<compile_context>
chip_gen: v5e
topology: v5e:2x2
jax: 0.10.0
libtpu: 0.0.40
codegen_flags: <defaults>
</compile_context>

<pallas_src>
import functools
import numpy as np
import jax
import jax.numpy as jnp
from jax.experimental import pallas as pl
from jax.experimental.pallas import tpu as pltpu

DIM = 16                    # small spatial size (original MNIST model uses 28)
N = DIM * DIM               # num_nodes
B = 2                       # batch size
DEG_SC = 4                  # degree_of_polynomial of SpectralConv -> 5 Laplacian powers
DEG_STAT = 9                # degree_of_polynomial of Statistic    -> 10 shifted powers
NUM_CLASSES = 3
POOL_SIZES = (200, 100, 50) # num_active_nodes of the three DynamicPool layers
F_STAT = 9                  # filters feeding the Statistic layer


# ----------------------------- Pallas kernels ------------------------------

def _spectral_conv_kernel(lpw_ref, x_ref, alpha_ref, beta_ref, mask_ref,
                          out_ref, score_ref, *, subtract_mean):
    # One grid step == one batch element.
    # lpw_ref   : (N, K*N)       wide operator [L^0 | L^1 | ... | L^{K-1}]  (L symmetric)
    # x_ref     : (1, Fin, N)    channel-first node features
    # alpha_ref : (K, Fout, Fin) spectral coefficients
    # beta_ref  : (Fout, 1)      per-output-filter bias
    # mask_ref  : (1, 1, N)      active-node mask
    # out_ref   : (1, Fout, N)   masked spectral conv output (lane-dense)
    # score_ref : (1, 1, N)      per-node pooling score (lane-dense)
    n = lpw_ref.shape[0]
    k_pow, fout, fin = alpha_ref.shape

    x = x_ref[0]                                            # (Fin, N)
    if subtract_mean:                                       # prepare_input folded here
        x = x - jnp.mean(x, axis=1, keepdims=True)
    m = mask_ref[0]                                         # (1, N)

    acc = None
    for k in range(k_pow):                                  # static unroll, K = 5
        # z_k = x @ L^k  (== (L^k x^T)^T since L^k symmetric); lane-aligned ref slice.
        zk = jnp.dot(x, lpw_ref[:, k * n:(k + 1) * n],
                     preferred_element_type=jnp.float32)    # (Fin, N)
        ak = alpha_ref[k]                                   # (Fout, Fin)
        if fin == 1:
            t = ak * zk                                     # outer product on the VPU
        else:
            t = jnp.dot(ak, zk, preferred_element_type=jnp.float32)   # (Fout, N)
        acc = t if acc is None else acc + t

    out = (acc + beta_ref[...]) * m                         # bias + active-node mask
    out_ref[0] = out

    # TODO(synk): exact DynamicPool node-scoring rule of the reference was not provided;
    # masked max-over-filters activation is used, inactive nodes -> -1e30.
    s = jnp.max(out, axis=0, keepdims=True)                 # (1, N) sublane reduce
    score_ref[0] = jnp.where(m > 0.0, s, jnp.float32(-1e30))


def _stat_fc_kernel(lspw_ref, x_ref, mask_ref, w1a_ref, w1s_ref, b1_ref,
                    w2_ref, b2_ref, w3_ref, b3_ref, w4_ref, b4_ref, out_ref):
    # One grid step == one batch element.
    # lspw_ref : (N, P*N)    wide operator [Ls^0 | ... | Ls^{P-1}]  (Ls symmetric)
    # x_ref    : (1, F, N)   spectral_conv3 output
    # mask_ref : (1, 1, N)   mask3
    # w1a_ref  : (P, F, H1)  FC1 rows matching the "sum |z|"  statistics
    # w1s_ref  : (P, F, H1)  FC1 rows matching the "sum z^2"  statistics
    # out_ref  : (1, 1, C)
    n = lspw_ref.shape[0]
    p_pow, nf, h1 = w1a_ref.shape

    xm = x_ref[0] * mask_ref[0]                             # (F, N), apply mask3

    # Statistic + FC1 fused: the FC1 contraction is accumulated per Laplacian degree so
    # neither the (F, P*N) response nor the (1, 180) statistic vector is materialized.
    h_acc = jnp.zeros((nf, h1), jnp.float32)
    for p in range(p_pow):                                  # static unroll, P = 10
        zp = jnp.dot(xm, lspw_ref[:, p * n:(p + 1) * n],
                     preferred_element_type=jnp.float32)    # (F, N)
        # TODO(synk): original Statistic layer source not provided; first/second order
        # statistics implemented as sum(|z|) and sum(z^2) over nodes per filter/degree.
        sa = jnp.sum(jnp.abs(zp), axis=1, keepdims=True)    # (F, 1) lane reduce (XLU)
        ss = jnp.sum(zp * zp, axis=1, keepdims=True)        # (F, 1)
        h_acc = h_acc + sa * w1a_ref[p] + ss * w1s_ref[p]   # (F, H1) VPU

    h = jnp.sum(h_acc, axis=0, keepdims=True) + b1_ref[...] # (1, H1) sublane reduce
    h = jnp.maximum(h, 0.0)
    h = jnp.maximum(jnp.dot(h, w2_ref[...], preferred_element_type=jnp.float32)
                    + b2_ref[...], 0.0)
    h = jnp.maximum(jnp.dot(h, w3_ref[...], preferred_element_type=jnp.float32)
                    + b3_ref[...], 0.0)
    out_ref[0] = jnp.dot(h, w4_ref[...], preferred_element_type=jnp.float32) + b4_ref[...]


# ----------------------------- wrappers ------------------------------------

def spectral_conv(lpw, x, alpha_t, beta_col, mask, *, subtract_mean=False):
    """x: (B, Fin, N); alpha_t: (K, Fout, Fin); beta_col: (Fout, 1); mask: (B, 1, N).
    Returns (out (B, Fout, N), score (B, 1, N))."""
    nb, fin, n = x.shape
    k_pow, fout, _ = alpha_t.shape
    kernel = functools.partial(_spectral_conv_kernel, subtract_mean=subtract_mean)
    return pl.pallas_call(
        kernel,
        grid=(nb,),
        in_specs=[
            pl.BlockSpec((n, k_pow * n), lambda b: (0, 0)),         # resident operator
            pl.BlockSpec((1, fin, n), lambda b: (b, 0, 0)),
            pl.BlockSpec((k_pow, fout, fin), lambda b: (0, 0, 0)),
            pl.BlockSpec((fout, 1), lambda b: (0, 0)),
            pl.BlockSpec((1, 1, n), lambda b: (b, 0, 0)),
        ],
        out_specs=(
            pl.BlockSpec((1, fout, n), lambda b: (b, 0, 0)),
            pl.BlockSpec((1, 1, n), lambda b: (b, 0, 0)),
        ),
        out_shape=(jax.ShapeDtypeStruct((nb, fout, n), jnp.float32),
                   jax.ShapeDtypeStruct((nb, 1, n), jnp.float32)),
        compiler_params=pltpu.CompilerParams(dimension_semantics=("parallel",)),
    )(lpw, x, alpha_t, beta_col, mask)


def dynamic_pool_mask(score, num_active):
    """Top-k node selection as a threshold compare (no scatter); data-dependent, in JAX.
    Note: exact ties at the k-th score could select extra nodes (measure-zero for floats)."""
    vals = jax.lax.top_k(score, num_active)[0]              # (B, 1, k)
    kth = vals[..., num_active - 1:num_active]              # (B, 1, 1)
    return (score >= kth).astype(jnp.float32)               # (B, 1, N)


def statistic_fc(lspw, x, mask, fc):
    """Fused Statistic + fully-connected head.  x: (B, F, N); mask: (B, 1, N)."""
    w1a, w1s, b1, w2, b2, w3, b3, w4, b4 = fc
    nb, nf, n = x.shape
    p_pow = w1a.shape[0]
    ncls = w4.shape[1]

    def full(a):                       # whole array resident every grid step
        return pl.BlockSpec(a.shape, lambda b, nd=a.ndim: (0,) * nd)

    out = pl.pallas_call(
        _stat_fc_kernel,
        grid=(nb,),
        in_specs=[
            pl.BlockSpec((n, p_pow * n), lambda b: (0, 0)),
            pl.BlockSpec((1, nf, n), lambda b: (b, 0, 0)),
            pl.BlockSpec((1, 1, n), lambda b: (b, 0, 0)),
            full(w1a), full(w1s), full(b1), full(w2), full(b2),
            full(w3), full(b3), full(w4), full(b4),
        ],
        out_specs=pl.BlockSpec((1, 1, ncls), lambda b: (b, 0, 0)),
        out_shape=jax.ShapeDtypeStruct((nb, 1, ncls), jnp.float32),
        compiler_params=pltpu.CompilerParams(dimension_semantics=("parallel",)),
    )(lspw, x, mask, w1a, w1s, b1, w2, b2, w3, b3, w4, b4)
    return out.reshape(nb, ncls)


def forward(x_img, prep):
    nb = x_img.shape[0]
    x = x_img.reshape(nb, 1, N).astype(jnp.float32)         # mean removal done in-kernel
    lpw = prep["lpw"]

    sc1, score1 = spectral_conv(lpw, x, prep["alpha1"], prep["beta1"],
                                prep["mask0"], subtract_mean=True)
    mask1 = dynamic_pool_mask(score1, POOL_SIZES[0])
    sc2, score2 = spectral_conv(lpw, sc1, prep["alpha2"], prep["beta2"], mask1)
    mask2 = dynamic_pool_mask(score2, POOL_SIZES[1])
    sc3, score3 = spectral_conv(lpw, sc2, prep["alpha3"], prep["beta3"], mask2)
    mask3 = dynamic_pool_mask(score3, POOL_SIZES[2])

    return statistic_fc(prep["lspw"], sc3, mask3, prep["fc"])   # (B, 3)


# ----------------------------- setup (constants / params) ------------------

def build_graph_constants(dim):
    n = dim * dim
    adj = np.zeros((n, n), np.float64)
    for r in range(dim):
        for c in range(dim):
            i = r * dim + c
            for dr, dc in ((0, 1), (1, 0), (0, -1), (-1, 0)):
                rr, cc = r + dr, c + dc
                if 0 <= rr < dim and 0 <= cc < dim:
                    adj[i, rr * dim + cc] = 1.0
    deg = adj.sum(1)
    dinv = 1.0 / np.sqrt(np.maximum(deg, 1e-12))
    lap = np.eye(n) - dinv[:, None] * adj * dinv[None, :]   # normalized Laplacian (symmetric)
    lap_shift = lap - np.eye(n)                             # shifted Laplacian (symmetric)

    def wide_powers(m, kmax):
        mats = [np.eye(n)]
        for _ in range(kmax):
            mats.append(mats[-1] @ m)
        return np.concatenate(mats, axis=1).astype(np.float32)   # (n, (kmax+1)*n)

    lpw = wide_powers(lap, DEG_SC)                          # (N, 5*N)
    lspw = wide_powers(lap_shift, DEG_STAT)                 # (N, 10*N)
    return jnp.asarray(lpw), jnp.asarray(lspw)


def init_params(key):
    ks = jax.random.split(key, 10)
    p = {
        # init_weights_default: uniform [0, 1] for spectral conv alpha / beta
        "alpha1": jax.random.uniform(ks[0], (3, (DEG_SC + 1) * 1), jnp.float32),
        "beta1": jax.random.uniform(ks[1], (1, 3), jnp.float32),
        "alpha2": jax.random.uniform(ks[2], (6, (DEG_SC + 1) * 3), jnp.float32),
        "beta2": jax.random.uniform(ks[3], (1, 6), jnp.float32),
        "alpha3": jax.random.uniform(ks[4], (9, (DEG_SC + 1) * 6), jnp.float32),
        "beta3": jax.random.uniform(ks[5], (1, 9), jnp.float32),
    }

    def linear(k, fin, fout):
        kw, kb = jax.random.split(k)
        lim = 1.0 / np.sqrt(fin)
        w = jax.random.uniform(kw, (fin, fout), jnp.float32, -lim, lim)
        bias = jax.random.uniform(kb, (1, fout), jnp.float32, -lim, lim)
        return w, bias

    p["fc"] = (linear(ks[6], 2 * (DEG_STAT + 1) * F_STAT, 100), linear(ks[7], 100, 80),
               linear(ks[8], 80, 60), linear(ks[9], 60, NUM_CLASSES))
    return p


def prepare_params(params, lpw, lspw):
    """One-time (outside jit) rearrangement of all parameters into kernel layouts."""
    k_pow = DEG_SC + 1

    def conv_prep(alpha, beta):
        fout, kfin = alpha.shape
        fin = kfin // k_pow
        alpha_t = jnp.transpose(alpha.reshape(fout, k_pow, fin), (1, 0, 2))  # (K, Fout, Fin)
        beta_col = beta.reshape(fout, 1)                                      # (Fout, 1)
        return alpha_t, beta_col

    a1, b1 = conv_prep(params["alpha1"], params["beta1"])
    a2, b2 = conv_prep(params["alpha2"], params["beta2"])
    a3, b3 = conv_prep(params["alpha3"], params["beta3"])

    (w1, fb1), (w2, fb2), (w3, fb3), (w4, fb4) = params["fc"]
    p_pow = DEG_STAT + 1
    # TODO(synk): reference statistic feature ordering assumed [degree][abs|sq][filter];
    # W1 rows are rearranged once here into the degree-accumulated in-kernel layout.
    w1r = w1.reshape(p_pow, 2, F_STAT, w1.shape[1])
    fc = (w1r[:, 0], w1r[:, 1], fb1, w2, fb2, w3, fb3, w4, fb4)

    return {
        "lpw": lpw, "lspw": lspw,
        "alpha1": a1, "beta1": b1,
        "alpha2": a2, "beta2": b2,
        "alpha3": a3, "beta3": b3,
        "fc": fc,
        "mask0": jnp.ones((B, 1, N), jnp.float32),
    }


if __name__ == "__main__":
    key = jax.random.PRNGKey(0)
    kx, kp = jax.random.split(key)
    x = jax.random.uniform(kx, (B, DIM, DIM), jnp.float32)   # MNIST-like image batch
    params = init_params(kp)
    lpw, lspw = build_graph_constants(DIM)
    prep = prepare_params(params, lpw, lspw)                 # hoisted out of the jit path

    fwd = jax.jit(forward)
    out = fwd(x, prep)
    jax.block_until_ready(out)
    assert out.shape == (B, NUM_CLASSES) and out.dtype == jnp.float32
    print("KERNEL_OK")
</pallas_src>

<mosaic_0001>
module attributes {stable_mosaic.version = 11 : i64} {
  func.func @_spectral_conv_kernel(%arg0: i32, %arg1: memref<256x1280xf32, #tpu.memory_space<vmem>>, %arg2: memref<1x1x256xf32, #tpu.memory_space<vmem>>, %arg3: memref<5x3x1xf32, #tpu.memory_space<vmem>>, %arg4: memref<3x1xf32, #tpu.memory_space<vmem>>, %arg5: memref<1x1x256xf32, #tpu.memory_space<vmem>>, %arg6: memref<1x3x256xf32, #tpu.memory_space<vmem>>, %arg7: memref<1x1x256xf32, #tpu.memory_space<vmem>>) attributes {dimension_semantics = [#tpu.dimension_semantics<parallel>], iteration_bounds = array<i64: 2>, scalar_prefetch = 0 : i64, scratch_operands = 0 : i64, tpu.core_type = #tpu.core_type<tc>, window_params = [{pipeline_mode = #tpu.pipeline_mode<synchronous>, transform_indices = @transform_0, window_bounds = array<i64: 256, 1280>}, {transform_indices = @transform_1, window_bounds = array<i64: 1, 1, 256>}, {pipeline_mode = #tpu.pipeline_mode<synchronous>, transform_indices = @transform_2, window_bounds = array<i64: 5, 3, 1>}, {pipeline_mode = #tpu.pipeline_mode<synchronous>, transform_indices = @transform_3, window_bounds = array<i64: 3, 1>}, {transform_indices = @transform_4, window_bounds = array<i64: 1, 1, 256>}, {transform_indices = @transform_5, window_bounds = array<i64: 1, 3, 256>}, {transform_indices = @transform_6, window_bounds = array<i64: 1, 1, 256>}]} {
    %c0 = arith.constant 0 : index
    %c0_0 = arith.constant 0 : index
    %c0_1 = arith.constant 0 : index
    %0 = vector.load %arg2[%c0, %c0_0, %c0_1] : memref<1x1x256xf32, #tpu.memory_space<vmem>>, vector<1x1x256xf32>
    %1 = vector.shape_cast %0 : vector<1x1x256xf32> to vector<1x256xf32>
    %cst = arith.constant dense<0.000000e+00> : vector<1xf32>
    %2 = vector.multi_reduction <add>, %1, %cst [1] : vector<1x256xf32> to vector<1xf32>
    %3 = vector.shape_cast %2 : vector<1xf32> to vector<1x1xf32>
    %cst_2 = arith.constant 2.560000e+02 : f32
    %4 = vector.broadcast %cst_2 : f32 to vector<1x1xf32>
    %5 = arith.divf %3, %4 : vector<1x1xf32>
    %6 = vector.broadcast %5 : vector<1x1xf32> to vector<1x256xf32>
    %7 = arith.subf %1, %6 : vector<1x256xf32>
    %c0_3 = arith.constant 0 : index
    %c0_4 = arith.constant 0 : index
    %c0_5 = arith.constant 0 : index
    %8 = vector.load %arg5[%c0_3, %c0_4, %c0_5] : memref<1x1x256xf32, #tpu.memory_space<vmem>>, vector<1x1x256xf32>
    %9 = vector.shape_cast %8 : vector<1x1x256xf32> to vector<1x256xf32>
    %c0_6 = arith.constant 0 : index
    %c0_7 = arith.constant 0 : index
    %10 = vector.load %arg1[%c0_6, %c0_7] : memref<256x1280xf32, #tpu.memory_space<vmem>>, vector<256x256xf32>
    %cst_8 = arith.constant dense<0.000000e+00> : vector<1x256xf32>
    %11 = tpu.matmul %7, %10, %cst_8 {dimension_numbers = #tpu.dot_dimension_numbers<[1], [0], [0], [1], [0, 0, 1, 1], [], []>} : vector<1x256xf32>, vector<256x256xf32>, vector<1x256xf32> -> vector<1x256xf32>
    %c0_9 = arith.constant 0 : index
    %c0_10 = arith.constant 0 : index
    %c0_11 = arith.constant 0 : index
    %12 = vector.load %arg3[%c0_9, %c0_10, %c0_11] : memref<5x3x1xf32, #tpu.memory_space<vmem>>, vector<1x3x1xf32>
    %13 = vector.shape_cast %12 : vector<1x3x1xf32> to vector<3x1xf32>
    %14 = vector.broadcast %13 : vector<3x1xf32> to vector<3x256xf32>
    %15 = vector.broadcast %11 : vector<1x256xf32> to vector<3x256xf32>
    %16 = arith.mulf %14, %15 : vector<3x256xf32>
    %c0_12 = arith.constant 0 : index
    %c256 = arith.constant 256 : index
    %17 = vector.load %arg1[%c0_12, %c256] : memref<256x1280xf32, #tpu.memory_space<vmem>>, vector<256x256xf32>
    %cst_13 = arith.constant dense<0.000000e+00> : vector<1x256xf32>
    %18 = tpu.matmul %7, %17, %cst_13 {dimension_numbers = #tpu.dot_dimension_numbers<[1], [0], [0], [1], [0, 0, 1, 1], [], []>} : vector<1x256xf32>, vector<256x256xf32>, vector<1x256xf32> -> vector<1x256xf32>
    %c1 = arith.constant 1 : index
    %c0_14 = arith.constant 0 : index
    %c0_15 = arith.constant 0 : index
    %19 = vector.load %arg3[%c1, %c0_14, %c0_15] : memref<5x3x1xf32, #tpu.memory_space<vmem>>, vector<1x3x1xf32>
    %20 = vector.shape_cast %19 : vector<1x3x1xf32> to vector<3x1xf32>
    %21 = vector.broadcast %20 : vector<3x1xf32> to vector<3x256xf32>
    %22 = vector.broadcast %18 : vector<1x256xf32> to vector<3x256xf32>
    %23 = arith.mulf %21, %22 : vector<3x256xf32>
    %24 = arith.addf %16, %23 : vector<3x256xf32>
    %c0_16 = arith.constant 0 : index
    %c512 = arith.constant 512 : index
    %25 = vector.load %arg1[%c0_16, %c512] : memref<256x1280xf32, #tpu.memory_space<vmem>>, vector<256x256xf32>
    %cst_17 = arith.constant dense<0.000000e+00> : vector<1x256xf32>
    %26 = tpu.matmul %7, %25, %cst_17 {dimension_numbers = #tpu.dot_dimension_numbers<[1], [0], [0], [1], [0, 0, 1, 1], [], []>} : vector<1x256xf32>, vector<256x256xf32>, vector<1x256xf32> -> vector<1x256xf32>
    %c2 = arith.constant 2 : index
    %c0_18 = arith.constant 0 : index
    %c0_19 = arith.constant 0 : index
    %27 = vector.load %arg3[%c2, %c0_18, %c0_19] : memref<5x3x1xf32, #tpu.memory_space<vmem>>, vector<1x3x1xf32>
    %28 = vector.shape_cast %27 : vector<1x3x1xf32> to vector<3x1xf32>
    %29 = vector.broadcast %28 : vector<3x1xf32> to vector<3x256xf32>
    %30 = vector.broadcast %26 : vector<1x256xf32> to vector<3x256xf32>
    %31 = arith.mulf %29, %30 : vector<3x256xf32>
    %32 = arith.addf %24, %31 : vector<3x256xf32>
    %c0_20 = arith.constant 0 : index
    %c768 = arith.constant 768 : index
    %33 = vector.load %arg1[%c0_20, %c768] : memref<256x1280xf32, #tpu.memory_space<vmem>>, vector<256x256xf32>
    %cst_21 = arith.constant dense<0.000000e+00> : vector<1x256xf32>
    %34 = tpu.matmul %7, %33, %cst_21 {dimension_numbers = #tpu.dot_dimension_numbers<[1], [0], [0], [1], [0, 0, 1, 1], [], []>} : vector<1x256xf32>, vector<256x256xf32>, vector<1x256xf32> -> vector<1x256xf32>
    %c3 = arith.constant 3 : index
    %c0_22 = arith.constant 0 : index
    %c0_23 = arith.constant 0 : index
    %35 = vector.load %arg3[%c3, %c0_22, %c0_23] : memref<5x3x1xf32, #tpu.memory_space<vmem>>, vector<1x3x1xf32>
    %36 = vector.shape_cast %35 : vector<1x3x1xf32> to vector<3x1xf32>
    %37 = vector.broadcast %36 : vector<3x1xf32> to vector<3x256xf32>
    %38 = vector.broadcast %34 : vector<1x256xf32> to vector<3x256xf32>
    %39 = arith.mulf %37, %38 : vector<3x256xf32>
    %40 = arith.addf %32, %39 : vector<3x256xf32>
    %c0_24 = arith.constant 0 : index
    %c1024 = arith.constant 1024 : index
    %41 = vector.load %arg1[%c0_24, %c1024] : memref<256x1280xf32, #tpu.memory_space<vmem>>, vector<256x256xf32>
    %cst_25 = arith.constant dense<0.000000e+00> : vector<1x256xf32>
    %42 = tpu.matmul %7, %41, %cst_25 {dimension_numbers = #tpu.dot_dimension_numbers<[1], [0], [0], [1], [0, 0, 1, 1], [], []>} : vector<1x256xf32>, vector<256x256xf32>, vector<1x256xf32> -> vector<1x256xf32>
    %c4 = arith.constant 4 : index
    %c0_26 = arith.constant 0 : index
    %c0_27 = arith.constant 0 : index
    %43 = vector.load %arg3[%c4, %c0_26, %c0_27] : memref<5x3x1xf32, #tpu.memory_space<vmem>>, vector<1x3x1xf32>
    %44 = vector.shape_cast %43 : vector<1x3x1xf32> to vector<3x1xf32>
    %45 = vector.broadcast %44 : vector<3x1xf32> to vector<3x256xf32>
    %46 = vector.broadcast %42 : vector<1x256xf32> to vector<3x256xf32>
    %47 = arith.mulf %45, %46 : vector<3x256xf32>
    %48 = arith.addf %40, %47 : vector<3x256xf32>
    %c0_28 = arith.constant 0 : index
    %c0_29 = arith.constant 0 : index
    %49 = vector.load %arg4[%c0_28, %c0_29] : memref<3x1xf32, #tpu.memory_space<vmem>>, vector<3x1xf32>
    %50 = vector.broadcast %49 : vector<3x1xf32> to vector<3x256xf32>
    %51 = arith.addf %48, %50 : vector<3x256xf32>
    %52 = vector.broadcast %9 : vector<1x256xf32> to vector<3x256xf32>
    %53 = arith.mulf %51, %52 : vector<3x256xf32>
    %c0_30 = arith.constant 0 : index
    %c0_31 = arith.constant 0 : index
    %c0_32 = arith.constant 0 : index
    %54 = vector.load %arg6[%c0_30, %c0_31, %c0_32] : memref<1x3x256xf32, #tpu.memory_space<vmem>>, vector<1x3x256xf32>
    %55 = vector.shape_cast %54 : vector<1x3x256xf32> to vector<3x256xf32>
    %56 = vector.shape_cast %53 : vector<3x256xf32> to vector<1x3x256xf32>
    tpu.vector_store %arg6[%c0_30, %c0_31, %c0_32], %56 {strides = array<i32>} : memref<1x3x256xf32, #tpu.memory_space<vmem>>, vector<1x3x256xf32>,
    %cst_33 = arith.constant dense<0xFF800000> : vector<256xf32>
    %57 = vector.multi_reduction <maximumf>, %53, %cst_33 [0] : vector<3x256xf32> to vector<256xf32>
    %58 = vector.shape_cast %57 : vector<256xf32> to vector<1x256xf32>
    %cst_34 = arith.constant 0.000000e+00 : f32
    %59 = vector.broadcast %cst_34 : f32 to vector<1x256xf32>
    %60 = arith.cmpf ogt, %9, %59 : vector<1x256xf32>
    %cst_35 = arith.constant -1.000000e+30 : f32
    %61 = vector.broadcast %cst_35 : f32 to vector<1x256xf32>
    %62 = arith.select %60, %58, %61 : vector<1x256xi1>, vector<1x256xf32>
    %c0_36 = arith.constant 0 : index
    %c0_37 = arith.constant 0 : index
    %c0_38 = arith.constant 0 : index
    %63 = vector.load %arg7[%c0_36, %c0_37, %c0_38] : memref<1x1x256xf32, #tpu.memory_space<vmem>>, vector<1x1x256xf32>
    %64 = vector.shape_cast %63 : vector<1x1x256xf32> to vector<1x256xf32>
    %65 = vector.shape_cast %62 : vector<1x256xf32> to vector<1x1x256xf32>
    tpu.vector_store %arg7[%c0_36, %c0_37, %c0_38], %65 {strides = array<i32>} : memref<1x1x256xf32, #tpu.memory_space<vmem>>, vector<1x1x256xf32>,
    return
  }
  func.func @transform_0(%arg0: i32) -> (i32, i32) {
    %c0_i32 = arith.constant 0 : i32
    %c0_i32_0 = arith.constant 0 : i32
    %c0_i32_1 = arith.constant 0 : i32
    return %c0_i32, %c0_i32_0 : i32, i32
  }
  func.func @transform_1(%arg0: i32) -> (i32, i32, i32) {
    %c0_i32 = arith.constant 0 : i32
    %c0_i32_0 = arith.constant 0 : i32
    %c0_i32_1 = arith.constant 0 : i32
    return %arg0, %c0_i32, %c0_i32_0 : i32, i32, i32
  }
  func.func @transform_2(%arg0: i32) -> (i32, i32, i32) {
    %c0_i32 = arith.constant 0 : i32
    %c0_i32_0 = arith.constant 0 : i32
    %c0_i32_1 = arith.constant 0 : i32
    %c0_i32_2 = arith.constant 0 : i32
    return %c0_i32, %c0_i32_0, %c0_i32_1 : i32, i32, i32
  }
  func.func @transform_3(%arg0: i32) -> (i32, i32) {
    %c0_i32 = arith.constant 0 : i32
    %c0_i32_0 = arith.constant 0 : i32
    %c0_i32_1 = arith.constant 0 : i32
    return %c0_i32, %c0_i32_0 : i32, i32
  }
  func.func @transform_4(%arg0: i32) -> (i32, i32, i32) {
    %c0_i32 = arith.constant 0 : i32
    %c0_i32_0 = arith.constant 0 : i32
    %c0_i32_1 = arith.constant 0 : i32
    return %arg0, %c0_i32, %c0_i32_0 : i32, i32, i32
  }
  func.func @transform_5(%arg0: i32) -> (i32, i32, i32) {
    %c0_i32 = arith.constant 0 : i32
    %c0_i32_0 = arith.constant 0 : i32
    %c0_i32_1 = arith.constant 0 : i32
    return %arg0, %c0_i32, %c0_i32_0 : i32, i32, i32
  }
  func.func @transform_6(%arg0: i32) -> (i32, i32, i32) {
    %c0_i32 = arith.constant 0 : i32
    %c0_i32_0 = arith.constant 0 : i32
    %c0_i32_1 = arith.constant 0 : i32
    return %arg0, %c0_i32, %c0_i32_0 : i32, i32, i32
  }
}

module attributes {stable_mosaic.version = 11 : i64} {
  func.func @_spectral_conv_kernel(%arg0: i32, %arg1: memref<256x1280xf32, #tpu.memory_space<vmem>>, %arg2: memref<1x3x256xf32, #tpu.memory_space<vmem>>, %arg3: memref<5x6x3xf32, #tpu.memory_space<vmem>>, %arg4: memref<6x1xf32, #tpu.memory_space<vmem>>, %arg5: memref<1x1x256xf32, #tpu.memory_space<vmem>>, %arg6: memref<1x6x256xf32, #tpu.memory_space<vmem>>, %arg7: memref<1x1x256xf32, #tpu.memory_space<vmem>>) attributes {dimension_semantics = [#tpu.dimension_semantics<parallel>], iteration_bounds = array<i64: 2>, scalar_prefetch = 0 : i64, scratch_operands = 0 : i64, tpu.core_type = #tpu.core_type<tc>, window_params = [{pipeline_mode = #tpu.pipeline_mode<synchronous>, transform_indices = @transform_0, window_bounds = array<i64: 256, 1280>}, {transform_indices = @transform_1, window_bounds = array<i64: 1, 3, 256>}, {pipeline_mode = #tpu.pipeline_mode<synchronous>, transform_indices = @transform_2, window_bounds = array<i64: 5, 6, 3>}, {pipeline_mode = #tpu.pipeline_mode<synchronous>, transform_indices = @transform_3, window_bounds = array<i64: 6, 1>}, {transform_indices = @transform_4, window_bounds = array<i64: 1, 1, 256>}, {transform_indices = @transform_5, window_bounds = array<i64: 1, 6, 256>}, {transform_indices = @transform_6, window_bounds = array<i64: 1, 1, 256>}]} {
    %c0 = arith.constant 0 : index
    %c0_0 = arith.constant 0 : index
    %c0_1 = arith.constant 0 : index
    %0 = vector.load %arg2[%c0, %c0_0, %c0_1] : memref<1x3x256xf32, #tpu.memory_space<vmem>>, vector<1x3x256xf32>
    %1 = vector.shape_cast %0 : vector<1x3x256xf32> to vector<3x256xf32>
    %c0_2 = arith.constant 0 : index
    %c0_3 = arith.constant 0 : index
    %c0_4 = arith.constant 0 : index
    %2 = vector.load %arg5[%c0_2, %c0_3, %c0_4] : memref<1x1x256xf32, #tpu.memory_space<vmem>>, vector<1x1x256xf32>
    %3 = vector.shape_cast %2 : vector<1x1x256xf32> to vector<1x256xf32>
    %c0_5 = arith.constant 0 : index
    %c0_6 = arith.constant 0 : index
    %4 = vector.load %arg1[%c0_5, %c0_6] : memref<256x1280xf32, #tpu.memory_space<vmem>>, vector<256x256xf32>
    %cst = arith.constant dense<0.000000e+00> : vector<3x256xf32>
    %5 = tpu.matmul %1, %4, %cst {dimension_numbers = #tpu.dot_dimension_numbers<[1], [0], [0], [1], [0, 0, 1, 1], [], []>} : vector<3x256xf32>, vector<256x256xf32>, vector<3x256xf32> -> vector<3x256xf32>
    %c0_7 = arith.constant 0 : index
    %c0_8 = arith.constant 0 : index
    %c0_9 = arith.constant 0 : index
    %6 = vector.load %arg3[%c0_7, %c0_8, %c0_9] : memref<5x6x3xf32, #tpu.memory_space<vmem>>, vector<1x6x3xf32>
    %7 = vector.shape_cast %6 : vector<1x6x3xf32> to vector<6x3xf32>
    %cst_10 = arith.constant dense<0.000000e+00> : vector<6x256xf32>
    %8 = tpu.matmul %7, %5, %cst_10 {dimension_numbers = #tpu.dot_dimension_numbers<[1], [0], [0], [1], [0, 0, 1, 1], [], []>} : vector<6x3xf32>, vector<3x256xf32>, vector<6x256xf32> -> vector<6x256xf32>
    %c0_11 = arith.constant 0 : index
    %c256 = arith.constant 256 : index
    %9 = vector.load %arg1[%c0_11, %c256] : memref<256x1280xf32, #tpu.memory_space<vmem>>, vector<256x256xf32>
    %cst_12 = arith.constant dense<0.000000e+00> : vector<3x256xf32>
    %10 = tpu.matmul %1, %9, %cst_12 {dimension_numbers = #tpu.dot_dimension_numbers<[1], [0], [0], [1], [0, 0, 1, 1], [], []>} : vector<3x256xf32>, vector<256x256xf32>, vector<3x256xf32> -> vector<3x256xf32>
    %c1 = arith.constant 1 : index
    %c0_13 = arith.constant 0 : index
    %c0_14 = arith.constant 0 : index
    %11 = vector.load %arg3[%c1, %c0_13, %c0_14] : memref<5x6x3xf32, #tpu.memory_space<vmem>>, vector<1x6x3xf32>
    %12 = vector.shape_cast %11 : vector<1x6x3xf32> to vector<6x3xf32>
    %cst_15 = arith.constant dense<0.000000e+00> : vector<6x256xf32>
    %13 = tpu.matmul %12, %10, %cst_15 {dimension_numbers = #tpu.dot_dimension_numbers<[1], [0], [0], [1], [0, 0, 1, 1], [], []>} : vector<6x3xf32>, vector<3x256xf32>, vector<6x256xf32> -> vector<6x256xf32>
    %14 = arith.addf %8, %13 : vector<6x256xf32>
    %c0_16 = arith.constant 0 : index
    %c512 = arith.constant 512 : index
    %15 = vector.load %arg1[%c0_16, %c512] : memref<256x1280xf32, #tpu.memory_space<vmem>>, vector<256x256xf32>
    %cst_17 = arith.constant dense<0.000000e+00> : vector<3x256xf32>
    %16 = tpu.matmul %1, %15, %cst_17 {dimension_numbers = #tpu.dot_dimension_numbers<[1], [0], [0], [1], [0, 0, 1, 1], [], []>} : vector<3x256xf32>, vector<256x256xf32>, vector<3x256xf32> -> vector<3x256xf32>
    %c2 = arith.constant 2 : index
    %c0_18 = arith.constant 0 : index
    %c0_19 = arith.constant 0 : index
    %17 = vector.load %arg3[%c2, %c0_18, %c0_19] : memref<5x6x3xf32, #tpu.memory_space<vmem>>, vector<1x6x3xf32>
    %18 = vector.shape_cast %17 : vector<1x6x3xf32> to vector<6x3xf32>
    %cst_20 = arith.constant dense<0.000000e+00> : vector<6x256xf32>
    %19 = tpu.matmul %18, %16, %cst_20 {dimension_numbers = #tpu.dot_dimension_numbers<[1], [0], [0], [1], [0, 0, 1, 1], [], []>} : vector<6x3xf32>, vector<3x256xf32>, vector<6x256xf32> -> vector<6x256xf32>
    %20 = arith.addf %14, %19 : vector<6x256xf32>
    %c0_21 = arith.constant 0 : index
    %c768 = arith.constant 768 : index
    %21 = vector.load %arg1[%c0_21, %c768] : memref<256x1280xf32, #tpu.memory_space<vmem>>, vector<256x256xf32>
    %cst_22 = arith.constant dense<0.000000e+00> : vector<3x256xf32>
    %22 = tpu.matmul %1, %21, %cst_22 {dimension_numbers = #tpu.dot_dimension_numbers<[1], [0], [0], [1], [0, 0, 1, 1], [], []>} : vector<3x256xf32>, vector<256x256xf32>, vector<3x256xf32> -> vector<3x256xf32>
    %c3 = arith.constant 3 : index
    %c0_23 = arith.constant 0 : index
    %c0_24 = arith.constant 0 : index
    %23 = vector.load %arg3[%c3, %c0_23, %c0_24] : memref<5x6x3xf32, #tpu.memory_space<vmem>>, vector<1x6x3xf32>
    %24 = vector.shape_cast %23 : vector<1x6x3xf32> to vector<6x3xf32>
    %cst_25 = arith.constant dense<0.000000e+00> : vector<6x256xf32>
    %25 = tpu.matmul %24, %22, %cst_25 {dimension_numbers = #tpu.dot_dimension_numbers<[1], [0], [0], [1], [0, 0, 1, 1], [], []>} : vector<6x3xf32>, vector<3x256xf32>, vector<6x256xf32> -> vector<6x256xf32>
    %26 = arith.addf %20, %25 : vector<6x256xf32>
    %c0_26 = arith.constant 0 : index
    %c1024 = arith.constant 1024 : index
    %27 = vector.load %arg1[%c0_26, %c1024] : memref<256x1280xf32, #tpu.memory_space<vmem>>, vector<256x256xf32>
    %cst_27 = arith.constant dense<0.000000e+00> : vector<3x256xf32>
    %28 = tpu.matmul %1, %27, %cst_27 {dimension_numbers = #tpu.dot_dimension_numbers<[1], [0], [0], [1], [0, 0, 1, 1], [], []>} : vector<3x256xf32>, vector<256x256xf32>, vector<3x256xf32> -> vector<3x256xf32>
    %c4 = arith.constant 4 : index
    %c0_28 = arith.constant 0 : index
    %c0_29 = arith.constant 0 : index
    %29 = vector.load %arg3[%c4, %c0_28, %c0_29] : memref<5x6x3xf32, #tpu.memory_space<vmem>>, vector<1x6x3xf32>
    %30 = vector.shape_cast %29 : vector<1x6x3xf32> to vector<6x3xf32>
    %cst_30 = arith.constant dense<0.000000e+00> : vector<6x256xf32>
    %31 = tpu.matmul %30, %28, %cst_30 {dimension_numbers = #tpu.dot_dimension_numbers<[1], [0], [0], [1], [0, 0, 1, 1], [], []>} : vector<6x3xf32>, vector<3x256xf32>, vector<6x256xf32> -> vector<6x256xf32>
    %32 = arith.addf %26, %31 : vector<6x256xf32>
    %c0_31 = arith.constant 0 : index
    %c0_32 = arith.constant 0 : index
    %33 = vector.load %arg4[%c0_31, %c0_32] : memref<6x1xf32, #tpu.memory_space<vmem>>, vector<6x1xf32>
    %34 = vector.broadcast %33 : vector<6x1xf32> to vector<6x256xf32>
    %35 = arith.addf %32, %34 : vector<6x256xf32>
    %36 = vector.broadcast %3 : vector<1x256xf32> to vector<6x256xf32>
    %37 = arith.mulf %35, %36 : vector<6x256xf32>
    %c0_33 = arith.constant 0 : index
    %c0_34 = arith.constant 0 : index
    %c0_35 = arith.constant 0 : index
    %38 = vector.load %arg6[%c0_33, %c0_34, %c0_35] : memref<1x6x256xf32, #tpu.memory_space<vmem>>, vector<1x6x256xf32>
    %39 = vector.shape_cast %38 : vector<1x6x256xf32> to vector<6x256xf32>
    %40 = vector.shape_cast %37 : vector<6x256xf32> to vector<1x6x256xf32>
    tpu.vector_store %arg6[%c0_33, %c0_34, %c0_35], %40 {strides = array<i32>} : memref<1x6x256xf32, #tpu.memory_space<vmem>>, vector<1x6x256xf32>,
    %cst_36 = arith.constant dense<0xFF800000> : vector<256xf32>
    %41 = vector.multi_reduction <maximumf>, %37, %cst_36 [0] : vector<6x256xf32> to vector<256xf32>
    %42 = vector.shape_cast %41 : vector<256xf32> to vector<1x256xf32>
    %cst_37 = arith.constant 0.000000e+00 : f32
    %43 = vector.broadcast %cst_37 : f32 to vector<1x256xf32>
    %44 = arith.cmpf ogt, %3, %43 : vector<1x256xf32>
    %cst_38 = arith.constant -1.000000e+30 : f32
    %45 = vector.broadcast %cst_38 : f32 to vector<1x256xf32>
    %46 = arith.select %44, %42, %45 : vector<1x256xi1>, vector<1x256xf32>
    %c0_39 = arith.constant 0 : index
    %c0_40 = arith.constant 0 : index
    %c0_41 = arith.constant 0 : index
    %47 = vector.load %arg7[%c0_39, %c0_40, %c0_41] : memref<1x1x256xf32, #tpu.memory_space<vmem>>, vector<1x1x256xf32>
    %48 = vector.shape_cast %47 : vector<1x1x256xf32> to vector<1x256xf32>
    %49 = vector.shape_cast %46 : vector<1x256xf32> to vector<1x1x256xf32>
    tpu.vector_store %arg7[%c0_39, %c0_40, %c0_41], %49 {strides = array<i32>} : memref<1x1x256xf32, #tpu.memory_space<vmem>>, vector<1x1x256xf32>,
    return
  }
  func.func @transform_0(%arg0: i32) -> (i32, i32) {
    %c0_i32 = arith.constant 0 : i32
    %c0_i32_0 = arith.constant 0 : i32
    %c0_i32_1 = arith.constant 0 : i32
    return %c0_i32, %c0_i32_0 : i32, i32
  }
  func.func @transform_1(%arg0: i32) -> (i32, i32, i32) {
    %c0_i32 = arith.constant 0 : i32
    %c0_i32_0 = arith.constant 0 : i32
    %c0_i32_1 = arith.constant 0 : i32
    return %arg0, %c0_i32, %c0_i32_0 : i32, i32, i32
  }
  func.func @transform_2(%arg0: i32) -> (i32, i32, i32) {
    %c0_i32 = arith.constant 0 : i32
    %c0_i32_0 = arith.constant 0 : i32
    %c0_i32_1 = arith.constant 0 : i32
    %c0_i32_2 = arith.constant 0 : i32
    return %c0_i32, %c0_i32_0, %c0_i32_1 : i32, i32, i32
  }
  func.func @transform_3(%arg0: i32) -> (i32, i32) {
    %c0_i32 = arith.constant 0 : i32
    %c0_i32_0 = arith.constant 0 : i32
    %c0_i32_1 = arith.constant 0 : i32
    return %c0_i32, %c0_i32_0 : i32, i32
  }
  func.func @transform_4(%arg0: i32) -> (i32, i32, i32) {
    %c0_i32 = arith.constant 0 : i32
    %c0_i32_0 = arith.constant 0 : i32
    %c0_i32_1 = arith.constant 0 : i32
    return %arg0, %c0_i32, %c0_i32_0 : i32, i32, i32
  }
  func.func @transform_5(%arg0: i32) -> (i32, i32, i32) {
    %c0_i32 = arith.constant 0 : i32
    %c0_i32_0 = arith.constant 0 : i32
    %c0_i32_1 = arith.constant 0 : i32
    return %arg0, %c0_i32, %c0_i32_0 : i32, i32, i32
  }
  func.func @transform_6(%arg0: i32) -> (i32, i32, i32) {
    %c0_i32 = arith.constant 0 : i32
    %c0_i32_0 = arith.constant 0 : i32
    %c0_i32_1 = arith.constant 0 : i32
    return %arg0, %c0_i32, %c0_i32_0 : i32, i32, i32
  }
}

module attributes {stable_mosaic.version = 11 : i64} {
  func.func @_spectral_conv_kernel(%arg0: i32, %arg1: memref<256x1280xf32, #tpu.memory_space<vmem>>, %arg2: memref<1x6x256xf32, #tpu.memory_space<vmem>>, %arg3: memref<5x9x6xf32, #tpu.memory_space<vmem>>, %arg4: memref<9x1xf32, #tpu.memory_space<vmem>>, %arg5: memref<1x1x256xf32, #tpu.memory_space<vmem>>, %arg6: memref<1x9x256xf32, #tpu.memory_space<vmem>>, %arg7: memref<1x1x256xf32, #tpu.memory_space<vmem>>) attributes {dimension_semantics = [#tpu.dimension_semantics<parallel>], iteration_bounds = array<i64: 2>, scalar_prefetch = 0 : i64, scratch_operands = 0 : i64, tpu.core_type = #tpu.core_type<tc>, window_params = [{pipeline_mode = #tpu.pipeline_mode<synchronous>, transform_indices = @transform_0, window_bounds = array<i64: 256, 1280>}, {transform_indices = @transform_1, window_bounds = array<i64: 1, 6, 256>}, {pipeline_mode = #tpu.pipeline_mode<synchronous>, transform_indices = @transform_2, window_bounds = array<i64: 5, 9, 6>}, {pipeline_mode = #tpu.pipeline_mode<synchronous>, transform_indices = @transform_3, window_bounds = array<i64: 9, 1>}, {transform_indices = @transform_4, window_bounds = array<i64: 1, 1, 256>}, {transform_indices = @transform_5, window_bounds = array<i64: 1, 9, 256>}, {transform_indices = @transform_6, window_bounds = array<i64: 1, 1, 256>}]} {
    %c0 = arith.constant 0 : index
    %c0_0 = arith.constant 0 : index
    %c0_1 = arith.constant 0 : index
    %0 = vector.load %arg2[%c0, %c0_0, %c0_1] : memref<1x6x256xf32, #tpu.memory_space<vmem>>, vector<1x6x256xf32>
    %1 = vector.shape_cast %0 : vector<1x6x256xf32> to vector<6x256xf32>
    %c0_2 = arith.constant 0 : index
    %c0_3 = arith.constant 0 : index
    %c0_4 = arith.constant 0 : index
    %2 = vector.load %arg5[%c0_2, %c0_3, %c0_4] : memref<1x1x256xf32, #tpu.memory_space<vmem>>, vector<1x1x256xf32>
    %3 = vector.shape_cast %2 : vector<1x1x256xf32> to vector<1x256xf32>
    %c0_5 = arith.constant 0 : index
    %c0_6 = arith.constant 0 : index
    %4 = vector.load %arg1[%c0_5, %c0_6] : memref<256x1280xf32, #tpu.memory_space<vmem>>, vector<256x256xf32>
    %cst = arith.constant dense<0.000000e+00> : vector<6x256xf32>
    %5 = tpu.matmul %1, %4, %cst {dimension_numbers = #tpu.dot_dimension_numbers<[1], [0], [0], [1], [0, 0, 1, 1], [], []>} : vector<6x256xf32>, vector<256x256xf32>, vector<6x256xf32> -> vector<6x256xf32>
    %c0_7 = arith.constant 0 : index
    %c0_8 = arith.constant 0 : index
    %c0_9 = arith.constant 0 : index
    %6 = vector.load %arg3[%c0_7, %c0_8, %c0_9] : memref<5x9x6xf32, #tpu.memory_space<vmem>>, vector<1x9x6xf32>
    %7 = vector.shape_cast %6 : vector<1x9x6xf32> to vector<9x6xf32>
    %cst_10 = arith.constant dense<0.000000e+00> : vector<9x256xf32>
    %8 = tpu.matmul %7, %5, %cst_10 {dimension_numbers = #tpu.dot_dimension_numbers<[1], [0], [0], [1], [0, 0, 1, 1], [], []>} : vector<9x6xf32>, vector<6x256xf32>, vector<9x256xf32> -> vector<9x256xf32>
    %c0_11 = arith.constant 0 : index
    %c256 = arith.constant 256 : index
    %9 = vector.load %arg1[%c0_11, %c256] : memref<256x1280xf32, #tpu.memory_space<vmem>>, vector<256x256xf32>
    %cst_12 = arith.constant dense<0.000000e+00> : vector<6x256xf32>
    %10 = tpu.matmul %1, %9, %cst_12 {dimension_numbers = #tpu.dot_dimension_numbers<[1], [0], [0], [1], [0, 0, 1, 1], [], []>} : vector<6x256xf32>, vector<256x256xf32>, vector<6x256xf32> -> vector<6x256xf32>
    %c1 = arith.constant 1 : index
    %c0_13 = arith.constant 0 : index
    %c0_14 = arith.constant 0 : index
    %11 = vector.load %arg3[%c1, %c0_13, %c0_14] : memref<5x9x6xf32, #tpu.memory_space<vmem>>, vector<1x9x6xf32>
    %12 = vector.shape_cast %11 : vector<1x9x6xf32> to vector<9x6xf32>
    %cst_15 = arith.constant dense<0.000000e+00> : vector<9x256xf32>
    %13 = tpu.matmul %12, %10, %cst_15 {dimension_numbers = #tpu.dot_dimension_numbers<[1], [0], [0], [1], [0, 0, 1, 1], [], []>} : vector<9x6xf32>, vector<6x256xf32>, vector<9x256xf32> -> vector<9x256xf32>
    %14 = arith.addf %8, %13 : vector<9x256xf32>
    %c0_16 = arith.constant 0 : index
    %c512 = arith.constant 512 : index
    %15 = vector.load %arg1[%c0_16, %c512] : memref<256x1280xf32, #tpu.memory_space<vmem>>, vector<256x256xf32>
    %cst_17 = arith.constant dense<0.000000e+00> : vector<6x256xf32>
    %16 = tpu.matmul %1, %15, %cst_17 {dimension_numbers = #tpu.dot_dimension_numbers<[1], [0], [0], [1], [0, 0, 1, 1], [], []>} : vector<6x256xf32>, vector<256x256xf32>, vector<6x256xf32> -> vector<6x256xf32>
    %c2 = arith.constant 2 : index
    %c0_18 = arith.constant 0 : index
    %c0_19 = arith.constant 0 : index
    %17 = vector.load %arg3[%c2, %c0_18, %c0_19] : memref<5x9x6xf32, #tpu.memory_space<vmem>>, vector<1x9x6xf32>
    %18 = vector.shape_cast %17 : vector<1x9x6xf32> to vector<9x6xf32>
    %cst_20 = arith.constant dense<0.000000e+00> : vector<9x256xf32>
    %19 = tpu.matmul %18, %16, %cst_20 {dimension_numbers = #tpu.dot_dimension_numbers<[1], [0], [0], [1], [0, 0, 1, 1], [], []>} : vector<9x6xf32>, vector<6x256xf32>, vector<9x256xf32> -> vector<9x256xf32>
    %20 = arith.addf %14, %19 : vector<9x256xf32>
    %c0_21 = arith.constant 0 : index
    %c768 = arith.constant 768 : index
    %21 = vector.load %arg1[%c0_21, %c768] : memref<256x1280xf32, #tpu.memory_space<vmem>>, vector<256x256xf32>
    %cst_22 = arith.constant dense<0.000000e+00> : vector<6x256xf32>
    %22 = tpu.matmul %1, %21, %cst_22 {dimension_numbers = #tpu.dot_dimension_numbers<[1], [0], [0], [1], [0, 0, 1, 1], [], []>} : vector<6x256xf32>, vector<256x256xf32>, vector<6x256xf32> -> vector<6x256xf32>
    %c3 = arith.constant 3 : index
    %c0_23 = arith.constant 0 : index
    %c0_24 = arith.constant 0 : index
    %23 = vector.load %arg3[%c3, %c0_23, %c0_24] : memref<5x9x6xf32, #tpu.memory_space<vmem>>, vector<1x9x6xf32>
    %24 = vector.shape_cast %23 : vector<1x9x6xf32> to vector<9x6xf32>
    %cst_25 = arith.constant dense<0.000000e+00> : vector<9x256xf32>
    %25 = tpu.matmul %24, %22, %cst_25 {dimension_numbers = #tpu.dot_dimension_numbers<[1], [0], [0], [1], [0, 0, 1, 1], [], []>} : vector<9x6xf32>, vector<6x256xf32>, vector<9x256xf32> -> vector<9x256xf32>
    %26 = arith.addf %20, %25 : vector<9x256xf32>
    %c0_26 = arith.constant 0 : index
    %c1024 = arith.constant 1024 : index
    %27 = vector.load %arg1[%c0_26, %c1024] : memref<256x1280xf32, #tpu.memory_space<vmem>>, vector<256x256xf32>
    %cst_27 = arith.constant dense<0.000000e+00> : vector<6x256xf32>
    %28 = tpu.matmul %1, %27, %cst_27 {dimension_numbers = #tpu.dot_dimension_numbers<[1], [0], [0], [1], [0, 0, 1, 1], [], []>} : vector<6x256xf32>, vector<256x256xf32>, vector<6x256xf32> -> vector<6x256xf32>
    %c4 = arith.constant 4 : index
    %c0_28 = arith.constant 0 : index
    %c0_29 = arith.constant 0 : index
    %29 = vector.load %arg3[%c4, %c0_28, %c0_29] : memref<5x9x6xf32, #tpu.memory_space<vmem>>, vector<1x9x6xf32>
    %30 = vector.shape_cast %29 : vector<1x9x6xf32> to vector<9x6xf32>
    %cst_30 = arith.constant dense<0.000000e+00> : vector<9x256xf32>
    %31 = tpu.matmul %30, %28, %cst_30 {dimension_numbers = #tpu.dot_dimension_numbers<[1], [0], [0], [1], [0, 0, 1, 1], [], []>} : vector<9x6xf32>, vector<6x256xf32>, vector<9x256xf32> -> vector<9x256xf32>
    %32 = arith.addf %26, %31 : vector<9x256xf32>
    %c0_31 = arith.constant 0 : index
    %c0_32 = arith.constant 0 : index
    %33 = vector.load %arg4[%c0_31, %c0_32] : memref<9x1xf32, #tpu.memory_space<vmem>>, vector<9x1xf32>
    %34 = vector.broadcast %33 : vector<9x1xf32> to vector<9x256xf32>
    %35 = arith.addf %32, %34 : vector<9x256xf32>
    %36 = vector.broadcast %3 : vector<1x256xf32> to vector<9x256xf32>
    %37 = arith.mulf %35, %36 : vector<9x256xf32>
    %c0_33 = arith.constant 0 : index
    %c0_34 = arith.constant 0 : index
    %c0_35 = arith.constant 0 : index
    %38 = vector.load %arg6[%c0_33, %c0_34, %c0_35] : memref<1x9x256xf32, #tpu.memory_space<vmem>>, vector<1x9x256xf32>
    %39 = vector.shape_cast %38 : vector<1x9x256xf32> to vector<9x256xf32>
    %40 = vector.shape_cast %37 : vector<9x256xf32> to vector<1x9x256xf32>
    tpu.vector_store %arg6[%c0_33, %c0_34, %c0_35], %40 {strides = array<i32>} : memref<1x9x256xf32, #tpu.memory_space<vmem>>, vector<1x9x256xf32>,
    %cst_36 = arith.constant dense<0xFF800000> : vector<256xf32>
    %41 = vector.multi_reduction <maximumf>, %37, %cst_36 [0] : vector<9x256xf32> to vector<256xf32>
    %42 = vector.shape_cast %41 : vector<256xf32> to vector<1x256xf32>
    %cst_37 = arith.constant 0.000000e+00 : f32
    %43 = vector.broadcast %cst_37 : f32 to vector<1x256xf32>
    %44 = arith.cmpf ogt, %3, %43 : vector<1x256xf32>
    %cst_38 = arith.constant -1.000000e+30 : f32
    %45 = vector.broadcast %cst_38 : f32 to vector<1x256xf32>
    %46 = arith.select %44, %42, %45 : vector<1x256xi1>, vector<1x256xf32>
    %c0_39 = arith.constant 0 : index
    %c0_40 = arith.constant 0 : index
    %c0_41 = arith.constant 0 : index
    %47 = vector.load %arg7[%c0_39, %c0_40, %c0_41] : memref<1x1x256xf32, #tpu.memory_space<vmem>>, vector<1x1x256xf32>
    %48 = vector.shape_cast %47 : vector<1x1x256xf32> to vector<1x256xf32>
    %49 = vector.shape_cast %46 : vector<1x256xf32> to vector<1x1x256xf32>
    tpu.vector_store %arg7[%c0_39, %c0_40, %c0_41], %49 {strides = array<i32>} : memref<1x1x256xf32, #tpu.memory_space<vmem>>, vector<1x1x256xf32>,
    return
  }
  func.func @transform_0(%arg0: i32) -> (i32, i32) {
    %c0_i32 = arith.constant 0 : i32
    %c0_i32_0 = arith.constant 0 : i32
    %c0_i32_1 = arith.constant 0 : i32
    return %c0_i32, %c0_i32_0 : i32, i32
  }
  func.func @transform_1(%arg0: i32) -> (i32, i32, i32) {
    %c0_i32 = arith.constant 0 : i32
    %c0_i32_0 = arith.constant 0 : i32
    %c0_i32_1 = arith.constant 0 : i32
    return %arg0, %c0_i32, %c0_i32_0 : i32, i32, i32
  }
  func.func @transform_2(%arg0: i32) -> (i32, i32, i32) {
    %c0_i32 = arith.constant 0 : i32
    %c0_i32_0 = arith.constant 0 : i32
    %c0_i32_1 = arith.constant 0 : i32
    %c0_i32_2 = arith.constant 0 : i32
    return %c0_i32, %c0_i32_0, %c0_i32_1 : i32, i32, i32
  }
  func.func @transform_3(%arg0: i32) -> (i32, i32) {
    %c0_i32 = arith.constant 0 : i32
    %c0_i32_0 = arith.constant 0 : i32
    %c0_i32_1 = arith.constant 0 : i32
    return %c0_i32, %c0_i32_0 : i32, i32
  }
  func.func @transform_4(%arg0: i32) -> (i32, i32, i32) {
    %c0_i32 = arith.constant 0 : i32
    %c0_i32_0 = arith.constant 0 : i32
    %c0_i32_1 = arith.constant 0 : i32
    return %arg0, %c0_i32, %c0_i32_0 : i32, i32, i32
  }
  func.func @transform_5(%arg0: i32) -> (i32, i32, i32) {
    %c0_i32 = arith.constant 0 : i32
    %c0_i32_0 = arith.constant 0 : i32
    %c0_i32_1 = arith.constant 0 : i32
    return %arg0, %c0_i32, %c0_i32_0 : i32, i32, i32
  }
  func.func @transform_6(%arg0: i32) -> (i32, i32, i32) {
    %c0_i32 = arith.constant 0 : i32
    %c0_i32_0 = arith.constant 0 : i32
    %c0_i32_1 = arith.constant 0 : i32
    return %arg0, %c0_i32, %c0_i32_0 : i32, i32, i32
  }
}

module attributes {stable_mosaic.version = 11 : i64} {
  func.func @_stat_fc_kernel(%arg0: i32, %arg1: memref<256x2560xf32, #tpu.memory_space<vmem>>, %arg2: memref<1x9x256xf32, #tpu.memory_space<vmem>>, %arg3: memref<1x1x256xf32, #tpu.memory_space<vmem>>, %arg4: memref<10x9x100xf32, #tpu.memory_space<vmem>>, %arg5: memref<10x9x100xf32, #tpu.memory_space<vmem>>, %arg6: memref<1x100xf32, #tpu.memory_space<vmem>>, %arg7: memref<100x80xf32, #tpu.memory_space<vmem>>, %arg8: memref<1x80xf32, #tpu.memory_space<vmem>>, %arg9: memref<80x60xf32, #tpu.memory_space<vmem>>, %arg10: memref<1x60xf32, #tpu.memory_space<vmem>>, %arg11: memref<60x3xf32, #tpu.memory_space<vmem>>, %arg12: memref<1x3xf32, #tpu.memory_space<vmem>>, %arg13: memref<1x1x3xf32, #tpu.memory_space<vmem>>) attributes {dimension_semantics = [#tpu.dimension_semantics<parallel>], iteration_bounds = array<i64: 2>, scalar_prefetch = 0 : i64, scratch_operands = 0 : i64, tpu.core_type = #tpu.core_type<tc>, window_params = [{pipeline_mode = #tpu.pipeline_mode<synchronous>, transform_indices = @transform_0, window_bounds = array<i64: 256, 2560>}, {transform_indices = @transform_1, window_bounds = array<i64: 1, 9, 256>}, {transform_indices = @transform_2, window_bounds = array<i64: 1, 1, 256>}, {pipeline_mode = #tpu.pipeline_mode<synchronous>, transform_indices = @transform_3, window_bounds = array<i64: 10, 9, 100>}, {pipeline_mode = #tpu.pipeline_mode<synchronous>, transform_indices = @transform_4, window_bounds = array<i64: 10, 9, 100>}, {pipeline_mode = #tpu.pipeline_mode<synchronous>, transform_indices = @transform_5, window_bounds = array<i64: 1, 100>}, {pipeline_mode = #tpu.pipeline_mode<synchronous>, transform_indices = @transform_6, window_bounds = array<i64: 100, 80>}, {pipeline_mode = #tpu.pipeline_mode<synchronous>, transform_indices = @transform_7, window_bounds = array<i64: 1, 80>}, {pipeline_mode = #tpu.pipeline_mode<synchronous>, transform_indices = @transform_8, window_bounds = array<i64: 80, 60>}, {pipeline_mode = #tpu.pipeline_mode<synchronous>, transform_indices = @transform_9, window_bounds = array<i64: 1, 60>}, {pipeline_mode = #tpu.pipeline_mode<synchronous>, transform_indices = @transform_10, window_bounds = array<i64: 60, 3>}, {pipeline_mode = #tpu.pipeline_mode<synchronous>, transform_indices = @transform_11, window_bounds = array<i64: 1, 3>}, {transform_indices = @transform_12, window_bounds = array<i64: 1, 1, 3>}]} {
    %c0 = arith.constant 0 : index
    %c0_0 = arith.constant 0 : index
    %c0_1 = arith.constant 0 : index
    %0 = vector.load %arg2[%c0, %c0_0, %c0_1] : memref<1x9x256xf32, #tpu.memory_space<vmem>>, vector<1x9x256xf32>
    %1 = vector.shape_cast %0 : vector<1x9x256xf32> to vector<9x256xf32>
    %c0_2 = arith.constant 0 : index
    %c0_3 = arith.constant 0 : index
    %c0_4 = arith.constant 0 : index
    %2 = vector.load %arg3[%c0_2, %c0_3, %c0_4] : memref<1x1x256xf32, #tpu.memory_space<vmem>>, vector<1x1x256xf32>
    %3 = vector.shape_cast %2 : vector<1x1x256xf32> to vector<1x256xf32>
    %4 = vector.broadcast %3 : vector<1x256xf32> to vector<9x256xf32>
    %5 = arith.mulf %1, %4 : vector<9x256xf32>
    %cst = arith.constant 0.000000e+00 : f32
    %6 = vector.broadcast %cst : f32 to vector<9x100xf32>
    %c0_5 = arith.constant 0 : index
    %c0_6 = arith.constant 0 : index
    %7 = vector.load %arg1[%c0_5, %c0_6] : memref<256x2560xf32, #tpu.memory_space<vmem>>, vector<256x256xf32>
    %cst_7 = arith.constant dense<0.000000e+00> : vector<9x256xf32>
    %8 = tpu.matmul %5, %7, %cst_7 {dimension_numbers = #tpu.dot_dimension_numbers<[1], [0], [0], [1], [0, 0, 1, 1], [], []>} : vector<9x256xf32>, vector<256x256xf32>, vector<9x256xf32> -> vector<9x256xf32>
    %9 = math.absf %8 : vector<9x256xf32>
    %cst_8 = arith.constant dense<0.000000e+00> : vector<9xf32>
    %10 = vector.multi_reduction <add>, %9, %cst_8 [1] : vector<9x256xf32> to vector<9xf32>
    %11 = vector.shape_cast %10 : vector<9xf32> to vector<9x1xf32>
    %12 = arith.mulf %8, %8 : vector<9x256xf32>
    %cst_9 = arith.constant dense<0.000000e+00> : vector<9xf32>
    %13 = vector.multi_reduction <add>, %12, %cst_9 [1] : vector<9x256xf32> to vector<9xf32>
    %14 = vector.shape_cast %13 : vector<9xf32> to vector<9x1xf32>
    %c0_10 = arith.constant 0 : index
    %c0_11 = arith.constant 0 : index
    %c0_12 = arith.constant 0 : index
    %15 = vector.load %arg4[%c0_10, %c0_11, %c0_12] : memref<10x9x100xf32, #tpu.memory_space<vmem>>, vector<1x9x100xf32>
    %16 = vector.shape_cast %15 : vector<1x9x100xf32> to vector<9x100xf32>
    %17 = vector.broadcast %11 : vector<9x1xf32> to vector<9x100xf32>
    %18 = arith.mulf %17, %16 : vector<9x100xf32>
    %19 = arith.addf %6, %18 : vector<9x100xf32>
    %c0_13 = arith.constant 0 : index
    %c0_14 = arith.constant 0 : index
    %c0_15 = arith.constant 0 : index
    %20 = vector.load %arg5[%c0_13, %c0_14, %c0_15] : memref<10x9x100xf32, #tpu.memory_space<vmem>>, vector<1x9x100xf32>
    %21 = vector.shape_cast %20 : vector<1x9x100xf32> to vector<9x100xf32>
    %22 = vector.broadcast %14 : vector<9x1xf32> to vector<9x100xf32>
    %23 = arith.mulf %22, %21 : vector<9x100xf32>
    %24 = arith.addf %19, %23 : vector<9x100xf32>
    %c0_16 = arith.constant 0 : index
    %c256 = arith.constant 256 : index
    %25 = vector.load %arg1[%c0_16, %c256] : memref<256x2560xf32, #tpu.memory_space<vmem>>, vector<256x256xf32>
    %cst_17 = arith.constant dense<0.000000e+00> : vector<9x256xf32>
    %26 = tpu.matmul %5, %25, %cst_17 {dimension_numbers = #tpu.dot_dimension_numbers<[1], [0], [0], [1], [0, 0, 1, 1], [], []>} : vector<9x256xf32>, vector<256x256xf32>, vector<9x256xf32> -> vector<9x256xf32>
    %27 = math.absf %26 : vector<9x256xf32>
    %cst_18 = arith.constant dense<0.000000e+00> : vector<9xf32>
    %28 = vector.multi_reduction <add>, %27, %cst_18 [1] : vector<9x256xf32> to vector<9xf32>
    %29 = vector.shape_cast %28 : vector<9xf32> to vector<9x1xf32>
    %30 = arith.mulf %26, %26 : vector<9x256xf32>
    %cst_19 = arith.constant dense<0.000000e+00> : vector<9xf32>
    %31 = vector.multi_reduction <add>, %30, %cst_19 [1] : vector<9x256xf32> to vector<9xf32>
    %32 = vector.shape_cast %31 : vector<9xf32> to vector<9x1xf32>
    %c1 = arith.constant 1 : index
    %c0_20 = arith.constant 0 : index
    %c0_21 = arith.constant 0 : index
    %33 = vector.load %arg4[%c1, %c0_20, %c0_21] : memref<10x9x100xf32, #tpu.memory_space<vmem>>, vector<1x9x100xf32>
    %34 = vector.shape_cast %33 : vector<1x9x100xf32> to vector<9x100xf32>
    %35 = vector.broadcast %29 : vector<9x1xf32> to vector<9x100xf32>
    %36 = arith.mulf %35, %34 : vector<9x100xf32>
    %37 = arith.addf %24, %36 : vector<9x100xf32>
    %c1_22 = arith.constant 1 : index
    %c0_23 = arith.constant 0 : index
    %c0_24 = arith.constant 0 : index
    %38 = vector.load %arg5[%c1_22, %c0_23, %c0_24] : memref<10x9x100xf32, #tpu.memory_space<vmem>>, vector<1x9x100xf32>
    %39 = vector.shape_cast %38 : vector<1x9x100xf32> to vector<9x100xf32>
    %40 = vector.broadcast %32 : vector<9x1xf32> to vector<9x100xf32>
    %41 = arith.mulf %40, %39 : vector<9x100xf32>
    %42 = arith.addf %37, %41 : vector<9x100xf32>
    %c0_25 = arith.constant 0 : index
    %c512 = arith.constant 512 : index
    %43 = vector.load %arg1[%c0_25, %c512] : memref<256x2560xf32, #tpu.memory_space<vmem>>, vector<256x256xf32>
    %cst_26 = arith.constant dense<0.000000e+00> : vector<9x256xf32>
    %44 = tpu.matmul %5, %43, %cst_26 {dimension_numbers = #tpu.dot_dimension_numbers<[1], [0], [0], [1], [0, 0, 1, 1], [], []>} : vector<9x256xf32>, vector<256x256xf32>, vector<9x256xf32> -> vector<9x256xf32>
    %45 = math.absf %44 : vector<9x256xf32>
    %cst_27 = arith.constant dense<0.000000e+00> : vector<9xf32>
    %46 = vector.multi_reduction <add>, %45, %cst_27 [1] : vector<9x256xf32> to vector<9xf32>
    %47 = vector.shape_cast %46 : vector<9xf32> to vector<9x1xf32>
    %48 = arith.mulf %44, %44 : vector<9x256xf32>
    %cst_28 = arith.constant dense<0.000000e+00> : vector<9xf32>
    %49 = vector.multi_reduction <add>, %48, %cst_28 [1] : vector<9x256xf32> to vector<9xf32>
    %50 = vector.shape_cast %49 : vector<9xf32> to vector<9x1xf32>
    %c2 = arith.constant 2 : index
    %c0_29 = arith.constant 0 : index
    %c0_30 = arith.constant 0 : index
    %51 = vector.load %arg4[%c2, %c0_29, %c0_30] : memref<10x9x100xf32, #tpu.memory_space<vmem>>, vector<1x9x100xf32>
    %52 = vector.shape_cast %51 : vector<1x9x100xf32> to vector<9x100xf32>
    %53 = vector.broadcast %47 : vector<9x1xf32> to vector<9x100xf32>
    %54 = arith.mulf %53, %52 : vector<9x100xf32>
    %55 = arith.addf %42, %54 : vector<9x100xf32>
    %c2_31 = arith.constant 2 : index
    %c0_32 = arith.constant 0 : index
    %c0_33 = arith.constant 0 : index
    %56 = vector.load %arg5[%c2_31, %c0_32, %c0_33] : memref<10x9x100xf32, #tpu.memory_space<vmem>>, vector<1x9x100xf32>
    %57 = vector.shape_cast %56 : vector<1x9x100xf32> to vector<9x100xf32>
    %58 = vector.broadcast %50 : vector<9x1xf32> to vector<9x100xf32>
    %59 = arith.mulf %58, %57 : vector<9x100xf32>
    %60 = arith.addf %55, %59 : vector<9x100xf32>
    %c0_34 = arith.constant 0 : index
    %c768 = arith.constant 768 : index
    %61 = vector.load %arg1[%c0_34, %c768] : memref<256x2560xf32, #tpu.memory_space<vmem>>, vector<256x256xf32>
    %cst_35 = arith.constant dense<0.000000e+00> : vector<9x256xf32>
    %62 = tpu.matmul %5, %61, %cst_35 {dimension_numbers = #tpu.dot_dimension_numbers<[1], [0], [0], [1], [0, 0, 1, 1], [], []>} : vector<9x256xf32>, vector<256x256xf32>, vector<9x256xf32> -> vector<9x256xf32>
    %63 = math.absf %62 : vector<9x256xf32>
    %cst_36 = arith.constant dense<0.000000e+00> : vector<9xf32>
    %64 = vector.multi_reduction <add>, %63, %cst_36 [1] : vector<9x256xf32> to vector<9xf32>
    %65 = vector.shape_cast %64 : vector<9xf32> to vector<9x1xf32>
    %66 = arith.mulf %62, %62 : vector<9x256xf32>
    %cst_37 = arith.constant dense<0.000000e+00> : vector<9xf32>
    %67 = vector.multi_reduction <add>, %66, %cst_37 [1] : vector<9x256xf32> to vector<9xf32>
    %68 = vector.shape_cast %67 : vector<9xf32> to vector<9x1xf32>
    %c3 = arith.constant 3 : index
    %c0_38 = arith.constant 0 : index
    %c0_39 = arith.constant 0 : index
    %69 = vector.load %arg4[%c3, %c0_38, %c0_39] : memref<10x9x100xf32, #tpu.memory_space<vmem>>, vector<1x9x100xf32>
    %70 = vector.shape_cast %69 : vector<1x9x100xf32> to vector<9x100xf32>
    %71 = vector.broadcast %65 : vector<9x1xf32> to vector<9x100xf32>
    %72 = arith.mulf %71, %70 : vector<9x100xf32>
    %73 = arith.addf %60, %72 : vector<9x100xf32>
    %c3_40 = arith.constant 3 : index
    %c0_41 = arith.constant 0 : index
    %c0_42 = arith.constant 0 : index
    %74 = vector.load %arg5[%c3_40, %c0_41, %c0_42] : memref<10x9x100xf32, #tpu.memory_space<vmem>>, vector<1x9x100xf32>
    %75 = vector.shape_cast %74 : vector<1x9x100xf32> to vector<9x100xf32>
    %76 = vector.broadcast %68 : vector<9x1xf32> to vector<9x100xf32>
    %77 = arith.mulf %76, %75 : vector<9x100xf32>
    %78 = arith.addf %73, %77 : vector<9x100xf32>
    %c0_43 = arith.constant 0 : index
    %c1024 = arith.constant 1024 : index
    %79 = vector.load %arg1[%c0_43, %c1024] : memref<256x2560xf32, #tpu.memory_space<vmem>>, vector<256x256xf32>
    %cst_44 = arith.constant dense<0.000000e+00> : vector<9x256xf32>
    %80 = tpu.matmul %5, %79, %cst_44 {dimension_numbers = #tpu.dot_dimension_numbers<[1], [0], [0], [1], [0, 0, 1, 1], [], []>} : vector<9x256xf32>, vector<256x256xf32>, vector<9x256xf32> -> vector<9x256xf32>
    %81 = math.absf %80 : vector<9x256xf32>
    %cst_45 = arith.constant dense<0.000000e+00> : vector<9xf32>
    %82 = vector.multi_reduction <add>, %81, %cst_45 [1] : vector<9x256xf32> to vector<9xf32>
    %83 = vector.shape_cast %82 : vector<9xf32> to vector<9x1xf32>
    %84 = arith.mulf %80, %80 : vector<9x256xf32>
    %cst_46 = arith.constant dense<0.000000e+00> : vector<9xf32>
    %85 = vector.multi_reduction <add>, %84, %cst_46 [1] : vector<9x256xf32> to vector<9xf32>
    %86 = vector.shape_cast %85 : vector<9xf32> to vector<9x1xf32>
    %c4 = arith.constant 4 : index
    %c0_47 = arith.constant 0 : index
    %c0_48 = arith.constant 0 : index
    %87 = vector.load %arg4[%c4, %c0_47, %c0_48] : memref<10x9x100xf32, #tpu.memory_space<vmem>>, vector<1x9x100xf32>
    %88 = vector.shape_cast %87 : vector<1x9x100xf32> to vector<9x100xf32>
    %89 = vector.broadcast %83 : vector<9x1xf32> to vector<9x100xf32>
    %90 = arith.mulf %89, %88 : vector<9x100xf32>
    %91 = arith.addf %78, %90 : vector<9x100xf32>
    %c4_49 = arith.constant 4 : index
    %c0_50 = arith.constant 0 : index
    %c0_51 = arith.constant 0 : index
    %92 = vector.load %arg5[%c4_49, %c0_50, %c0_51] : memref<10x9x100xf32, #tpu.memory_space<vmem>>, vector<1x9x100xf32>
    %93 = vector.shape_cast %92 : vector<1x9x100xf32> to vector<9x100xf32>
    %94 = vector.broadcast %86 : vector<9x1xf32> to vector<9x100xf32>
    %95 = arith.mulf %94, %93 : vector<9x100xf32>
    %96 = arith.addf %91, %95 : vector<9x100xf32>
    %c0_52 = arith.constant 0 : index
    %c1280 = arith.constant 1280 : index
    %97 = vector.load %arg1[%c0_52, %c1280] : memref<256x2560xf32, #tpu.memory_space<vmem>>, vector<256x256xf32>
    %cst_53 = arith.constant dense<0.000000e+00> : vector<9x256xf32>
    %98 = tpu.matmul %5, %97, %cst_53 {dimension_numbers = #tpu.dot_dimension_numbers<[1], [0], [0], [1], [0, 0, 1, 1], [], []>} : vector<9x256xf32>, vector<256x256xf32>, vector<9x256xf32> -> vector<9x256xf32>
    %99 = math.absf %98 : vector<9x256xf32>
    %cst_54 = arith.constant dense<0.000000e+00> : vector<9xf32>
    %100 = vector.multi_reduction <add>, %99, %cst_54 [1] : vector<9x256xf32> to vector<9xf32>
    %101 = vector.shape_cast %100 : vector<9xf32> to vector<9x1xf32>
    %102 = arith.mulf %98, %98 : vector<9x256xf32>
    %cst_55 = arith.constant dense<0.000000e+00> : vector<9xf32>
    %103 = vector.multi_reduction <add>, %102, %cst_55 [1] : vector<9x256xf32> to vector<9xf32>
    %104 = vector.shape_cast %103 : vector<9xf32> to vector<9x1xf32>
    %c5 = arith.constant 5 : index
    %c0_56 = arith.constant 0 : index
    %c0_57 = arith.constant 0 : index
    %105 = vector.load %arg4[%c5, %c0_56, %c0_57] : memref<10x9x100xf32, #tpu.memory_space<vmem>>, vector<1x9x100xf32>
    %106 = vector.shape_cast %105 : vector<1x9x100xf32> to vector<9x100xf32>
    %107 = vector.broadcast %101 : vector<9x1xf32> to vector<9x100xf32>
    %108 = arith.mulf %107, %106 : vector<9x100xf32>
    %109 = arith.addf %96, %108 : vector<9x100xf32>
    %c5_58 = arith.constant 5 : index
    %c0_59 = arith.constant 0 : index
    %c0_60 = arith.constant 0 : index
    %110 = vector.load %arg5[%c5_58, %c0_59, %c0_60] : memref<10x9x100xf32, #tpu.memory_space<vmem>>, vector<1x9x100xf32>
    %111 = vector.shape_cast %110 : vector<1x9x100xf32> to vector<9x100xf32>
    %112 = vector.broadcast %104 : vector<9x1xf32> to vector<9x100xf32>
    %113 = arith.mulf %112, %111 : vector<9x100xf32>
    %114 = arith.addf %109, %113 : vector<9x100xf32>
    %c0_61 = arith.constant 0 : index
    %c1536 = arith.constant 1536 : index
    %115 = vector.load %arg1[%c0_61, %c1536] : memref<256x2560xf32, #tpu.memory_space<vmem>>, vector<256x256xf32>
    %cst_62 = arith.constant dense<0.000000e+00> : vector<9x256xf32>
    %116 = tpu.matmul %5, %115, %cst_62 {dimension_numbers = #tpu.dot_dimension_numbers<[1], [0], [0], [1], [0, 0, 1, 1], [], []>} : vector<9x256xf32>, vector<256x256xf32>, vector<9x256xf32> -> vector<9x256xf32>
    %117 = math.absf %116 : vector<9x256xf32>
    %cst_63 = arith.constant dense<0.000000e+00> : vector<9xf32>
    %118 = vector.multi_reduction <add>, %117, %cst_63 [1] : vector<9x256xf32> to vector<9xf32>
    %119 = vector.shape_cast %118 : vector<9xf32> to vector<9x1xf32>
    %120 = arith.mulf %116, %116 : vector<9x256xf32>
    %cst_64 = arith.constant dense<0.000000e+00> : vector<9xf32>
    %121 = vector.multi_reduction <add>, %120, %cst_64 [1] : vector<9x256xf32> to vector<9xf32>
    %122 = vector.shape_cast %121 : vector<9xf32> to vector<9x1xf32>
    %c6 = arith.constant 6 : index
    %c0_65 = arith.constant 0 : index
    %c0_66 = arith.constant 0 : index
    %123 = vector.load %arg4[%c6, %c0_65, %c0_66] : memref<10x9x100xf32, #tpu.memory_space<vmem>>, vector<1x9x100xf32>
    %124 = vector.shape_cast %123 : vector<1x9x100xf32> to vector<9x100xf32>
    %125 = vector.broadcast %119 : vector<9x1xf32> to vector<9x100xf32>
    %126 = arith.mulf %125, %124 : vector<9x100xf32>
    %127 = arith.addf %114, %126 : vector<9x100xf32>
    %c6_67 = arith.constant 6 : index
    %c0_68 = arith.constant 0 : index
    %c0_69 = arith.constant 0 : index
    %128 = vector.load %arg5[%c6_67, %c0_68, %c0_69] : memref<10x9x100xf32, #tpu.memory_space<vmem>>, vector<1x9x100xf32>
    %129 = vector.shape_cast %128 : vector<1x9x100xf32> to vector<9x100xf32>
    %130 = vector.broadcast %122 : vector<9x1xf32> to vector<9x100xf32>
    %131 = arith.mulf %130, %129 : vector<9x100xf32>
    %132 = arith.addf %127, %131 : vector<9x100xf32>
    %c0_70 = arith.constant 0 : index
    %c1792 = arith.constant 1792 : index
    %133 = vector.load %arg1[%c0_70, %c1792] : memref<256x2560xf32, #tpu.memory_space<vmem>>, vector<256x256xf32>
    %cst_71 = arith.constant dense<0.000000e+00> : vector<9x256xf32>
    %134 = tpu.matmul %5, %133, %cst_71 {dimension_numbers = #tpu.dot_dimension_numbers<[1], [0], [0], [1], [0, 0, 1, 1], [], []>} : vector<9x256xf32>, vector<256x256xf32>, vector<9x256xf32> -> vector<9x256xf32>
    %135 = math.absf %134 : vector<9x256xf32>
    %cst_72 = arith.constant dense<0.000000e+00> : vector<9xf32>
    %136 = vector.multi_reduction <add>, %135, %cst_72 [1] : vector<9x256xf32> to vector<9xf32>
    %137 = vector.shape_cast %136 : vector<9xf32> to vector<9x1xf32>
    %138 = arith.mulf %134, %134 : vector<9x256xf32>
    %cst_73 = arith.constant dense<0.000000e+00> : vector<9xf32>
    %139 = vector.multi_reduction <add>, %138, %cst_73 [1] : vector<9x256xf32> to vector<9xf32>
    %140 = vector.shape_cast %139 : vector<9xf32> to vector<9x1xf32>
    %c7 = arith.constant 7 : index
    %c0_74 = arith.constant 0 : index
    %c0_75 = arith.constant 0 : index
    %141 = vector.load %arg4[%c7, %c0_74, %c0_75] : memref<10x9x100xf32, #tpu.memory_space<vmem>>, vector<1x9x100xf32>
    %142 = vector.shape_cast %141 : vector<1x9x100xf32> to vector<9x100xf32>
    %143 = vector.broadcast %137 : vector<9x1xf32> to vector<9x100xf32>
    %144 = arith.mulf %143, %142 : vector<9x100xf32>
    %145 = arith.addf %132, %144 : vector<9x100xf32>
    %c7_76 = arith.constant 7 : index
    %c0_77 = arith.constant 0 : index
    %c0_78 = arith.constant 0 : index
    %146 = vector.load %arg5[%c7_76, %c0_77, %c0_78] : memref<10x9x100xf32, #tpu.memory_space<vmem>>, vector<1x9x100xf32>
    %147 = vector.shape_cast %146 : vector<1x9x100xf32> to vector<9x100xf32>
    %148 = vector.broadcast %140 : vector<9x1xf32> to vector<9x100xf32>
    %149 = arith.mulf %148, %147 : vector<9x100xf32>
    %150 = arith.addf %145, %149 : vector<9x100xf32>
    %c0_79 = arith.constant 0 : index
    %c2048 = arith.constant 2048 : index
    %151 = vector.load %arg1[%c0_79, %c2048] : memref<256x2560xf32, #tpu.memory_space<vmem>>, vector<256x256xf32>
    %cst_80 = arith.constant dense<0.000000e+00> : vector<9x256xf32>
    %152 = tpu.matmul %5, %151, %cst_80 {dimension_numbers = #tpu.dot_dimension_numbers<[1], [0], [0], [1], [0, 0, 1, 1], [], []>} : vector<9x256xf32>, vector<256x256xf32>, vector<9x256xf32> -> vector<9x256xf32>
    %153 = math.absf %152 : vector<9x256xf32>
    %cst_81 = arith.constant dense<0.000000e+00> : vector<9xf32>
    %154 = vector.multi_reduction <add>, %153, %cst_81 [1] : vector<9x256xf32> to vector<9xf32>
    %155 = vector.shape_cast %154 : vector<9xf32> to vector<9x1xf32>
    %156 = arith.mulf %152, %152 : vector<9x256xf32>
    %cst_82 = arith.constant dense<0.000000e+00> : vector<9xf32>
    %157 = vector.multi_reduction <add>, %156, %cst_82 [1] : vector<9x256xf32> to vector<9xf32>
    %158 = vector.shape_cast %157 : vector<9xf32> to vector<9x1xf32>
    %c8 = arith.constant 8 : index
    %c0_83 = arith.constant 0 : index
    %c0_84 = arith.constant 0 : index
    %159 = vector.load %arg4[%c8, %c0_83, %c0_84] : memref<10x9x100xf32, #tpu.memory_space<vmem>>, vector<1x9x100xf32>
    %160 = vector.shape_cast %159 : vector<1x9x100xf32> to vector<9x100xf32>
    %161 = vector.broadcast %155 : vector<9x1xf32> to vector<9x100xf32>
    %162 = arith.mulf %161, %160 : vector<9x100xf32>
    %163 = arith.addf %150, %162 : vector<9x100xf32>
    %c8_85 = arith.constant 8 : index
    %c0_86 = arith.constant 0 : index
    %c0_87 = arith.constant 0 : index
    %164 = vector.load %arg5[%c8_85, %c0_86, %c0_87] : memref<10x9x100xf32, #tpu.memory_space<vmem>>, vector<1x9x100xf32>
    %165 = vector.shape_cast %164 : vector<1x9x100xf32> to vector<9x100xf32>
    %166 = vector.broadcast %158 : vector<9x1xf32> to vector<9x100xf32>
    %167 = arith.mulf %166, %165 : vector<9x100xf32>
    %168 = arith.addf %163, %167 : vector<9x100xf32>
    %c0_88 = arith.constant 0 : index
    %c2304 = arith.constant 2304 : index
    %169 = vector.load %arg1[%c0_88, %c2304] : memref<256x2560xf32, #tpu.memory_space<vmem>>, vector<256x256xf32>
    %cst_89 = arith.constant dense<0.000000e+00> : vector<9x256xf32>
    %170 = tpu.matmul %5, %169, %cst_89 {dimension_numbers = #tpu.dot_dimension_numbers<[1], [0], [0], [1], [0, 0, 1, 1], [], []>} : vector<9x256xf32>, vector<256x256xf32>, vector<9x256xf32> -> vector<9x256xf32>
    %171 = math.absf %170 : vector<9x256xf32>
    %cst_90 = arith.constant dense<0.000000e+00> : vector<9xf32>
    %172 = vector.multi_reduction <add>, %171, %cst_90 [1] : vector<9x256xf32> to vector<9xf32>
    %173 = vector.shape_cast %172 : vector<9xf32> to vector<9x1xf32>
    %174 = arith.mulf %170, %170 : vector<9x256xf32>
    %cst_91 = arith.constant dense<0.000000e+00> : vector<9xf32>
    %175 = vector.multi_reduction <add>, %174, %cst_91 [1] : vector<9x256xf32> to vector<9xf32>
    %176 = vector.shape_cast %175 : vector<9xf32> to vector<9x1xf32>
    %c9 = arith.constant 9 : index
    %c0_92 = arith.constant 0 : index
    %c0_93 = arith.constant 0 : index
    %177 = vector.load %arg4[%c9, %c0_92, %c0_93] : memref<10x9x100xf32, #tpu.memory_space<vmem>>, vector<1x9x100xf32>
    %178 = vector.shape_cast %177 : vector<1x9x100xf32> to vector<9x100xf32>
    %179 = vector.broadcast %173 : vector<9x1xf32> to vector<9x100xf32>
    %180 = arith.mulf %179, %178 : vector<9x100xf32>
    %181 = arith.addf %168, %180 : vector<9x100xf32>
    %c9_94 = arith.constant 9 : index
    %c0_95 = arith.constant 0 : index
    %c0_96 = arith.constant 0 : index
    %182 = vector.load %arg5[%c9_94, %c0_95, %c0_96] : memref<10x9x100xf32, #tpu.memory_space<vmem>>, vector<1x9x100xf32>
    %183 = vector.shape_cast %182 : vector<1x9x100xf32> to vector<9x100xf32>
    %184 = vector.broadcast %176 : vector<9x1xf32> to vector<9x100xf32>
    %185 = arith.mulf %184, %183 : vector<9x100xf32>
    %186 = arith.addf %181, %185 : vector<9x100xf32>
    %cst_97 = arith.constant dense<0.000000e+00> : vector<100xf32>
    %187 = vector.multi_reduction <add>, %186, %cst_97 [0] : vector<9x100xf32> to vector<100xf32>
    %188 = vector.shape_cast %187 : vector<100xf32> to vector<1x100xf32>
    %c0_98 = arith.constant 0 : index
    %c0_99 = arith.constant 0 : index
    %189 = vector.load %arg6[%c0_98, %c0_99] : memref<1x100xf32, #tpu.memory_space<vmem>>, vector<1x100xf32>
    %190 = arith.addf %188, %189 : vector<1x100xf32>
    %cst_100 = arith.constant 0.000000e+00 : f32
    %191 = vector.broadcast %cst_100 : f32 to vector<1x100xf32>
    %192 = arith.maximumf %190, %191 : vector<1x100xf32>
    %c0_101 = arith.constant 0 : index
    %c0_102 = arith.constant 0 : index
    %193 = vector.load %arg7[%c0_101, %c0_102] : memref<100x80xf32, #tpu.memory_space<vmem>>, vector<100x80xf32>
    %cst_103 = arith.constant dense<0.000000e+00> : vector<1x80xf32>
    %194 = tpu.matmul %192, %193, %cst_103 {dimension_numbers = #tpu.dot_dimension_numbers<[1], [0], [0], [1], [0, 0, 1, 1], [], []>} : vector<1x100xf32>, vector<100x80xf32>, vector<1x80xf32> -> vector<1x80xf32>
    %c0_104 = arith.constant 0 : index
    %c0_105 = arith.constant 0 : index
    %195 = vector.load %arg8[%c0_104, %c0_105] : memref<1x80xf32, #tpu.memory_space<vmem>>, vector<1x80xf32>
    %196 = arith.addf %194, %195 : vector<1x80xf32>
    %cst_106 = arith.constant 0.000000e+00 : f32
    %197 = vector.broadcast %cst_106 : f32 to vector<1x80xf32>
    %198 = arith.maximumf %196, %197 : vector<1x80xf32>
    %c0_107 = arith.constant 0 : index
    %c0_108 = arith.constant 0 : index
    %199 = vector.load %arg9[%c0_107, %c0_108] : memref<80x60xf32, #tpu.memory_space<vmem>>, vector<80x60xf32>
    %cst_109 = arith.constant dense<0.000000e+00> : vector<1x60xf32>
    %200 = tpu.matmul %198, %199, %cst_109 {dimension_numbers = #tpu.dot_dimension_numbers<[1], [0], [0], [1], [0, 0, 1, 1], [], []>} : vector<1x80xf32>, vector<80x60xf32>, vector<1x60xf32> -> vector<1x60xf32>
    %c0_110 = arith.constant 0 : index
    %c0_111 = arith.constant 0 : index
    %201 = vector.load %arg10[%c0_110, %c0_111] : memref<1x60xf32, #tpu.memory_space<vmem>>, vector<1x60xf32>
    %202 = arith.addf %200, %201 : vector<1x60xf32>
    %cst_112 = arith.constant 0.000000e+00 : f32
    %203 = vector.broadcast %cst_112 : f32 to vector<1x60xf32>
    %204 = arith.maximumf %202, %203 : vector<1x60xf32>
    %c0_113 = arith.constant 0 : index
    %c0_114 = arith.constant 0 : index
    %205 = vector.load %arg11[%c0_113, %c0_114] : memref<60x3xf32, #tpu.memory_space<vmem>>, vector<60x3xf32>
    %cst_115 = arith.constant dense<0.000000e+00> : vector<1x3xf32>
    %206 = tpu.matmul %204, %205, %cst_115 {dimension_numbers = #tpu.dot_dimension_numbers<[1], [0], [0], [1], [0, 0, 1, 1], [], []>} : vector<1x60xf32>, vector<60x3xf32>, vector<1x3xf32> -> vector<1x3xf32>
    %c0_116 = arith.constant 0 : index
    %c0_117 = arith.constant 0 : index
    %207 = vector.load %arg12[%c0_116, %c0_117] : memref<1x3xf32, #tpu.memory_space<vmem>>, vector<1x3xf32>
    %208 = arith.addf %206, %207 : vector<1x3xf32>
    %c0_118 = arith.constant 0 : index
    %c0_119 = arith.constant 0 : index
    %c0_120 = arith.constant 0 : index
    %209 = vector.load %arg13[%c0_118, %c0_119, %c0_120] : memref<1x1x3xf32, #tpu.memory_space<vmem>>, vector<1x1x3xf32>
    %210 = vector.shape_cast %209 : vector<1x1x3xf32> to vector<1x3xf32>
    %211 = vector.shape_cast %208 : vector<1x3xf32> to vector<1x1x3xf32>
    tpu.vector_store %arg13[%c0_118, %c0_119, %c0_120], %211 {strides = array<i32>} : memref<1x1x3xf32, #tpu.memory_space<vmem>>, vector<1x1x3xf32>,
    return
  }
  func.func @transform_0(%arg0: i32) -> (i32, i32) {
    %c0_i32 = arith.constant 0 : i32
    %c0_i32_0 = arith.constant 0 : i32
    %c0_i32_1 = arith.constant 0 : i32
    return %c0_i32, %c0_i32_0 : i32, i32
  }
  func.func @transform_1(%arg0: i32) -> (i32, i32, i32) {
    %c0_i32 = arith.constant 0 : i32
    %c0_i32_0 = arith.constant 0 : i32
    %c0_i32_1 = arith.constant 0 : i32
    return %arg0, %c0_i32, %c0_i32_0 : i32, i32, i32
  }
  func.func @transform_2(%arg0: i32) -> (i32, i32, i32) {
    %c0_i32 = arith.constant 0 : i32
    %c0_i32_0 = arith.constant 0 : i32
    %c0_i32_1 = arith.constant 0 : i32
    return %arg0, %c0_i32, %c0_i32_0 : i32, i32, i32
  }
  func.func @transform_3(%arg0: i32) -> (i32, i32, i32) {
    %c0_i32 = arith.constant 0 : i32
    %c0_i32_0 = arith.constant 0 : i32
    %c0_i32_1 = arith.constant 0 : i32
    %c0_i32_2 = arith.constant 0 : i32
    return %c0_i32, %c0_i32_0, %c0_i32_1 : i32, i32, i32
  }
  func.func @transform_4(%arg0: i32) -> (i32, i32, i32) {
    %c0_i32 = arith.constant 0 : i32
    %c0_i32_0 = arith.constant 0 : i32
    %c0_i32_1 = arith.constant 0 : i32
    %c0_i32_2 = arith.constant 0 : i32
    return %c0_i32, %c0_i32_0, %c0_i32_1 : i32, i32, i32
  }
  func.func @transform_5(%arg0: i32) -> (i32, i32) {
    %c0_i32 = arith.constant 0 : i32
    %c0_i32_0 = arith.constant 0 : i32
    %c0_i32_1 = arith.constant 0 : i32
    return %c0_i32, %c0_i32_0 : i32, i32
  }
  func.func @transform_6(%arg0: i32) -> (i32, i32) {
    %c0_i32 = arith.constant 0 : i32
    %c0_i32_0 = arith.constant 0 : i32
    %c0_i32_1 = arith.constant 0 : i32
    return %c0_i32, %c0_i32_0 : i32, i32
  }
  func.func @transform_7(%arg0: i32) -> (i32, i32) {
    %c0_i32 = arith.constant 0 : i32
    %c0_i32_0 = arith.constant 0 : i32
    %c0_i32_1 = arith.constant 0 : i32
    return %c0_i32, %c0_i32_0 : i32, i32
  }
  func.func @transform_8(%arg0: i32) -> (i32, i32) {
    %c0_i32 = arith.constant 0 : i32
    %c0_i32_0 = arith.constant 0 : i32
    %c0_i32_1 = arith.constant 0 : i32
    return %c0_i32, %c0_i32_0 : i32, i32
  }
  func.func @transform_9(%arg0: i32) -> (i32, i32) {
    %c0_i32 = arith.constant 0 : i32
    %c0_i32_0 = arith.constant 0 : i32
    %c0_i32_1 = arith.constant 0 : i32
    return %c0_i32, %c0_i32_0 : i32, i32
  }
  func.func @transform_10(%arg0: i32) -> (i32, i32) {
    %c0_i32 = arith.constant 0 : i32
    %c0_i32_0 = arith.constant 0 : i32
    %c0_i32_1 = arith.constant 0 : i32
    return %c0_i32, %c0_i32_0 : i32, i32
  }
  func.func @transform_11(%arg0: i32) -> (i32, i32) {
    %c0_i32 = arith.constant 0 : i32
    %c0_i32_0 = arith.constant 0 : i32
    %c0_i32_1 = arith.constant 0 : i32
    return %c0_i32, %c0_i32_0 : i32, i32
  }
  func.func @transform_12(%arg0: i32) -> (i32, i32, i32) {
    %c0_i32 = arith.constant 0 : i32
    %c0_i32_0 = arith.constant 0 : i32
    %c0_i32_1 = arith.constant 0 : i32
    return %arg0, %c0_i32, %c0_i32_0 : i32, i32, i32
  }
}

</mosaic_0001>

<llo_original>
// kernel: forward.4
$region0: #{forward.4}
  #allocation0 [shape = 'u32[]', space=smem, size = 0x4, offset = 0x4, fixed_abs, tag = 'smem constant byte address 0x4 - core index']
  #allocation1 [shape = 'u32[72,128]{1,0:T(1,128)}', space=vmem, size = 0x9000, scoped, tag = 'internal scratch']
  %s0 = inlined_call_operand.hbm [shape: f32[256,1280], index: 0, kind: input, shape index: {}]
  %s1 = inlined_call_operand.vmem [shape: f32[2,1,256], index: 1, kind: input, shape index: {}]
  %s2 = inlined_call_operand.vmem [shape: f32[5,3,1], index: 2, kind: input, shape index: {}]
  %s3 = inlined_call_operand.vmem [shape: f32[3,1], index: 3, kind: input, shape index: {}]
  %s4 = inlined_call_operand.hbm [shape: f32[2,1,256], index: 4, kind: input, shape index: {}]
  %s5 = inlined_call_operand.vmem [shape: f32[2,3,256], index: 5, kind: output, shape index: {0}]
  %s6 = inlined_call_operand.vmem [shape: f32[2,1,256], index: 6, kind: output, shape index: {1}]
  %7 = xla_tuple %s5, %s6
  %s8 = sld [smem:[#allocation0]]
  $region69: #{forward.4} parent=0
    _
  %s10 = ssub.s32 1, %s8
  %s11 = scalar_select 0, %s10, %s8
  $region1: #{forward.4} parent=0
    #allocation2 [shape = 'u8[1310720]{0}', space=vmem, size = 0x140000, scoped, tag = 'input window, operand 0, single buffered']
    #allocation3 [shape = 's32[2]{0}', space=sflag, size = 0x8, scoped, tag = 'scoped memory for forward.4']
    #allocation4 [shape = 'u8[2048]{0}', space=vmem, size = 0x800, scoped, tag = 'input window, operand 4']
    #allocation5 [shape = 's32[2]{0}', space=sflag, size = 0x8, scoped, tag = 'scoped memory for forward.4']
    %12 = vsyncpa [#allocation3], 0
    %13 = vsyncpa [#allocation5], 0
    %s14 = scalar_lea.sflag [#allocation5], 1
    %15 = vsyncpa %s14, 0
    loop: start=0, step=1, limit=4
    $region2: #{forward.4} parent=1 // loop_pre_header
      _
    $region3: #{forward.4} parent=1 // loop_header
      %s17 = sphi 0, %s21
      %p18 = scmp.ge.s32.totalorder %s17, 4
      %s25 = sphi 0, %s25
      %s27 = sphi 0, %s25
      %s28 = sphi 0, %s27
      %s42 = sphi 0, %s28
      %s48 = sphi 0, %s50
      %s51 = sphi 0, %s48
      %s52 = sphi 0, %s51
      %s68 = sphi 0, %s52
      %s72 = sphi 0, %s72
      %s74 = sphi 0, %s72
      %s75 = sphi 0, %s74
      %s89 = sphi 0, %s75
      %s93 = sphi 0, %s93
      %s95 = sphi 0, %s93
      %s96 = sphi 0, %s95
      %s110 = sphi 0, %s96
      %s116 = sphi 0, %s118
      %s119 = sphi 0, %s116
      %s120 = sphi 0, %s119
      %s136 = sphi 0, %s120
      %s142 = sphi 0, %s144
      %s145 = sphi 0, %s142
      %s146 = sphi 0, %s145
      %s162 = sphi 0, %s146
      %s168 = sphi 0, %s170
      %s171 = sphi 0, %s168
      %s172 = sphi 0, %s171
      %s188 = sphi 0, %s172
    $region4: #{forward.4} parent=1 // loop_header_branch
      %20 = sbr.rel (%p18) target = $region8
    $region5: #{forward.4} parent=1 // loop_body
      %s22 = ssub.s32 %s17, 1
      %s23 = ssub.s32 %s17, 2
      %s24 = sadd.s32 %s17, 1
      %s26 = sadd.s32 %s25, 1
      %p29 = scmp.eq.s32.totalorder %s17, 1
      %p30 = scmp.ne.s32.totalorder %s25, %s27
      %p31 = scmp.eq.s32.totalorder %s17, 0
      %p32 = por %p30, %p31
      %p33 = scmp.ne.s32.totalorder %s25, %s27
      %p34 = scmp.eq.s32.totalorder %s22, 1
      %p35 = por %p33, %p34
      %p36 = scmp.ne.s32.totalorder %s27, %s28
      %p37 = scmp.eq.s32.totalorder %s22, 0
      %p38 = por %p36, %p37
      %p39 = scmp.ne.s32.totalorder %s27, %s28
      %p40 = scmp.eq.s32.totalorder %s23, 1
      %p41 = por %p39, %p40
      %p43 = scmp.ne.s32.totalorder %s28, %s42
      %p44 = scmp.eq.s32.totalorder %s23, 0
      %p45 = por %p43, %p44
      %s46 = ssub.s32 %s17, %s24
      %p47 = scmp.eq.s32.totalorder %s46, 0
      %s49 = sadd.s32 %s48, 1
      %s50 = scalar_select %p47, %s48, %s49
      %p53 = pneg %p47
      %p54 = scmp.eq.s32.totalorder %s17, 1
      %p55 = por %p53, %p54
      %p56 = scmp.ne.s32.totalorder %s48, %s51
      %p57 = scmp.eq.s32.totalorder %s17, 0
      %p58 = por %p56, %p57
      %p59 = scmp.ne.s32.totalorder %s48, %s51
      %p60 = scmp.eq.s32.totalorder %s22, 1
      %p61 = por %p59, %p60
      %p62 = scmp.ne.s32.totalorder %s51, %s52
      %p63 = scmp.eq.s32.totalorder %s22, 0
      %p64 = por %p62, %p63
      %p65 = scmp.ne.s32.totalorder %s51, %s52
      %p66 = scmp.eq.s32.totalorder %s23, 1
      %p67 = por %p65, %p66
      %p69 = scmp.ne.s32.totalorder %s52, %s68
      %p70 = scmp.eq.s32.totalorder %s23, 0
      %p71 = por %p69, %p70
      %s73 = sadd.s32 %s72, 1
      %p76 = scmp.eq.s32.totalorder %s17, 1
      %p77 = scmp.ne.s32.totalorder %s72, %s74
      %p78 = scmp.eq.s32.totalorder %s17, 0
      %p79 = por %p77, %p78
      %p80 = scmp.ne.s32.totalorder %s72, %s74
      %p81 = scmp.eq.s32.totalorder %s22, 1
      %p82 = por %p80, %p81
      %p83 = scmp.ne.s32.totalorder %s74, %s75
      %p84 = scmp.eq.s32.totalorder %s22, 0
      %p85 = por %p83, %p84
      %p86 = scmp.ne.s32.totalorder %s74, %s75
      %p87 = scmp.eq.s32.totalorder %s23, 1
      %p88 = por %p86, %p87
      %p90 = scmp.ne.s32.totalorder %s75, %s89
      %p91 = scmp.eq.s32.totalorder %s23, 0
      %p92 = por %p90, %p91
      %s94 = sadd.s32 %s93, 1
      %p97 = scmp.eq.s32.totalorder %s17, 1
      %p98 = scmp.ne.s32.totalorder %s93, %s95
      %p99 = scmp.eq.s32.totalorder %s17, 0
      %p100 = por %p98, %p99
      %p101 = scmp.ne.s32.totalorder %s93, %s95
      %p102 = scmp.eq.s32.totalorder %s22, 1
      %p103 = por %p101, %p102
      %p104 = scmp.ne.s32.totalorder %s95, %s96
      %p105 = scmp.eq.s32.totalorder %s22, 0
      %p106 = por %p104, %p105
      %p107 = scmp.ne.s32.totalorder %s95, %s96
      %p108 = scmp.eq.s32.totalorder %s23, 1
      %p109 = por %p107, %p108
      %p111 = scmp.ne.s32.totalorder %s96, %s110
      %p112 = scmp.eq.s32.totalorder %s23, 0
      %p113 = por %p111, %p112
      %s114 = ssub.s32 %s17, %s24
      %p115 = scmp.eq.s32.totalorder %s114, 0
      %s117 = sadd.s32 %s116, 1
      %s118 = scalar_select %p115, %s116, %s117
      %p121 = pneg %p115
      %p122 = scmp.eq.s32.totalorder %s17, 1
      %p123 = por %p121, %p122
      %p124 = scmp.ne.s32.totalorder %s116, %s119
      %p125 = scmp.eq.s32.totalorder %s17, 0
      %p126 = por %p124, %p125
      %p127 = scmp.ne.s32.totalorder %s116, %s119
      %p128 = scmp.eq.s32.totalorder %s22, 1
      %p129 = por %p127, %p128
      %p130 = scmp.ne.s32.totalorder %s119, %s120
      %p131 = scmp.eq.s32.totalorder %s22, 0
      %p132 = por %p130, %p131
      %p133 = scmp.ne.s32.totalorder %s119, %s120
      %p134 = scmp.eq.s32.totalorder %s23, 1
      %p135 = por %p133, %p134
      %p137 = scmp.ne.s32.totalorder %s120, %s136
      %p138 = scmp.eq.s32.totalorder %s23, 0
      %p139 = por %p137, %p138
      %s140 = ssub.s32 %s17, %s24
      %p141 = scmp.eq.s32.totalorder %s140, 0
      %s143 = sadd.s32 %s142, 1
      %s144 = scalar_select %p141, %s142, %s143
      %p147 = pneg %p141
      %p148 = scmp.eq.s32.totalorder %s17, 1
      %p149 = por %p147, %p148
      %p150 = scmp.ne.s32.totalorder %s142, %s145
      %p151 = scmp.eq.s32.totalorder %s17, 0
      %p152 = por %p150, %p151
      %p153 = scmp.ne.s32.totalorder %s142, %s145
      %p154 = scmp.eq.s32.totalorder %s22, 1
      %p155 = por %p153, %p154
      %p156 = scmp.ne.s32.totalorder %s145, %s146
      %p157 = scmp.eq.s32.totalorder %s22, 0
      %p158 = por %p156, %p157
      %p159 = scmp.ne.s32.totalorder %s145, %s146
      %p160 = scmp.eq.s32.totalorder %s23, 1
      %p161 = por %p159, %p160
      %p163 = scmp.ne.s32.totalorder %s146, %s162
      %p164 = scmp.eq.s32.totalorder %s23, 0
      %p165 = por %p163, %p164
      %s166 = ssub.s32 %s17, %s24
      %p167 = scmp.eq.s32.totalorder %s166, 0
      %s169 = sadd.s32 %s168, 1
      %s170 = scalar_select %p167, %s168, %s169
      %p173 = pneg %p167
      %p174 = scmp.eq.s32.totalorder %s17, 1
      %p175 = por %p173, %p174
      %p176 = scmp.ne.s32.totalorder %s168, %s171
      %p177 = scmp.eq.s32.totalorder %s17, 0
      %p178 = por %p176, %p177
      %p179 = scmp.ne.s32.totalorder %s168, %s171
      %p180 = scmp.eq.s32.totalorder %s22, 1
      %p181 = por %p179, %p180
      %p182 = scmp.ne.s32.totalorder %s171, %s172
      %p183 = scmp.eq.s32.totalorder %s22, 0
      %p184 = por %p182, %p183
      %p185 = scmp.ne.s32.totalorder %s171, %s172
      %p186 = scmp.eq.s32.totalorder %s23, 1
      %p187 = por %p185, %p186
      %p189 = scmp.ne.s32.totalorder %s172, %s188
      %p190 = scmp.eq.s32.totalorder %s23, 0
      %p191 = por %p189, %p190
      %p192 = scmp.le.s32.totalorder 1, %s17
      %p193 = scmp.lt.s32.totalorder %s17, 3
      %p194 = pnand %p192, %p193
      %p195 = pneg %p194
      // Predicated region
      $region9: #{forward.4} parent=5 // pred_check
        _
      $region10: #{forward.4} parent=5 // pred_check_branch
        %197 = sbr.rel (%p194) target = $region12
      $region11: #{forward.4} parent=5 // pred_region
        %s198 = ssub.s32 %s17, 1
        // Predicated region
        $region13: #{forward.4} parent=11 // pred_check
          %p199 = pneg %p38
        $region14: #{forward.4} parent=11 // pred_check_branch
          %201 = sbr.rel (%p199) target = $region16
        $region15: #{forward.4} parent=11 // pred_region
          %203 = vsyncadd [#allocation3], 0
          %s204 = sshll.u32 %s0, 4
          %s205 = int_to_ptr.hbm [resolvable:$true] %s204
          %s206 = sshll.u32 [#allocation2], 4
          %s207 = int_to_ptr.vmem [resolvable:$true] %s206
          %212 = dma.hbm_to_vmem [thread:$0]  %s205, 40960, %s207, [#allocation3], 1280, 1280, 80
        $region16: #{forward.4} parent=11 // pred_fallthru
          _
        // Predicated region
        $region17: #{forward.4} parent=11 // pred_check
          %p213 = pneg %p85
        $region18: #{forward.4} parent=11 // pred_check_branch
          %215 = sbr.rel (%p213) target = $region20
        $region19: #{forward.4} parent=11 // pred_region
          _
        $region20: #{forward.4} parent=11 // pred_fallthru
          _
        // Predicated region
        $region21: #{forward.4} parent=11 // pred_check
          %p216 = pneg %p106
        $region22: #{forward.4} parent=11 // pred_check_branch
          %218 = sbr.rel (%p216) target = $region24
        $region23: #{forward.4} parent=11 // pred_region
          _
        $region24: #{forward.4} parent=11 // pred_fallthru
          _
      $region12: #{forward.4} parent=5 // pred_fallthru
        _
      %p219 = scmp.lt.s32.totalorder %s17, 2
      // Predicated region
      $region25: #{forward.4} parent=5 // pred_check
        %p220 = pneg %p219
      $region26: #{forward.4} parent=5 // pred_check_branch
        %222 = sbr.rel (%p220) target = $region28
      $region27: #{forward.4} parent=5 // pred_region
        // Predicated region
        $region29: #{forward.4} parent=27 // pred_check
          %p223 = pneg %p58
        $region30: #{forward.4} parent=27 // pred_check_branch
          %225 = sbr.rel (%p223) target = $region32
        $region31: #{forward.4} parent=27 // pred_region
          %p226 = scmp.lt.s32.totalorder %s17, 1
          %s227 = scalar_select %p226, %s17, 1
          %s228 = smul.addr %s227, 2
          %s229 = scalar_lea.vmem %s1, %s228
        $region32: #{forward.4} parent=27 // pred_fallthru
          _
        // Predicated region
        $region33: #{forward.4} parent=27 // pred_check
          %p230 = pneg %p126
        $region34: #{forward.4} parent=27 // pred_check_branch
          %232 = sbr.rel (%p230) target = $region36
        $region35: #{forward.4} parent=27 // pred_region
          %s233 = sand.u32 %s116, 1
          %s234 = scalar_lea.sflag [#allocation5], %s233
          %s235 = sand.u32 %s116, 1
          %s236 = smul.addr %s235, 2
          %s237 = scalar_lea.vmem [#allocation4], %s236
          %239 = vsyncadd %s234, 0
          %s240 = smul.addr %s17, 2
          %s241 = scalar_lea.hbm %s4, %s240
          %s243 = sshll.u32 %s241, 4
          %s244 = int_to_ptr.hbm [resolvable:$true] %s243
          %s245 = sshll.u32 %s237, 4
          %s246 = int_to_ptr.vmem [resolvable:$true] %s245
          %248 = dma.hbm_to_vmem [thread:$0]  %s244, 32, %s246, %s234
        $region36: #{forward.4} parent=27 // pred_fallthru
          _
      $region28: #{forward.4} parent=5 // pred_fallthru
        _
      %p249 = scmp.le.s32.totalorder 1, %s17
      %p250 = scmp.lt.s32.totalorder %s17, 3
      %p251 = pnand %p249, %p250
      %p252 = pneg %p251
      // Predicated region
      $region37: #{forward.4} parent=5 // pred_check
        _
      $region38: #{forward.4} parent=5 // pred_check_branch
        %254 = sbr.rel (%p251) target = $region40
      $region39: #{forward.4} parent=5 // pred_region
        %s255 = ssub.s32 %s17, 1
        // Predicated region
        $region41: #{forward.4} parent=39 // pred_check
          %p256 = pneg %p38
        $region42: #{forward.4} parent=39 // pred_check_branch
          %258 = sbr.rel (%p256) target = $region44
        $region43: #{forward.4} parent=39 // pred_region
          %260 = dma.done [#allocation3], 40960
        $region44: #{forward.4} parent=39 // pred_fallthru
          _
        %s261 = sand.u32 %s119, 1
        %s262 = scalar_lea.sflag [#allocation5], %s261
        %s263 = sand.u32 %s119, 1
        %s264 = smul.addr %s263, 2
        %s265 = scalar_lea.vmem [#allocation4], %s264
        // Predicated region
        $region45: #{forward.4} parent=39 // pred_check
          %p266 = pneg %p132
        $region46: #{forward.4} parent=39 // pred_check_branch
          %268 = sbr.rel (%p266) target = $region48
        $region47: #{forward.4} parent=39 // pred_region
          %270 = dma.done %s262, 32
        $region48: #{forward.4} parent=39 // pred_fallthru
          _
        %p271 = pneg %p38
        %p272 = pneg %p35
        %p273 = scmp.lt.s32.totalorder %s22, 1
        %s274 = scalar_select %p273, %s22, 1
        %s275 = smul.addr %s274, 2
        %s276 = scalar_lea.vmem %s1, %s275
        %p277 = pneg %p64
        %p278 = pneg %p61
        %p279 = pneg %p85
        %p280 = pneg %p82
        %p281 = pneg %p106
        %p282 = pneg %p103
        %s283 = sand.u32 %s119, 1
        %s284 = scalar_lea.sflag [#allocation5], %s283
        %s285 = sand.u32 %s119, 1
        %s286 = smul.addr %s285, 2
        %s287 = scalar_lea.vmem [#allocation4], %s286
        %p288 = pneg %p132
        %p289 = pneg %p129
        %p290 = pneg %p158
        %p291 = pneg %p155
        %p292 = scmp.lt.s32.totalorder %s22, 1
        %s293 = scalar_select %p292, %s22, 1
        %s294 = smul.addr %s293, 2
        %s295 = smul.addr %s294, 4
        %s296 = scalar_lea.vmem %s5, %s295
        %p297 = pneg %p184
        %p298 = pneg %p181
        %p299 = scmp.lt.s32.totalorder %s22, 1
        %s300 = scalar_select %p299, %s22, 1
        %s301 = smul.addr %s300, 2
        %s302 = scalar_lea.vmem %s6, %s301
        %p303 = scmp.lt.s32.totalorder %s22, 1
        %s304 = scalar_select %p303, %s22, 1
        %s305 = smul.addr %s304, 2
        %s306 = scalar_lea.vmem %s1, %s305
        %p307 = scmp.lt.s32.totalorder %s22, 1
        %s308 = scalar_select %p307, %s22, 1
        %s309 = smul.addr %s308, 2
        %s310 = smul.addr %s309, 4
        %s311 = scalar_lea.vmem %s5, %s310
        %p312 = scmp.lt.s32.totalorder %s22, 1
        %s313 = scalar_select %p312, %s22, 1
        %s314 = smul.addr %s313, 2
        %s315 = scalar_lea.vmem %s6, %s314
        %v316 = vld [vmem:[%s306] sm:$0x3]
        %v318 = vperm.slane %v316, 0
        %v319 = vperm.slane %v316, 1
        %vm322 = vcmask 1040384
        %v323 = vsel %vm322, %v318, 0.0
        %v324 = vsel %vm322, %v319, 0.0
        %v325 = vadd.f32 %v323, %v324
        %326 = vadd.xlane.f32.xlu0 %v325
        %v327 = vpop.xlane.xlu0 %326
        %v328 = vrcp.pop 256.0
        %v329 = vmul.f32 256.0, %v328
        %v330 = vsub.f32 1.0, %v329
        %v331 = vmul.f32 %v328, %v330
        %v332 = vadd.f32 %v328, %v331
        %vm333 = vweird.f32 %v328
        %v334 = vsel %vm333, %v328, %v332
        %v335 = vmul.f32 %v327, %v334
        %v337 = vperm.slane %v335, 0
        %v339 = vsub.f32 %v316, %v337
        %v340 = vld [vmem:[%s265] sm:$0x3]
        %v341 = vld [vmem:[#allocation2] sm:$0xff]
        %v342 = vld [vmem:[#allocation2 + $0x8] sm:$0xff]
        %v343 = vld [vmem:[#allocation2 + $0x50] sm:$0xff]
        %v344 = vld [vmem:[#allocation2 + $0x58] sm:$0xff]
        %v345 = vld [vmem:[#allocation2 + $0xa0] sm:$0xff]
        %v346 = vld [vmem:[#allocation2 + $0xa8] sm:$0xff]
        %v347 = vld [vmem:[#allocation2 + $0xf0] sm:$0xff]
        %v348 = vld [vmem:[#allocation2 + $0xf8] sm:$0xff]
        %v349 = vld [vmem:[#allocation2 + $0x140] sm:$0xff]
        %v350 = vld [vmem:[#allocation2 + $0x148] sm:$0xff]
        %v351 = vld [vmem:[#allocation2 + $0x190] sm:$0xff]
        %v352 = vld [vmem:[#allocation2 + $0x198] sm:$0xff]
        %v353 = vld [vmem:[#allocation2 + $0x1e0] sm:$0xff]
        %v354 = vld [vmem:[#allocation2 + $0x1e8] sm:$0xff]
        %v355 = vld [vmem:[#allocation2 + $0x230] sm:$0xff]
        %v356 = vld [vmem:[#allocation2 + $0x238] sm:$0xff]
        %v357 = vld [vmem:[#allocation2 + $0x280] sm:$0xff]
        %v358 = vld [vmem:[#allocation2 + $0x288] sm:$0xff]
        %v359 = vld [vmem:[#allocation2 + $0x2d0] sm:$0xff]
        %v360 = vld [vmem:[#allocation2 + $0x2d8] sm:$0xff]
        %v361 = vld [vmem:[#allocation2 + $0x320] sm:$0xff]
        %v362 = vld [vmem:[#allocation2 + $0x328] sm:$0xff]
        %v363 = vld [vmem:[#allocation2 + $0x370] sm:$0xff]
        %v364 = vld [vmem:[#allocation2 + $0x378] sm:$0xff]
        %v365 = vld [vmem:[#allocation2 + $0x3c0] sm:$0xff]
        %v366 = vld [vmem:[#allocation2 + $0x3c8] sm:$0xff]
        %v367 = vld [vmem:[#allocation2 + $0x410] sm:$0xff]
        %v368 = vld [vmem:[#allocation2 + $0x418] sm:$0xff]
        %v369 = vld [vmem:[#allocation2 + $0x460] sm:$0xff]
        %v370 = vld [vmem:[#allocation2 + $0x468] sm:$0xff]
        %v371 = vld [vmem:[#allocation2 + $0x4b0] sm:$0xff]
        %v372 = vld [vmem:[#allocation2 + $0x4b8] sm:$0xff]
        %v373 = vld [vmem:[#allocation2 + $0x500] sm:$0xff]
        %v374 = vld [vmem:[#allocation2 + $0x508] sm:$0xff]
        %v375 = vld [vmem:[#allocation2 + $0x550] sm:$0xff]
        %v376 = vld [vmem:[#allocation2 + $0x558] sm:$0xff]
        %v377 = vld [vmem:[#allocation2 + $0x5a0] sm:$0xff]
        %v378 = vld [vmem:[#allocation2 + $0x5a8] sm:$0xff]
        %v379 = vld [vmem:[#allocation2 + $0x5f0] sm:$0xff]
        %v380 = vld [vmem:[#allocation2 + $0x5f8] sm:$0xff]
        %v381 = vld [vmem:[#allocation2 + $0x640] sm:$0xff]
        %v382 = vld [vmem:[#allocation2 + $0x648] sm:$0xff]
        %v383 = vld [vmem:[#allocation2 + $0x690] sm:$0xff]
        %v384 = vld [vmem:[#allocation2 + $0x698] sm:$0xff]
        %v385 = vld [vmem:[#allocation2 + $0x6e0] sm:$0xff]
        %v386 = vld [vmem:[#allocation2 + $0x6e8] sm:$0xff]
        %v387 = vld [vmem:[#allocation2 + $0x730] sm:$0xff]
        %v388 = vld [vmem:[#allocation2 + $0x738] sm:$0xff]
        %v389 = vld [vmem:[#allocation2 + $0x780] sm:$0xff]
        %v390 = vld [vmem:[#allocation2 + $0x788] sm:$0xff]
        %v391 = vld [vmem:[#allocation2 + $0x7d0] sm:$0xff]
        %v392 = vld [vmem:[#allocation2 + $0x7d8] sm:$0xff]
        %v393 = vld [vmem:[#allocation2 + $0x820] sm:$0xff]
        %v394 = vld [vmem:[#allocation2 + $0x828] sm:$0xff]
        %v395 = vld [vmem:[#allocation2 + $0x870] sm:$0xff]
        %v396 = vld [vmem:[#allocation2 + $0x878] sm:$0xff]
        %v397 = vld [vmem:[#allocation2 + $0x8c0] sm:$0xff]
        %v398 = vld [vmem:[#allocation2 + $0x8c8] sm:$0xff]
        %v399 = vld [vmem:[#allocation2 + $0x910] sm:$0xff]
        %v400 = vld [vmem:[#allocation2 + $0x918] sm:$0xff]
        %v401 = vld [vmem:[#allocation2 + $0x960] sm:$0xff]
        %v402 = vld [vmem:[#allocation2 + $0x968] sm:$0xff]
        %v403 = vld [vmem:[#allocation2 + $0x9b0] sm:$0xff]
        %v404 = vld [vmem:[#allocation2 + $0x9b8] sm:$0xff]
        %v406 = vperm.slane %v339, 0
        %v407 = vperm.slane %v339, 1
        %410 = vmatpush.msra.mxu0 %v371
        %411 = vmatpush.msra.mxu0 %v369
        %412 = vmatpush.msra.mxu0 %v367
        %413 = vmatpush.msra.mxu0 %v365
        %414 = vmatpush.msra.mxu0 %v363
        %415 = vmatpush.msra.mxu0 %v361
        %416 = vmatpush.msra.mxu0 %v359
        %417 = vmatpush.msra.mxu0 %v357
        %418 = vmatpush.msra.mxu0 %v355
        %419 = vmatpush.msra.mxu0 %v353
        %420 = vmatpush.msra.mxu0 %v351
        %421 = vmatpush.msra.mxu0 %v349
        %422 = vmatpush.msra.mxu0 %v347
        %423 = vmatpush.msra.mxu0 %v345
        %424 = vmatpush.msra.mxu0 %v343
        %425 = vmatpush.msra.mxu0 %v341
        %426 = vmatmul.f32.gmra.mxu0 %v406
        %v427 = vpop.f32.mrf.mxu0
        %v428 = vadd.f32 0.0, %v427
        %429 = vdwg.mxu0
        %430 = vmatpush.msra.mxu0 %v403
        %431 = vmatpush.msra.mxu0 %v401
        %432 = vmatpush.msra.mxu0 %v399
        %433 = vmatpush.msra.mxu0 %v397
        %434 = vmatpush.msra.mxu0 %v395
        %435 = vmatpush.msra.mxu0 %v393
        %436 = vmatpush.msra.mxu0 %v391
        %437 = vmatpush.msra.mxu0 %v389
        %438 = vmatpush.msra.mxu0 %v387
        %439 = vmatpush.msra.mxu0 %v385
        %440 = vmatpush.msra.mxu0 %v383
        %441 = vmatpush.msra.mxu0 %v381
        %442 = vmatpush.msra.mxu0 %v379
        %443 = vmatpush.msra.mxu0 %v377
        %444 = vmatpush.msra.mxu0 %v375
        %445 = vmatpush.msra.mxu0 %v373
        %446 = vmatmul.f32.gmra.mxu0 %v407
        %v447 = vpop.f32.mrf.mxu0
        %v448 = vadd.f32 %v428, %v447
        %449 = vdwg.mxu0
        %450 = vmatpush.msra.mxu0 %v372
        %451 = vmatpush.msra.mxu0 %v370
        %452 = vmatpush.msra.mxu0 %v368
        %453 = vmatpush.msra.mxu0 %v366
        %454 = vmatpush.msra.mxu0 %v364
        %455 = vmatpush.msra.mxu0 %v362
        %456 = vmatpush.msra.mxu0 %v360
        %457 = vmatpush.msra.mxu0 %v358
        %458 = vmatpush.msra.mxu0 %v356
        %459 = vmatpush.msra.mxu0 %v354
        %460 = vmatpush.msra.mxu0 %v352
        %461 = vmatpush.msra.mxu0 %v350
        %462 = vmatpush.msra.mxu0 %v348
        %463 = vmatpush.msra.mxu0 %v346
        %464 = vmatpush.msra.mxu0 %v344
        %465 = vmatpush.msra.mxu0 %v342
        %466 = vmatmul.f32.gmra.mxu0 %v406
        %v467 = vpop.f32.mrf.mxu0
        %v468 = vadd.f32 0.0, %v467
        %469 = vdwg.mxu0
        %470 = vmatpush.msra.mxu0 %v404
        %471 = vmatpush.msra.mxu0 %v402
        %472 = vmatpush.msra.mxu0 %v400
        %473 = vmatpush.msra.mxu0 %v398
        %474 = vmatpush.msra.mxu0 %v396
        %475 = vmatpush.msra.mxu0 %v394
        %476 = vmatpush.msra.mxu0 %v392
        %477 = vmatpush.msra.mxu0 %v390
        %478 = vmatpush.msra.mxu0 %v388
        %479 = vmatpush.msra.mxu0 %v386
        %480 = vmatpush.msra.mxu0 %v384
        %481 = vmatpush.msra.mxu0 %v382
        %482 = vmatpush.msra.mxu0 %v380
        %483 = vmatpush.msra.mxu0 %v378
        %484 = vmatpush.msra.mxu0 %v376
        %485 = vmatpush.msra.mxu0 %v374
        %486 = vmatmul.f32.gmra.mxu0 %v407
        %v487 = vpop.f32.mrf.mxu0
        %v488 = vadd.f32 %v468, %v487
        %489 = vdwg.mxu0
        %v490 = vld [vmem:[%s2] sm:$0x7]
        %492 = vset.pattern.permute.xlu0 0
        %493 = vperm.xlu0 %492, %v490
        %v494 = vpop.permute.xlu0 %493
        %v496 = vperm.slane %v448, 0
        %v497 = vperm.slane %v488, 0
        %v498 = vmul.f32 %v494, %v496
        %v499 = vmul.f32 %v494, %v497
        %v500 = vld [vmem:[#allocation2 + $0x10] sm:$0xff]
        %v501 = vld [vmem:[#allocation2 + $0x18] sm:$0xff]
        %v502 = vld [vmem:[#allocation2 + $0x60] sm:$0xff]
        %v503 = vld [vmem:[#allocation2 + $0x68] sm:$0xff]
        %v504 = vld [vmem:[#allocation2 + $0xb0] sm:$0xff]
        %v505 = vld [vmem:[#allocation2 + $0xb8] sm:$0xff]
        %v506 = vld [vmem:[#allocation2 + $0x100] sm:$0xff]
        %v507 = vld [vmem:[#allocation2 + $0x108] sm:$0xff]
        %v508 = vld [vmem:[#allocation2 + $0x150] sm:$0xff]
        %v509 = vld [vmem:[#allocation2 + $0x158] sm:$0xff]
        %v510 = vld [vmem:[#allocation2 + $0x1a0] sm:$0xff]
        %v511 = vld [vmem:[#allocation2 + $0x1a8] sm:$0xff]
        %v512 = vld [vmem:[#allocation2 + $0x1f0] sm:$0xff]
        %v513 = vld [vmem:[#allocation2 + $0x1f8] sm:$0xff]
        %v514 = vld [vmem:[#allocation2 + $0x240] sm:$0xff]
        %v515 = vld [vmem:[#allocation2 + $0x248] sm:$0xff]
        %v516 = vld [vmem:[#allocation2 + $0x290] sm:$0xff]
        %v517 = vld [vmem:[#allocation2 + $0x298] sm:$0xff]
        %v518 = vld [vmem:[#allocation2 + $0x2e0] sm:$0xff]
        %v519 = vld [vmem:[#allocation2 + $0x2e8] sm:$0xff]
        %v520 = vld [vmem:[#allocation2 + $0x330] sm:$0xff]
        %v521 = vld [vmem:[#allocation2 + $0x338] sm:$0xff]
        %v522 = vld [vmem:[#allocation2 + $0x380] sm:$0xff]
        %v523 = vld [vmem:[#allocation2 + $0x388] sm:$0xff]
        %v524 = vld [vmem:[#allocation2 + $0x3d0] sm:$0xff]
        %v525 = vld [vmem:[#allocation2 + $0x3d8] sm:$0xff]
        %v526 = vld [vmem:[#allocation2 + $0x420] sm:$0xff]
        %v527 = vld [vmem:[#allocation2 + $0x428] sm:$0xff]
        %v528 = vld [vmem:[#allocation2 + $0x470] sm:$0xff]
        %v529 = vld [vmem:[#allocation2 + $0x478] sm:$0xff]
        %v530 = vld [vmem:[#allocation2 + $0x4c0] sm:$0xff]
        %v531 = vld [vmem:[#allocation2 + $0x4c8] sm:$0xff]
        %v532 = vld [vmem:[#allocation2 + $0x510] sm:$0xff]
        %v533 = vld [vmem:[#allocation2 + $0x518] sm:$0xff]
        %v534 = vld [vmem:[#allocation2 + $0x560] sm:$0xff]
        %v535 = vld [vmem:[#allocation2 + $0x568] sm:$0xff]
        %v536 = vld [vmem:[#allocation2 + $0x5b0] sm:$0xff]
        %v537 = vld [vmem:[#allocation2 + $0x5b8] sm:$0xff]
        %v538 = vld [vmem:[#allocation2 + $0x600] sm:$0xff]
        %v539 = vld [vmem:[#allocation2 + $0x608] sm:$0xff]
        %v540 = vld [vmem:[#allocation2 + $0x650] sm:$0xff]
        %v541 = vld [vmem:[#allocation2 + $0x658] sm:$0xff]
        %v542 = vld [vmem:[#allocation2 + $0x6a0] sm:$0xff]
        %v543 = vld [vmem:[#allocation2 + $0x6a8] sm:$0xff]
        %v544 = vld [vmem:[#allocation2 + $0x6f0] sm:$0xff]
        %v545 = vld [vmem:[#allocation2 + $0x6f8] sm:$0xff]
        %v546 = vld [vmem:[#allocation2 + $0x740] sm:$0xff]
        %v547 = vld [vmem:[#allocation2 + $0x748] sm:$0xff]
        %v548 = vld [vmem:[#allocation2 + $0x790] sm:$0xff]
        %v549 = vld [vmem:[#allocation2 + $0x798] sm:$0xff]
        %v550 = vld [vmem:[#allocation2 + $0x7e0] sm:$0xff]
        %v551 = vld [vmem:[#allocation2 + $0x7e8] sm:$0xff]
        %v552 = vld [vmem:[#allocation2 + $0x830] sm:$0xff]
        %v553 = vld [vmem:[#allocation2 + $0x838] sm:$0xff]
        %v554 = vld [vmem:[#allocation2 + $0x880] sm:$0xff]
        %v555 = vld [vmem:[#allocation2 + $0x888] sm:$0xff]
        %v556 = vld [vmem:[#allocation2 + $0x8d0] sm:$0xff]
        %v557 = vld [vmem:[#allocation2 + $0x8d8] sm:$0xff]
        %v558 = vld [vmem:[#allocation2 + $0x920] sm:$0xff]
        %v559 = vld [vmem:[#allocation2 + $0x928] sm:$0xff]
        %v560 = vld [vmem:[#allocation2 + $0x970] sm:$0xff]
        %v561 = vld [vmem:[#allocation2 + $0x978] sm:$0xff]
        %v562 = vld [vmem:[#allocation2 + $0x9c0] sm:$0xff]
        %v563 = vld [vmem:[#allocation2 + $0x9c8] sm:$0xff]
        %564 = vmatpush.msra.mxu0 %v530
        %565 = vmatpush.msra.mxu0 %v528
        %566 = vmatpush.msra.mxu0 %v526
        %567 = vmatpush.msra.mxu0 %v524
        %568 = vmatpush.msra.mxu0 %v522
        %569 = vmatpush.msra.mxu0 %v520
        %570 = vmatpush.msra.mxu0 %v518
        %571 = vmatpush.msra.mxu0 %v516
        %572 = vmatpush.msra.mxu0 %v514
        %573 = vmatpush.msra.mxu0 %v512
        %574 = vmatpush.msra.mxu0 %v510
        %575 = vmatpush.msra.mxu0 %v508
        %576 = vmatpush.msra.mxu0 %v506
        %577 = vmatpush.msra.mxu0 %v504
        %578 = vmatpush.msra.mxu0 %v502
        %579 = vmatpush.msra.mxu0 %v500
        %580 = vmatmul.f32.gmra.mxu0 %v406
        %v581 = vpop.f32.mrf.mxu0
        %v582 = vadd.f32 0.0, %v581
        %583 = vdwg.mxu0
        %584 = vmatpush.msra.mxu0 %v562
        %585 = vmatpush.msra.mxu0 %v560
        %586 = vmatpush.msra.mxu0 %v558
        %587 = vmatpush.msra.mxu0 %v556
        %588 = vmatpush.msra.mxu0 %v554
        %589 = vmatpush.msra.mxu0 %v552
        %590 = vmatpush.msra.mxu0 %v550
        %591 = vmatpush.msra.mxu0 %v548
        %592 = vmatpush.msra.mxu0 %v546
        %593 = vmatpush.msra.mxu0 %v544
        %594 = vmatpush.msra.mxu0 %v542
        %595 = vmatpush.msra.mxu0 %v540
        %596 = vmatpush.msra.mxu0 %v538
        %597 = vmatpush.msra.mxu0 %v536
        %598 = vmatpush.msra.mxu0 %v534
        %599 = vmatpush.msra.mxu0 %v532
        %600 = vmatmul.f32.gmra.mxu0 %v407
        %v601 = vpop.f32.mrf.mxu0
        %v602 = vadd.f32 %v582, %v601
        %603 = vdwg.mxu0
        %604 = vmatpush.msra.mxu0 %v531
        %605 = vmatpush.msra.mxu0 %v529
        %606 = vmatpush.msra.mxu0 %v527
        %607 = vmatpush.msra.mxu0 %v525
        %608 = vmatpush.msra.mxu0 %v523
        %609 = vmatpush.msra.mxu0 %v521
        %610 = vmatpush.msra.mxu0 %v519
        %611 = vmatpush.msra.mxu0 %v517
        %612 = vmatpush.msra.mxu0 %v515
        %613 = vmatpush.msra.mxu0 %v513
        %614 = vmatpush.msra.mxu0 %v511
        %615 = vmatpush.msra.mxu0 %v509
        %616 = vmatpush.msra.mxu0 %v507
        %617 = vmatpush.msra.mxu0 %v505
        %618 = vmatpush.msra.mxu0 %v503
        %619 = vmatpush.msra.mxu0 %v501
        %620 = vmatmul.f32.gmra.mxu0 %v406
        %v621 = vpop.f32.mrf.mxu0
        %v622 = vadd.f32 0.0, %v621
        %623 = vdwg.mxu0
        %624 = vmatpush.msra.mxu0 %v563
        %625 = vmatpush.msra.mxu0 %v561
        %626 = vmatpush.msra.mxu0 %v559
        %627 = vmatpush.msra.mxu0 %v557
        %628 = vmatpush.msra.mxu0 %v555
        %629 = vmatpush.msra.mxu0 %v553
        %630 = vmatpush.msra.mxu0 %v551
        %631 = vmatpush.msra.mxu0 %v549
        %632 = vmatpush.msra.mxu0 %v547
        %633 = vmatpush.msra.mxu0 %v545
        %634 = vmatpush.msra.mxu0 %v543
        %635 = vmatpush.msra.mxu0 %v541
        %636 = vmatpush.msra.mxu0 %v539
        %637 = vmatpush.msra.mxu0 %v537
        %638 = vmatpush.msra.mxu0 %v535
        %639 = vmatpush.msra.mxu0 %v533
        %640 = vmatmul.f32.gmra.mxu0 %v407
        %v641 = vpop.f32.mrf.mxu0
        %v642 = vadd.f32 %v622, %v641
        %643 = vdwg.mxu0
        %s644 = scalar_lea.vmem %s2, 4
        %v645 = vld [vmem:[%s644] sm:$0x7]
        %647 = vset.pattern.permute.xlu0 0
        %648 = vperm.xlu0 %647, %v645
        %v649 = vpop.permute.xlu0 %648
        %v651 = vperm.slane %v602, 0
        %v652 = vperm.slane %v642, 0
        %v653 = vmul.f32 %v649, %v651
        %v654 = vmul.f32 %v649, %v652
        %v655 = vadd.f32 %v498, %v653
        %v656 = vadd.f32 %v499, %v654
        %v657 = vld [vmem:[#allocation2 + $0x20] sm:$0xff]
        %v658 = vld [vmem:[#allocation2 + $0x28] sm:$0xff]
        %v659 = vld [vmem:[#allocation2 + $0x70] sm:$0xff]
        %v660 = vld [vmem:[#allocation2 + $0x78] sm:$0xff]
        %v661 = vld [vmem:[#allocation2 + $0xc0] sm:$0xff]
        %v662 = vld [vmem:[#allocation2 + $0xc8] sm:$0xff]
        %v663 = vld [vmem:[#allocation2 + $0x110] sm:$0xff]
        %v664 = vld [vmem:[#allocation2 + $0x118] sm:$0xff]
        %v665 = vld [vmem:[#allocation2 + $0x160] sm:$0xff]
        %v666 = vld [vmem:[#allocation2 + $0x168] sm:$0xff]
        %v667 = vld [vmem:[#allocation2 + $0x1b0] sm:$0xff]
        %v668 = vld [vmem:[#allocation2 + $0x1b8] sm:$0xff]
        %v669 = vld [vmem:[#allocation2 + $0x200] sm:$0xff]
        %v670 = vld [vmem:[#allocation2 + $0x208] sm:$0xff]
        %v671 = vld [vmem:[#allocation2 + $0x250] sm:$0xff]
        %v672 = vld [vmem:[#allocation2 + $0x258] sm:$0xff]
        %v673 = vld [vmem:[#allocation2 + $0x2a0] sm:$0xff]
        %v674 = vld [vmem:[#allocation2 + $0x2a8] sm:$0xff]
        %v675 = vld [vmem:[#allocation2 + $0x2f0] sm:$0xff]
        %v676 = vld [vmem:[#allocation2 + $0x2f8] sm:$0xff]
        %v677 = vld [vmem:[#allocation2 + $0x340] sm:$0xff]
        %v678 = vld [vmem:[#allocation2 + $0x348] sm:$0xff]
        %v679 = vld [vmem:[#allocation2 + $0x390] sm:$0xff]
        %v680 = vld [vmem:[#allocation2 + $0x398] sm:$0xff]
        %v681 = vld [vmem:[#allocation2 + $0x3e0] sm:$0xff]
        %v682 = vld [vmem:[#allocation2 + $0x3e8] sm:$0xff]
        %v683 = vld [vmem:[#allocation2 + $0x430] sm:$0xff]
        %v684 = vld [vmem:[#allocation2 + $0x438] sm:$0xff]
        %v685 = vld [vmem:[#allocation2 + $0x480] sm:$0xff]
        %v686 = vld [vmem:[#allocation2 + $0x488] sm:$0xff]
        %v687 = vld [vmem:[#allocation2 + $0x4d0] sm:$0xff]
        %v688 = vld [vmem:[#allocation2 + $0x4d8] sm:$0xff]
        %v689 = vld [vmem:[#allocation2 + $0x520] sm:$0xff]
        %v690 = vld [vmem:[#allocation2 + $0x528] sm:$0xff]
        %v691 = vld [vmem:[#allocation2 + $0x570] sm:$0xff]
        %v692 = vld [vmem:[#allocation2 + $0x578] sm:$0xff]
        %v693 = vld [vmem:[#allocation2 + $0x5c0] sm:$0xff]
        %v694 = vld [vmem:[#allocation2 + $0x5c8] sm:$0xff]
        %v695 = vld [vmem:[#allocation2 + $0x610] sm:$0xff]
        %v696 = vld [vmem:[#allocation2 + $0x618] sm:$0xff]
        %v697 = vld [vmem:[#allocation2 + $0x660] sm:$0xff]
        %v698 = vld [vmem:[#allocation2 + $0x668] sm:$0xff]
        %v699 = vld [vmem:[#allocation2 + $0x6b0] sm:$0xff]
        %v700 = vld [vmem:[#allocation2 + $0x6b8] sm:$0xff]
        %v701 = vld [vmem:[#allocation2 + $0x700] sm:$0xff]
        %v702 = vld [vmem:[#allocation2 + $0x708] sm:$0xff]
        %v703 = vld [vmem:[#allocation2 + $0x750] sm:$0xff]
        %v704 = vld [vmem:[#allocation2 + $0x758] sm:$0xff]
        %v705 = vld [vmem:[#allocation2 + $0x7a0] sm:$0xff]
        %v706 = vld [vmem:[#allocation2 + $0x7a8] sm:$0xff]
        %v707 = vld [vmem:[#allocation2 + $0x7f0] sm:$0xff]
        %v708 = vld [vmem:[#allocation2 + $0x7f8] sm:$0xff]
        %v709 = vld [vmem:[#allocation2 + $0x840] sm:$0xff]
        %v710 = vld [vmem:[#allocation2 + $0x848] sm:$0xff]
        %v711 = vld [vmem:[#allocation2 + $0x890] sm:$0xff]
        %v712 = vld [vmem:[#allocation2 + $0x898] sm:$0xff]
        %v713 = vld [vmem:[#allocation2 + $0x8e0] sm:$0xff]
        %v714 = vld [vmem:[#allocation2 + $0x8e8] sm:$0xff]
        %v715 = vld [vmem:[#allocation2 + $0x930] sm:$0xff]
        %v716 = vld [vmem:[#allocation2 + $0x938] sm:$0xff]
        %v717 = vld [vmem:[#allocation2 + $0x980] sm:$0xff]
        %v718 = vld [vmem:[#allocation2 + $0x988] sm:$0xff]
        %v719 = vld [vmem:[#allocation2 + $0x9d0] sm:$0xff]
        %v720 = vld [vmem:[#allocation2 + $0x9d8] sm:$0xff]
        %721 = vmatpush.msra.mxu0 %v687
        %722 = vmatpush.msra.mxu0 %v685
        %723 = vmatpush.msra.mxu0 %v683
        %724 = vmatpush.msra.mxu0 %v681
        %725 = vmatpush.msra.mxu0 %v679
        %726 = vmatpush.msra.mxu0 %v677
        %727 = vmatpush.msra.mxu0 %v675
        %728 = vmatpush.msra.mxu0 %v673
        %729 = vmatpush.msra.mxu0 %v671
        %730 = vmatpush.msra.mxu0 %v669
        %731 = vmatpush.msra.mxu0 %v667
        %732 = vmatpush.msra.mxu0 %v665
        %733 = vmatpush.msra.mxu0 %v663
        %734 = vmatpush.msra.mxu0 %v661
        %735 = vmatpush.msra.mxu0 %v659
        %736 = vmatpush.msra.mxu0 %v657
        %737 = vmatmul.f32.gmra.mxu0 %v406
        %v738 = vpop.f32.mrf.mxu0
        %v739 = vadd.f32 0.0, %v738
        %740 = vdwg.mxu0
        %741 = vmatpush.msra.mxu0 %v719
        %742 = vmatpush.msra.mxu0 %v717
        %743 = vmatpush.msra.mxu0 %v715
        %744 = vmatpush.msra.mxu0 %v713
        %745 = vmatpush.msra.mxu0 %v711
        %746 = vmatpush.msra.mxu0 %v709
        %747 = vmatpush.msra.mxu0 %v707
        %748 = vmatpush.msra.mxu0 %v705
        %749 = vmatpush.msra.mxu0 %v703
        %750 = vmatpush.msra.mxu0 %v701
        %751 = vmatpush.msra.mxu0 %v699
        %752 = vmatpush.msra.mxu0 %v697
        %753 = vmatpush.msra.mxu0 %v695
        %754 = vmatpush.msra.mxu0 %v693
        %755 = vmatpush.msra.mxu0 %v691
        %756 = vmatpush.msra.mxu0 %v689
        %757 = vmatmul.f32.gmra.mxu0 %v407
        %v758 = vpop.f32.mrf.mxu0
        %v759 = vadd.f32 %v739, %v758
        %760 = vdwg.mxu0
        %761 = vmatpush.msra.mxu0 %v688
        %762 = vmatpush.msra.mxu0 %v686
        %763 = vmatpush.msra.mxu0 %v684
        %764 = vmatpush.msra.mxu0 %v682
        %765 = vmatpush.msra.mxu0 %v680
        %766 = vmatpush.msra.mxu0 %v678
        %767 = vmatpush.msra.mxu0 %v676
        %768 = vmatpush.msra.mxu0 %v674
        %769 = vmatpush.msra.mxu0 %v672
        %770 = vmatpush.msra.mxu0 %v670
        %771 = vmatpush.msra.mxu0 %v668
        %772 = vmatpush.msra.mxu0 %v666
        %773 = vmatpush.msra.mxu0 %v664
        %774 = vmatpush.msra.mxu0 %v662
        %775 = vmatpush.msra.mxu0 %v660
        %776 = vmatpush.msra.mxu0 %v658
        %777 = vmatmul.f32.gmra.mxu0 %v406
        %v778 = vpop.f32.mrf.mxu0
        %v779 = vadd.f32 0.0, %v778
        %780 = vdwg.mxu0
        %781 = vmatpush.msra.mxu0 %v720
        %782 = vmatpush.msra.mxu0 %v718
        %783 = vmatpush.msra.mxu0 %v716
        %784 = vmatpush.msra.mxu0 %v714
        %785 = vmatpush.msra.mxu0 %v712
        %786 = vmatpush.msra.mxu0 %v710
        %787 = vmatpush.msra.mxu0 %v708
        %788 = vmatpush.msra.mxu0 %v706
        %789 = vmatpush.msra.mxu0 %v704
        %790 = vmatpush.msra.mxu0 %v702
        %791 = vmatpush.msra.mxu0 %v700
        %792 = vmatpush.msra.mxu0 %v698
        %793 = vmatpush.msra.mxu0 %v696
        %794 = vmatpush.msra.mxu0 %v694
        %795 = vmatpush.msra.mxu0 %v692
        %796 = vmatpush.msra.mxu0 %v690
        %797 = vmatmul.f32.gmra.mxu0 %v407
        %v798 = vpop.f32.mrf.mxu0
        %v799 = vadd.f32 %v779, %v798
        %800 = vdwg.mxu0
        %s801 = scalar_lea.vmem %s2, 8
        %v802 = vld [vmem:[%s801] sm:$0x7]
        %804 = vset.pattern.permute.xlu0 0
        %805 = vperm.xlu0 %804, %v802
        %v806 = vpop.permute.xlu0 %805
        %v808 = vperm.slane %v759, 0
        %v809 = vperm.slane %v799, 0
        %v810 = vmul.f32 %v806, %v808
        %v811 = vmul.f32 %v806, %v809
        %v812 = vadd.f32 %v655, %v810
        %v813 = vadd.f32 %v656, %v811
        %v814 = vld [vmem:[#allocation2 + $0x30] sm:$0xff]
        %v815 = vld [vmem:[#allocation2 + $0x38] sm:$0xff]
        %v816 = vld [vmem:[#allocation2 + $0x80] sm:$0xff]
        %v817 = vld [vmem:[#allocation2 + $0x88] sm:$0xff]
        %v818 = vld [vmem:[#allocation2 + $0xd0] sm:$0xff]
        %v819 = vld [vmem:[#allocation2 + $0xd8] sm:$0xff]
        %v820 = vld [vmem:[#allocation2 + $0x120] sm:$0xff]
        %v821 = vld [vmem:[#allocation2 + $0x128] sm:$0xff]
        %v822 = vld [vmem:[#allocation2 + $0x170] sm:$0xff]
        %v823 = vld [vmem:[#allocation2 + $0x178] sm:$0xff]
        %v824 = vld [vmem:[#allocation2 + $0x1c0] sm:$0xff]
        %v825 = vld [vmem:[#allocation2 + $0x1c8] sm:$0xff]
        %v826 = vld [vmem:[#allocation2 + $0x210] sm:$0xff]
        %v827 = vld [vmem:[#allocation2 + $0x218] sm:$0xff]
        %v828 = vld [vmem:[#allocation2 + $0x260] sm:$0xff]
        %v829 = vld [vmem:[#allocation2 + $0x268] sm:$0xff]
        %v830 = vld [vmem:[#allocation2 + $0x2b0] sm:$0xff]
        %v831 = vld [vmem:[#allocation2 + $0x2b8] sm:$0xff]
        %v832 = vld [vmem:[#allocation2 + $0x300] sm:$0xff]
        %v833 = vld [vmem:[#allocation2 + $0x308] sm:$0xff]
        %v834 = vld [vmem:[#allocation2 + $0x350] sm:$0xff]
        %v835 = vld [vmem:[#allocation2 + $0x358] sm:$0xff]
        %v836 = vld [vmem:[#allocation2 + $0x3a0] sm:$0xff]
        %v837 = vld [vmem:[#allocation2 + $0x3a8] sm:$0xff]
        %v838 = vld [vmem:[#allocation2 + $0x3f0] sm:$0xff]
        %v839 = vld [vmem:[#allocation2 + $0x3f8] sm:$0xff]
        %v840 = vld [vmem:[#allocation2 + $0x440] sm:$0xff]
        %v841 = vld [vmem:[#allocation2 + $0x448] sm:$0xff]
        %v842 = vld [vmem:[#allocation2 + $0x490] sm:$0xff]
        %v843 = vld [vmem:[#allocation2 + $0x498] sm:$0xff]
        %v844 = vld [vmem:[#allocation2 + $0x4e0] sm:$0xff]
        %v845 = vld [vmem:[#allocation2 + $0x4e8] sm:$0xff]
        %v846 = vld [vmem:[#allocation2 + $0x530] sm:$0xff]
        %v847 = vld [vmem:[#allocation2 + $0x538] sm:$0xff]
        %v848 = vld [vmem:[#allocation2 + $0x580] sm:$0xff]
        %v849 = vld [vmem:[#allocation2 + $0x588] sm:$0xff]
        %v850 = vld [vmem:[#allocation2 + $0x5d0] sm:$0xff]
        %v851 = vld [vmem:[#allocation2 + $0x5d8] sm:$0xff]
        %v852 = vld [vmem:[#allocation2 + $0x620] sm:$0xff]
        %v853 = vld [vmem:[#allocation2 + $0x628] sm:$0xff]
        %v854 = vld [vmem:[#allocation2 + $0x670] sm:$0xff]
        %v855 = vld [vmem:[#allocation2 + $0x678] sm:$0xff]
        %v856 = vld [vmem:[#allocation2 + $0x6c0] sm:$0xff]
        %v857 = vld [vmem:[#allocation2 + $0x6c8] sm:$0xff]
        %v858 = vld [vmem:[#allocation2 + $0x710] sm:$0xff]
        %v859 = vld [vmem:[#allocation2 + $0x718] sm:$0xff]
        %v860 = vld [vmem:[#allocation2 + $0x760] sm:$0xff]
        %v861 = vld [vmem:[#allocation2 + $0x768] sm:$0xff]
        %v862 = vld [vmem:[#allocation2 + $0x7b0] sm:$0xff]
        %v863 = vld [vmem:[#allocation2 + $0x7b8] sm:$0xff]
        %v864 = vld [vmem:[#allocation2 + $0x800] sm:$0xff]
        %v865 = vld [vmem:[#allocation2 + $0x808] sm:$0xff]
        %v866 = vld [vmem:[#allocation2 + $0x850] sm:$0xff]
        %v867 = vld [vmem:[#allocation2 + $0x858] sm:$0xff]
        %v868 = vld [vmem:[#allocation2 + $0x8a0] sm:$0xff]
        %v869 = vld [vmem:[#allocation2 + $0x8a8] sm:$0xff]
        %v870 = vld [vmem:[#allocation2 + $0x8f0] sm:$0xff]
        %v871 = vld [vmem:[#allocation2 + $0x8f8] sm:$0xff]
        %v872 = vld [vmem:[#allocation2 + $0x940] sm:$0xff]
        %v873 = vld [vmem:[#allocation2 + $0x948] sm:$0xff]
        %v874 = vld [vmem:[#allocation2 + $0x990] sm:$0xff]
        %v875 = vld [vmem:[#allocation2 + $0x998] sm:$0xff]
        %v876 = vld [vmem:[#allocation2 + $0x9e0] sm:$0xff]
        %v877 = vld [vmem:[#allocation2 + $0x9e8] sm:$0xff]
        %878 = vmatpush.msra.mxu0 %v844
        %879 = vmatpush.msra.mxu0 %v842
        %880 = vmatpush.msra.mxu0 %v840
        %881 = vmatpush.msra.mxu0 %v838
        %882 = vmatpush.msra.mxu0 %v836
        %883 = vmatpush.msra.mxu0 %v834
        %884 = vmatpush.msra.mxu0 %v832
        %885 = vmatpush.msra.mxu0 %v830
        %886 = vmatpush.msra.mxu0 %v828
        %887 = vmatpush.msra.mxu0 %v826
        %888 = vmatpush.msra.mxu0 %v824
        %889 = vmatpush.msra.mxu0 %v822
        %890 = vmatpush.msra.mxu0 %v820
        %891 = vmatpush.msra.mxu0 %v818
        %892 = vmatpush.msra.mxu0 %v816
        %893 = vmatpush.msra.mxu0 %v814
        %894 = vmatmul.f32.gmra.mxu0 %v406
        %v895 = vpop.f32.mrf.mxu0
        %v896 = vadd.f32 0.0, %v895
        %897 = vdwg.mxu0
        %898 = vmatpush.msra.mxu0 %v876
        %899 = vmatpush.msra.mxu0 %v874
        %900 = vmatpush.msra.mxu0 %v872
        %901 = vmatpush.msra.mxu0 %v870
        %902 = vmatpush.msra.mxu0 %v868
        %903 = vmatpush.msra.mxu0 %v866
        %904 = vmatpush.msra.mxu0 %v864
        %905 = vmatpush.msra.mxu0 %v862
        %906 = vmatpush.msra.mxu0 %v860
        %907 = vmatpush.msra.mxu0 %v858
        %908 = vmatpush.msra.mxu0 %v856
        %909 = vmatpush.msra.mxu0 %v854
        %910 = vmatpush.msra.mxu0 %v852
        %911 = vmatpush.msra.mxu0 %v850
        %912 = vmatpush.msra.mxu0 %v848
        %913 = vmatpush.msra.mxu0 %v846
        %914 = vmatmul.f32.gmra.mxu0 %v407
        %v915 = vpop.f32.mrf.mxu0
        %v916 = vadd.f32 %v896, %v915
        %917 = vdwg.mxu0
        %918 = vmatpush.msra.mxu0 %v845
        %919 = vmatpush.msra.mxu0 %v843
        %920 = vmatpush.msra.mxu0 %v841
        %921 = vmatpush.msra.mxu0 %v839
        %922 = vmatpush.msra.mxu0 %v837
        %923 = vmatpush.msra.mxu0 %v835
        %924 = vmatpush.msra.mxu0 %v833
        %925 = vmatpush.msra.mxu0 %v831
        %926 = vmatpush.msra.mxu0 %v829
        %927 = vmatpush.msra.mxu0 %v827
        %928 = vmatpush.msra.mxu0 %v825
        %929 = vmatpush.msra.mxu0 %v823
        %930 = vmatpush.msra.mxu0 %v821
        %931 = vmatpush.msra.mxu0 %v819
        %932 = vmatpush.msra.mxu0 %v817
        %933 = vmatpush.msra.mxu0 %v815
        %934 = vmatmul.f32.gmra.mxu0 %v406
        %v935 = vpop.f32.mrf.mxu0
        %v936 = vadd.f32 0.0, %v935
        %937 = vdwg.mxu0
        %938 = vmatpush.msra.mxu0 %v877
        %939 = vmatpush.msra.mxu0 %v875
        %940 = vmatpush.msra.mxu0 %v873
        %941 = vmatpush.msra.mxu0 %v871
        %942 = vmatpush.msra.mxu0 %v869
        %943 = vmatpush.msra.mxu0 %v867
        %944 = vmatpush.msra.mxu0 %v865
        %945 = vmatpush.msra.mxu0 %v863
        %946 = vmatpush.msra.mxu0 %v861
        %947 = vmatpush.msra.mxu0 %v859
        %948 = vmatpush.msra.mxu0 %v857
        %949 = vmatpush.msra.mxu0 %v855
        %950 = vmatpush.msra.mxu0 %v853
        %951 = vmatpush.msra.mxu0 %v851
        %952 = vmatpush.msra.mxu0 %v849
        %953 = vmatpush.msra.mxu0 %v847
        %954 = vmatmul.f32.gmra.mxu0 %v407
        %v955 = vpop.f32.mrf.mxu0
        %v956 = vadd.f32 %v936, %v955
        %957 = vdwg.mxu0
        %s958 = scalar_lea.vmem %s2, 12
        %v959 = vld [vmem:[%s958] sm:$0x7]
        %961 = vset.pattern.permute.xlu0 0
        %962 = vperm.xlu0 %961, %v959
        %v963 = vpop.permute.xlu0 %962
        %v965 = vperm.slane %v916, 0
        %v966 = vperm.slane %v956, 0
        %v967 = vmul.f32 %v963, %v965
        %v968 = vmul.f32 %v963, %v966
        %v969 = vadd.f32 %v812, %v967
        %v970 = vadd.f32 %v813, %v968
        %v971 = vld [vmem:[#allocation2 + $0x40] sm:$0xff]
        %v972 = vld [vmem:[#allocation2 + $0x48] sm:$0xff]
        %v973 = vld [vmem:[#allocation2 + $0x90] sm:$0xff]
        %v974 = vld [vmem:[#allocation2 + $0x98] sm:$0xff]
        %v975 = vld [vmem:[#allocation2 + $0xe0] sm:$0xff]
        %v976 = vld [vmem:[#allocation2 + $0xe8] sm:$0xff]
        %v977 = vld [vmem:[#allocation2 + $0x130] sm:$0xff]
        %v978 = vld [vmem:[#allocation2 + $0x138] sm:$0xff]
        %v979 = vld [vmem:[#allocation2 + $0x180] sm:$0xff]
        %v980 = vld [vmem:[#allocation2 + $0x188] sm:$0xff]
        %v981 = vld [vmem:[#allocation2 + $0x1d0] sm:$0xff]
        %v982 = vld [vmem:[#allocation2 + $0x1d8] sm:$0xff]
        %v983 = vld [vmem:[#allocation2 + $0x220] sm:$0xff]
        %v984 = vld [vmem:[#allocation2 + $0x228] sm:$0xff]
        %v985 = vld [vmem:[#allocation2 + $0x270] sm:$0xff]
        %v986 = vld [vmem:[#allocation2 + $0x278] sm:$0xff]
        %v987 = vld [vmem:[#allocation2 + $0x2c0] sm:$0xff]
        %v988 = vld [vmem:[#allocation2 + $0x2c8] sm:$0xff]
        %v989 = vld [vmem:[#allocation2 + $0x310] sm:$0xff]
        %v990 = vld [vmem:[#allocation2 + $0x318] sm:$0xff]
        %v991 = vld [vmem:[#allocation2 + $0x360] sm:$0xff]
        %v992 = vld [vmem:[#allocation2 + $0x368] sm:$0xff]
        %v993 = vld [vmem:[#allocation2 + $0x3b0] sm:$0xff]
        %v994 = vld [vmem:[#allocation2 + $0x3b8] sm:$0xff]
        %v995 = vld [vmem:[#allocation2 + $0x400] sm:$0xff]
        %v996 = vld [vmem:[#allocation2 + $0x408] sm:$0xff]
        %v997 = vld [vmem:[#allocation2 + $0x450] sm:$0xff]
        %v998 = vld [vmem:[#allocation2 + $0x458] sm:$0xff]
        %v999 = vld [vmem:[#allocation2 + $0x4a0] sm:$0xff]
        %v1000 = vld [vmem:[#allocation2 + $0x4a8] sm:$0xff]
        %v1001 = vld [vmem:[#allocation2 + $0x4f0] sm:$0xff]
        %v1002 = vld [vmem:[#allocation2 + $0x4f8] sm:$0xff]
        %v1003 = vld [vmem:[#allocation2 + $0x540] sm:$0xff]
        %v1004 = vld [vmem:[#allocation2 + $0x548] sm:$0xff]
        %v1005 = vld [vmem:[#allocation2 + $0x590] sm:$0xff]
        %v1006 = vld [vmem:[#allocation2 + $0x598] sm:$0xff]
        %v1007 = vld [vmem:[#allocation2 + $0x5e0] sm:$0xff]
        %v1008 = vld [vmem:[#allocation2 + $0x5e8] sm:$0xff]
        %v1009 = vld [vmem:[#allocation2 + $0x630] sm:$0xff]
        %v1010 = vld [vmem:[#allocation2 + $0x638] sm:$0xff]
        %v1011 = vld [vmem:[#allocation2 + $0x680] sm:$0xff]
        %v1012 = vld [vmem:[#allocation2 + $0x688] sm:$0xff]
        %v1013 = vld [vmem:[#allocation2 + $0x6d0] sm:$0xff]
        %v1014 = vld [vmem:[#allocation2 + $0x6d8] sm:$0xff]
        %v1015 = vld [vmem:[#allocation2 + $0x720] sm:$0xff]
        %v1016 = vld [vmem:[#allocation2 + $0x728] sm:$0xff]
        %v1017 = vld [vmem:[#allocation2 + $0x770] sm:$0xff]
        %v1018 = vld [vmem:[#allocation2 + $0x778] sm:$0xff]
        %v1019 = vld [vmem:[#allocation2 + $0x7c0] sm:$0xff]
        %v1020 = vld [vmem:[#allocation2 + $0x7c8] sm:$0xff]
        %v1021 = vld [vmem:[#allocation2 + $0x810] sm:$0xff]
        %v1022 = vld [vmem:[#allocation2 + $0x818] sm:$0xff]
        %v1023 = vld [vmem:[#allocation2 + $0x860] sm:$0xff]
        %v1024 = vld [vmem:[#allocation2 + $0x868] sm:$0xff]
        %v1025 = vld [vmem:[#allocation2 + $0x8b0] sm:$0xff]
        %v1026 = vld [vmem:[#allocation2 + $0x8b8] sm:$0xff]
        %v1027 = vld [vmem:[#allocation2 + $0x900] sm:$0xff]
        %v1028 = vld [vmem:[#allocation2 + $0x908] sm:$0xff]
        %v1029 = vld [vmem:[#allocation2 + $0x950] sm:$0xff]
        %v1030 = vld [vmem:[#allocation2 + $0x958] sm:$0xff]
        %v1031 = vld [vmem:[#allocation2 + $0x9a0] sm:$0xff]
        %v1032 = vld [vmem:[#allocation2 + $0x9a8] sm:$0xff]
        %v1033 = vld [vmem:[#allocation2 + $0x9f0] sm:$0xff]
        %v1034 = vld [vmem:[#allocation2 + $0x9f8] sm:$0xff]
        %1035 = vmatpush.msra.mxu0 %v1001
        %1036 = vmatpush.msra.mxu0 %v999
        %1037 = vmatpush.msra.mxu0 %v997
        %1038 = vmatpush.msra.mxu0 %v995
        %1039 = vmatpush.msra.mxu0 %v993
        %1040 = vmatpush.msra.mxu0 %v991
        %1041 = vmatpush.msra.mxu0 %v989
        %1042 = vmatpush.msra.mxu0 %v987
        %1043 = vmatpush.msra.mxu0 %v985
        %1044 = vmatpush.msra.mxu0 %v983
        %1045 = vmatpush.msra.mxu0 %v981
        %1046 = vmatpush.msra.mxu0 %v979
        %1047 = vmatpush.msra.mxu0 %v977
        %1048 = vmatpush.msra.mxu0 %v975
        %1049 = vmatpush.msra.mxu0 %v973
        %1050 = vmatpush.msra.mxu0 %v971
        %1051 = vmatmul.f32.gmra.mxu0 %v406
        %v1052 = vpop.f32.mrf.mxu0
        %v1053 = vadd.f32 0.0, %v1052
        %1054 = vdwg.mxu0
        %1055 = vmatpush.msra.mxu0 %v1033
        %1056 = vmatpush.msra.mxu0 %v1031
        %1057 = vmatpush.msra.mxu0 %v1029
        %1058 = vmatpush.msra.mxu0 %v1027
        %1059 = vmatpush.msra.mxu0 %v1025
        %1060 = vmatpush.msra.mxu0 %v1023
        %1061 = vmatpush.msra.mxu0 %v1021
        %1062 = vmatpush.msra.mxu0 %v1019
        %1063 = vmatpush.msra.mxu0 %v1017
        %1064 = vmatpush.msra.mxu0 %v1015
        %1065 = vmatpush.msra.mxu0 %v1013
        %1066 = vmatpush.msra.mxu0 %v1011
        %1067 = vmatpush.msra.mxu0 %v1009
        %1068 = vmatpush.msra.mxu0 %v1007
        %1069 = vmatpush.msra.mxu0 %v1005
        %1070 = vmatpush.msra.mxu0 %v1003
        %1071 = vmatmul.f32.gmra.mxu0 %v407
        %v1072 = vpop.f32.mrf.mxu0
        %v1073 = vadd.f32 %v1053, %v1072
        %1074 = vdwg.mxu0
        %1075 = vmatpush.msra.mxu0 %v1002
        %1076 = vmatpush.msra.mxu0 %v1000
        %1077 = vmatpush.msra.mxu0 %v998
        %1078 = vmatpush.msra.mxu0 %v996
        %1079 = vmatpush.msra.mxu0 %v994
        %1080 = vmatpush.msra.mxu0 %v992
        %1081 = vmatpush.msra.mxu0 %v990
        %1082 = vmatpush.msra.mxu0 %v988
        %1083 = vmatpush.msra.mxu0 %v986
        %1084 = vmatpush.msra.mxu0 %v984
        %1085 = vmatpush.msra.mxu0 %v982
        %1086 = vmatpush.msra.mxu0 %v980
        %1087 = vmatpush.msra.mxu0 %v978
        %1088 = vmatpush.msra.mxu0 %v976
        %1089 = vmatpush.msra.mxu0 %v974
        %1090 = vmatpush.msra.mxu0 %v972
        %1091 = vmatmul.f32.gmra.mxu0 %v406
        %v1092 = vpop.f32.mrf.mxu0
        %v1093 = vadd.f32 0.0, %v1092
        %1094 = vdwg.mxu0
        %1095 = vmatpush.msra.mxu0 %v1034
        %1096 = vmatpush.msra.mxu0 %v1032
        %1097 = vmatpush.msra.mxu0 %v1030
        %1098 = vmatpush.msra.mxu0 %v1028
        %1099 = vmatpush.msra.mxu0 %v1026
        %1100 = vmatpush.msra.mxu0 %v1024
        %1101 = vmatpush.msra.mxu0 %v1022
        %1102 = vmatpush.msra.mxu0 %v1020
        %1103 = vmatpush.msra.mxu0 %v1018
        %1104 = vmatpush.msra.mxu0 %v1016
        %1105 = vmatpush.msra.mxu0 %v1014
        %1106 = vmatpush.msra.mxu0 %v1012
        %1107 = vmatpush.msra.mxu0 %v1010
        %1108 = vmatpush.msra.mxu0 %v1008
        %1109 = vmatpush.msra.mxu0 %v1006
        %1110 = vmatpush.msra.mxu0 %v1004
        %1111 = vmatmul.f32.gmra.mxu0 %v407
        %v1112 = vpop.f32.mrf.mxu0
        %v1113 = vadd.f32 %v1093, %v1112
        %1114 = vdwg.mxu0
        %s1115 = scalar_lea.vmem %s2, 16
        %v1116 = vld [vmem:[%s1115] sm:$0x7]
        %1118 = vset.pattern.permute.xlu0 0
        %1119 = vperm.xlu0 %1118, %v1116
        %v1120 = vpop.permute.xlu0 %1119
        %v1122 = vperm.slane %v1073, 0
        %v1123 = vperm.slane %v1113, 0
        %v1124 = vmul.f32 %v1120, %v1122
        %v1125 = vmul.f32 %v1120, %v1123
        %v1126 = vadd.f32 %v969, %v1124
        %v1127 = vadd.f32 %v970, %v1125
        %v1128 = vld [vmem:[%s3] sm:$0x7]
        %1130 = vset.pattern.permute.xlu0 0
        %1131 = vperm.xlu0 %1130, %v1128
        %v1132 = vpop.permute.xlu0 %1131
        %v1134 = vadd.f32 %v1126, %v1132
        %v1135 = vadd.f32 %v1127, %v1132
        %v1137 = vperm.slane %v340, 0
        %v1138 = vperm.slane %v340, 1
        %v1141 = vmul.f32 %v1134, %v1137
        %v1142 = vmul.f32 %v1135, %v1138
        %v1145 = vrot.slane %v1142, 4
        %vm1146 = vcmask 1043456
        %v1147 = vsel %vm1146, %v1141, %v1145
        %1149 = vst [vmem:[%s311] sm:$0x77] %v1147
        %vm1150 = vcmask 1042432
        %v1151 = vsel %vm1150, %v1141, -inf
        %v1152 = vrot.slane %v1151, 4
        %v1153 = vmax.f32 %v1151, %v1152
        %v1154 = vrot.slane %v1153, 2
        %v1155 = vmax.f32 %v1153, %v1154
        %v1156 = vrot.slane %v1155, 1
        %v1157 = vmax.f32 %v1155, %v1156
        %v1158 = vsel %vm1150, %v1142, -inf
        %v1159 = vrot.slane %v1158, 4
        %v1160 = vmax.f32 %v1158, %v1159
        %v1161 = vrot.slane %v1160, 2
        %v1162 = vmax.f32 %v1160, %v1161
        %v1163 = vrot.slane %v1162, 1
        %v1164 = vmax.f32 %v1162, %v1163
        %vm1165 = vcmp.gt.f32.partialorder %v340, 0.0
        %v1168 = vrot.slane %v1164, 7
        %v1169 = vsel %vm322, %v1157, %v1168
        %v1171 = vsel %vm1165, %v1169, -1e+30
        %v1172 = vlaneseq
        %vm1173 = vcmp.ge.s32.totalorder %v1172, 0
        %vm1174 = vcmp.lt.s32.totalorder %v1172, 256
        %vm1175 = vmand %vm1173, %vm1174
        %1176 = vst.msk [vmem:[%s315] sm:$0x3] %vm1175, %v1171
        %p1177 = scmp.lt.s32.totalorder %s22, 1
        %s1178 = scalar_select %p1177, %s22, 1
        %s1179 = smul.addr %s1178, 2
        %s1180 = smul.addr %s1179, 4
        %s1181 = scalar_lea.vmem %s5, %s1180
        %p1182 = scmp.lt.s32.totalorder %s22, 1
        %s1183 = scalar_select %p1182, %s22, 1
        %s1184 = smul.addr %s1183, 2
        %s1185 = scalar_lea.vmem %s6, %s1184
        // Predicated region
        $region49: #{forward.4} parent=39 // pred_check
          %p1186 = pneg %p155
        $region50: #{forward.4} parent=39 // pred_check_branch
          %1188 = sbr.rel (%p1186) target = $region52
        $region51: #{forward.4} parent=39 // pred_region
          _
        $region52: #{forward.4} parent=39 // pred_fallthru
          _
        // Predicated region
        $region53: #{forward.4} parent=39 // pred_check
          %p1189 = pneg %p181
        $region54: #{forward.4} parent=39 // pred_check_branch
          %1191 = sbr.rel (%p1189) target = $region56
        $region55: #{forward.4} parent=39 // pred_region
          _
        $region56: #{forward.4} parent=39 // pred_fallthru
          _
      $region40: #{forward.4} parent=5 // pred_fallthru
        _
      %p1192 = scmp.le.s32.totalorder 2, %s17
      // Predicated region
      $region57: #{forward.4} parent=5 // pred_check
        %p1193 = pneg %p1192
      $region58: #{forward.4} parent=5 // pred_check_branch
        %1195 = sbr.rel (%p1193) target = $region60
      $region59: #{forward.4} parent=5 // pred_region
        %s1196 = ssub.s32 %s17, 2
        // Predicated region
        $region61: #{forward.4} parent=59 // pred_check
          %p1197 = pneg %p161
        $region62: #{forward.4} parent=59 // pred_check_branch
          %1199 = sbr.rel (%p1197) target = $region64
        $region63: #{forward.4} parent=59 // pred_region
          %p1200 = scmp.lt.s32.totalorder %s23, 1
          %s1201 = scalar_select %p1200, %s23, 1
          %s1202 = smul.addr %s1201, 2
          %s1203 = smul.addr %s1202, 4
          %s1204 = scalar_lea.vmem %s5, %s1203
        $region64: #{forward.4} parent=59 // pred_fallthru
          _
        // Predicated region
        $region65: #{forward.4} parent=59 // pred_check
          %p1205 = pneg %p187
        $region66: #{forward.4} parent=59 // pred_check_branch
          %1207 = sbr.rel (%p1205) target = $region68
        $region67: #{forward.4} parent=59 // pred_region
          %p1208 = scmp.lt.s32.totalorder %s23, 1
          %s1209 = scalar_select %p1208, %s23, 1
          %s1210 = smul.addr %s1209, 2
          %s1211 = scalar_lea.vmem %s6, %s1210
        $region68: #{forward.4} parent=59 // pred_fallthru
          _
      $region60: #{forward.4} parent=5 // pred_fallthru
        _
    $region6: #{forward.4} parent=1 // loop_footer
      %s21 = sadd.s32 1, %s17
    $region7: #{forward.4} parent=1 // loop_footer_branch
      %16 = sbr.rel target = $region3
    $region8: #{forward.4} parent=1 // loop_exit
      _
    %1212 = vsyncpa [#allocation3], 1
    %s1213 = scalar_lea.sflag [#allocation3], 1
    %1214 = vsyncpa %s1213, 1
    %1215 = vsyncpa [#allocation5], 1
    %s1216 = scalar_lea.sflag [#allocation5], 1
    %1217 = vsyncpa %s1216, 1

// kernel: forward.5
$region0: #{forward.5}
  #allocation0 [shape = 'u32[]', space=smem, size = 0x4, offset = 0x4, fixed_abs, tag = 'smem constant byte address 0x4 - core index']
  #allocation1 [shape = 'u32[72,128]{1,0:T(1,128)}', space=vmem, size = 0x9000, scoped, tag = 'internal scratch']
  %s0 = inlined_call_operand.hbm [shape: f32[256,1280], index: 0, kind: input, shape index: {}]
  %s1 = inlined_call_operand.vmem [shape: f32[2,3,256], index: 1, kind: input, shape index: {}]
  %s2 = inlined_call_operand.vmem [shape: f32[5,6,3], index: 2, kind: input, shape index: {}]
  %s3 = inlined_call_operand.vmem [shape: f32[6,1], index: 3, kind: input, shape index: {}]
  %s4 = inlined_call_operand.vmem [shape: f32[2,1,256], index: 4, kind: input, shape index: {}]
  %s5 = inlined_call_operand.vmem [shape: f32[2,6,256], index: 5, kind: output, shape index: {0}]
  %s6 = inlined_call_operand.vmem [shape: f32[2,1,256], index: 6, kind: output, shape index: {1}]
  %7 = xla_tuple %s5, %s6
  %s8 = sld [smem:[#allocation0]]
  $region65: #{forward.5} parent=0
    _
  %s10 = ssub.s32 1, %s8
  %s11 = scalar_select 0, %s10, %s8
  $region1: #{forward.5} parent=0
    #allocation2 [shape = 'u8[1310720]{0}', space=vmem, size = 0x140000, scoped, tag = 'input window, operand 0, single buffered']
    #allocation3 [shape = 's32[2]{0}', space=sflag, size = 0x8, scoped, tag = 'scoped memory for forward.5']
    %12 = vsyncpa [#allocation3], 0
    loop: start=0, step=1, limit=4
    $region2: #{forward.5} parent=1 // loop_pre_header
      _
    $region3: #{forward.5} parent=1 // loop_header
      %s14 = sphi 0, %s18
      %p15 = scmp.ge.s32.totalorder %s14, 4
      %s22 = sphi 0, %s22
      %s24 = sphi 0, %s22
      %s25 = sphi 0, %s24
      %s39 = sphi 0, %s25
      %s45 = sphi 0, %s47
      %s48 = sphi 0, %s45
      %s49 = sphi 0, %s48
      %s65 = sphi 0, %s49
      %s69 = sphi 0, %s69
      %s71 = sphi 0, %s69
      %s72 = sphi 0, %s71
      %s86 = sphi 0, %s72
      %s90 = sphi 0, %s90
      %s92 = sphi 0, %s90
      %s93 = sphi 0, %s92
      %s107 = sphi 0, %s93
      %s113 = sphi 0, %s115
      %s116 = sphi 0, %s113
      %s117 = sphi 0, %s116
      %s133 = sphi 0, %s117
      %s139 = sphi 0, %s141
      %s142 = sphi 0, %s139
      %s143 = sphi 0, %s142
      %s159 = sphi 0, %s143
      %s165 = sphi 0, %s167
      %s168 = sphi 0, %s165
      %s169 = sphi 0, %s168
      %s185 = sphi 0, %s169
    $region4: #{forward.5} parent=1 // loop_header_branch
      %17 = sbr.rel (%p15) target = $region8
    $region5: #{forward.5} parent=1 // loop_body
      %s19 = ssub.s32 %s14, 1
      %s20 = ssub.s32 %s14, 2
      %s21 = sadd.s32 %s14, 1
      %s23 = sadd.s32 %s22, 1
      %p26 = scmp.eq.s32.totalorder %s14, 1
      %p27 = scmp.ne.s32.totalorder %s22, %s24
      %p28 = scmp.eq.s32.totalorder %s14, 0
      %p29 = por %p27, %p28
      %p30 = scmp.ne.s32.totalorder %s22, %s24
      %p31 = scmp.eq.s32.totalorder %s19, 1
      %p32 = por %p30, %p31
      %p33 = scmp.ne.s32.totalorder %s24, %s25
      %p34 = scmp.eq.s32.totalorder %s19, 0
      %p35 = por %p33, %p34
      %p36 = scmp.ne.s32.totalorder %s24, %s25
      %p37 = scmp.eq.s32.totalorder %s20, 1
      %p38 = por %p36, %p37
      %p40 = scmp.ne.s32.totalorder %s25, %s39
      %p41 = scmp.eq.s32.totalorder %s20, 0
      %p42 = por %p40, %p41
      %s43 = ssub.s32 %s14, %s21
      %p44 = scmp.eq.s32.totalorder %s43, 0
      %s46 = sadd.s32 %s45, 1
      %s47 = scalar_select %p44, %s45, %s46
      %p50 = pneg %p44
      %p51 = scmp.eq.s32.totalorder %s14, 1
      %p52 = por %p50, %p51
      %p53 = scmp.ne.s32.totalorder %s45, %s48
      %p54 = scmp.eq.s32.totalorder %s14, 0
      %p55 = por %p53, %p54
      %p56 = scmp.ne.s32.totalorder %s45, %s48
      %p57 = scmp.eq.s32.totalorder %s19, 1
      %p58 = por %p56, %p57
      %p59 = scmp.ne.s32.totalorder %s48, %s49
      %p60 = scmp.eq.s32.totalorder %s19, 0
      %p61 = por %p59, %p60
      %p62 = scmp.ne.s32.totalorder %s48, %s49
      %p63 = scmp.eq.s32.totalorder %s20, 1
      %p64 = por %p62, %p63
      %p66 = scmp.ne.s32.totalorder %s49, %s65
      %p67 = scmp.eq.s32.totalorder %s20, 0
      %p68 = por %p66, %p67
      %s70 = sadd.s32 %s69, 1
      %p73 = scmp.eq.s32.totalorder %s14, 1
      %p74 = scmp.ne.s32.totalorder %s69, %s71
      %p75 = scmp.eq.s32.totalorder %s14, 0
      %p76 = por %p74, %p75
      %p77 = scmp.ne.s32.totalorder %s69, %s71
      %p78 = scmp.eq.s32.totalorder %s19, 1
      %p79 = por %p77, %p78
      %p80 = scmp.ne.s32.totalorder %s71, %s72
      %p81 = scmp.eq.s32.totalorder %s19, 0
      %p82 = por %p80, %p81
      %p83 = scmp.ne.s32.totalorder %s71, %s72
      %p84 = scmp.eq.s32.totalorder %s20, 1
      %p85 = por %p83, %p84
      %p87 = scmp.ne.s32.totalorder %s72, %s86
      %p88 = scmp.eq.s32.totalorder %s20, 0
      %p89 = por %p87, %p88
      %s91 = sadd.s32 %s90, 1
      %p94 = scmp.eq.s32.totalorder %s14, 1
      %p95 = scmp.ne.s32.totalorder %s90, %s92
      %p96 = scmp.eq.s32.totalorder %s14, 0
      %p97 = por %p95, %p96
      %p98 = scmp.ne.s32.totalorder %s90, %s92
      %p99 = scmp.eq.s32.totalorder %s19, 1
      %p100 = por %p98, %p99
      %p101 = scmp.ne.s32.totalorder %s92, %s93
      %p102 = scmp.eq.s32.totalorder %s19, 0
      %p103 = por %p101, %p102
      %p104 = scmp.ne.s32.totalorder %s92, %s93
      %p105 = scmp.eq.s32.totalorder %s20, 1
      %p106 = por %p104, %p105
      %p108 = scmp.ne.s32.totalorder %s93, %s107
      %p109 = scmp.eq.s32.totalorder %s20, 0
      %p110 = por %p108, %p109
      %s111 = ssub.s32 %s14, %s21
      %p112 = scmp.eq.s32.totalorder %s111, 0
      %s114 = sadd.s32 %s113, 1
      %s115 = scalar_select %p112, %s113, %s114
      %p118 = pneg %p112
      %p119 = scmp.eq.s32.totalorder %s14, 1
      %p120 = por %p118, %p119
      %p121 = scmp.ne.s32.totalorder %s113, %s116
      %p122 = scmp.eq.s32.totalorder %s14, 0
      %p123 = por %p121, %p122
      %p124 = scmp.ne.s32.totalorder %s113, %s116
      %p125 = scmp.eq.s32.totalorder %s19, 1
      %p126 = por %p124, %p125
      %p127 = scmp.ne.s32.totalorder %s116, %s117
      %p128 = scmp.eq.s32.totalorder %s19, 0
      %p129 = por %p127, %p128
      %p130 = scmp.ne.s32.totalorder %s116, %s117
      %p131 = scmp.eq.s32.totalorder %s20, 1
      %p132 = por %p130, %p131
      %p134 = scmp.ne.s32.totalorder %s117, %s133
      %p135 = scmp.eq.s32.totalorder %s20, 0
      %p136 = por %p134, %p135
      %s137 = ssub.s32 %s14, %s21
      %p138 = scmp.eq.s32.totalorder %s137, 0
      %s140 = sadd.s32 %s139, 1
      %s141 = scalar_select %p138, %s139, %s140
      %p144 = pneg %p138
      %p145 = scmp.eq.s32.totalorder %s14, 1
      %p146 = por %p144, %p145
      %p147 = scmp.ne.s32.totalorder %s139, %s142
      %p148 = scmp.eq.s32.totalorder %s14, 0
      %p149 = por %p147, %p148
      %p150 = scmp.ne.s32.totalorder %s139, %s142
      %p151 = scmp.eq.s32.totalorder %s19, 1
      %p152 = por %p150, %p151
      %p153 = scmp.ne.s32.totalorder %s142, %s143
      %p154 = scmp.eq.s32.totalorder %s19, 0
      %p155 = por %p153, %p154
      %p156 = scmp.ne.s32.totalorder %s142, %s143
      %p157 = scmp.eq.s32.totalorder %s20, 1
      %p158 = por %p156, %p157
      %p160 = scmp.ne.s32.totalorder %s143, %s159
      %p161 = scmp.eq.s32.totalorder %s20, 0
      %p162 = por %p160, %p161
      %s163 = ssub.s32 %s14, %s21
      %p164 = scmp.eq.s32.totalorder %s163, 0
      %s166 = sadd.s32 %s165, 1
      %s167 = scalar_select %p164, %s165, %s166
      %p170 = pneg %p164
      %p171 = scmp.eq.s32.totalorder %s14, 1
      %p172 = por %p170, %p171
      %p173 = scmp.ne.s32.totalorder %s165, %s168
      %p174 = scmp.eq.s32.totalorder %s14, 0
      %p175 = por %p173, %p174
      %p176 = scmp.ne.s32.totalorder %s165, %s168
      %p177 = scmp.eq.s32.totalorder %s19, 1
      %p178 = por %p176, %p177
      %p179 = scmp.ne.s32.totalorder %s168, %s169
      %p180 = scmp.eq.s32.totalorder %s19, 0
      %p181 = por %p179, %p180
      %p182 = scmp.ne.s32.totalorder %s168, %s169
      %p183 = scmp.eq.s32.totalorder %s20, 1
      %p184 = por %p182, %p183
      %p186 = scmp.ne.s32.totalorder %s169, %s185
      %p187 = scmp.eq.s32.totalorder %s20, 0
      %p188 = por %p186, %p187
      %p189 = scmp.le.s32.totalorder 1, %s14
      %p190 = scmp.lt.s32.totalorder %s14, 3
      %p191 = pnand %p189, %p190
      %p192 = pneg %p191
      // Predicated region
      $region9: #{forward.5} parent=5 // pred_check
        _
      $region10: #{forward.5} parent=5 // pred_check_branch
        %194 = sbr.rel (%p191) target = $region12
      $region11: #{forward.5} parent=5 // pred_region
        %s195 = ssub.s32 %s14, 1
        // Predicated region
        $region13: #{forward.5} parent=11 // pred_check
          %p196 = pneg %p35
        $region14: #{forward.5} parent=11 // pred_check_branch
          %198 = sbr.rel (%p196) target = $region16
        $region15: #{forward.5} parent=11 // pred_region
          %200 = vsyncadd [#allocation3], 0
          %s201 = sshll.u32 %s0, 4
          %s202 = int_to_ptr.hbm [resolvable:$true] %s201
          %s203 = sshll.u32 [#allocation2], 4
          %s204 = int_to_ptr.vmem [resolvable:$true] %s203
          %209 = dma.hbm_to_vmem [thread:$0]  %s202, 40960, %s204, [#allocation3], 1280, 1280, 80
        $region16: #{forward.5} parent=11 // pred_fallthru
          _
        // Predicated region
        $region17: #{forward.5} parent=11 // pred_check
          %p210 = pneg %p82
        $region18: #{forward.5} parent=11 // pred_check_branch
          %212 = sbr.rel (%p210) target = $region20
        $region19: #{forward.5} parent=11 // pred_region
          _
        $region20: #{forward.5} parent=11 // pred_fallthru
          _
        // Predicated region
        $region21: #{forward.5} parent=11 // pred_check
          %p213 = pneg %p103
        $region22: #{forward.5} parent=11 // pred_check_branch
          %215 = sbr.rel (%p213) target = $region24
        $region23: #{forward.5} parent=11 // pred_region
          _
        $region24: #{forward.5} parent=11 // pred_fallthru
          _
      $region12: #{forward.5} parent=5 // pred_fallthru
        _
      %p216 = scmp.lt.s32.totalorder %s14, 2
      // Predicated region
      $region25: #{forward.5} parent=5 // pred_check
        %p217 = pneg %p216
      $region26: #{forward.5} parent=5 // pred_check_branch
        %219 = sbr.rel (%p217) target = $region28
      $region27: #{forward.5} parent=5 // pred_region
        // Predicated region
        $region29: #{forward.5} parent=27 // pred_check
          %p220 = pneg %p55
        $region30: #{forward.5} parent=27 // pred_check_branch
          %222 = sbr.rel (%p220) target = $region32
        $region31: #{forward.5} parent=27 // pred_region
          %p223 = scmp.lt.s32.totalorder %s14, 1
          %s224 = scalar_select %p223, %s14, 1
          %s225 = smul.addr %s224, 2
          %s226 = smul.addr %s225, 4
          %s227 = scalar_lea.vmem %s1, %s226
        $region32: #{forward.5} parent=27 // pred_fallthru
          _
        // Predicated region
        $region33: #{forward.5} parent=27 // pred_check
          %p228 = pneg %p123
        $region34: #{forward.5} parent=27 // pred_check_branch
          %230 = sbr.rel (%p228) target = $region36
        $region35: #{forward.5} parent=27 // pred_region
          %p231 = scmp.lt.s32.totalorder %s14, 1
          %s232 = scalar_select %p231, %s14, 1
          %s233 = smul.addr %s232, 2
          %s234 = scalar_lea.vmem %s4, %s233
        $region36: #{forward.5} parent=27 // pred_fallthru
          _
      $region28: #{forward.5} parent=5 // pred_fallthru
        _
      %p235 = scmp.le.s32.totalorder 1, %s14
      %p236 = scmp.lt.s32.totalorder %s14, 3
      %p237 = pnand %p235, %p236
      %p238 = pneg %p237
      // Predicated region
      $region37: #{forward.5} parent=5 // pred_check
        _
      $region38: #{forward.5} parent=5 // pred_check_branch
        %240 = sbr.rel (%p237) target = $region40
      $region39: #{forward.5} parent=5 // pred_region
        %s241 = ssub.s32 %s14, 1
        // Predicated region
        $region41: #{forward.5} parent=39 // pred_check
          %p242 = pneg %p35
        $region42: #{forward.5} parent=39 // pred_check_branch
          %244 = sbr.rel (%p242) target = $region44
        $region43: #{forward.5} parent=39 // pred_region
          %246 = dma.done [#allocation3], 40960
        $region44: #{forward.5} parent=39 // pred_fallthru
          _
        %p247 = pneg %p35
        %p248 = pneg %p32
        %p249 = scmp.lt.s32.totalorder %s19, 1
        %s250 = scalar_select %p249, %s19, 1
        %s251 = smul.addr %s250, 2
        %s252 = smul.addr %s251, 4
        %s253 = scalar_lea.vmem %s1, %s252
        %p254 = pneg %p61
        %p255 = pneg %p58
        %p256 = pneg %p82
        %p257 = pneg %p79
        %p258 = pneg %p103
        %p259 = pneg %p100
        %p260 = scmp.lt.s32.totalorder %s19, 1
        %s261 = scalar_select %p260, %s19, 1
        %s262 = smul.addr %s261, 2
        %s263 = scalar_lea.vmem %s4, %s262
        %p264 = pneg %p129
        %p265 = pneg %p126
        %p266 = pneg %p155
        %p267 = pneg %p152
        %p268 = scmp.lt.s32.totalorder %s19, 1
        %s269 = scalar_select %p268, %s19, 1
        %s270 = smul.addr %s269, 2
        %s271 = smul.addr %s270, 8
        %s272 = scalar_lea.vmem %s5, %s271
        %p273 = pneg %p181
        %p274 = pneg %p178
        %p275 = scmp.lt.s32.totalorder %s19, 1
        %s276 = scalar_select %p275, %s19, 1
        %s277 = smul.addr %s276, 2
        %s278 = scalar_lea.vmem %s6, %s277
        %p279 = scmp.lt.s32.totalorder %s19, 1
        %s280 = scalar_select %p279, %s19, 1
        %s281 = smul.addr %s280, 2
        %s282 = smul.addr %s281, 4
        %s283 = scalar_lea.vmem %s1, %s282
        %p284 = scmp.lt.s32.totalorder %s19, 1
        %s285 = scalar_select %p284, %s19, 1
        %s286 = smul.addr %s285, 2
        %s287 = scalar_lea.vmem %s4, %s286
        %p288 = scmp.lt.s32.totalorder %s19, 1
        %s289 = scalar_select %p288, %s19, 1
        %s290 = smul.addr %s289, 2
        %s291 = smul.addr %s290, 8
        %s292 = scalar_lea.vmem %s5, %s291
        %p293 = scmp.lt.s32.totalorder %s19, 1
        %s294 = scalar_select %p293, %s19, 1
        %s295 = smul.addr %s294, 2
        %s296 = scalar_lea.vmem %s6, %s295
        %v297 = vld [vmem:[%s283] sm:$0x77]
        %v298 = vld [vmem:[%s287] sm:$0x3]
        %v299 = vld [vmem:[#allocation2] sm:$0xff]
        %v300 = vld [vmem:[#allocation2 + $0x8] sm:$0xff]
        %v301 = vld [vmem:[#allocation2 + $0x50] sm:$0xff]
        %v302 = vld [vmem:[#allocation2 + $0x58] sm:$0xff]
        %v303 = vld [vmem:[#allocation2 + $0xa0] sm:$0xff]
        %v304 = vld [vmem:[#allocation2 + $0xa8] sm:$0xff]
        %v305 = vld [vmem:[#allocation2 + $0xf0] sm:$0xff]
        %v306 = vld [vmem:[#allocation2 + $0xf8] sm:$0xff]
        %v307 = vld [vmem:[#allocation2 + $0x140] sm:$0xff]
        %v308 = vld [vmem:[#allocation2 + $0x148] sm:$0xff]
        %v309 = vld [vmem:[#allocation2 + $0x190] sm:$0xff]
        %v310 = vld [vmem:[#allocation2 + $0x198] sm:$0xff]
        %v311 = vld [vmem:[#allocation2 + $0x1e0] sm:$0xff]
        %v312 = vld [vmem:[#allocation2 + $0x1e8] sm:$0xff]
        %v313 = vld [vmem:[#allocation2 + $0x230] sm:$0xff]
        %v314 = vld [vmem:[#allocation2 + $0x238] sm:$0xff]
        %v315 = vld [vmem:[#allocation2 + $0x280] sm:$0xff]
        %v316 = vld [vmem:[#allocation2 + $0x288] sm:$0xff]
        %v317 = vld [vmem:[#allocation2 + $0x2d0] sm:$0xff]
        %v318 = vld [vmem:[#allocation2 + $0x2d8] sm:$0xff]
        %v319 = vld [vmem:[#allocation2 + $0x320] sm:$0xff]
        %v320 = vld [vmem:[#allocation2 + $0x328] sm:$0xff]
        %v321 = vld [vmem:[#allocation2 + $0x370] sm:$0xff]
        %v322 = vld [vmem:[#allocation2 + $0x378] sm:$0xff]
        %v323 = vld [vmem:[#allocation2 + $0x3c0] sm:$0xff]
        %v324 = vld [vmem:[#allocation2 + $0x3c8] sm:$0xff]
        %v325 = vld [vmem:[#allocation2 + $0x410] sm:$0xff]
        %v326 = vld [vmem:[#allocation2 + $0x418] sm:$0xff]
        %v327 = vld [vmem:[#allocation2 + $0x460] sm:$0xff]
        %v328 = vld [vmem:[#allocation2 + $0x468] sm:$0xff]
        %v329 = vld [vmem:[#allocation2 + $0x4b0] sm:$0xff]
        %v330 = vld [vmem:[#allocation2 + $0x4b8] sm:$0xff]
        %v331 = vld [vmem:[#allocation2 + $0x500] sm:$0xff]
        %v332 = vld [vmem:[#allocation2 + $0x508] sm:$0xff]
        %v333 = vld [vmem:[#allocation2 + $0x550] sm:$0xff]
        %v334 = vld [vmem:[#allocation2 + $0x558] sm:$0xff]
        %v335 = vld [vmem:[#allocation2 + $0x5a0] sm:$0xff]
        %v336 = vld [vmem:[#allocation2 + $0x5a8] sm:$0xff]
        %v337 = vld [vmem:[#allocation2 + $0x5f0] sm:$0xff]
        %v338 = vld [vmem:[#allocation2 + $0x5f8] sm:$0xff]
        %v339 = vld [vmem:[#allocation2 + $0x640] sm:$0xff]
        %v340 = vld [vmem:[#allocation2 + $0x648] sm:$0xff]
        %v341 = vld [vmem:[#allocation2 + $0x690] sm:$0xff]
        %v342 = vld [vmem:[#allocation2 + $0x698] sm:$0xff]
        %v343 = vld [vmem:[#allocation2 + $0x6e0] sm:$0xff]
        %v344 = vld [vmem:[#allocation2 + $0x6e8] sm:$0xff]
        %v345 = vld [vmem:[#allocation2 + $0x730] sm:$0xff]
        %v346 = vld [vmem:[#allocation2 + $0x738] sm:$0xff]
        %v347 = vld [vmem:[#allocation2 + $0x780] sm:$0xff]
        %v348 = vld [vmem:[#allocation2 + $0x788] sm:$0xff]
        %v349 = vld [vmem:[#allocation2 + $0x7d0] sm:$0xff]
        %v350 = vld [vmem:[#allocation2 + $0x7d8] sm:$0xff]
        %v351 = vld [vmem:[#allocation2 + $0x820] sm:$0xff]
        %v352 = vld [vmem:[#allocation2 + $0x828] sm:$0xff]
        %v353 = vld [vmem:[#allocation2 + $0x870] sm:$0xff]
        %v354 = vld [vmem:[#allocation2 + $0x878] sm:$0xff]
        %v355 = vld [vmem:[#allocation2 + $0x8c0] sm:$0xff]
        %v356 = vld [vmem:[#allocation2 + $0x8c8] sm:$0xff]
        %v357 = vld [vmem:[#allocation2 + $0x910] sm:$0xff]
        %v358 = vld [vmem:[#allocation2 + $0x918] sm:$0xff]
        %v359 = vld [vmem:[#allocation2 + $0x960] sm:$0xff]
        %v360 = vld [vmem:[#allocation2 + $0x968] sm:$0xff]
        %v361 = vld [vmem:[#allocation2 + $0x9b0] sm:$0xff]
        %v362 = vld [vmem:[#allocation2 + $0x9b8] sm:$0xff]
        %364 = vst [vmem:[#allocation1] ss:$2 sm:$0xff] %v297
        %v365 = vld.sshfl [vmem:[#allocation1] sm:$0xff pattern:$0x75316420]
        %v366 = vld.sshfl [vmem:[#allocation1 + $0x8] sm:$0xff pattern:$0x75316420]
        %369 = vmatpush.msra.mxu0 %v329
        %370 = vmatpush.msra.mxu0 %v327
        %371 = vmatpush.msra.mxu0 %v325
        %372 = vmatpush.msra.mxu0 %v323
        %373 = vmatpush.msra.mxu0 %v321
        %374 = vmatpush.msra.mxu0 %v319
        %375 = vmatpush.msra.mxu0 %v317
        %376 = vmatpush.msra.mxu0 %v315
        %377 = vmatpush.msra.mxu0 %v313
        %378 = vmatpush.msra.mxu0 %v311
        %379 = vmatpush.msra.mxu0 %v309
        %380 = vmatpush.msra.mxu0 %v307
        %381 = vmatpush.msra.mxu0 %v305
        %382 = vmatpush.msra.mxu0 %v303
        %383 = vmatpush.msra.mxu0 %v301
        %384 = vmatpush.msra.mxu0 %v299
        %385 = vmatmul.f32.gmra.mxu0 %v365
        %v386 = vpop.f32.mrf.mxu0
        %v387 = vadd.f32 0.0, %v386
        %388 = vdwg.mxu0
        %389 = vmatpush.msra.mxu0 %v361
        %390 = vmatpush.msra.mxu0 %v359
        %391 = vmatpush.msra.mxu0 %v357
        %392 = vmatpush.msra.mxu0 %v355
        %393 = vmatpush.msra.mxu0 %v353
        %394 = vmatpush.msra.mxu0 %v351
        %395 = vmatpush.msra.mxu0 %v349
        %396 = vmatpush.msra.mxu0 %v347
        %397 = vmatpush.msra.mxu0 %v345
        %398 = vmatpush.msra.mxu0 %v343
        %399 = vmatpush.msra.mxu0 %v341
        %400 = vmatpush.msra.mxu0 %v339
        %401 = vmatpush.msra.mxu0 %v337
        %402 = vmatpush.msra.mxu0 %v335
        %403 = vmatpush.msra.mxu0 %v333
        %404 = vmatpush.msra.mxu0 %v331
        %405 = vmatmul.f32.gmra.mxu0 %v366
        %v406 = vpop.f32.mrf.mxu0
        %v407 = vadd.f32 %v387, %v406
        %408 = vdwg.mxu0
        %409 = vmatpush.msra.mxu0 %v330
        %410 = vmatpush.msra.mxu0 %v328
        %411 = vmatpush.msra.mxu0 %v326
        %412 = vmatpush.msra.mxu0 %v324
        %413 = vmatpush.msra.mxu0 %v322
        %414 = vmatpush.msra.mxu0 %v320
        %415 = vmatpush.msra.mxu0 %v318
        %416 = vmatpush.msra.mxu0 %v316
        %417 = vmatpush.msra.mxu0 %v314
        %418 = vmatpush.msra.mxu0 %v312
        %419 = vmatpush.msra.mxu0 %v310
        %420 = vmatpush.msra.mxu0 %v308
        %421 = vmatpush.msra.mxu0 %v306
        %422 = vmatpush.msra.mxu0 %v304
        %423 = vmatpush.msra.mxu0 %v302
        %424 = vmatpush.msra.mxu0 %v300
        %425 = vmatmul.f32.gmra.mxu0 %v365
        %v426 = vpop.f32.mrf.mxu0
        %v427 = vadd.f32 0.0, %v426
        %428 = vdwg.mxu0
        %429 = vmatpush.msra.mxu0 %v362
        %430 = vmatpush.msra.mxu0 %v360
        %431 = vmatpush.msra.mxu0 %v358
        %432 = vmatpush.msra.mxu0 %v356
        %433 = vmatpush.msra.mxu0 %v354
        %434 = vmatpush.msra.mxu0 %v352
        %435 = vmatpush.msra.mxu0 %v350
        %436 = vmatpush.msra.mxu0 %v348
        %437 = vmatpush.msra.mxu0 %v346
        %438 = vmatpush.msra.mxu0 %v344
        %439 = vmatpush.msra.mxu0 %v342
        %440 = vmatpush.msra.mxu0 %v340
        %441 = vmatpush.msra.mxu0 %v338
        %442 = vmatpush.msra.mxu0 %v336
        %443 = vmatpush.msra.mxu0 %v334
        %444 = vmatpush.msra.mxu0 %v332
        %445 = vmatmul.f32.gmra.mxu0 %v366
        %v446 = vpop.f32.mrf.mxu0
        %v447 = vadd.f32 %v427, %v446
        %448 = vdwg.mxu0
        %v449 = vld [vmem:[%s2] sm:$0x3f]
        %v450 = vld [vmem:[#allocation2 + $0x10] sm:$0xff]
        %v451 = vld [vmem:[#allocation2 + $0x18] sm:$0xff]
        %v452 = vld [vmem:[#allocation2 + $0x60] sm:$0xff]
        %v453 = vld [vmem:[#allocation2 + $0x68] sm:$0xff]
        %v454 = vld [vmem:[#allocation2 + $0xb0] sm:$0xff]
        %v455 = vld [vmem:[#allocation2 + $0xb8] sm:$0xff]
        %v456 = vld [vmem:[#allocation2 + $0x100] sm:$0xff]
        %v457 = vld [vmem:[#allocation2 + $0x108] sm:$0xff]
        %v458 = vld [vmem:[#allocation2 + $0x150] sm:$0xff]
        %v459 = vld [vmem:[#allocation2 + $0x158] sm:$0xff]
        %v460 = vld [vmem:[#allocation2 + $0x1a0] sm:$0xff]
        %v461 = vld [vmem:[#allocation2 + $0x1a8] sm:$0xff]
        %v462 = vld [vmem:[#allocation2 + $0x1f0] sm:$0xff]
        %v463 = vld [vmem:[#allocation2 + $0x1f8] sm:$0xff]
        %v464 = vld [vmem:[#allocation2 + $0x240] sm:$0xff]
        %v465 = vld [vmem:[#allocation2 + $0x248] sm:$0xff]
        %v466 = vld [vmem:[#allocation2 + $0x290] sm:$0xff]
        %v467 = vld [vmem:[#allocation2 + $0x298] sm:$0xff]
        %v468 = vld [vmem:[#allocation2 + $0x2e0] sm:$0xff]
        %v469 = vld [vmem:[#allocation2 + $0x2e8] sm:$0xff]
        %v470 = vld [vmem:[#allocation2 + $0x330] sm:$0xff]
        %v471 = vld [vmem:[#allocation2 + $0x338] sm:$0xff]
        %v472 = vld [vmem:[#allocation2 + $0x380] sm:$0xff]
        %v473 = vld [vmem:[#allocation2 + $0x388] sm:$0xff]
        %v474 = vld [vmem:[#allocation2 + $0x3d0] sm:$0xff]
        %v475 = vld [vmem:[#allocation2 + $0x3d8] sm:$0xff]
        %v476 = vld [vmem:[#allocation2 + $0x420] sm:$0xff]
        %v477 = vld [vmem:[#allocation2 + $0x428] sm:$0xff]
        %v478 = vld [vmem:[#allocation2 + $0x470] sm:$0xff]
        %v479 = vld [vmem:[#allocation2 + $0x478] sm:$0xff]
        %v480 = vld [vmem:[#allocation2 + $0x4c0] sm:$0xff]
        %v481 = vld [vmem:[#allocation2 + $0x4c8] sm:$0xff]
        %v482 = vld [vmem:[#allocation2 + $0x510] sm:$0xff]
        %v483 = vld [vmem:[#allocation2 + $0x518] sm:$0xff]
        %v484 = vld [vmem:[#allocation2 + $0x560] sm:$0xff]
        %v485 = vld [vmem:[#allocation2 + $0x568] sm:$0xff]
        %v486 = vld [vmem:[#allocation2 + $0x5b0] sm:$0xff]
        %v487 = vld [vmem:[#allocation2 + $0x5b8] sm:$0xff]
        %v488 = vld [vmem:[#allocation2 + $0x600] sm:$0xff]
        %v489 = vld [vmem:[#allocation2 + $0x608] sm:$0xff]
        %v490 = vld [vmem:[#allocation2 + $0x650] sm:$0xff]
        %v491 = vld [vmem:[#allocation2 + $0x658] sm:$0xff]
        %v492 = vld [vmem:[#allocation2 + $0x6a0] sm:$0xff]
        %v493 = vld [vmem:[#allocation2 + $0x6a8] sm:$0xff]
        %v494 = vld [vmem:[#allocation2 + $0x6f0] sm:$0xff]
        %v495 = vld [vmem:[#allocation2 + $0x6f8] sm:$0xff]
        %v496 = vld [vmem:[#allocation2 + $0x740] sm:$0xff]
        %v497 = vld [vmem:[#allocation2 + $0x748] sm:$0xff]
        %v498 = vld [vmem:[#allocation2 + $0x790] sm:$0xff]
        %v499 = vld [vmem:[#allocation2 + $0x798] sm:$0xff]
        %v500 = vld [vmem:[#allocation2 + $0x7e0] sm:$0xff]
        %v501 = vld [vmem:[#allocation2 + $0x7e8] sm:$0xff]
        %v502 = vld [vmem:[#allocation2 + $0x830] sm:$0xff]
        %v503 = vld [vmem:[#allocation2 + $0x838] sm:$0xff]
        %v504 = vld [vmem:[#allocation2 + $0x880] sm:$0xff]
        %v505 = vld [vmem:[#allocation2 + $0x888] sm:$0xff]
        %v506 = vld [vmem:[#allocation2 + $0x8d0] sm:$0xff]
        %v507 = vld [vmem:[#allocation2 + $0x8d8] sm:$0xff]
        %v508 = vld [vmem:[#allocation2 + $0x920] sm:$0xff]
        %v509 = vld [vmem:[#allocation2 + $0x928] sm:$0xff]
        %v510 = vld [vmem:[#allocation2 + $0x970] sm:$0xff]
        %v511 = vld [vmem:[#allocation2 + $0x978] sm:$0xff]
        %v512 = vld [vmem:[#allocation2 + $0x9c0] sm:$0xff]
        %v513 = vld [vmem:[#allocation2 + $0x9c8] sm:$0xff]
        %514 = vst [vmem:[#allocation1] ss:$2 sm:$0xff] %v297
        %v515 = vld.sshfl [vmem:[#allocation1] sm:$0xff pattern:$0x75316420]
        %v516 = vld.sshfl [vmem:[#allocation1 + $0x8] sm:$0xff pattern:$0x75316420]
        %519 = vmatpush.msra.mxu0 %v480
        %520 = vmatpush.msra.mxu0 %v478
        %521 = vmatpush.msra.mxu0 %v476
        %522 = vmatpush.msra.mxu0 %v474
        %523 = vmatpush.msra.mxu0 %v472
        %524 = vmatpush.msra.mxu0 %v470
        %525 = vmatpush.msra.mxu0 %v468
        %526 = vmatpush.msra.mxu0 %v466
        %527 = vmatpush.msra.mxu0 %v464
        %528 = vmatpush.msra.mxu0 %v462
        %529 = vmatpush.msra.mxu0 %v460
        %530 = vmatpush.msra.mxu0 %v458
        %531 = vmatpush.msra.mxu0 %v456
        %532 = vmatpush.msra.mxu0 %v454
        %533 = vmatpush.msra.mxu0 %v452
        %534 = vmatpush.msra.mxu0 %v450
        %535 = vmatmul.f32.gmra.mxu0 %v515
        %v536 = vpop.f32.mrf.mxu0
        %v537 = vadd.f32 0.0, %v536
        %538 = vdwg.mxu0
        %539 = vmatpush.msra.mxu0 %v512
        %540 = vmatpush.msra.mxu0 %v510
        %541 = vmatpush.msra.mxu0 %v508
        %542 = vmatpush.msra.mxu0 %v506
        %543 = vmatpush.msra.mxu0 %v504
        %544 = vmatpush.msra.mxu0 %v502
        %545 = vmatpush.msra.mxu0 %v500
        %546 = vmatpush.msra.mxu0 %v498
        %547 = vmatpush.msra.mxu0 %v496
        %548 = vmatpush.msra.mxu0 %v494
        %549 = vmatpush.msra.mxu0 %v492
        %550 = vmatpush.msra.mxu0 %v490
        %551 = vmatpush.msra.mxu0 %v488
        %552 = vmatpush.msra.mxu0 %v486
        %553 = vmatpush.msra.mxu0 %v484
        %554 = vmatpush.msra.mxu0 %v482
        %555 = vmatmul.f32.gmra.mxu0 %v516
        %v556 = vpop.f32.mrf.mxu0
        %v557 = vadd.f32 %v537, %v556
        %558 = vdwg.mxu0
        %559 = vmatpush.msra.mxu0 %v481
        %560 = vmatpush.msra.mxu0 %v479
        %561 = vmatpush.msra.mxu0 %v477
        %562 = vmatpush.msra.mxu0 %v475
        %563 = vmatpush.msra.mxu0 %v473
        %564 = vmatpush.msra.mxu0 %v471
        %565 = vmatpush.msra.mxu0 %v469
        %566 = vmatpush.msra.mxu0 %v467
        %567 = vmatpush.msra.mxu0 %v465
        %568 = vmatpush.msra.mxu0 %v463
        %569 = vmatpush.msra.mxu0 %v461
        %570 = vmatpush.msra.mxu0 %v459
        %571 = vmatpush.msra.mxu0 %v457
        %572 = vmatpush.msra.mxu0 %v455
        %573 = vmatpush.msra.mxu0 %v453
        %574 = vmatpush.msra.mxu0 %v451
        %575 = vmatmul.f32.gmra.mxu0 %v515
        %v576 = vpop.f32.mrf.mxu0
        %v577 = vadd.f32 0.0, %v576
        %578 = vdwg.mxu0
        %579 = vmatpush.msra.mxu0 %v513
        %580 = vmatpush.msra.mxu0 %v511
        %581 = vmatpush.msra.mxu0 %v509
        %582 = vmatpush.msra.mxu0 %v507
        %583 = vmatpush.msra.mxu0 %v505
        %584 = vmatpush.msra.mxu0 %v503
        %585 = vmatpush.msra.mxu0 %v501
        %586 = vmatpush.msra.mxu0 %v499
        %587 = vmatpush.msra.mxu0 %v497
        %588 = vmatpush.msra.mxu0 %v495
        %589 = vmatpush.msra.mxu0 %v493
        %590 = vmatpush.msra.mxu0 %v491
        %591 = vmatpush.msra.mxu0 %v489
        %592 = vmatpush.msra.mxu0 %v487
        %593 = vmatpush.msra.mxu0 %v485
        %594 = vmatpush.msra.mxu0 %v483
        %595 = vmatmul.f32.gmra.mxu0 %v516
        %v596 = vpop.f32.mrf.mxu0
        %v597 = vadd.f32 %v577, %v596
        %598 = vdwg.mxu0
        %s599 = scalar_lea.vmem %s2, 8
        %v600 = vld [vmem:[%s599] sm:$0x3f]
        %vm601 = vcmask 23552
        %v603 = vsel %vm601, %v600, 0
        %vm605 = vcmask 1042432
        %v607 = vsel %vm605, %v557, 0
        %v610 = vsel %vm605, %v597, 0
        %612 = vmatpush.msra.mxu0 0.0
        %613 = vmatpush.msra.mxu0 0.0
        %614 = vmatpush.msra.mxu0 0.0
        %615 = vmatpush.msra.mxu0 0.0
        %616 = vmatpush.msra.mxu0 0.0
        %617 = vmatpush.msra.mxu0 0.0
        %618 = vmatpush.msra.mxu0 0.0
        %619 = vmatpush.msra.mxu0 0.0
        %620 = vmatpush.msra.mxu0 0.0
        %621 = vmatpush.msra.mxu0 0.0
        %622 = vmatpush.msra.mxu0 0.0
        %623 = vmatpush.msra.mxu0 0.0
        %624 = vmatpush.msra.mxu0 0.0
        %625 = vmatpush.msra.mxu0 0.0
        %626 = vmatpush.msra.mxu0 0.0
        %627 = vmatpush.msra.mxu0 %v607
        %628 = vmatmul.f32.gmra.mxu0 %v603
        %v629 = vpop.f32.mrf.mxu0
        %v630 = vadd.f32 0.0, %v629
        %631 = vdwg.mxu0
        %632 = vmatpush.msra.mxu0 0.0
        %633 = vmatpush.msra.mxu0 0.0
        %634 = vmatpush.msra.mxu0 0.0
        %635 = vmatpush.msra.mxu0 0.0
        %636 = vmatpush.msra.mxu0 0.0
        %637 = vmatpush.msra.mxu0 0.0
        %638 = vmatpush.msra.mxu0 0.0
        %639 = vmatpush.msra.mxu0 0.0
        %640 = vmatpush.msra.mxu0 0.0
        %641 = vmatpush.msra.mxu0 0.0
        %642 = vmatpush.msra.mxu0 0.0
        %643 = vmatpush.msra.mxu0 0.0
        %644 = vmatpush.msra.mxu0 0.0
        %645 = vmatpush.msra.mxu0 0.0
        %646 = vmatpush.msra.mxu0 0.0
        %647 = vmatpush.msra.mxu0 %v610
        %648 = vmatmul.f32.gmra.mxu0 %v603
        %v649 = vpop.f32.mrf.mxu0
        %v650 = vadd.f32 0.0, %v649
        %651 = vdwg.mxu0
        %v653 = vsel %vm601, %v449, 0
        %v656 = vsel %vm605, %v407, 0
        %v659 = vsel %vm605, %v447, 0
        %661 = vmatpush.msra.mxu0 0.0
        %662 = vmatpush.msra.mxu0 0.0
        %663 = vmatpush.msra.mxu0 0.0
        %664 = vmatpush.msra.mxu0 0.0
        %665 = vmatpush.msra.mxu0 0.0
        %666 = vmatpush.msra.mxu0 0.0
        %667 = vmatpush.msra.mxu0 0.0
        %668 = vmatpush.msra.mxu0 0.0
        %669 = vmatpush.msra.mxu0 0.0
        %670 = vmatpush.msra.mxu0 0.0
        %671 = vmatpush.msra.mxu0 0.0
        %672 = vmatpush.msra.mxu0 0.0
        %673 = vmatpush.msra.mxu0 0.0
        %674 = vmatpush.msra.mxu0 0.0
        %675 = vmatpush.msra.mxu0 0.0
        %676 = vmatpush.msra.mxu0 %v656
        %677 = vmatmul.f32.gmra.mxu0 %v653
        %v678 = vpop.f32.mrf.mxu0
        %v679 = vadd.f32 %v630, %v678
        %680 = vdwg.mxu0
        %681 = vmatpush.msra.mxu0 0.0
        %682 = vmatpush.msra.mxu0 0.0
        %683 = vmatpush.msra.mxu0 0.0
        %684 = vmatpush.msra.mxu0 0.0
        %685 = vmatpush.msra.mxu0 0.0
        %686 = vmatpush.msra.mxu0 0.0
        %687 = vmatpush.msra.mxu0 0.0
        %688 = vmatpush.msra.mxu0 0.0
        %689 = vmatpush.msra.mxu0 0.0
        %690 = vmatpush.msra.mxu0 0.0
        %691 = vmatpush.msra.mxu0 0.0
        %692 = vmatpush.msra.mxu0 0.0
        %693 = vmatpush.msra.mxu0 0.0
        %694 = vmatpush.msra.mxu0 0.0
        %695 = vmatpush.msra.mxu0 0.0
        %696 = vmatpush.msra.mxu0 %v659
        %697 = vmatmul.f32.gmra.mxu0 %v653
        %v698 = vpop.f32.mrf.mxu0
        %v699 = vadd.f32 %v650, %v698
        %700 = vdwg.mxu0
        %v701 = vld [vmem:[#allocation2 + $0x20] sm:$0xff]
        %v702 = vld [vmem:[#allocation2 + $0x28] sm:$0xff]
        %v703 = vld [vmem:[#allocation2 + $0x70] sm:$0xff]
        %v704 = vld [vmem:[#allocation2 + $0x78] sm:$0xff]
        %v705 = vld [vmem:[#allocation2 + $0xc0] sm:$0xff]
        %v706 = vld [vmem:[#allocation2 + $0xc8] sm:$0xff]
        %v707 = vld [vmem:[#allocation2 + $0x110] sm:$0xff]
        %v708 = vld [vmem:[#allocation2 + $0x118] sm:$0xff]
        %v709 = vld [vmem:[#allocation2 + $0x160] sm:$0xff]
        %v710 = vld [vmem:[#allocation2 + $0x168] sm:$0xff]
        %v711 = vld [vmem:[#allocation2 + $0x1b0] sm:$0xff]
        %v712 = vld [vmem:[#allocation2 + $0x1b8] sm:$0xff]
        %v713 = vld [vmem:[#allocation2 + $0x200] sm:$0xff]
        %v714 = vld [vmem:[#allocation2 + $0x208] sm:$0xff]
        %v715 = vld [vmem:[#allocation2 + $0x250] sm:$0xff]
        %v716 = vld [vmem:[#allocation2 + $0x258] sm:$0xff]
        %v717 = vld [vmem:[#allocation2 + $0x2a0] sm:$0xff]
        %v718 = vld [vmem:[#allocation2 + $0x2a8] sm:$0xff]
        %v719 = vld [vmem:[#allocation2 + $0x2f0] sm:$0xff]
        %v720 = vld [vmem:[#allocation2 + $0x2f8] sm:$0xff]
        %v721 = vld [vmem:[#allocation2 + $0x340] sm:$0xff]
        %v722 = vld [vmem:[#allocation2 + $0x348] sm:$0xff]
        %v723 = vld [vmem:[#allocation2 + $0x390] sm:$0xff]
        %v724 = vld [vmem:[#allocation2 + $0x398] sm:$0xff]
        %v725 = vld [vmem:[#allocation2 + $0x3e0] sm:$0xff]
        %v726 = vld [vmem:[#allocation2 + $0x3e8] sm:$0xff]
        %v727 = vld [vmem:[#allocation2 + $0x430] sm:$0xff]
        %v728 = vld [vmem:[#allocation2 + $0x438] sm:$0xff]
        %v729 = vld [vmem:[#allocation2 + $0x480] sm:$0xff]
        %v730 = vld [vmem:[#allocation2 + $0x488] sm:$0xff]
        %v731 = vld [vmem:[#allocation2 + $0x4d0] sm:$0xff]
        %v732 = vld [vmem:[#allocation2 + $0x4d8] sm:$0xff]
        %v733 = vld [vmem:[#allocation2 + $0x520] sm:$0xff]
        %v734 = vld [vmem:[#allocation2 + $0x528] sm:$0xff]
        %v735 = vld [vmem:[#allocation2 + $0x570] sm:$0xff]
        %v736 = vld [vmem:[#allocation2 + $0x578] sm:$0xff]
        %v737 = vld [vmem:[#allocation2 + $0x5c0] sm:$0xff]
        %v738 = vld [vmem:[#allocation2 + $0x5c8] sm:$0xff]
        %v739 = vld [vmem:[#allocation2 + $0x610] sm:$0xff]
        %v740 = vld [vmem:[#allocation2 + $0x618] sm:$0xff]
        %v741 = vld [vmem:[#allocation2 + $0x660] sm:$0xff]
        %v742 = vld [vmem:[#allocation2 + $0x668] sm:$0xff]
        %v743 = vld [vmem:[#allocation2 + $0x6b0] sm:$0xff]
        %v744 = vld [vmem:[#allocation2 + $0x6b8] sm:$0xff]
        %v745 = vld [vmem:[#allocation2 + $0x700] sm:$0xff]
        %v746 = vld [vmem:[#allocation2 + $0x708] sm:$0xff]
        %v747 = vld [vmem:[#allocation2 + $0x750] sm:$0xff]
        %v748 = vld [vmem:[#allocation2 + $0x758] sm:$0xff]
        %v749 = vld [vmem:[#allocation2 + $0x7a0] sm:$0xff]
        %v750 = vld [vmem:[#allocation2 + $0x7a8] sm:$0xff]
        %v751 = vld [vmem:[#allocation2 + $0x7f0] sm:$0xff]
        %v752 = vld [vmem:[#allocation2 + $0x7f8] sm:$0xff]
        %v753 = vld [vmem:[#allocation2 + $0x840] sm:$0xff]
        %v754 = vld [vmem:[#allocation2 + $0x848] sm:$0xff]
        %v755 = vld [vmem:[#allocation2 + $0x890] sm:$0xff]
        %v756 = vld [vmem:[#allocation2 + $0x898] sm:$0xff]
        %v757 = vld [vmem:[#allocation2 + $0x8e0] sm:$0xff]
        %v758 = vld [vmem:[#allocation2 + $0x8e8] sm:$0xff]
        %v759 = vld [vmem:[#allocation2 + $0x930] sm:$0xff]
        %v760 = vld [vmem:[#allocation2 + $0x938] sm:$0xff]
        %v761 = vld [vmem:[#allocation2 + $0x980] sm:$0xff]
        %v762 = vld [vmem:[#allocation2 + $0x988] sm:$0xff]
        %v763 = vld [vmem:[#allocation2 + $0x9d0] sm:$0xff]
        %v764 = vld [vmem:[#allocation2 + $0x9d8] sm:$0xff]
        %765 = vst [vmem:[#allocation1] ss:$2 sm:$0xff] %v297
        %v766 = vld.sshfl [vmem:[#allocation1] sm:$0xff pattern:$0x75316420]
        %v767 = vld.sshfl [vmem:[#allocation1 + $0x8] sm:$0xff pattern:$0x75316420]
        %770 = vmatpush.msra.mxu0 %v731
        %771 = vmatpush.msra.mxu0 %v729
        %772 = vmatpush.msra.mxu0 %v727
        %773 = vmatpush.msra.mxu0 %v725
        %774 = vmatpush.msra.mxu0 %v723
        %775 = vmatpush.msra.mxu0 %v721
        %776 = vmatpush.msra.mxu0 %v719
        %777 = vmatpush.msra.mxu0 %v717
        %778 = vmatpush.msra.mxu0 %v715
        %779 = vmatpush.msra.mxu0 %v713
        %780 = vmatpush.msra.mxu0 %v711
        %781 = vmatpush.msra.mxu0 %v709
        %782 = vmatpush.msra.mxu0 %v707
        %783 = vmatpush.msra.mxu0 %v705
        %784 = vmatpush.msra.mxu0 %v703
        %785 = vmatpush.msra.mxu0 %v701
        %786 = vmatmul.f32.gmra.mxu0 %v766
        %v787 = vpop.f32.mrf.mxu0
        %v788 = vadd.f32 0.0, %v787
        %789 = vdwg.mxu0
        %790 = vmatpush.msra.mxu0 %v763
        %791 = vmatpush.msra.mxu0 %v761
        %792 = vmatpush.msra.mxu0 %v759
        %793 = vmatpush.msra.mxu0 %v757
        %794 = vmatpush.msra.mxu0 %v755
        %795 = vmatpush.msra.mxu0 %v753
        %796 = vmatpush.msra.mxu0 %v751
        %797 = vmatpush.msra.mxu0 %v749
        %798 = vmatpush.msra.mxu0 %v747
        %799 = vmatpush.msra.mxu0 %v745
        %800 = vmatpush.msra.mxu0 %v743
        %801 = vmatpush.msra.mxu0 %v741
        %802 = vmatpush.msra.mxu0 %v739
        %803 = vmatpush.msra.mxu0 %v737
        %804 = vmatpush.msra.mxu0 %v735
        %805 = vmatpush.msra.mxu0 %v733
        %806 = vmatmul.f32.gmra.mxu0 %v767
        %v807 = vpop.f32.mrf.mxu0
        %v808 = vadd.f32 %v788, %v807
        %809 = vdwg.mxu0
        %810 = vmatpush.msra.mxu0 %v732
        %811 = vmatpush.msra.mxu0 %v730
        %812 = vmatpush.msra.mxu0 %v728
        %813 = vmatpush.msra.mxu0 %v726
        %814 = vmatpush.msra.mxu0 %v724
        %815 = vmatpush.msra.mxu0 %v722
        %816 = vmatpush.msra.mxu0 %v720
        %817 = vmatpush.msra.mxu0 %v718
        %818 = vmatpush.msra.mxu0 %v716
        %819 = vmatpush.msra.mxu0 %v714
        %820 = vmatpush.msra.mxu0 %v712
        %821 = vmatpush.msra.mxu0 %v710
        %822 = vmatpush.msra.mxu0 %v708
        %823 = vmatpush.msra.mxu0 %v706
        %824 = vmatpush.msra.mxu0 %v704
        %825 = vmatpush.msra.mxu0 %v702
        %826 = vmatmul.f32.gmra.mxu0 %v766
        %v827 = vpop.f32.mrf.mxu0
        %v828 = vadd.f32 0.0, %v827
        %829 = vdwg.mxu0
        %830 = vmatpush.msra.mxu0 %v764
        %831 = vmatpush.msra.mxu0 %v762
        %832 = vmatpush.msra.mxu0 %v760
        %833 = vmatpush.msra.mxu0 %v758
        %834 = vmatpush.msra.mxu0 %v756
        %835 = vmatpush.msra.mxu0 %v754
        %836 = vmatpush.msra.mxu0 %v752
        %837 = vmatpush.msra.mxu0 %v750
        %838 = vmatpush.msra.mxu0 %v748
        %839 = vmatpush.msra.mxu0 %v746
        %840 = vmatpush.msra.mxu0 %v744
        %841 = vmatpush.msra.mxu0 %v742
        %842 = vmatpush.msra.mxu0 %v740
        %843 = vmatpush.msra.mxu0 %v738
        %844 = vmatpush.msra.mxu0 %v736
        %845 = vmatpush.msra.mxu0 %v734
        %846 = vmatmul.f32.gmra.mxu0 %v767
        %v847 = vpop.f32.mrf.mxu0
        %v848 = vadd.f32 %v828, %v847
        %849 = vdwg.mxu0
        %s850 = scalar_lea.vmem %s2, 16
        %v851 = vld [vmem:[%s850] sm:$0x3f]
        %v853 = vsel %vm601, %v851, 0
        %v856 = vsel %vm605, %v808, 0
        %v859 = vsel %vm605, %v848, 0
        %861 = vmatpush.msra.mxu0 0.0
        %862 = vmatpush.msra.mxu0 0.0
        %863 = vmatpush.msra.mxu0 0.0
        %864 = vmatpush.msra.mxu0 0.0
        %865 = vmatpush.msra.mxu0 0.0
        %866 = vmatpush.msra.mxu0 0.0
        %867 = vmatpush.msra.mxu0 0.0
        %868 = vmatpush.msra.mxu0 0.0
        %869 = vmatpush.msra.mxu0 0.0
        %870 = vmatpush.msra.mxu0 0.0
        %871 = vmatpush.msra.mxu0 0.0
        %872 = vmatpush.msra.mxu0 0.0
        %873 = vmatpush.msra.mxu0 0.0
        %874 = vmatpush.msra.mxu0 0.0
        %875 = vmatpush.msra.mxu0 0.0
        %876 = vmatpush.msra.mxu0 %v856
        %877 = vmatmul.f32.gmra.mxu0 %v853
        %v878 = vpop.f32.mrf.mxu0
        %v879 = vadd.f32 0.0, %v878
        %880 = vdwg.mxu0
        %881 = vmatpush.msra.mxu0 0.0
        %882 = vmatpush.msra.mxu0 0.0
        %883 = vmatpush.msra.mxu0 0.0
        %884 = vmatpush.msra.mxu0 0.0
        %885 = vmatpush.msra.mxu0 0.0
        %886 = vmatpush.msra.mxu0 0.0
        %887 = vmatpush.msra.mxu0 0.0
        %888 = vmatpush.msra.mxu0 0.0
        %889 = vmatpush.msra.mxu0 0.0
        %890 = vmatpush.msra.mxu0 0.0
        %891 = vmatpush.msra.mxu0 0.0
        %892 = vmatpush.msra.mxu0 0.0
        %893 = vmatpush.msra.mxu0 0.0
        %894 = vmatpush.msra.mxu0 0.0
        %895 = vmatpush.msra.mxu0 0.0
        %896 = vmatpush.msra.mxu0 %v859
        %897 = vmatmul.f32.gmra.mxu0 %v853
        %v898 = vpop.f32.mrf.mxu0
        %v899 = vadd.f32 0.0, %v898
        %900 = vdwg.mxu0
        %v901 = vadd.f32 %v679, %v879
        %v902 = vadd.f32 %v699, %v899
        %v903 = vld [vmem:[#allocation2 + $0x30] sm:$0xff]
        %v904 = vld [vmem:[#allocation2 + $0x38] sm:$0xff]
        %v905 = vld [vmem:[#allocation2 + $0x80] sm:$0xff]
        %v906 = vld [vmem:[#allocation2 + $0x88] sm:$0xff]
        %v907 = vld [vmem:[#allocation2 + $0xd0] sm:$0xff]
        %v908 = vld [vmem:[#allocation2 + $0xd8] sm:$0xff]
        %v909 = vld [vmem:[#allocation2 + $0x120] sm:$0xff]
        %v910 = vld [vmem:[#allocation2 + $0x128] sm:$0xff]
        %v911 = vld [vmem:[#allocation2 + $0x170] sm:$0xff]
        %v912 = vld [vmem:[#allocation2 + $0x178] sm:$0xff]
        %v913 = vld [vmem:[#allocation2 + $0x1c0] sm:$0xff]
        %v914 = vld [vmem:[#allocation2 + $0x1c8] sm:$0xff]
        %v915 = vld [vmem:[#allocation2 + $0x210] sm:$0xff]
        %v916 = vld [vmem:[#allocation2 + $0x218] sm:$0xff]
        %v917 = vld [vmem:[#allocation2 + $0x260] sm:$0xff]
        %v918 = vld [vmem:[#allocation2 + $0x268] sm:$0xff]
        %v919 = vld [vmem:[#allocation2 + $0x2b0] sm:$0xff]
        %v920 = vld [vmem:[#allocation2 + $0x2b8] sm:$0xff]
        %v921 = vld [vmem:[#allocation2 + $0x300] sm:$0xff]
        %v922 = vld [vmem:[#allocation2 + $0x308] sm:$0xff]
        %v923 = vld [vmem:[#allocation2 + $0x350] sm:$0xff]
        %v924 = vld [vmem:[#allocation2 + $0x358] sm:$0xff]
        %v925 = vld [vmem:[#allocation2 + $0x3a0] sm:$0xff]
        %v926 = vld [vmem:[#allocation2 + $0x3a8] sm:$0xff]
        %v927 = vld [vmem:[#allocation2 + $0x3f0] sm:$0xff]
        %v928 = vld [vmem:[#allocation2 + $0x3f8] sm:$0xff]
        %v929 = vld [vmem:[#allocation2 + $0x440] sm:$0xff]
        %v930 = vld [vmem:[#allocation2 + $0x448] sm:$0xff]
        %v931 = vld [vmem:[#allocation2 + $0x490] sm:$0xff]
        %v932 = vld [vmem:[#allocation2 + $0x498] sm:$0xff]
        %v933 = vld [vmem:[#allocation2 + $0x4e0] sm:$0xff]
        %v934 = vld [vmem:[#allocation2 + $0x4e8] sm:$0xff]
        %v935 = vld [vmem:[#allocation2 + $0x530] sm:$0xff]
        %v936 = vld [vmem:[#allocation2 + $0x538] sm:$0xff]
        %v937 = vld [vmem:[#allocation2 + $0x580] sm:$0xff]
        %v938 = vld [vmem:[#allocation2 + $0x588] sm:$0xff]
        %v939 = vld [vmem:[#allocation2 + $0x5d0] sm:$0xff]
        %v940 = vld [vmem:[#allocation2 + $0x5d8] sm:$0xff]
        %v941 = vld [vmem:[#allocation2 + $0x620] sm:$0xff]
        %v942 = vld [vmem:[#allocation2 + $0x628] sm:$0xff]
        %v943 = vld [vmem:[#allocation2 + $0x670] sm:$0xff]
        %v944 = vld [vmem:[#allocation2 + $0x678] sm:$0xff]
        %v945 = vld [vmem:[#allocation2 + $0x6c0] sm:$0xff]
        %v946 = vld [vmem:[#allocation2 + $0x6c8] sm:$0xff]
        %v947 = vld [vmem:[#allocation2 + $0x710] sm:$0xff]
        %v948 = vld [vmem:[#allocation2 + $0x718] sm:$0xff]
        %v949 = vld [vmem:[#allocation2 + $0x760] sm:$0xff]
        %v950 = vld [vmem:[#allocation2 + $0x768] sm:$0xff]
        %v951 = vld [vmem:[#allocation2 + $0x7b0] sm:$0xff]
        %v952 = vld [vmem:[#allocation2 + $0x7b8] sm:$0xff]
        %v953 = vld [vmem:[#allocation2 + $0x800] sm:$0xff]
        %v954 = vld [vmem:[#allocation2 + $0x808] sm:$0xff]
        %v955 = vld [vmem:[#allocation2 + $0x850] sm:$0xff]
        %v956 = vld [vmem:[#allocation2 + $0x858] sm:$0xff]
        %v957 = vld [vmem:[#allocation2 + $0x8a0] sm:$0xff]
        %v958 = vld [vmem:[#allocation2 + $0x8a8] sm:$0xff]
        %v959 = vld [vmem:[#allocation2 + $0x8f0] sm:$0xff]
        %v960 = vld [vmem:[#allocation2 + $0x8f8] sm:$0xff]
        %v961 = vld [vmem:[#allocation2 + $0x940] sm:$0xff]
        %v962 = vld [vmem:[#allocation2 + $0x948] sm:$0xff]
        %v963 = vld [vmem:[#allocation2 + $0x990] sm:$0xff]
        %v964 = vld [vmem:[#allocation2 + $0x998] sm:$0xff]
        %v965 = vld [vmem:[#allocation2 + $0x9e0] sm:$0xff]
        %v966 = vld [vmem:[#allocation2 + $0x9e8] sm:$0xff]
        %967 = vst [vmem:[#allocation1] ss:$2 sm:$0xff] %v297
        %v968 = vld.sshfl [vmem:[#allocation1] sm:$0xff pattern:$0x75316420]
        %v969 = vld.sshfl [vmem:[#allocation1 + $0x8] sm:$0xff pattern:$0x75316420]
        %972 = vmatpush.msra.mxu0 %v933
        %973 = vmatpush.msra.mxu0 %v931
        %974 = vmatpush.msra.mxu0 %v929
        %975 = vmatpush.msra.mxu0 %v927
        %976 = vmatpush.msra.mxu0 %v925
        %977 = vmatpush.msra.mxu0 %v923
        %978 = vmatpush.msra.mxu0 %v921
        %979 = vmatpush.msra.mxu0 %v919
        %980 = vmatpush.msra.mxu0 %v917
        %981 = vmatpush.msra.mxu0 %v915
        %982 = vmatpush.msra.mxu0 %v913
        %983 = vmatpush.msra.mxu0 %v911
        %984 = vmatpush.msra.mxu0 %v909
        %985 = vmatpush.msra.mxu0 %v907
        %986 = vmatpush.msra.mxu0 %v905
        %987 = vmatpush.msra.mxu0 %v903
        %988 = vmatmul.f32.gmra.mxu0 %v968
        %v989 = vpop.f32.mrf.mxu0
        %v990 = vadd.f32 0.0, %v989
        %991 = vdwg.mxu0
        %992 = vmatpush.msra.mxu0 %v965
        %993 = vmatpush.msra.mxu0 %v963
        %994 = vmatpush.msra.mxu0 %v961
        %995 = vmatpush.msra.mxu0 %v959
        %996 = vmatpush.msra.mxu0 %v957
        %997 = vmatpush.msra.mxu0 %v955
        %998 = vmatpush.msra.mxu0 %v953
        %999 = vmatpush.msra.mxu0 %v951
        %1000 = vmatpush.msra.mxu0 %v949
        %1001 = vmatpush.msra.mxu0 %v947
        %1002 = vmatpush.msra.mxu0 %v945
        %1003 = vmatpush.msra.mxu0 %v943
        %1004 = vmatpush.msra.mxu0 %v941
        %1005 = vmatpush.msra.mxu0 %v939
        %1006 = vmatpush.msra.mxu0 %v937
        %1007 = vmatpush.msra.mxu0 %v935
        %1008 = vmatmul.f32.gmra.mxu0 %v969
        %v1009 = vpop.f32.mrf.mxu0
        %v1010 = vadd.f32 %v990, %v1009
        %1011 = vdwg.mxu0
        %1012 = vmatpush.msra.mxu0 %v934
        %1013 = vmatpush.msra.mxu0 %v932
        %1014 = vmatpush.msra.mxu0 %v930
        %1015 = vmatpush.msra.mxu0 %v928
        %1016 = vmatpush.msra.mxu0 %v926
        %1017 = vmatpush.msra.mxu0 %v924
        %1018 = vmatpush.msra.mxu0 %v922
        %1019 = vmatpush.msra.mxu0 %v920
        %1020 = vmatpush.msra.mxu0 %v918
        %1021 = vmatpush.msra.mxu0 %v916
        %1022 = vmatpush.msra.mxu0 %v914
        %1023 = vmatpush.msra.mxu0 %v912
        %1024 = vmatpush.msra.mxu0 %v910
        %1025 = vmatpush.msra.mxu0 %v908
        %1026 = vmatpush.msra.mxu0 %v906
        %1027 = vmatpush.msra.mxu0 %v904
        %1028 = vmatmul.f32.gmra.mxu0 %v968
        %v1029 = vpop.f32.mrf.mxu0
        %v1030 = vadd.f32 0.0, %v1029
        %1031 = vdwg.mxu0
        %1032 = vmatpush.msra.mxu0 %v966
        %1033 = vmatpush.msra.mxu0 %v964
        %1034 = vmatpush.msra.mxu0 %v962
        %1035 = vmatpush.msra.mxu0 %v960
        %1036 = vmatpush.msra.mxu0 %v958
        %1037 = vmatpush.msra.mxu0 %v956
        %1038 = vmatpush.msra.mxu0 %v954
        %1039 = vmatpush.msra.mxu0 %v952
        %1040 = vmatpush.msra.mxu0 %v950
        %1041 = vmatpush.msra.mxu0 %v948
        %1042 = vmatpush.msra.mxu0 %v946
        %1043 = vmatpush.msra.mxu0 %v944
        %1044 = vmatpush.msra.mxu0 %v942
        %1045 = vmatpush.msra.mxu0 %v940
        %1046 = vmatpush.msra.mxu0 %v938
        %1047 = vmatpush.msra.mxu0 %v936
        %1048 = vmatmul.f32.gmra.mxu0 %v969
        %v1049 = vpop.f32.mrf.mxu0
        %v1050 = vadd.f32 %v1030, %v1049
        %1051 = vdwg.mxu0
        %s1052 = scalar_lea.vmem %s2, 24
        %v1053 = vld [vmem:[%s1052] sm:$0x3f]
        %v1055 = vsel %vm601, %v1053, 0
        %v1058 = vsel %vm605, %v1010, 0
        %v1061 = vsel %vm605, %v1050, 0
        %1063 = vmatpush.msra.mxu0 0.0
        %1064 = vmatpush.msra.mxu0 0.0
        %1065 = vmatpush.msra.mxu0 0.0
        %1066 = vmatpush.msra.mxu0 0.0
        %1067 = vmatpush.msra.mxu0 0.0
        %1068 = vmatpush.msra.mxu0 0.0
        %1069 = vmatpush.msra.mxu0 0.0
        %1070 = vmatpush.msra.mxu0 0.0
        %1071 = vmatpush.msra.mxu0 0.0
        %1072 = vmatpush.msra.mxu0 0.0
        %1073 = vmatpush.msra.mxu0 0.0
        %1074 = vmatpush.msra.mxu0 0.0
        %1075 = vmatpush.msra.mxu0 0.0
        %1076 = vmatpush.msra.mxu0 0.0
        %1077 = vmatpush.msra.mxu0 0.0
        %1078 = vmatpush.msra.mxu0 %v1058
        %1079 = vmatmul.f32.gmra.mxu0 %v1055
        %v1080 = vpop.f32.mrf.mxu0
        %v1081 = vadd.f32 0.0, %v1080
        %1082 = vdwg.mxu0
        %1083 = vmatpush.msra.mxu0 0.0
        %1084 = vmatpush.msra.mxu0 0.0
        %1085 = vmatpush.msra.mxu0 0.0
        %1086 = vmatpush.msra.mxu0 0.0
        %1087 = vmatpush.msra.mxu0 0.0
        %1088 = vmatpush.msra.mxu0 0.0
        %1089 = vmatpush.msra.mxu0 0.0
        %1090 = vmatpush.msra.mxu0 0.0
        %1091 = vmatpush.msra.mxu0 0.0
        %1092 = vmatpush.msra.mxu0 0.0
        %1093 = vmatpush.msra.mxu0 0.0
        %1094 = vmatpush.msra.mxu0 0.0
        %1095 = vmatpush.msra.mxu0 0.0
        %1096 = vmatpush.msra.mxu0 0.0
        %1097 = vmatpush.msra.mxu0 0.0
        %1098 = vmatpush.msra.mxu0 %v1061
        %1099 = vmatmul.f32.gmra.mxu0 %v1055
        %v1100 = vpop.f32.mrf.mxu0
        %v1101 = vadd.f32 0.0, %v1100
        %1102 = vdwg.mxu0
        %v1103 = vadd.f32 %v901, %v1081
        %v1104 = vadd.f32 %v902, %v1101
        %v1105 = vld [vmem:[#allocation2 + $0x40] sm:$0xff]
        %v1106 = vld [vmem:[#allocation2 + $0x48] sm:$0xff]
        %v1107 = vld [vmem:[#allocation2 + $0x90] sm:$0xff]
        %v1108 = vld [vmem:[#allocation2 + $0x98] sm:$0xff]
        %v1109 = vld [vmem:[#allocation2 + $0xe0] sm:$0xff]
        %v1110 = vld [vmem:[#allocation2 + $0xe8] sm:$0xff]
        %v1111 = vld [vmem:[#allocation2 + $0x130] sm:$0xff]
        %v1112 = vld [vmem:[#allocation2 + $0x138] sm:$0xff]
        %v1113 = vld [vmem:[#allocation2 + $0x180] sm:$0xff]
        %v1114 = vld [vmem:[#allocation2 + $0x188] sm:$0xff]
        %v1115 = vld [vmem:[#allocation2 + $0x1d0] sm:$0xff]
        %v1116 = vld [vmem:[#allocation2 + $0x1d8] sm:$0xff]
        %v1117 = vld [vmem:[#allocation2 + $0x220] sm:$0xff]
        %v1118 = vld [vmem:[#allocation2 + $0x228] sm:$0xff]
        %v1119 = vld [vmem:[#allocation2 + $0x270] sm:$0xff]
        %v1120 = vld [vmem:[#allocation2 + $0x278] sm:$0xff]
        %v1121 = vld [vmem:[#allocation2 + $0x2c0] sm:$0xff]
        %v1122 = vld [vmem:[#allocation2 + $0x2c8] sm:$0xff]
        %v1123 = vld [vmem:[#allocation2 + $0x310] sm:$0xff]
        %v1124 = vld [vmem:[#allocation2 + $0x318] sm:$0xff]
        %v1125 = vld [vmem:[#allocation2 + $0x360] sm:$0xff]
        %v1126 = vld [vmem:[#allocation2 + $0x368] sm:$0xff]
        %v1127 = vld [vmem:[#allocation2 + $0x3b0] sm:$0xff]
        %v1128 = vld [vmem:[#allocation2 + $0x3b8] sm:$0xff]
        %v1129 = vld [vmem:[#allocation2 + $0x400] sm:$0xff]
        %v1130 = vld [vmem:[#allocation2 + $0x408] sm:$0xff]
        %v1131 = vld [vmem:[#allocation2 + $0x450] sm:$0xff]
        %v1132 = vld [vmem:[#allocation2 + $0x458] sm:$0xff]
        %v1133 = vld [vmem:[#allocation2 + $0x4a0] sm:$0xff]
        %v1134 = vld [vmem:[#allocation2 + $0x4a8] sm:$0xff]
        %v1135 = vld [vmem:[#allocation2 + $0x4f0] sm:$0xff]
        %v1136 = vld [vmem:[#allocation2 + $0x4f8] sm:$0xff]
        %v1137 = vld [vmem:[#allocation2 + $0x540] sm:$0xff]
        %v1138 = vld [vmem:[#allocation2 + $0x548] sm:$0xff]
        %v1139 = vld [vmem:[#allocation2 + $0x590] sm:$0xff]
        %v1140 = vld [vmem:[#allocation2 + $0x598] sm:$0xff]
        %v1141 = vld [vmem:[#allocation2 + $0x5e0] sm:$0xff]
        %v1142 = vld [vmem:[#allocation2 + $0x5e8] sm:$0xff]
        %v1143 = vld [vmem:[#allocation2 + $0x630] sm:$0xff]
        %v1144 = vld [vmem:[#allocation2 + $0x638] sm:$0xff]
        %v1145 = vld [vmem:[#allocation2 + $0x680] sm:$0xff]
        %v1146 = vld [vmem:[#allocation2 + $0x688] sm:$0xff]
        %v1147 = vld [vmem:[#allocation2 + $0x6d0] sm:$0xff]
        %v1148 = vld [vmem:[#allocation2 + $0x6d8] sm:$0xff]
        %v1149 = vld [vmem:[#allocation2 + $0x720] sm:$0xff]
        %v1150 = vld [vmem:[#allocation2 + $0x728] sm:$0xff]
        %v1151 = vld [vmem:[#allocation2 + $0x770] sm:$0xff]
        %v1152 = vld [vmem:[#allocation2 + $0x778] sm:$0xff]
        %v1153 = vld [vmem:[#allocation2 + $0x7c0] sm:$0xff]
        %v1154 = vld [vmem:[#allocation2 + $0x7c8] sm:$0xff]
        %v1155 = vld [vmem:[#allocation2 + $0x810] sm:$0xff]
        %v1156 = vld [vmem:[#allocation2 + $0x818] sm:$0xff]
        %v1157 = vld [vmem:[#allocation2 + $0x860] sm:$0xff]
        %v1158 = vld [vmem:[#allocation2 + $0x868] sm:$0xff]
        %v1159 = vld [vmem:[#allocation2 + $0x8b0] sm:$0xff]
        %v1160 = vld [vmem:[#allocation2 + $0x8b8] sm:$0xff]
        %v1161 = vld [vmem:[#allocation2 + $0x900] sm:$0xff]
        %v1162 = vld [vmem:[#allocation2 + $0x908] sm:$0xff]
        %v1163 = vld [vmem:[#allocation2 + $0x950] sm:$0xff]
        %v1164 = vld [vmem:[#allocation2 + $0x958] sm:$0xff]
        %v1165 = vld [vmem:[#allocation2 + $0x9a0] sm:$0xff]
        %v1166 = vld [vmem:[#allocation2 + $0x9a8] sm:$0xff]
        %v1167 = vld [vmem:[#allocation2 + $0x9f0] sm:$0xff]
        %v1168 = vld [vmem:[#allocation2 + $0x9f8] sm:$0xff]
        %1169 = vst [vmem:[#allocation1] ss:$2 sm:$0xff] %v297
        %v1170 = vld.sshfl [vmem:[#allocation1] sm:$0xff pattern:$0x75316420]
        %v1171 = vld.sshfl [vmem:[#allocation1 + $0x8] sm:$0xff pattern:$0x75316420]
        %1174 = vmatpush.msra.mxu0 %v1135
        %1175 = vmatpush.msra.mxu0 %v1133
        %1176 = vmatpush.msra.mxu0 %v1131
        %1177 = vmatpush.msra.mxu0 %v1129
        %1178 = vmatpush.msra.mxu0 %v1127
        %1179 = vmatpush.msra.mxu0 %v1125
        %1180 = vmatpush.msra.mxu0 %v1123
        %1181 = vmatpush.msra.mxu0 %v1121
        %1182 = vmatpush.msra.mxu0 %v1119
        %1183 = vmatpush.msra.mxu0 %v1117
        %1184 = vmatpush.msra.mxu0 %v1115
        %1185 = vmatpush.msra.mxu0 %v1113
        %1186 = vmatpush.msra.mxu0 %v1111
        %1187 = vmatpush.msra.mxu0 %v1109
        %1188 = vmatpush.msra.mxu0 %v1107
        %1189 = vmatpush.msra.mxu0 %v1105
        %1190 = vmatmul.f32.gmra.mxu0 %v1170
        %v1191 = vpop.f32.mrf.mxu0
        %v1192 = vadd.f32 0.0, %v1191
        %1193 = vdwg.mxu0
        %1194 = vmatpush.msra.mxu0 %v1167
        %1195 = vmatpush.msra.mxu0 %v1165
        %1196 = vmatpush.msra.mxu0 %v1163
        %1197 = vmatpush.msra.mxu0 %v1161
        %1198 = vmatpush.msra.mxu0 %v1159
        %1199 = vmatpush.msra.mxu0 %v1157
        %1200 = vmatpush.msra.mxu0 %v1155
        %1201 = vmatpush.msra.mxu0 %v1153
        %1202 = vmatpush.msra.mxu0 %v1151
        %1203 = vmatpush.msra.mxu0 %v1149
        %1204 = vmatpush.msra.mxu0 %v1147
        %1205 = vmatpush.msra.mxu0 %v1145
        %1206 = vmatpush.msra.mxu0 %v1143
        %1207 = vmatpush.msra.mxu0 %v1141
        %1208 = vmatpush.msra.mxu0 %v1139
        %1209 = vmatpush.msra.mxu0 %v1137
        %1210 = vmatmul.f32.gmra.mxu0 %v1171
        %v1211 = vpop.f32.mrf.mxu0
        %v1212 = vadd.f32 %v1192, %v1211
        %1213 = vdwg.mxu0
        %1214 = vmatpush.msra.mxu0 %v1136
        %1215 = vmatpush.msra.mxu0 %v1134
        %1216 = vmatpush.msra.mxu0 %v1132
        %1217 = vmatpush.msra.mxu0 %v1130
        %1218 = vmatpush.msra.mxu0 %v1128
        %1219 = vmatpush.msra.mxu0 %v1126
        %1220 = vmatpush.msra.mxu0 %v1124
        %1221 = vmatpush.msra.mxu0 %v1122
        %1222 = vmatpush.msra.mxu0 %v1120
        %1223 = vmatpush.msra.mxu0 %v1118
        %1224 = vmatpush.msra.mxu0 %v1116
        %1225 = vmatpush.msra.mxu0 %v1114
        %1226 = vmatpush.msra.mxu0 %v1112
        %1227 = vmatpush.msra.mxu0 %v1110
        %1228 = vmatpush.msra.mxu0 %v1108
        %1229 = vmatpush.msra.mxu0 %v1106
        %1230 = vmatmul.f32.gmra.mxu0 %v1170
        %v1231 = vpop.f32.mrf.mxu0
        %v1232 = vadd.f32 0.0, %v1231
        %1233 = vdwg.mxu0
        %1234 = vmatpush.msra.mxu0 %v1168
        %1235 = vmatpush.msra.mxu0 %v1166
        %1236 = vmatpush.msra.mxu0 %v1164
        %1237 = vmatpush.msra.mxu0 %v1162
        %1238 = vmatpush.msra.mxu0 %v1160
        %1239 = vmatpush.msra.mxu0 %v1158
        %1240 = vmatpush.msra.mxu0 %v1156
        %1241 = vmatpush.msra.mxu0 %v1154
        %1242 = vmatpush.msra.mxu0 %v1152
        %1243 = vmatpush.msra.mxu0 %v1150
        %1244 = vmatpush.msra.mxu0 %v1148
        %1245 = vmatpush.msra.mxu0 %v1146
        %1246 = vmatpush.msra.mxu0 %v1144
        %1247 = vmatpush.msra.mxu0 %v1142
        %1248 = vmatpush.msra.mxu0 %v1140
        %1249 = vmatpush.msra.mxu0 %v1138
        %1250 = vmatmul.f32.gmra.mxu0 %v1171
        %v1251 = vpop.f32.mrf.mxu0
        %v1252 = vadd.f32 %v1232, %v1251
        %1253 = vdwg.mxu0
        %s1254 = scalar_lea.vmem %s2, 32
        %v1255 = vld [vmem:[%s1254] sm:$0x3f]
        %v1257 = vsel %vm601, %v1255, 0
        %v1260 = vsel %vm605, %v1212, 0
        %v1263 = vsel %vm605, %v1252, 0
        %1265 = vmatpush.msra.mxu0 0.0
        %1266 = vmatpush.msra.mxu0 0.0
        %1267 = vmatpush.msra.mxu0 0.0
        %1268 = vmatpush.msra.mxu0 0.0
        %1269 = vmatpush.msra.mxu0 0.0
        %1270 = vmatpush.msra.mxu0 0.0
        %1271 = vmatpush.msra.mxu0 0.0
        %1272 = vmatpush.msra.mxu0 0.0
        %1273 = vmatpush.msra.mxu0 0.0
        %1274 = vmatpush.msra.mxu0 0.0
        %1275 = vmatpush.msra.mxu0 0.0
        %1276 = vmatpush.msra.mxu0 0.0
        %1277 = vmatpush.msra.mxu0 0.0
        %1278 = vmatpush.msra.mxu0 0.0
        %1279 = vmatpush.msra.mxu0 0.0
        %1280 = vmatpush.msra.mxu0 %v1260
        %1281 = vmatmul.f32.gmra.mxu0 %v1257
        %v1282 = vpop.f32.mrf.mxu0
        %v1283 = vadd.f32 0.0, %v1282
        %1284 = vdwg.mxu0
        %1285 = vmatpush.msra.mxu0 0.0
        %1286 = vmatpush.msra.mxu0 0.0
        %1287 = vmatpush.msra.mxu0 0.0
        %1288 = vmatpush.msra.mxu0 0.0
        %1289 = vmatpush.msra.mxu0 0.0
        %1290 = vmatpush.msra.mxu0 0.0
        %1291 = vmatpush.msra.mxu0 0.0
        %1292 = vmatpush.msra.mxu0 0.0
        %1293 = vmatpush.msra.mxu0 0.0
        %1294 = vmatpush.msra.mxu0 0.0
        %1295 = vmatpush.msra.mxu0 0.0
        %1296 = vmatpush.msra.mxu0 0.0
        %1297 = vmatpush.msra.mxu0 0.0
        %1298 = vmatpush.msra.mxu0 0.0
        %1299 = vmatpush.msra.mxu0 0.0
        %1300 = vmatpush.msra.mxu0 %v1263
        %1301 = vmatmul.f32.gmra.mxu0 %v1257
        %v1302 = vpop.f32.mrf.mxu0
        %v1303 = vadd.f32 0.0, %v1302
        %1304 = vdwg.mxu0
        %v1305 = vadd.f32 %v1103, %v1283
        %v1306 = vadd.f32 %v1104, %v1303
        %v1307 = vld [vmem:[%s3] sm:$0x3f]
        %1309 = vset.pattern.permute.xlu0 0
        %1310 = vperm.xlu0 %1309, %v1307
        %v1311 = vpop.permute.xlu0 %1310
        %v1313 = vadd.f32 %v1305, %v1311
        %v1314 = vadd.f32 %v1306, %v1311
        %v1316 = vperm.slane %v298, 0
        %v1317 = vperm.slane %v298, 1
        %v1320 = vmul.f32 %v1313, %v1316
        %v1321 = vmul.f32 %v1314, %v1317
        %1322 = vst [vmem:[%s292] sm:$0x3f] %v1320
        %1323 = vst [vmem:[%s292 + $0x8] sm:$0x3f] %v1321
        %vm1324 = vcmask 1045504
        %v1325 = vsel %vm1324, %v1320, -inf
        %v1326 = vrot.slane %v1325, 4
        %v1327 = vmax.f32 %v1325, %v1326
        %v1328 = vrot.slane %v1327, 2
        %v1329 = vmax.f32 %v1327, %v1328
        %v1330 = vrot.slane %v1329, 1
        %v1331 = vmax.f32 %v1329, %v1330
        %v1332 = vsel %vm1324, %v1321, -inf
        %v1333 = vrot.slane %v1332, 4
        %v1334 = vmax.f32 %v1332, %v1333
        %v1335 = vrot.slane %v1334, 2
        %v1336 = vmax.f32 %v1334, %v1335
        %v1337 = vrot.slane %v1336, 1
        %v1338 = vmax.f32 %v1336, %v1337
        %vm1339 = vcmp.gt.f32.partialorder %v298, 0.0
        %v1342 = vrot.slane %v1338, 7
        %vm1343 = vcmask 1040384
        %v1344 = vsel %vm1343, %v1331, %v1342
        %v1346 = vsel %vm1339, %v1344, -1e+30
        %v1347 = vlaneseq
        %vm1348 = vcmp.ge.s32.totalorder %v1347, 0
        %vm1349 = vcmp.lt.s32.totalorder %v1347, 256
        %vm1350 = vmand %vm1348, %vm1349
        %1351 = vst.msk [vmem:[%s296] sm:$0x3] %vm1350, %v1346
        %p1352 = scmp.lt.s32.totalorder %s19, 1
        %s1353 = scalar_select %p1352, %s19, 1
        %s1354 = smul.addr %s1353, 2
        %s1355 = smul.addr %s1354, 8
        %s1356 = scalar_lea.vmem %s5, %s1355
        %p1357 = scmp.lt.s32.totalorder %s19, 1
        %s1358 = scalar_select %p1357, %s19, 1
        %s1359 = smul.addr %s1358, 2
        %s1360 = scalar_lea.vmem %s6, %s1359
        // Predicated region
        $region45: #{forward.5} parent=39 // pred_check
          %p1361 = pneg %p152
        $region46: #{forward.5} parent=39 // pred_check_branch
          %1363 = sbr.rel (%p1361) target = $region48
        $region47: #{forward.5} parent=39 // pred_region
          _
        $region48: #{forward.5} parent=39 // pred_fallthru
          _
        // Predicated region
        $region49: #{forward.5} parent=39 // pred_check
          %p1364 = pneg %p178
        $region50: #{forward.5} parent=39 // pred_check_branch
          %1366 = sbr.rel (%p1364) target = $region52
        $region51: #{forward.5} parent=39 // pred_region
          _
        $region52: #{forward.5} parent=39 // pred_fallthru
          _
      $region40: #{forward.5} parent=5 // pred_fallthru
        _
      %p1367 = scmp.le.s32.totalorder 2, %s14
      // Predicated region
      $region53: #{forward.5} parent=5 // pred_check
        %p1368 = pneg %p1367
      $region54: #{forward.5} parent=5 // pred_check_branch
        %1370 = sbr.rel (%p1368) target = $region56
      $region55: #{forward.5} parent=5 // pred_region
        %s1371 = ssub.s32 %s14, 2
        // Predicated region
        $region57: #{forward.5} parent=55 // pred_check
          %p1372 = pneg %p158
        $region58: #{forward.5} parent=55 // pred_check_branch
          %1374 = sbr.rel (%p1372) target = $region60
        $region59: #{forward.5} parent=55 // pred_region
          %p1375 = scmp.lt.s32.totalorder %s20, 1
          %s1376 = scalar_select %p1375, %s20, 1
          %s1377 = smul.addr %s1376, 2
          %s1378 = smul.addr %s1377, 8
          %s1379 = scalar_lea.vmem %s5, %s1378
        $region60: #{forward.5} parent=55 // pred_fallthru
          _
        // Predicated region
        $region61: #{forward.5} parent=55 // pred_check
          %p1380 = pneg %p184
        $region62: #{forward.5} parent=55 // pred_check_branch
          %1382 = sbr.rel (%p1380) target = $region64
        $region63: #{forward.5} parent=55 // pred_region
          %p1383 = scmp.lt.s32.totalorder %s20, 1
          %s1384 = scalar_select %p1383, %s20, 1
          %s1385 = smul.addr %s1384, 2
          %s1386 = scalar_lea.vmem %s6, %s1385
        $region64: #{forward.5} parent=55 // pred_fallthru
          _
      $region56: #{forward.5} parent=5 // pred_fallthru
        _
    $region6: #{forward.5} parent=1 // loop_footer
      %s18 = sadd.s32 1, %s14
    $region7: #{forward.5} parent=1 // loop_footer_branch
      %13 = sbr.rel target = $region3
    $region8: #{forward.5} parent=1 // loop_exit
      _
    %1387 = vsyncpa [#allocation3], 1
    %s1388 = scalar_lea.sflag [#allocation3], 1
    %1389 = vsyncpa %s1388, 1

// kernel: forward.6
$region0: #{forward.6}
  #allocation0 [shape = 'u32[]', space=smem, size = 0x4, offset = 0x4, fixed_abs, tag = 'smem constant byte address 0x4 - core index']
  #allocation1 [shape = 'u32[72,128]{1,0:T(1,128)}', space=vmem, size = 0x9000, scoped, tag = 'internal scratch']
  %s0 = inlined_call_operand.hbm [shape: f32[256,1280], index: 0, kind: input, shape index: {}]
  %s1 = inlined_call_operand.vmem [shape: f32[2,6,256], index: 1, kind: input, shape index: {}]
  %s2 = inlined_call_operand.vmem [shape: f32[5,9,6], index: 2, kind: input, shape index: {}]
  %s3 = inlined_call_operand.vmem [shape: f32[9,1], index: 3, kind: input, shape index: {}]
  %s4 = inlined_call_operand.vmem [shape: f32[2,1,256], index: 4, kind: input, shape index: {}]
  %s5 = inlined_call_operand.vmem [shape: f32[2,9,256], index: 5, kind: output, shape index: {0}]
  %s6 = inlined_call_operand.vmem [shape: f32[2,1,256], index: 6, kind: output, shape index: {1}]
  %7 = xla_tuple %s5, %s6
  %s8 = sld [smem:[#allocation0]]
  $region65: #{forward.6} parent=0
    _
  %s10 = ssub.s32 1, %s8
  %s11 = scalar_select 0, %s10, %s8
  $region1: #{forward.6} parent=0
    #allocation2 [shape = 'u8[1310720]{0}', space=vmem, size = 0x140000, scoped, tag = 'input window, operand 0, single buffered']
    #allocation3 [shape = 's32[2]{0}', space=sflag, size = 0x8, scoped, tag = 'scoped memory for forward.6']
    %12 = vsyncpa [#allocation3], 0
    loop: start=0, step=1, limit=4
    $region2: #{forward.6} parent=1 // loop_pre_header
      _
    $region3: #{forward.6} parent=1 // loop_header
      %s14 = sphi 0, %s18
      %p15 = scmp.ge.s32.totalorder %s14, 4
      %s22 = sphi 0, %s22
      %s24 = sphi 0, %s22
      %s25 = sphi 0, %s24
      %s39 = sphi 0, %s25
      %s45 = sphi 0, %s47
      %s48 = sphi 0, %s45
      %s49 = sphi 0, %s48
      %s65 = sphi 0, %s49
      %s69 = sphi 0, %s69
      %s71 = sphi 0, %s69
      %s72 = sphi 0, %s71
      %s86 = sphi 0, %s72
      %s90 = sphi 0, %s90
      %s92 = sphi 0, %s90
      %s93 = sphi 0, %s92
      %s107 = sphi 0, %s93
      %s113 = sphi 0, %s115
      %s116 = sphi 0, %s113
      %s117 = sphi 0, %s116
      %s133 = sphi 0, %s117
      %s139 = sphi 0, %s141
      %s142 = sphi 0, %s139
      %s143 = sphi 0, %s142
      %s159 = sphi 0, %s143
      %s165 = sphi 0, %s167
      %s168 = sphi 0, %s165
      %s169 = sphi 0, %s168
      %s185 = sphi 0, %s169
    $region4: #{forward.6} parent=1 // loop_header_branch
      %17 = sbr.rel (%p15) target = $region8
    $region5: #{forward.6} parent=1 // loop_body
      %s19 = ssub.s32 %s14, 1
      %s20 = ssub.s32 %s14, 2
      %s21 = sadd.s32 %s14, 1
      %s23 = sadd.s32 %s22, 1
      %p26 = scmp.eq.s32.totalorder %s14, 1
      %p27 = scmp.ne.s32.totalorder %s22, %s24
      %p28 = scmp.eq.s32.totalorder %s14, 0
      %p29 = por %p27, %p28
      %p30 = scmp.ne.s32.totalorder %s22, %s24
      %p31 = scmp.eq.s32.totalorder %s19, 1
      %p32 = por %p30, %p31
      %p33 = scmp.ne.s32.totalorder %s24, %s25
      %p34 = scmp.eq.s32.totalorder %s19, 0
      %p35 = por %p33, %p34
      %p36 = scmp.ne.s32.totalorder %s24, %s25
      %p37 = scmp.eq.s32.totalorder %s20, 1
      %p38 = por %p36, %p37
      %p40 = scmp.ne.s32.totalorder %s25, %s39
      %p41 = scmp.eq.s32.totalorder %s20, 0
      %p42 = por %p40, %p41
      %s43 = ssub.s32 %s14, %s21
      %p44 = scmp.eq.s32.totalorder %s43, 0
      %s46 = sadd.s32 %s45, 1
      %s47 = scalar_select %p44, %s45, %s46
      %p50 = pneg %p44
      %p51 = scmp.eq.s32.totalorder %s14, 1
      %p52 = por %p50, %p51
      %p53 = scmp.ne.s32.totalorder %s45, %s48
      %p54 = scmp.eq.s32.totalorder %s14, 0
      %p55 = por %p53, %p54
      %p56 = scmp.ne.s32.totalorder %s45, %s48
      %p57 = scmp.eq.s32.totalorder %s19, 1
      %p58 = por %p56, %p57
      %p59 = scmp.ne.s32.totalorder %s48, %s49
      %p60 = scmp.eq.s32.totalorder %s19, 0
      %p61 = por %p59, %p60
      %p62 = scmp.ne.s32.totalorder %s48, %s49
      %p63 = scmp.eq.s32.totalorder %s20, 1
      %p64 = por %p62, %p63
      %p66 = scmp.ne.s32.totalorder %s49, %s65
      %p67 = scmp.eq.s32.totalorder %s20, 0
      %p68 = por %p66, %p67
      %s70 = sadd.s32 %s69, 1
      %p73 = scmp.eq.s32.totalorder %s14, 1
      %p74 = scmp.ne.s32.totalorder %s69, %s71
      %p75 = scmp.eq.s32.totalorder %s14, 0
      %p76 = por %p74, %p75
      %p77 = scmp.ne.s32.totalorder %s69, %s71
      %p78 = scmp.eq.s32.totalorder %s19, 1
      %p79 = por %p77, %p78
      %p80 = scmp.ne.s32.totalorder %s71, %s72
      %p81 = scmp.eq.s32.totalorder %s19, 0
      %p82 = por %p80, %p81
      %p83 = scmp.ne.s32.totalorder %s71, %s72
      %p84 = scmp.eq.s32.totalorder %s20, 1
      %p85 = por %p83, %p84
      %p87 = scmp.ne.s32.totalorder %s72, %s86
      %p88 = scmp.eq.s32.totalorder %s20, 0
      %p89 = por %p87, %p88
      %s91 = sadd.s32 %s90, 1
      %p94 = scmp.eq.s32.totalorder %s14, 1
      %p95 = scmp.ne.s32.totalorder %s90, %s92
      %p96 = scmp.eq.s32.totalorder %s14, 0
      %p97 = por %p95, %p96
      %p98 = scmp.ne.s32.totalorder %s90, %s92
      %p99 = scmp.eq.s32.totalorder %s19, 1
      %p100 = por %p98, %p99
      %p101 = scmp.ne.s32.totalorder %s92, %s93
      %p102 = scmp.eq.s32.totalorder %s19, 0
      %p103 = por %p101, %p102
      %p104 = scmp.ne.s32.totalorder %s92, %s93
      %p105 = scmp.eq.s32.totalorder %s20, 1
      %p106 = por %p104, %p105
      %p108 = scmp.ne.s32.totalorder %s93, %s107
      %p109 = scmp.eq.s32.totalorder %s20, 0
      %p110 = por %p108, %p109
      %s111 = ssub.s32 %s14, %s21
      %p112 = scmp.eq.s32.totalorder %s111, 0
      %s114 = sadd.s32 %s113, 1
      %s115 = scalar_select %p112, %s113, %s114
      %p118 = pneg %p112
      %p119 = scmp.eq.s32.totalorder %s14, 1
      %p120 = por %p118, %p119
      %p121 = scmp.ne.s32.totalorder %s113, %s116
      %p122 = scmp.eq.s32.totalorder %s14, 0
      %p123 = por %p121, %p122
      %p124 = scmp.ne.s32.totalorder %s113, %s116
      %p125 = scmp.eq.s32.totalorder %s19, 1
      %p126 = por %p124, %p125
      %p127 = scmp.ne.s32.totalorder %s116, %s117
      %p128 = scmp.eq.s32.totalorder %s19, 0
      %p129 = por %p127, %p128
      %p130 = scmp.ne.s32.totalorder %s116, %s117
      %p131 = scmp.eq.s32.totalorder %s20, 1
      %p132 = por %p130, %p131
      %p134 = scmp.ne.s32.totalorder %s117, %s133
      %p135 = scmp.eq.s32.totalorder %s20, 0
      %p136 = por %p134, %p135
      %s137 = ssub.s32 %s14, %s21
      %p138 = scmp.eq.s32.totalorder %s137, 0
      %s140 = sadd.s32 %s139, 1
      %s141 = scalar_select %p138, %s139, %s140
      %p144 = pneg %p138
      %p145 = scmp.eq.s32.totalorder %s14, 1
      %p146 = por %p144, %p145
      %p147 = scmp.ne.s32.totalorder %s139, %s142
      %p148 = scmp.eq.s32.totalorder %s14, 0
      %p149 = por %p147, %p148
      %p150 = scmp.ne.s32.totalorder %s139, %s142
      %p151 = scmp.eq.s32.totalorder %s19, 1
      %p152 = por %p150, %p151
      %p153 = scmp.ne.s32.totalorder %s142, %s143
      %p154 = scmp.eq.s32.totalorder %s19, 0
      %p155 = por %p153, %p154
      %p156 = scmp.ne.s32.totalorder %s142, %s143
      %p157 = scmp.eq.s32.totalorder %s20, 1
      %p158 = por %p156, %p157
      %p160 = scmp.ne.s32.totalorder %s143, %s159
      %p161 = scmp.eq.s32.totalorder %s20, 0
      %p162 = por %p160, %p161
      %s163 = ssub.s32 %s14, %s21
      %p164 = scmp.eq.s32.totalorder %s163, 0
      %s166 = sadd.s32 %s165, 1
      %s167 = scalar_select %p164, %s165, %s166
      %p170 = pneg %p164
      %p171 = scmp.eq.s32.totalorder %s14, 1
      %p172 = por %p170, %p171
      %p173 = scmp.ne.s32.totalorder %s165, %s168
      %p174 = scmp.eq.s32.totalorder %s14, 0
      %p175 = por %p173, %p174
      %p176 = scmp.ne.s32.totalorder %s165, %s168
      %p177 = scmp.eq.s32.totalorder %s19, 1
      %p178 = por %p176, %p177
      %p179 = scmp.ne.s32.totalorder %s168, %s169
      %p180 = scmp.eq.s32.totalorder %s19, 0
      %p181 = por %p179, %p180
      %p182 = scmp.ne.s32.totalorder %s168, %s169
      %p183 = scmp.eq.s32.totalorder %s20, 1
      %p184 = por %p182, %p183
      %p186 = scmp.ne.s32.totalorder %s169, %s185
      %p187 = scmp.eq.s32.totalorder %s20, 0
      %p188 = por %p186, %p187
      %p189 = scmp.le.s32.totalorder 1, %s14
      %p190 = scmp.lt.s32.totalorder %s14, 3
      %p191 = pnand %p189, %p190
      %p192 = pneg %p191
      // Predicated region
      $region9: #{forward.6} parent=5 // pred_check
        _
      $region10: #{forward.6} parent=5 // pred_check_branch
        %194 = sbr.rel (%p191) target = $region12
      $region11: #{forward.6} parent=5 // pred_region
        %s195 = ssub.s32 %s14, 1
        // Predicated region
        $region13: #{forward.6} parent=11 // pred_check
          %p196 = pneg %p35
        $region14: #{forward.6} parent=11 // pred_check_branch
          %198 = sbr.rel (%p196) target = $region16
        $region15: #{forward.6} parent=11 // pred_region
          %200 = vsyncadd [#allocation3], 0
          %s201 = sshll.u32 %s0, 4
          %s202 = int_to_ptr.hbm [resolvable:$true] %s201
          %s203 = sshll.u32 [#allocation2], 4
          %s204 = int_to_ptr.vmem [resolvable:$true] %s203
          %209 = dma.hbm_to_vmem [thread:$0]  %s202, 40960, %s204, [#allocation3], 1280, 1280, 80
        $region16: #{forward.6} parent=11 // pred_fallthru
          _
        // Predicated region
        $region17: #{forward.6} parent=11 // pred_check
          %p210 = pneg %p82
        $region18: #{forward.6} parent=11 // pred_check_branch
          %212 = sbr.rel (%p210) target = $region20
        $region19: #{forward.6} parent=11 // pred_region
          _
        $region20: #{forward.6} parent=11 // pred_fallthru
          _
        // Predicated region
        $region21: #{forward.6} parent=11 // pred_check
          %p213 = pneg %p103
        $region22: #{forward.6} parent=11 // pred_check_branch
          %215 = sbr.rel (%p213) target = $region24
        $region23: #{forward.6} parent=11 // pred_region
          _
        $region24: #{forward.6} parent=11 // pred_fallthru
          _
      $region12: #{forward.6} parent=5 // pred_fallthru
        _
      %p216 = scmp.lt.s32.totalorder %s14, 2
      // Predicated region
      $region25: #{forward.6} parent=5 // pred_check
        %p217 = pneg %p216
      $region26: #{forward.6} parent=5 // pred_check_branch
        %219 = sbr.rel (%p217) target = $region28
      $region27: #{forward.6} parent=5 // pred_region
        // Predicated region
        $region29: #{forward.6} parent=27 // pred_check
          %p220 = pneg %p55
        $region30: #{forward.6} parent=27 // pred_check_branch
          %222 = sbr.rel (%p220) target = $region32
        $region31: #{forward.6} parent=27 // pred_region
          %p223 = scmp.lt.s32.totalorder %s14, 1
          %s224 = scalar_select %p223, %s14, 1
          %s225 = smul.addr %s224, 2
          %s226 = smul.addr %s225, 8
          %s227 = scalar_lea.vmem %s1, %s226
        $region32: #{forward.6} parent=27 // pred_fallthru
          _
        // Predicated region
        $region33: #{forward.6} parent=27 // pred_check
          %p228 = pneg %p123
        $region34: #{forward.6} parent=27 // pred_check_branch
          %230 = sbr.rel (%p228) target = $region36
        $region35: #{forward.6} parent=27 // pred_region
          %p231 = scmp.lt.s32.totalorder %s14, 1
          %s232 = scalar_select %p231, %s14, 1
          %s233 = smul.addr %s232, 2
          %s234 = scalar_lea.vmem %s4, %s233
        $region36: #{forward.6} parent=27 // pred_fallthru
          _
      $region28: #{forward.6} parent=5 // pred_fallthru
        _
      %p235 = scmp.le.s32.totalorder 1, %s14
      %p236 = scmp.lt.s32.totalorder %s14, 3
      %p237 = pnand %p235, %p236
      %p238 = pneg %p237
      // Predicated region
      $region37: #{forward.6} parent=5 // pred_check
        _
      $region38: #{forward.6} parent=5 // pred_check_branch
        %240 = sbr.rel (%p237) target = $region40
      $region39: #{forward.6} parent=5 // pred_region
        %s241 = ssub.s32 %s14, 1
        // Predicated region
        $region41: #{forward.6} parent=39 // pred_check
          %p242 = pneg %p35
        $region42: #{forward.6} parent=39 // pred_check_branch
          %244 = sbr.rel (%p242) target = $region44
        $region43: #{forward.6} parent=39 // pred_region
          %246 = dma.done [#allocation3], 40960
        $region44: #{forward.6} parent=39 // pred_fallthru
          _
        %p247 = pneg %p35
        %p248 = pneg %p32
        %p249 = scmp.lt.s32.totalorder %s19, 1
        %s250 = scalar_select %p249, %s19, 1
        %s251 = smul.addr %s250, 2
        %s252 = smul.addr %s251, 8
        %s253 = scalar_lea.vmem %s1, %s252
        %p254 = pneg %p61
        %p255 = pneg %p58
        %p256 = pneg %p82
        %p257 = pneg %p79
        %p258 = pneg %p103
        %p259 = pneg %p100
        %p260 = scmp.lt.s32.totalorder %s19, 1
        %s261 = scalar_select %p260, %s19, 1
        %s262 = smul.addr %s261, 2
        %s263 = scalar_lea.vmem %s4, %s262
        %p264 = pneg %p129
        %p265 = pneg %p126
        %p266 = pneg %p155
        %p267 = pneg %p152
        %p268 = scmp.lt.s32.totalorder %s19, 1
        %s269 = scalar_select %p268, %s19, 1
        %s270 = smul.addr %s269, 4
        %s271 = smul.addr %s270, 8
        %s272 = scalar_lea.vmem %s5, %s271
        %p273 = pneg %p181
        %p274 = pneg %p178
        %p275 = scmp.lt.s32.totalorder %s19, 1
        %s276 = scalar_select %p275, %s19, 1
        %s277 = smul.addr %s276, 2
        %s278 = scalar_lea.vmem %s6, %s277
        %p279 = scmp.lt.s32.totalorder %s19, 1
        %s280 = scalar_select %p279, %s19, 1
        %s281 = smul.addr %s280, 2
        %s282 = smul.addr %s281, 8
        %s283 = scalar_lea.vmem %s1, %s282
        %p284 = scmp.lt.s32.totalorder %s19, 1
        %s285 = scalar_select %p284, %s19, 1
        %s286 = smul.addr %s285, 2
        %s287 = scalar_lea.vmem %s4, %s286
        %p288 = scmp.lt.s32.totalorder %s19, 1
        %s289 = scalar_select %p288, %s19, 1
        %s290 = smul.addr %s289, 4
        %s291 = smul.addr %s290, 8
        %s292 = scalar_lea.vmem %s5, %s291
        %p293 = scmp.lt.s32.totalorder %s19, 1
        %s294 = scalar_select %p293, %s19, 1
        %s295 = smul.addr %s294, 2
        %s296 = scalar_lea.vmem %s6, %s295
        %v297 = vld [vmem:[%s283] sm:$0x3f]
        %v298 = vld [vmem:[%s283 + $0x8] sm:$0x3f]
        %v299 = vld [vmem:[%s287] sm:$0x3]
        %v300 = vld [vmem:[#allocation2] sm:$0xff]
        %v301 = vld [vmem:[#allocation2 + $0x8] sm:$0xff]
        %v302 = vld [vmem:[#allocation2 + $0x50] sm:$0xff]
        %v303 = vld [vmem:[#allocation2 + $0x58] sm:$0xff]
        %v304 = vld [vmem:[#allocation2 + $0xa0] sm:$0xff]
        %v305 = vld [vmem:[#allocation2 + $0xa8] sm:$0xff]
        %v306 = vld [vmem:[#allocation2 + $0xf0] sm:$0xff]
        %v307 = vld [vmem:[#allocation2 + $0xf8] sm:$0xff]
        %v308 = vld [vmem:[#allocation2 + $0x140] sm:$0xff]
        %v309 = vld [vmem:[#allocation2 + $0x148] sm:$0xff]
        %v310 = vld [vmem:[#allocation2 + $0x190] sm:$0xff]
        %v311 = vld [vmem:[#allocation2 + $0x198] sm:$0xff]
        %v312 = vld [vmem:[#allocation2 + $0x1e0] sm:$0xff]
        %v313 = vld [vmem:[#allocation2 + $0x1e8] sm:$0xff]
        %v314 = vld [vmem:[#allocation2 + $0x230] sm:$0xff]
        %v315 = vld [vmem:[#allocation2 + $0x238] sm:$0xff]
        %v316 = vld [vmem:[#allocation2 + $0x280] sm:$0xff]
        %v317 = vld [vmem:[#allocation2 + $0x288] sm:$0xff]
        %v318 = vld [vmem:[#allocation2 + $0x2d0] sm:$0xff]
        %v319 = vld [vmem:[#allocation2 + $0x2d8] sm:$0xff]
        %v320 = vld [vmem:[#allocation2 + $0x320] sm:$0xff]
        %v321 = vld [vmem:[#allocation2 + $0x328] sm:$0xff]
        %v322 = vld [vmem:[#allocation2 + $0x370] sm:$0xff]
        %v323 = vld [vmem:[#allocation2 + $0x378] sm:$0xff]
        %v324 = vld [vmem:[#allocation2 + $0x3c0] sm:$0xff]
        %v325 = vld [vmem:[#allocation2 + $0x3c8] sm:$0xff]
        %v326 = vld [vmem:[#allocation2 + $0x410] sm:$0xff]
        %v327 = vld [vmem:[#allocation2 + $0x418] sm:$0xff]
        %v328 = vld [vmem:[#allocation2 + $0x460] sm:$0xff]
        %v329 = vld [vmem:[#allocation2 + $0x468] sm:$0xff]
        %v330 = vld [vmem:[#allocation2 + $0x4b0] sm:$0xff]
        %v331 = vld [vmem:[#allocation2 + $0x4b8] sm:$0xff]
        %v332 = vld [vmem:[#allocation2 + $0x500] sm:$0xff]
        %v333 = vld [vmem:[#allocation2 + $0x508] sm:$0xff]
        %v334 = vld [vmem:[#allocation2 + $0x550] sm:$0xff]
        %v335 = vld [vmem:[#allocation2 + $0x558] sm:$0xff]
        %v336 = vld [vmem:[#allocation2 + $0x5a0] sm:$0xff]
        %v337 = vld [vmem:[#allocation2 + $0x5a8] sm:$0xff]
        %v338 = vld [vmem:[#allocation2 + $0x5f0] sm:$0xff]
        %v339 = vld [vmem:[#allocation2 + $0x5f8] sm:$0xff]
        %v340 = vld [vmem:[#allocation2 + $0x640] sm:$0xff]
        %v341 = vld [vmem:[#allocation2 + $0x648] sm:$0xff]
        %v342 = vld [vmem:[#allocation2 + $0x690] sm:$0xff]
        %v343 = vld [vmem:[#allocation2 + $0x698] sm:$0xff]
        %v344 = vld [vmem:[#allocation2 + $0x6e0] sm:$0xff]
        %v345 = vld [vmem:[#allocation2 + $0x6e8] sm:$0xff]
        %v346 = vld [vmem:[#allocation2 + $0x730] sm:$0xff]
        %v347 = vld [vmem:[#allocation2 + $0x738] sm:$0xff]
        %v348 = vld [vmem:[#allocation2 + $0x780] sm:$0xff]
        %v349 = vld [vmem:[#allocation2 + $0x788] sm:$0xff]
        %v350 = vld [vmem:[#allocation2 + $0x7d0] sm:$0xff]
        %v351 = vld [vmem:[#allocation2 + $0x7d8] sm:$0xff]
        %v352 = vld [vmem:[#allocation2 + $0x820] sm:$0xff]
        %v353 = vld [vmem:[#allocation2 + $0x828] sm:$0xff]
        %v354 = vld [vmem:[#allocation2 + $0x870] sm:$0xff]
        %v355 = vld [vmem:[#allocation2 + $0x878] sm:$0xff]
        %v356 = vld [vmem:[#allocation2 + $0x8c0] sm:$0xff]
        %v357 = vld [vmem:[#allocation2 + $0x8c8] sm:$0xff]
        %v358 = vld [vmem:[#allocation2 + $0x910] sm:$0xff]
        %v359 = vld [vmem:[#allocation2 + $0x918] sm:$0xff]
        %v360 = vld [vmem:[#allocation2 + $0x960] sm:$0xff]
        %v361 = vld [vmem:[#allocation2 + $0x968] sm:$0xff]
        %v362 = vld [vmem:[#allocation2 + $0x9b0] sm:$0xff]
        %v363 = vld [vmem:[#allocation2 + $0x9b8] sm:$0xff]
        %364 = vmatpush.msra.mxu0 %v330
        %365 = vmatpush.msra.mxu0 %v328
        %366 = vmatpush.msra.mxu0 %v326
        %367 = vmatpush.msra.mxu0 %v324
        %368 = vmatpush.msra.mxu0 %v322
        %369 = vmatpush.msra.mxu0 %v320
        %370 = vmatpush.msra.mxu0 %v318
        %371 = vmatpush.msra.mxu0 %v316
        %372 = vmatpush.msra.mxu0 %v314
        %373 = vmatpush.msra.mxu0 %v312
        %374 = vmatpush.msra.mxu0 %v310
        %375 = vmatpush.msra.mxu0 %v308
        %376 = vmatpush.msra.mxu0 %v306
        %377 = vmatpush.msra.mxu0 %v304
        %378 = vmatpush.msra.mxu0 %v302
        %379 = vmatpush.msra.mxu0 %v300
        %380 = vmatmul.f32.gmra.mxu0 %v297
        %v381 = vpop.f32.mrf.mxu0
        %v382 = vadd.f32 0.0, %v381
        %383 = vdwg.mxu0
        %384 = vmatpush.msra.mxu0 %v362
        %385 = vmatpush.msra.mxu0 %v360
        %386 = vmatpush.msra.mxu0 %v358
        %387 = vmatpush.msra.mxu0 %v356
        %388 = vmatpush.msra.mxu0 %v354
        %389 = vmatpush.msra.mxu0 %v352
        %390 = vmatpush.msra.mxu0 %v350
        %391 = vmatpush.msra.mxu0 %v348
        %392 = vmatpush.msra.mxu0 %v346
        %393 = vmatpush.msra.mxu0 %v344
        %394 = vmatpush.msra.mxu0 %v342
        %395 = vmatpush.msra.mxu0 %v340
        %396 = vmatpush.msra.mxu0 %v338
        %397 = vmatpush.msra.mxu0 %v336
        %398 = vmatpush.msra.mxu0 %v334
        %399 = vmatpush.msra.mxu0 %v332
        %400 = vmatmul.f32.gmra.mxu0 %v298
        %v401 = vpop.f32.mrf.mxu0
        %v402 = vadd.f32 %v382, %v401
        %403 = vdwg.mxu0
        %404 = vmatpush.msra.mxu0 %v331
        %405 = vmatpush.msra.mxu0 %v329
        %406 = vmatpush.msra.mxu0 %v327
        %407 = vmatpush.msra.mxu0 %v325
        %408 = vmatpush.msra.mxu0 %v323
        %409 = vmatpush.msra.mxu0 %v321
        %410 = vmatpush.msra.mxu0 %v319
        %411 = vmatpush.msra.mxu0 %v317
        %412 = vmatpush.msra.mxu0 %v315
        %413 = vmatpush.msra.mxu0 %v313
        %414 = vmatpush.msra.mxu0 %v311
        %415 = vmatpush.msra.mxu0 %v309
        %416 = vmatpush.msra.mxu0 %v307
        %417 = vmatpush.msra.mxu0 %v305
        %418 = vmatpush.msra.mxu0 %v303
        %419 = vmatpush.msra.mxu0 %v301
        %420 = vmatmul.f32.gmra.mxu0 %v297
        %v421 = vpop.f32.mrf.mxu0
        %v422 = vadd.f32 0.0, %v421
        %423 = vdwg.mxu0
        %424 = vmatpush.msra.mxu0 %v363
        %425 = vmatpush.msra.mxu0 %v361
        %426 = vmatpush.msra.mxu0 %v359
        %427 = vmatpush.msra.mxu0 %v357
        %428 = vmatpush.msra.mxu0 %v355
        %429 = vmatpush.msra.mxu0 %v353
        %430 = vmatpush.msra.mxu0 %v351
        %431 = vmatpush.msra.mxu0 %v349
        %432 = vmatpush.msra.mxu0 %v347
        %433 = vmatpush.msra.mxu0 %v345
        %434 = vmatpush.msra.mxu0 %v343
        %435 = vmatpush.msra.mxu0 %v341
        %436 = vmatpush.msra.mxu0 %v339
        %437 = vmatpush.msra.mxu0 %v337
        %438 = vmatpush.msra.mxu0 %v335
        %439 = vmatpush.msra.mxu0 %v333
        %440 = vmatmul.f32.gmra.mxu0 %v298
        %v441 = vpop.f32.mrf.mxu0
        %v442 = vadd.f32 %v422, %v441
        %443 = vdwg.mxu0
        %v444 = vld [vmem:[%s2] sm:$0xff]
        %v445 = vld [vmem:[%s2 + $0x8] sm:$0x1]
        %v446 = vld [vmem:[#allocation2 + $0x10] sm:$0xff]
        %v447 = vld [vmem:[#allocation2 + $0x18] sm:$0xff]
        %v448 = vld [vmem:[#allocation2 + $0x60] sm:$0xff]
        %v449 = vld [vmem:[#allocation2 + $0x68] sm:$0xff]
        %v450 = vld [vmem:[#allocation2 + $0xb0] sm:$0xff]
        %v451 = vld [vmem:[#allocation2 + $0xb8] sm:$0xff]
        %v452 = vld [vmem:[#allocation2 + $0x100] sm:$0xff]
        %v453 = vld [vmem:[#allocation2 + $0x108] sm:$0xff]
        %v454 = vld [vmem:[#allocation2 + $0x150] sm:$0xff]
        %v455 = vld [vmem:[#allocation2 + $0x158] sm:$0xff]
        %v456 = vld [vmem:[#allocation2 + $0x1a0] sm:$0xff]
        %v457 = vld [vmem:[#allocation2 + $0x1a8] sm:$0xff]
        %v458 = vld [vmem:[#allocation2 + $0x1f0] sm:$0xff]
        %v459 = vld [vmem:[#allocation2 + $0x1f8] sm:$0xff]
        %v460 = vld [vmem:[#allocation2 + $0x240] sm:$0xff]
        %v461 = vld [vmem:[#allocation2 + $0x248] sm:$0xff]
        %v462 = vld [vmem:[#allocation2 + $0x290] sm:$0xff]
        %v463 = vld [vmem:[#allocation2 + $0x298] sm:$0xff]
        %v464 = vld [vmem:[#allocation2 + $0x2e0] sm:$0xff]
        %v465 = vld [vmem:[#allocation2 + $0x2e8] sm:$0xff]
        %v466 = vld [vmem:[#allocation2 + $0x330] sm:$0xff]
        %v467 = vld [vmem:[#allocation2 + $0x338] sm:$0xff]
        %v468 = vld [vmem:[#allocation2 + $0x380] sm:$0xff]
        %v469 = vld [vmem:[#allocation2 + $0x388] sm:$0xff]
        %v470 = vld [vmem:[#allocation2 + $0x3d0] sm:$0xff]
        %v471 = vld [vmem:[#allocation2 + $0x3d8] sm:$0xff]
        %v472 = vld [vmem:[#allocation2 + $0x420] sm:$0xff]
        %v473 = vld [vmem:[#allocation2 + $0x428] sm:$0xff]
        %v474 = vld [vmem:[#allocation2 + $0x470] sm:$0xff]
        %v475 = vld [vmem:[#allocation2 + $0x478] sm:$0xff]
        %v476 = vld [vmem:[#allocation2 + $0x4c0] sm:$0xff]
        %v477 = vld [vmem:[#allocation2 + $0x4c8] sm:$0xff]
        %v478 = vld [vmem:[#allocation2 + $0x510] sm:$0xff]
        %v479 = vld [vmem:[#allocation2 + $0x518] sm:$0xff]
        %v480 = vld [vmem:[#allocation2 + $0x560] sm:$0xff]
        %v481 = vld [vmem:[#allocation2 + $0x568] sm:$0xff]
        %v482 = vld [vmem:[#allocation2 + $0x5b0] sm:$0xff]
        %v483 = vld [vmem:[#allocation2 + $0x5b8] sm:$0xff]
        %v484 = vld [vmem:[#allocation2 + $0x600] sm:$0xff]
        %v485 = vld [vmem:[#allocation2 + $0x608] sm:$0xff]
        %v486 = vld [vmem:[#allocation2 + $0x650] sm:$0xff]
        %v487 = vld [vmem:[#allocation2 + $0x658] sm:$0xff]
        %v488 = vld [vmem:[#allocation2 + $0x6a0] sm:$0xff]
        %v489 = vld [vmem:[#allocation2 + $0x6a8] sm:$0xff]
        %v490 = vld [vmem:[#allocation2 + $0x6f0] sm:$0xff]
        %v491 = vld [vmem:[#allocation2 + $0x6f8] sm:$0xff]
        %v492 = vld [vmem:[#allocation2 + $0x740] sm:$0xff]
        %v493 = vld [vmem:[#allocation2 + $0x748] sm:$0xff]
        %v494 = vld [vmem:[#allocation2 + $0x790] sm:$0xff]
        %v495 = vld [vmem:[#allocation2 + $0x798] sm:$0xff]
        %v496 = vld [vmem:[#allocation2 + $0x7e0] sm:$0xff]
        %v497 = vld [vmem:[#allocation2 + $0x7e8] sm:$0xff]
        %v498 = vld [vmem:[#allocation2 + $0x830] sm:$0xff]
        %v499 = vld [vmem:[#allocation2 + $0x838] sm:$0xff]
        %v500 = vld [vmem:[#allocation2 + $0x880] sm:$0xff]
        %v501 = vld [vmem:[#allocation2 + $0x888] sm:$0xff]
        %v502 = vld [vmem:[#allocation2 + $0x8d0] sm:$0xff]
        %v503 = vld [vmem:[#allocation2 + $0x8d8] sm:$0xff]
        %v504 = vld [vmem:[#allocation2 + $0x920] sm:$0xff]
        %v505 = vld [vmem:[#allocation2 + $0x928] sm:$0xff]
        %v506 = vld [vmem:[#allocation2 + $0x970] sm:$0xff]
        %v507 = vld [vmem:[#allocation2 + $0x978] sm:$0xff]
        %v508 = vld [vmem:[#allocation2 + $0x9c0] sm:$0xff]
        %v509 = vld [vmem:[#allocation2 + $0x9c8] sm:$0xff]
        %510 = vmatpush.msra.mxu0 %v476
        %511 = vmatpush.msra.mxu0 %v474
        %512 = vmatpush.msra.mxu0 %v472
        %513 = vmatpush.msra.mxu0 %v470
        %514 = vmatpush.msra.mxu0 %v468
        %515 = vmatpush.msra.mxu0 %v466
        %516 = vmatpush.msra.mxu0 %v464
        %517 = vmatpush.msra.mxu0 %v462
        %518 = vmatpush.msra.mxu0 %v460
        %519 = vmatpush.msra.mxu0 %v458
        %520 = vmatpush.msra.mxu0 %v456
        %521 = vmatpush.msra.mxu0 %v454
        %522 = vmatpush.msra.mxu0 %v452
        %523 = vmatpush.msra.mxu0 %v450
        %524 = vmatpush.msra.mxu0 %v448
        %525 = vmatpush.msra.mxu0 %v446
        %526 = vmatmul.f32.gmra.mxu0 %v297
        %v527 = vpop.f32.mrf.mxu0
        %v528 = vadd.f32 0.0, %v527
        %529 = vdwg.mxu0
        %530 = vmatpush.msra.mxu0 %v508
        %531 = vmatpush.msra.mxu0 %v506
        %532 = vmatpush.msra.mxu0 %v504
        %533 = vmatpush.msra.mxu0 %v502
        %534 = vmatpush.msra.mxu0 %v500
        %535 = vmatpush.msra.mxu0 %v498
        %536 = vmatpush.msra.mxu0 %v496
        %537 = vmatpush.msra.mxu0 %v494
        %538 = vmatpush.msra.mxu0 %v492
        %539 = vmatpush.msra.mxu0 %v490
        %540 = vmatpush.msra.mxu0 %v488
        %541 = vmatpush.msra.mxu0 %v486
        %542 = vmatpush.msra.mxu0 %v484
        %543 = vmatpush.msra.mxu0 %v482
        %544 = vmatpush.msra.mxu0 %v480
        %545 = vmatpush.msra.mxu0 %v478
        %546 = vmatmul.f32.gmra.mxu0 %v298
        %v547 = vpop.f32.mrf.mxu0
        %v548 = vadd.f32 %v528, %v547
        %549 = vdwg.mxu0
        %550 = vmatpush.msra.mxu0 %v477
        %551 = vmatpush.msra.mxu0 %v475
        %552 = vmatpush.msra.mxu0 %v473
        %553 = vmatpush.msra.mxu0 %v471
        %554 = vmatpush.msra.mxu0 %v469
        %555 = vmatpush.msra.mxu0 %v467
        %556 = vmatpush.msra.mxu0 %v465
        %557 = vmatpush.msra.mxu0 %v463
        %558 = vmatpush.msra.mxu0 %v461
        %559 = vmatpush.msra.mxu0 %v459
        %560 = vmatpush.msra.mxu0 %v457
        %561 = vmatpush.msra.mxu0 %v455
        %562 = vmatpush.msra.mxu0 %v453
        %563 = vmatpush.msra.mxu0 %v451
        %564 = vmatpush.msra.mxu0 %v449
        %565 = vmatpush.msra.mxu0 %v447
        %566 = vmatmul.f32.gmra.mxu0 %v297
        %v567 = vpop.f32.mrf.mxu0
        %v568 = vadd.f32 0.0, %v567
        %569 = vdwg.mxu0
        %570 = vmatpush.msra.mxu0 %v509
        %571 = vmatpush.msra.mxu0 %v507
        %572 = vmatpush.msra.mxu0 %v505
        %573 = vmatpush.msra.mxu0 %v503
        %574 = vmatpush.msra.mxu0 %v501
        %575 = vmatpush.msra.mxu0 %v499
        %576 = vmatpush.msra.mxu0 %v497
        %577 = vmatpush.msra.mxu0 %v495
        %578 = vmatpush.msra.mxu0 %v493
        %579 = vmatpush.msra.mxu0 %v491
        %580 = vmatpush.msra.mxu0 %v489
        %581 = vmatpush.msra.mxu0 %v487
        %582 = vmatpush.msra.mxu0 %v485
        %583 = vmatpush.msra.mxu0 %v483
        %584 = vmatpush.msra.mxu0 %v481
        %585 = vmatpush.msra.mxu0 %v479
        %586 = vmatmul.f32.gmra.mxu0 %v298
        %v587 = vpop.f32.mrf.mxu0
        %v588 = vadd.f32 %v568, %v587
        %589 = vdwg.mxu0
        %s590 = scalar_lea.vmem %s2, 16
        %v591 = vld [vmem:[%s590] sm:$0xff]
        %v592 = vld [vmem:[%s590 + $0x8] sm:$0x1]
        %vm593 = vcmask 48128
        %v595 = vsel %vm593, %v591, 0
        %v598 = vsel %vm593, %v592, 0
        %vm600 = vcmask 1045504
        %v602 = vsel %vm600, %v548, 0
        %v605 = vsel %vm600, %v588, 0
        %607 = vmatpush.msra.mxu0 0.0
        %608 = vmatpush.msra.mxu0 0.0
        %609 = vmatpush.msra.mxu0 0.0
        %610 = vmatpush.msra.mxu0 0.0
        %611 = vmatpush.msra.mxu0 0.0
        %612 = vmatpush.msra.mxu0 0.0
        %613 = vmatpush.msra.mxu0 0.0
        %614 = vmatpush.msra.mxu0 0.0
        %615 = vmatpush.msra.mxu0 0.0
        %616 = vmatpush.msra.mxu0 0.0
        %617 = vmatpush.msra.mxu0 0.0
        %618 = vmatpush.msra.mxu0 0.0
        %619 = vmatpush.msra.mxu0 0.0
        %620 = vmatpush.msra.mxu0 0.0
        %621 = vmatpush.msra.mxu0 0.0
        %622 = vmatpush.msra.mxu0 %v602
        %623 = vmatmul.f32.gmra.mxu0 %v595
        %v624 = vpop.f32.mrf.mxu0
        %v625 = vadd.f32 0.0, %v624
        %626 = vmatmul.f32.gmra.mxu0 %v598
        %v627 = vpop.f32.mrf.mxu0
        %v628 = vadd.f32 0.0, %v627
        %629 = vdwg.mxu0
        %630 = vmatpush.msra.mxu0 0.0
        %631 = vmatpush.msra.mxu0 0.0
        %632 = vmatpush.msra.mxu0 0.0
        %633 = vmatpush.msra.mxu0 0.0
        %634 = vmatpush.msra.mxu0 0.0
        %635 = vmatpush.msra.mxu0 0.0
        %636 = vmatpush.msra.mxu0 0.0
        %637 = vmatpush.msra.mxu0 0.0
        %638 = vmatpush.msra.mxu0 0.0
        %639 = vmatpush.msra.mxu0 0.0
        %640 = vmatpush.msra.mxu0 0.0
        %641 = vmatpush.msra.mxu0 0.0
        %642 = vmatpush.msra.mxu0 0.0
        %643 = vmatpush.msra.mxu0 0.0
        %644 = vmatpush.msra.mxu0 0.0
        %645 = vmatpush.msra.mxu0 %v605
        %646 = vmatmul.f32.gmra.mxu0 %v595
        %v647 = vpop.f32.mrf.mxu0
        %v648 = vadd.f32 0.0, %v647
        %649 = vmatmul.f32.gmra.mxu0 %v598
        %v650 = vpop.f32.mrf.mxu0
        %v651 = vadd.f32 0.0, %v650
        %652 = vdwg.mxu0
        %v654 = vsel %vm593, %v444, 0
        %v657 = vsel %vm593, %v445, 0
        %v660 = vsel %vm600, %v402, 0
        %v663 = vsel %vm600, %v442, 0
        %665 = vmatpush.msra.mxu0 0.0
        %666 = vmatpush.msra.mxu0 0.0
        %667 = vmatpush.msra.mxu0 0.0
        %668 = vmatpush.msra.mxu0 0.0
        %669 = vmatpush.msra.mxu0 0.0
        %670 = vmatpush.msra.mxu0 0.0
        %671 = vmatpush.msra.mxu0 0.0
        %672 = vmatpush.msra.mxu0 0.0
        %673 = vmatpush.msra.mxu0 0.0
        %674 = vmatpush.msra.mxu0 0.0
        %675 = vmatpush.msra.mxu0 0.0
        %676 = vmatpush.msra.mxu0 0.0
        %677 = vmatpush.msra.mxu0 0.0
        %678 = vmatpush.msra.mxu0 0.0
        %679 = vmatpush.msra.mxu0 0.0
        %680 = vmatpush.msra.mxu0 %v660
        %681 = vmatmul.f32.gmra.mxu0 %v654
        %v682 = vpop.f32.mrf.mxu0
        %v683 = vadd.f32 %v625, %v682
        %684 = vmatmul.f32.gmra.mxu0 %v657
        %v685 = vpop.f32.mrf.mxu0
        %v686 = vadd.f32 %v628, %v685
        %687 = vdwg.mxu0
        %688 = vmatpush.msra.mxu0 0.0
        %689 = vmatpush.msra.mxu0 0.0
        %690 = vmatpush.msra.mxu0 0.0
        %691 = vmatpush.msra.mxu0 0.0
        %692 = vmatpush.msra.mxu0 0.0
        %693 = vmatpush.msra.mxu0 0.0
        %694 = vmatpush.msra.mxu0 0.0
        %695 = vmatpush.msra.mxu0 0.0
        %696 = vmatpush.msra.mxu0 0.0
        %697 = vmatpush.msra.mxu0 0.0
        %698 = vmatpush.msra.mxu0 0.0
        %699 = vmatpush.msra.mxu0 0.0
        %700 = vmatpush.msra.mxu0 0.0
        %701 = vmatpush.msra.mxu0 0.0
        %702 = vmatpush.msra.mxu0 0.0
        %703 = vmatpush.msra.mxu0 %v663
        %704 = vmatmul.f32.gmra.mxu0 %v654
        %v705 = vpop.f32.mrf.mxu0
        %v706 = vadd.f32 %v648, %v705
        %707 = vmatmul.f32.gmra.mxu0 %v657
        %v708 = vpop.f32.mrf.mxu0
        %v709 = vadd.f32 %v651, %v708
        %710 = vdwg.mxu0
        %v711 = vld [vmem:[#allocation2 + $0x20] sm:$0xff]
        %v712 = vld [vmem:[#allocation2 + $0x28] sm:$0xff]
        %v713 = vld [vmem:[#allocation2 + $0x70] sm:$0xff]
        %v714 = vld [vmem:[#allocation2 + $0x78] sm:$0xff]
        %v715 = vld [vmem:[#allocation2 + $0xc0] sm:$0xff]
        %v716 = vld [vmem:[#allocation2 + $0xc8] sm:$0xff]
        %v717 = vld [vmem:[#allocation2 + $0x110] sm:$0xff]
        %v718 = vld [vmem:[#allocation2 + $0x118] sm:$0xff]
        %v719 = vld [vmem:[#allocation2 + $0x160] sm:$0xff]
        %v720 = vld [vmem:[#allocation2 + $0x168] sm:$0xff]
        %v721 = vld [vmem:[#allocation2 + $0x1b0] sm:$0xff]
        %v722 = vld [vmem:[#allocation2 + $0x1b8] sm:$0xff]
        %v723 = vld [vmem:[#allocation2 + $0x200] sm:$0xff]
        %v724 = vld [vmem:[#allocation2 + $0x208] sm:$0xff]
        %v725 = vld [vmem:[#allocation2 + $0x250] sm:$0xff]
        %v726 = vld [vmem:[#allocation2 + $0x258] sm:$0xff]
        %v727 = vld [vmem:[#allocation2 + $0x2a0] sm:$0xff]
        %v728 = vld [vmem:[#allocation2 + $0x2a8] sm:$0xff]
        %v729 = vld [vmem:[#allocation2 + $0x2f0] sm:$0xff]
        %v730 = vld [vmem:[#allocation2 + $0x2f8] sm:$0xff]
        %v731 = vld [vmem:[#allocation2 + $0x340] sm:$0xff]
        %v732 = vld [vmem:[#allocation2 + $0x348] sm:$0xff]
        %v733 = vld [vmem:[#allocation2 + $0x390] sm:$0xff]
        %v734 = vld [vmem:[#allocation2 + $0x398] sm:$0xff]
        %v735 = vld [vmem:[#allocation2 + $0x3e0] sm:$0xff]
        %v736 = vld [vmem:[#allocation2 + $0x3e8] sm:$0xff]
        %v737 = vld [vmem:[#allocation2 + $0x430] sm:$0xff]
        %v738 = vld [vmem:[#allocation2 + $0x438] sm:$0xff]
        %v739 = vld [vmem:[#allocation2 + $0x480] sm:$0xff]
        %v740 = vld [vmem:[#allocation2 + $0x488] sm:$0xff]
        %v741 = vld [vmem:[#allocation2 + $0x4d0] sm:$0xff]
        %v742 = vld [vmem:[#allocation2 + $0x4d8] sm:$0xff]
        %v743 = vld [vmem:[#allocation2 + $0x520] sm:$0xff]
        %v744 = vld [vmem:[#allocation2 + $0x528] sm:$0xff]
        %v745 = vld [vmem:[#allocation2 + $0x570] sm:$0xff]
        %v746 = vld [vmem:[#allocation2 + $0x578] sm:$0xff]
        %v747 = vld [vmem:[#allocation2 + $0x5c0] sm:$0xff]
        %v748 = vld [vmem:[#allocation2 + $0x5c8] sm:$0xff]
        %v749 = vld [vmem:[#allocation2 + $0x610] sm:$0xff]
        %v750 = vld [vmem:[#allocation2 + $0x618] sm:$0xff]
        %v751 = vld [vmem:[#allocation2 + $0x660] sm:$0xff]
        %v752 = vld [vmem:[#allocation2 + $0x668] sm:$0xff]
        %v753 = vld [vmem:[#allocation2 + $0x6b0] sm:$0xff]
        %v754 = vld [vmem:[#allocation2 + $0x6b8] sm:$0xff]
        %v755 = vld [vmem:[#allocation2 + $0x700] sm:$0xff]
        %v756 = vld [vmem:[#allocation2 + $0x708] sm:$0xff]
        %v757 = vld [vmem:[#allocation2 + $0x750] sm:$0xff]
        %v758 = vld [vmem:[#allocation2 + $0x758] sm:$0xff]
        %v759 = vld [vmem:[#allocation2 + $0x7a0] sm:$0xff]
        %v760 = vld [vmem:[#allocation2 + $0x7a8] sm:$0xff]
        %v761 = vld [vmem:[#allocation2 + $0x7f0] sm:$0xff]
        %v762 = vld [vmem:[#allocation2 + $0x7f8] sm:$0xff]
        %v763 = vld [vmem:[#allocation2 + $0x840] sm:$0xff]
        %v764 = vld [vmem:[#allocation2 + $0x848] sm:$0xff]
        %v765 = vld [vmem:[#allocation2 + $0x890] sm:$0xff]
        %v766 = vld [vmem:[#allocation2 + $0x898] sm:$0xff]
        %v767 = vld [vmem:[#allocation2 + $0x8e0] sm:$0xff]
        %v768 = vld [vmem:[#allocation2 + $0x8e8] sm:$0xff]
        %v769 = vld [vmem:[#allocation2 + $0x930] sm:$0xff]
        %v770 = vld [vmem:[#allocation2 + $0x938] sm:$0xff]
        %v771 = vld [vmem:[#allocation2 + $0x980] sm:$0xff]
        %v772 = vld [vmem:[#allocation2 + $0x988] sm:$0xff]
        %v773 = vld [vmem:[#allocation2 + $0x9d0] sm:$0xff]
        %v774 = vld [vmem:[#allocation2 + $0x9d8] sm:$0xff]
        %775 = vmatpush.msra.mxu0 %v741
        %776 = vmatpush.msra.mxu0 %v739
        %777 = vmatpush.msra.mxu0 %v737
        %778 = vmatpush.msra.mxu0 %v735
        %779 = vmatpush.msra.mxu0 %v733
        %780 = vmatpush.msra.mxu0 %v731
        %781 = vmatpush.msra.mxu0 %v729
        %782 = vmatpush.msra.mxu0 %v727
        %783 = vmatpush.msra.mxu0 %v725
        %784 = vmatpush.msra.mxu0 %v723
        %785 = vmatpush.msra.mxu0 %v721
        %786 = vmatpush.msra.mxu0 %v719
        %787 = vmatpush.msra.mxu0 %v717
        %788 = vmatpush.msra.mxu0 %v715
        %789 = vmatpush.msra.mxu0 %v713
        %790 = vmatpush.msra.mxu0 %v711
        %791 = vmatmul.f32.gmra.mxu0 %v297
        %v792 = vpop.f32.mrf.mxu0
        %v793 = vadd.f32 0.0, %v792
        %794 = vdwg.mxu0
        %795 = vmatpush.msra.mxu0 %v773
        %796 = vmatpush.msra.mxu0 %v771
        %797 = vmatpush.msra.mxu0 %v769
        %798 = vmatpush.msra.mxu0 %v767
        %799 = vmatpush.msra.mxu0 %v765
        %800 = vmatpush.msra.mxu0 %v763
        %801 = vmatpush.msra.mxu0 %v761
        %802 = vmatpush.msra.mxu0 %v759
        %803 = vmatpush.msra.mxu0 %v757
        %804 = vmatpush.msra.mxu0 %v755
        %805 = vmatpush.msra.mxu0 %v753
        %806 = vmatpush.msra.mxu0 %v751
        %807 = vmatpush.msra.mxu0 %v749
        %808 = vmatpush.msra.mxu0 %v747
        %809 = vmatpush.msra.mxu0 %v745
        %810 = vmatpush.msra.mxu0 %v743
        %811 = vmatmul.f32.gmra.mxu0 %v298
        %v812 = vpop.f32.mrf.mxu0
        %v813 = vadd.f32 %v793, %v812
        %814 = vdwg.mxu0
        %815 = vmatpush.msra.mxu0 %v742
        %816 = vmatpush.msra.mxu0 %v740
        %817 = vmatpush.msra.mxu0 %v738
        %818 = vmatpush.msra.mxu0 %v736
        %819 = vmatpush.msra.mxu0 %v734
        %820 = vmatpush.msra.mxu0 %v732
        %821 = vmatpush.msra.mxu0 %v730
        %822 = vmatpush.msra.mxu0 %v728
        %823 = vmatpush.msra.mxu0 %v726
        %824 = vmatpush.msra.mxu0 %v724
        %825 = vmatpush.msra.mxu0 %v722
        %826 = vmatpush.msra.mxu0 %v720
        %827 = vmatpush.msra.mxu0 %v718
        %828 = vmatpush.msra.mxu0 %v716
        %829 = vmatpush.msra.mxu0 %v714
        %830 = vmatpush.msra.mxu0 %v712
        %831 = vmatmul.f32.gmra.mxu0 %v297
        %v832 = vpop.f32.mrf.mxu0
        %v833 = vadd.f32 0.0, %v832
        %834 = vdwg.mxu0
        %835 = vmatpush.msra.mxu0 %v774
        %836 = vmatpush.msra.mxu0 %v772
        %837 = vmatpush.msra.mxu0 %v770
        %838 = vmatpush.msra.mxu0 %v768
        %839 = vmatpush.msra.mxu0 %v766
        %840 = vmatpush.msra.mxu0 %v764
        %841 = vmatpush.msra.mxu0 %v762
        %842 = vmatpush.msra.mxu0 %v760
        %843 = vmatpush.msra.mxu0 %v758
        %844 = vmatpush.msra.mxu0 %v756
        %845 = vmatpush.msra.mxu0 %v754
        %846 = vmatpush.msra.mxu0 %v752
        %847 = vmatpush.msra.mxu0 %v750
        %848 = vmatpush.msra.mxu0 %v748
        %849 = vmatpush.msra.mxu0 %v746
        %850 = vmatpush.msra.mxu0 %v744
        %851 = vmatmul.f32.gmra.mxu0 %v298
        %v852 = vpop.f32.mrf.mxu0
        %v853 = vadd.f32 %v833, %v852
        %854 = vdwg.mxu0
        %s855 = scalar_lea.vmem %s2, 32
        %v856 = vld [vmem:[%s855] sm:$0xff]
        %v857 = vld [vmem:[%s855 + $0x8] sm:$0x1]
        %v859 = vsel %vm593, %v856, 0
        %v862 = vsel %vm593, %v857, 0
        %v865 = vsel %vm600, %v813, 0
        %v868 = vsel %vm600, %v853, 0
        %870 = vmatpush.msra.mxu0 0.0
        %871 = vmatpush.msra.mxu0 0.0
        %872 = vmatpush.msra.mxu0 0.0
        %873 = vmatpush.msra.mxu0 0.0
        %874 = vmatpush.msra.mxu0 0.0
        %875 = vmatpush.msra.mxu0 0.0
        %876 = vmatpush.msra.mxu0 0.0
        %877 = vmatpush.msra.mxu0 0.0
        %878 = vmatpush.msra.mxu0 0.0
        %879 = vmatpush.msra.mxu0 0.0
        %880 = vmatpush.msra.mxu0 0.0
        %881 = vmatpush.msra.mxu0 0.0
        %882 = vmatpush.msra.mxu0 0.0
        %883 = vmatpush.msra.mxu0 0.0
        %884 = vmatpush.msra.mxu0 0.0
        %885 = vmatpush.msra.mxu0 %v865
        %886 = vmatmul.f32.gmra.mxu0 %v859
        %v887 = vpop.f32.mrf.mxu0
        %v888 = vadd.f32 0.0, %v887
        %889 = vmatmul.f32.gmra.mxu0 %v862
        %v890 = vpop.f32.mrf.mxu0
        %v891 = vadd.f32 0.0, %v890
        %892 = vdwg.mxu0
        %893 = vmatpush.msra.mxu0 0.0
        %894 = vmatpush.msra.mxu0 0.0
        %895 = vmatpush.msra.mxu0 0.0
        %896 = vmatpush.msra.mxu0 0.0
        %897 = vmatpush.msra.mxu0 0.0
        %898 = vmatpush.msra.mxu0 0.0
        %899 = vmatpush.msra.mxu0 0.0
        %900 = vmatpush.msra.mxu0 0.0
        %901 = vmatpush.msra.mxu0 0.0
        %902 = vmatpush.msra.mxu0 0.0
        %903 = vmatpush.msra.mxu0 0.0
        %904 = vmatpush.msra.mxu0 0.0
        %905 = vmatpush.msra.mxu0 0.0
        %906 = vmatpush.msra.mxu0 0.0
        %907 = vmatpush.msra.mxu0 0.0
        %908 = vmatpush.msra.mxu0 %v868
        %909 = vmatmul.f32.gmra.mxu0 %v859
        %v910 = vpop.f32.mrf.mxu0
        %v911 = vadd.f32 0.0, %v910
        %912 = vmatmul.f32.gmra.mxu0 %v862
        %v913 = vpop.f32.mrf.mxu0
        %v914 = vadd.f32 0.0, %v913
        %915 = vdwg.mxu0
        %v916 = vadd.f32 %v683, %v888
        %v917 = vadd.f32 %v706, %v911
        %v918 = vadd.f32 %v686, %v891
        %v919 = vadd.f32 %v709, %v914
        %v920 = vld [vmem:[#allocation2 + $0x30] sm:$0xff]
        %v921 = vld [vmem:[#allocation2 + $0x38] sm:$0xff]
        %v922 = vld [vmem:[#allocation2 + $0x80] sm:$0xff]
        %v923 = vld [vmem:[#allocation2 + $0x88] sm:$0xff]
        %v924 = vld [vmem:[#allocation2 + $0xd0] sm:$0xff]
        %v925 = vld [vmem:[#allocation2 + $0xd8] sm:$0xff]
        %v926 = vld [vmem:[#allocation2 + $0x120] sm:$0xff]
        %v927 = vld [vmem:[#allocation2 + $0x128] sm:$0xff]
        %v928 = vld [vmem:[#allocation2 + $0x170] sm:$0xff]
        %v929 = vld [vmem:[#allocation2 + $0x178] sm:$0xff]
        %v930 = vld [vmem:[#allocation2 + $0x1c0] sm:$0xff]
        %v931 = vld [vmem:[#allocation2 + $0x1c8] sm:$0xff]
        %v932 = vld [vmem:[#allocation2 + $0x210] sm:$0xff]
        %v933 = vld [vmem:[#allocation2 + $0x218] sm:$0xff]
        %v934 = vld [vmem:[#allocation2 + $0x260] sm:$0xff]
        %v935 = vld [vmem:[#allocation2 + $0x268] sm:$0xff]
        %v936 = vld [vmem:[#allocation2 + $0x2b0] sm:$0xff]
        %v937 = vld [vmem:[#allocation2 + $0x2b8] sm:$0xff]
        %v938 = vld [vmem:[#allocation2 + $0x300] sm:$0xff]
        %v939 = vld [vmem:[#allocation2 + $0x308] sm:$0xff]
        %v940 = vld [vmem:[#allocation2 + $0x350] sm:$0xff]
        %v941 = vld [vmem:[#allocation2 + $0x358] sm:$0xff]
        %v942 = vld [vmem:[#allocation2 + $0x3a0] sm:$0xff]
        %v943 = vld [vmem:[#allocation2 + $0x3a8] sm:$0xff]
        %v944 = vld [vmem:[#allocation2 + $0x3f0] sm:$0xff]
        %v945 = vld [vmem:[#allocation2 + $0x3f8] sm:$0xff]
        %v946 = vld [vmem:[#allocation2 + $0x440] sm:$0xff]
        %v947 = vld [vmem:[#allocation2 + $0x448] sm:$0xff]
        %v948 = vld [vmem:[#allocation2 + $0x490] sm:$0xff]
        %v949 = vld [vmem:[#allocation2 + $0x498] sm:$0xff]
        %v950 = vld [vmem:[#allocation2 + $0x4e0] sm:$0xff]
        %v951 = vld [vmem:[#allocation2 + $0x4e8] sm:$0xff]
        %v952 = vld [vmem:[#allocation2 + $0x530] sm:$0xff]
        %v953 = vld [vmem:[#allocation2 + $0x538] sm:$0xff]
        %v954 = vld [vmem:[#allocation2 + $0x580] sm:$0xff]
        %v955 = vld [vmem:[#allocation2 + $0x588] sm:$0xff]
        %v956 = vld [vmem:[#allocation2 + $0x5d0] sm:$0xff]
        %v957 = vld [vmem:[#allocation2 + $0x5d8] sm:$0xff]
        %v958 = vld [vmem:[#allocation2 + $0x620] sm:$0xff]
        %v959 = vld [vmem:[#allocation2 + $0x628] sm:$0xff]
        %v960 = vld [vmem:[#allocation2 + $0x670] sm:$0xff]
        %v961 = vld [vmem:[#allocation2 + $0x678] sm:$0xff]
        %v962 = vld [vmem:[#allocation2 + $0x6c0] sm:$0xff]
        %v963 = vld [vmem:[#allocation2 + $0x6c8] sm:$0xff]
        %v964 = vld [vmem:[#allocation2 + $0x710] sm:$0xff]
        %v965 = vld [vmem:[#allocation2 + $0x718] sm:$0xff]
        %v966 = vld [vmem:[#allocation2 + $0x760] sm:$0xff]
        %v967 = vld [vmem:[#allocation2 + $0x768] sm:$0xff]
        %v968 = vld [vmem:[#allocation2 + $0x7b0] sm:$0xff]
        %v969 = vld [vmem:[#allocation2 + $0x7b8] sm:$0xff]
        %v970 = vld [vmem:[#allocation2 + $0x800] sm:$0xff]
        %v971 = vld [vmem:[#allocation2 + $0x808] sm:$0xff]
        %v972 = vld [vmem:[#allocation2 + $0x850] sm:$0xff]
        %v973 = vld [vmem:[#allocation2 + $0x858] sm:$0xff]
        %v974 = vld [vmem:[#allocation2 + $0x8a0] sm:$0xff]
        %v975 = vld [vmem:[#allocation2 + $0x8a8] sm:$0xff]
        %v976 = vld [vmem:[#allocation2 + $0x8f0] sm:$0xff]
        %v977 = vld [vmem:[#allocation2 + $0x8f8] sm:$0xff]
        %v978 = vld [vmem:[#allocation2 + $0x940] sm:$0xff]
        %v979 = vld [vmem:[#allocation2 + $0x948] sm:$0xff]
        %v980 = vld [vmem:[#allocation2 + $0x990] sm:$0xff]
        %v981 = vld [vmem:[#allocation2 + $0x998] sm:$0xff]
        %v982 = vld [vmem:[#allocation2 + $0x9e0] sm:$0xff]
        %v983 = vld [vmem:[#allocation2 + $0x9e8] sm:$0xff]
        %984 = vmatpush.msra.mxu0 %v950
        %985 = vmatpush.msra.mxu0 %v948
        %986 = vmatpush.msra.mxu0 %v946
        %987 = vmatpush.msra.mxu0 %v944
        %988 = vmatpush.msra.mxu0 %v942
        %989 = vmatpush.msra.mxu0 %v940
        %990 = vmatpush.msra.mxu0 %v938
        %991 = vmatpush.msra.mxu0 %v936
        %992 = vmatpush.msra.mxu0 %v934
        %993 = vmatpush.msra.mxu0 %v932
        %994 = vmatpush.msra.mxu0 %v930
        %995 = vmatpush.msra.mxu0 %v928
        %996 = vmatpush.msra.mxu0 %v926
        %997 = vmatpush.msra.mxu0 %v924
        %998 = vmatpush.msra.mxu0 %v922
        %999 = vmatpush.msra.mxu0 %v920
        %1000 = vmatmul.f32.gmra.mxu0 %v297
        %v1001 = vpop.f32.mrf.mxu0
        %v1002 = vadd.f32 0.0, %v1001
        %1003 = vdwg.mxu0
        %1004 = vmatpush.msra.mxu0 %v982
        %1005 = vmatpush.msra.mxu0 %v980
        %1006 = vmatpush.msra.mxu0 %v978
        %1007 = vmatpush.msra.mxu0 %v976
        %1008 = vmatpush.msra.mxu0 %v974
        %1009 = vmatpush.msra.mxu0 %v972
        %1010 = vmatpush.msra.mxu0 %v970
        %1011 = vmatpush.msra.mxu0 %v968
        %1012 = vmatpush.msra.mxu0 %v966
        %1013 = vmatpush.msra.mxu0 %v964
        %1014 = vmatpush.msra.mxu0 %v962
        %1015 = vmatpush.msra.mxu0 %v960
        %1016 = vmatpush.msra.mxu0 %v958
        %1017 = vmatpush.msra.mxu0 %v956
        %1018 = vmatpush.msra.mxu0 %v954
        %1019 = vmatpush.msra.mxu0 %v952
        %1020 = vmatmul.f32.gmra.mxu0 %v298
        %v1021 = vpop.f32.mrf.mxu0
        %v1022 = vadd.f32 %v1002, %v1021
        %1023 = vdwg.mxu0
        %1024 = vmatpush.msra.mxu0 %v951
        %1025 = vmatpush.msra.mxu0 %v949
        %1026 = vmatpush.msra.mxu0 %v947
        %1027 = vmatpush.msra.mxu0 %v945
        %1028 = vmatpush.msra.mxu0 %v943
        %1029 = vmatpush.msra.mxu0 %v941
        %1030 = vmatpush.msra.mxu0 %v939
        %1031 = vmatpush.msra.mxu0 %v937
        %1032 = vmatpush.msra.mxu0 %v935
        %1033 = vmatpush.msra.mxu0 %v933
        %1034 = vmatpush.msra.mxu0 %v931
        %1035 = vmatpush.msra.mxu0 %v929
        %1036 = vmatpush.msra.mxu0 %v927
        %1037 = vmatpush.msra.mxu0 %v925
        %1038 = vmatpush.msra.mxu0 %v923
        %1039 = vmatpush.msra.mxu0 %v921
        %1040 = vmatmul.f32.gmra.mxu0 %v297
        %v1041 = vpop.f32.mrf.mxu0
        %v1042 = vadd.f32 0.0, %v1041
        %1043 = vdwg.mxu0
        %1044 = vmatpush.msra.mxu0 %v983
        %1045 = vmatpush.msra.mxu0 %v981
        %1046 = vmatpush.msra.mxu0 %v979
        %1047 = vmatpush.msra.mxu0 %v977
        %1048 = vmatpush.msra.mxu0 %v975
        %1049 = vmatpush.msra.mxu0 %v973
        %1050 = vmatpush.msra.mxu0 %v971
        %1051 = vmatpush.msra.mxu0 %v969
        %1052 = vmatpush.msra.mxu0 %v967
        %1053 = vmatpush.msra.mxu0 %v965
        %1054 = vmatpush.msra.mxu0 %v963
        %1055 = vmatpush.msra.mxu0 %v961
        %1056 = vmatpush.msra.mxu0 %v959
        %1057 = vmatpush.msra.mxu0 %v957
        %1058 = vmatpush.msra.mxu0 %v955
        %1059 = vmatpush.msra.mxu0 %v953
        %1060 = vmatmul.f32.gmra.mxu0 %v298
        %v1061 = vpop.f32.mrf.mxu0
        %v1062 = vadd.f32 %v1042, %v1061
        %1063 = vdwg.mxu0
        %s1064 = scalar_lea.vmem %s2, 48
        %v1065 = vld [vmem:[%s1064] sm:$0xff]
        %v1066 = vld [vmem:[%s1064 + $0x8] sm:$0x1]
        %v1068 = vsel %vm593, %v1065, 0
        %v1071 = vsel %vm593, %v1066, 0
        %v1074 = vsel %vm600, %v1022, 0
        %v1077 = vsel %vm600, %v1062, 0
        %1079 = vmatpush.msra.mxu0 0.0
        %1080 = vmatpush.msra.mxu0 0.0
        %1081 = vmatpush.msra.mxu0 0.0
        %1082 = vmatpush.msra.mxu0 0.0
        %1083 = vmatpush.msra.mxu0 0.0
        %1084 = vmatpush.msra.mxu0 0.0
        %1085 = vmatpush.msra.mxu0 0.0
        %1086 = vmatpush.msra.mxu0 0.0
        %1087 = vmatpush.msra.mxu0 0.0
        %1088 = vmatpush.msra.mxu0 0.0
        %1089 = vmatpush.msra.mxu0 0.0
        %1090 = vmatpush.msra.mxu0 0.0
        %1091 = vmatpush.msra.mxu0 0.0
        %1092 = vmatpush.msra.mxu0 0.0
        %1093 = vmatpush.msra.mxu0 0.0
        %1094 = vmatpush.msra.mxu0 %v1074
        %1095 = vmatmul.f32.gmra.mxu0 %v1068
        %v1096 = vpop.f32.mrf.mxu0
        %v1097 = vadd.f32 0.0, %v1096
        %1098 = vmatmul.f32.gmra.mxu0 %v1071
        %v1099 = vpop.f32.mrf.mxu0
        %v1100 = vadd.f32 0.0, %v1099
        %1101 = vdwg.mxu0
        %1102 = vmatpush.msra.mxu0 0.0
        %1103 = vmatpush.msra.mxu0 0.0
        %1104 = vmatpush.msra.mxu0 0.0
        %1105 = vmatpush.msra.mxu0 0.0
        %1106 = vmatpush.msra.mxu0 0.0
        %1107 = vmatpush.msra.mxu0 0.0
        %1108 = vmatpush.msra.mxu0 0.0
        %1109 = vmatpush.msra.mxu0 0.0
        %1110 = vmatpush.msra.mxu0 0.0
        %1111 = vmatpush.msra.mxu0 0.0
        %1112 = vmatpush.msra.mxu0 0.0
        %1113 = vmatpush.msra.mxu0 0.0
        %1114 = vmatpush.msra.mxu0 0.0
        %1115 = vmatpush.msra.mxu0 0.0
        %1116 = vmatpush.msra.mxu0 0.0
        %1117 = vmatpush.msra.mxu0 %v1077
        %1118 = vmatmul.f32.gmra.mxu0 %v1068
        %v1119 = vpop.f32.mrf.mxu0
        %v1120 = vadd.f32 0.0, %v1119
        %1121 = vmatmul.f32.gmra.mxu0 %v1071
        %v1122 = vpop.f32.mrf.mxu0
        %v1123 = vadd.f32 0.0, %v1122
        %1124 = vdwg.mxu0
        %v1125 = vadd.f32 %v916, %v1097
        %v1126 = vadd.f32 %v917, %v1120
        %v1127 = vadd.f32 %v918, %v1100
        %v1128 = vadd.f32 %v919, %v1123
        %v1129 = vld [vmem:[#allocation2 + $0x40] sm:$0xff]
        %v1130 = vld [vmem:[#allocation2 + $0x48] sm:$0xff]
        %v1131 = vld [vmem:[#allocation2 + $0x90] sm:$0xff]
        %v1132 = vld [vmem:[#allocation2 + $0x98] sm:$0xff]
        %v1133 = vld [vmem:[#allocation2 + $0xe0] sm:$0xff]
        %v1134 = vld [vmem:[#allocation2 + $0xe8] sm:$0xff]
        %v1135 = vld [vmem:[#allocation2 + $0x130] sm:$0xff]
        %v1136 = vld [vmem:[#allocation2 + $0x138] sm:$0xff]
        %v1137 = vld [vmem:[#allocation2 + $0x180] sm:$0xff]
        %v1138 = vld [vmem:[#allocation2 + $0x188] sm:$0xff]
        %v1139 = vld [vmem:[#allocation2 + $0x1d0] sm:$0xff]
        %v1140 = vld [vmem:[#allocation2 + $0x1d8] sm:$0xff]
        %v1141 = vld [vmem:[#allocation2 + $0x220] sm:$0xff]
        %v1142 = vld [vmem:[#allocation2 + $0x228] sm:$0xff]
        %v1143 = vld [vmem:[#allocation2 + $0x270] sm:$0xff]
        %v1144 = vld [vmem:[#allocation2 + $0x278] sm:$0xff]
        %v1145 = vld [vmem:[#allocation2 + $0x2c0] sm:$0xff]
        %v1146 = vld [vmem:[#allocation2 + $0x2c8] sm:$0xff]
        %v1147 = vld [vmem:[#allocation2 + $0x310] sm:$0xff]
        %v1148 = vld [vmem:[#allocation2 + $0x318] sm:$0xff]
        %v1149 = vld [vmem:[#allocation2 + $0x360] sm:$0xff]
        %v1150 = vld [vmem:[#allocation2 + $0x368] sm:$0xff]
        %v1151 = vld [vmem:[#allocation2 + $0x3b0] sm:$0xff]
        %v1152 = vld [vmem:[#allocation2 + $0x3b8] sm:$0xff]
        %v1153 = vld [vmem:[#allocation2 + $0x400] sm:$0xff]
        %v1154 = vld [vmem:[#allocation2 + $0x408] sm:$0xff]
        %v1155 = vld [vmem:[#allocation2 + $0x450] sm:$0xff]
        %v1156 = vld [vmem:[#allocation2 + $0x458] sm:$0xff]
        %v1157 = vld [vmem:[#allocation2 + $0x4a0] sm:$0xff]
        %v1158 = vld [vmem:[#allocation2 + $0x4a8] sm:$0xff]
        %v1159 = vld [vmem:[#allocation2 + $0x4f0] sm:$0xff]
        %v1160 = vld [vmem:[#allocation2 + $0x4f8] sm:$0xff]
        %v1161 = vld [vmem:[#allocation2 + $0x540] sm:$0xff]
        %v1162 = vld [vmem:[#allocation2 + $0x548] sm:$0xff]
        %v1163 = vld [vmem:[#allocation2 + $0x590] sm:$0xff]
        %v1164 = vld [vmem:[#allocation2 + $0x598] sm:$0xff]
        %v1165 = vld [vmem:[#allocation2 + $0x5e0] sm:$0xff]
        %v1166 = vld [vmem:[#allocation2 + $0x5e8] sm:$0xff]
        %v1167 = vld [vmem:[#allocation2 + $0x630] sm:$0xff]
        %v1168 = vld [vmem:[#allocation2 + $0x638] sm:$0xff]
        %v1169 = vld [vmem:[#allocation2 + $0x680] sm:$0xff]
        %v1170 = vld [vmem:[#allocation2 + $0x688] sm:$0xff]
        %v1171 = vld [vmem:[#allocation2 + $0x6d0] sm:$0xff]
        %v1172 = vld [vmem:[#allocation2 + $0x6d8] sm:$0xff]
        %v1173 = vld [vmem:[#allocation2 + $0x720] sm:$0xff]
        %v1174 = vld [vmem:[#allocation2 + $0x728] sm:$0xff]
        %v1175 = vld [vmem:[#allocation2 + $0x770] sm:$0xff]
        %v1176 = vld [vmem:[#allocation2 + $0x778] sm:$0xff]
        %v1177 = vld [vmem:[#allocation2 + $0x7c0] sm:$0xff]
        %v1178 = vld [vmem:[#allocation2 + $0x7c8] sm:$0xff]
        %v1179 = vld [vmem:[#allocation2 + $0x810] sm:$0xff]
        %v1180 = vld [vmem:[#allocation2 + $0x818] sm:$0xff]
        %v1181 = vld [vmem:[#allocation2 + $0x860] sm:$0xff]
        %v1182 = vld [vmem:[#allocation2 + $0x868] sm:$0xff]
        %v1183 = vld [vmem:[#allocation2 + $0x8b0] sm:$0xff]
        %v1184 = vld [vmem:[#allocation2 + $0x8b8] sm:$0xff]
        %v1185 = vld [vmem:[#allocation2 + $0x900] sm:$0xff]
        %v1186 = vld [vmem:[#allocation2 + $0x908] sm:$0xff]
        %v1187 = vld [vmem:[#allocation2 + $0x950] sm:$0xff]
        %v1188 = vld [vmem:[#allocation2 + $0x958] sm:$0xff]
        %v1189 = vld [vmem:[#allocation2 + $0x9a0] sm:$0xff]
        %v1190 = vld [vmem:[#allocation2 + $0x9a8] sm:$0xff]
        %v1191 = vld [vmem:[#allocation2 + $0x9f0] sm:$0xff]
        %v1192 = vld [vmem:[#allocation2 + $0x9f8] sm:$0xff]
        %1193 = vmatpush.msra.mxu0 %v1159
        %1194 = vmatpush.msra.mxu0 %v1157
        %1195 = vmatpush.msra.mxu0 %v1155
        %1196 = vmatpush.msra.mxu0 %v1153
        %1197 = vmatpush.msra.mxu0 %v1151
        %1198 = vmatpush.msra.mxu0 %v1149
        %1199 = vmatpush.msra.mxu0 %v1147
        %1200 = vmatpush.msra.mxu0 %v1145
        %1201 = vmatpush.msra.mxu0 %v1143
        %1202 = vmatpush.msra.mxu0 %v1141
        %1203 = vmatpush.msra.mxu0 %v1139
        %1204 = vmatpush.msra.mxu0 %v1137
        %1205 = vmatpush.msra.mxu0 %v1135
        %1206 = vmatpush.msra.mxu0 %v1133
        %1207 = vmatpush.msra.mxu0 %v1131
        %1208 = vmatpush.msra.mxu0 %v1129
        %1209 = vmatmul.f32.gmra.mxu0 %v297
        %v1210 = vpop.f32.mrf.mxu0
        %v1211 = vadd.f32 0.0, %v1210
        %1212 = vdwg.mxu0
        %1213 = vmatpush.msra.mxu0 %v1191
        %1214 = vmatpush.msra.mxu0 %v1189
        %1215 = vmatpush.msra.mxu0 %v1187
        %1216 = vmatpush.msra.mxu0 %v1185
        %1217 = vmatpush.msra.mxu0 %v1183
        %1218 = vmatpush.msra.mxu0 %v1181
        %1219 = vmatpush.msra.mxu0 %v1179
        %1220 = vmatpush.msra.mxu0 %v1177
        %1221 = vmatpush.msra.mxu0 %v1175
        %1222 = vmatpush.msra.mxu0 %v1173
        %1223 = vmatpush.msra.mxu0 %v1171
        %1224 = vmatpush.msra.mxu0 %v1169
        %1225 = vmatpush.msra.mxu0 %v1167
        %1226 = vmatpush.msra.mxu0 %v1165
        %1227 = vmatpush.msra.mxu0 %v1163
        %1228 = vmatpush.msra.mxu0 %v1161
        %1229 = vmatmul.f32.gmra.mxu0 %v298
        %v1230 = vpop.f32.mrf.mxu0
        %v1231 = vadd.f32 %v1211, %v1230
        %1232 = vdwg.mxu0
        %1233 = vmatpush.msra.mxu0 %v1160
        %1234 = vmatpush.msra.mxu0 %v1158
        %1235 = vmatpush.msra.mxu0 %v1156
        %1236 = vmatpush.msra.mxu0 %v1154
        %1237 = vmatpush.msra.mxu0 %v1152
        %1238 = vmatpush.msra.mxu0 %v1150
        %1239 = vmatpush.msra.mxu0 %v1148
        %1240 = vmatpush.msra.mxu0 %v1146
        %1241 = vmatpush.msra.mxu0 %v1144
        %1242 = vmatpush.msra.mxu0 %v1142
        %1243 = vmatpush.msra.mxu0 %v1140
        %1244 = vmatpush.msra.mxu0 %v1138
        %1245 = vmatpush.msra.mxu0 %v1136
        %1246 = vmatpush.msra.mxu0 %v1134
        %1247 = vmatpush.msra.mxu0 %v1132
        %1248 = vmatpush.msra.mxu0 %v1130
        %1249 = vmatmul.f32.gmra.mxu0 %v297
        %v1250 = vpop.f32.mrf.mxu0
        %v1251 = vadd.f32 0.0, %v1250
        %1252 = vdwg.mxu0
        %1253 = vmatpush.msra.mxu0 %v1192
        %1254 = vmatpush.msra.mxu0 %v1190
        %1255 = vmatpush.msra.mxu0 %v1188
        %1256 = vmatpush.msra.mxu0 %v1186
        %1257 = vmatpush.msra.mxu0 %v1184
        %1258 = vmatpush.msra.mxu0 %v1182
        %1259 = vmatpush.msra.mxu0 %v1180
        %1260 = vmatpush.msra.mxu0 %v1178
        %1261 = vmatpush.msra.mxu0 %v1176
        %1262 = vmatpush.msra.mxu0 %v1174
        %1263 = vmatpush.msra.mxu0 %v1172
        %1264 = vmatpush.msra.mxu0 %v1170
        %1265 = vmatpush.msra.mxu0 %v1168
        %1266 = vmatpush.msra.mxu0 %v1166
        %1267 = vmatpush.msra.mxu0 %v1164
        %1268 = vmatpush.msra.mxu0 %v1162
        %1269 = vmatmul.f32.gmra.mxu0 %v298
        %v1270 = vpop.f32.mrf.mxu0
        %v1271 = vadd.f32 %v1251, %v1270
        %1272 = vdwg.mxu0
        %s1273 = scalar_lea.vmem %s2, 64
        %v1274 = vld [vmem:[%s1273] sm:$0xff]
        %v1275 = vld [vmem:[%s1273 + $0x8] sm:$0x1]
        %v1277 = vsel %vm593, %v1274, 0
        %v1280 = vsel %vm593, %v1275, 0
        %v1283 = vsel %vm600, %v1231, 0
        %v1286 = vsel %vm600, %v1271, 0
        %1288 = vmatpush.msra.mxu0 0.0
        %1289 = vmatpush.msra.mxu0 0.0
        %1290 = vmatpush.msra.mxu0 0.0
        %1291 = vmatpush.msra.mxu0 0.0
        %1292 = vmatpush.msra.mxu0 0.0
        %1293 = vmatpush.msra.mxu0 0.0
        %1294 = vmatpush.msra.mxu0 0.0
        %1295 = vmatpush.msra.mxu0 0.0
        %1296 = vmatpush.msra.mxu0 0.0
        %1297 = vmatpush.msra.mxu0 0.0
        %1298 = vmatpush.msra.mxu0 0.0
        %1299 = vmatpush.msra.mxu0 0.0
        %1300 = vmatpush.msra.mxu0 0.0
        %1301 = vmatpush.msra.mxu0 0.0
        %1302 = vmatpush.msra.mxu0 0.0
        %1303 = vmatpush.msra.mxu0 %v1283
        %1304 = vmatmul.f32.gmra.mxu0 %v1277
        %v1305 = vpop.f32.mrf.mxu0
        %v1306 = vadd.f32 0.0, %v1305
        %1307 = vmatmul.f32.gmra.mxu0 %v1280
        %v1308 = vpop.f32.mrf.mxu0
        %v1309 = vadd.f32 0.0, %v1308
        %1310 = vdwg.mxu0
        %1311 = vmatpush.msra.mxu0 0.0
        %1312 = vmatpush.msra.mxu0 0.0
        %1313 = vmatpush.msra.mxu0 0.0
        %1314 = vmatpush.msra.mxu0 0.0
        %1315 = vmatpush.msra.mxu0 0.0
        %1316 = vmatpush.msra.mxu0 0.0
        %1317 = vmatpush.msra.mxu0 0.0
        %1318 = vmatpush.msra.mxu0 0.0
        %1319 = vmatpush.msra.mxu0 0.0
        %1320 = vmatpush.msra.mxu0 0.0
        %1321 = vmatpush.msra.mxu0 0.0
        %1322 = vmatpush.msra.mxu0 0.0
        %1323 = vmatpush.msra.mxu0 0.0
        %1324 = vmatpush.msra.mxu0 0.0
        %1325 = vmatpush.msra.mxu0 0.0
        %1326 = vmatpush.msra.mxu0 %v1286
        %1327 = vmatmul.f32.gmra.mxu0 %v1277
        %v1328 = vpop.f32.mrf.mxu0
        %v1329 = vadd.f32 0.0, %v1328
        %1330 = vmatmul.f32.gmra.mxu0 %v1280
        %v1331 = vpop.f32.mrf.mxu0
        %v1332 = vadd.f32 0.0, %v1331
        %1333 = vdwg.mxu0
        %v1334 = vadd.f32 %v1125, %v1306
        %v1335 = vadd.f32 %v1126, %v1329
        %v1336 = vadd.f32 %v1127, %v1309
        %v1337 = vadd.f32 %v1128, %v1332
        %v1338 = vld [vmem:[%s3] sm:$0xff]
        %v1339 = vld [vmem:[%s3 + $0x8] sm:$0x1]
        %1341 = vset.pattern.permute.xlu0 0
        %1342 = vperm.xlu0 %1341, %v1338
        %v1343 = vpop.permute.xlu0 %1342
        %1346 = vset.pattern.permute.xlu0 0
        %1347 = vperm.xlu0 %1346, %v1339
        %v1348 = vpop.permute.xlu0 %1347
        %v1350 = vadd.f32 %v1334, %v1343
        %v1351 = vadd.f32 %v1335, %v1343
        %v1352 = vadd.f32 %v1336, %v1348
        %v1353 = vadd.f32 %v1337, %v1348
        %v1355 = vperm.slane %v299, 0
        %v1356 = vperm.slane %v299, 1
        %v1359 = vmul.f32 %v1350, %v1355
        %v1360 = vmul.f32 %v1351, %v1356
        %v1361 = vmul.f32 %v1352, %v1355
        %v1362 = vmul.f32 %v1353, %v1356
        %1363 = vst [vmem:[%s292] sm:$0xff] %v1359
        %1364 = vst [vmem:[%s292 + $0x8] sm:$0xff] %v1360
        %1365 = vst [vmem:[%s292 + $0x10] sm:$0x1] %v1361
        %1366 = vst [vmem:[%s292 + $0x18] sm:$0x1] %v1362
        %vm1367 = vcmask 1040384
        %v1368 = vsel %vm1367, %v1361, -inf
        %v1369 = vmax.f32 %v1359, %v1368
        %v1370 = vrot.slane %v1369, 4
        %v1371 = vmax.f32 %v1369, %v1370
        %v1372 = vrot.slane %v1371, 2
        %v1373 = vmax.f32 %v1371, %v1372
        %v1374 = vrot.slane %v1373, 1
        %v1375 = vmax.f32 %v1373, %v1374
        %v1376 = vsel %vm1367, %v1362, -inf
        %v1377 = vmax.f32 %v1360, %v1376
        %v1378 = vrot.slane %v1377, 4
        %v1379 = vmax.f32 %v1377, %v1378
        %v1380 = vrot.slane %v1379, 2
        %v1381 = vmax.f32 %v1379, %v1380
        %v1382 = vrot.slane %v1381, 1
        %v1383 = vmax.f32 %v1381, %v1382
        %vm1384 = vcmp.gt.f32.partialorder %v299, 0.0
        %v1387 = vrot.slane %v1383, 7
        %v1388 = vsel %vm1367, %v1375, %v1387
        %v1390 = vsel %vm1384, %v1388, -1e+30
        %v1391 = vlaneseq
        %vm1392 = vcmp.ge.s32.totalorder %v1391, 0
        %vm1393 = vcmp.lt.s32.totalorder %v1391, 256
        %vm1394 = vmand %vm1392, %vm1393
        %1395 = vst.msk [vmem:[%s296] sm:$0x3] %vm1394, %v1390
        %p1396 = scmp.lt.s32.totalorder %s19, 1
        %s1397 = scalar_select %p1396, %s19, 1
        %s1398 = smul.addr %s1397, 4
        %s1399 = smul.addr %s1398, 8
        %s1400 = scalar_lea.vmem %s5, %s1399
        %p1401 = scmp.lt.s32.totalorder %s19, 1
        %s1402 = scalar_select %p1401, %s19, 1
        %s1403 = smul.addr %s1402, 2
        %s1404 = scalar_lea.vmem %s6, %s1403
        // Predicated region
        $region45: #{forward.6} parent=39 // pred_check
          %p1405 = pneg %p152
        $region46: #{forward.6} parent=39 // pred_check_branch
          %1407 = sbr.rel (%p1405) target = $region48
        $region47: #{forward.6} parent=39 // pred_region
          _
        $region48: #{forward.6} parent=39 // pred_fallthru
          _
        // Predicated region
        $region49: #{forward.6} parent=39 // pred_check
          %p1408 = pneg %p178
        $region50: #{forward.6} parent=39 // pred_check_branch
          %1410 = sbr.rel (%p1408) target = $region52
        $region51: #{forward.6} parent=39 // pred_region
          _
        $region52: #{forward.6} parent=39 // pred_fallthru
          _
      $region40: #{forward.6} parent=5 // pred_fallthru
        _
      %p1411 = scmp.le.s32.totalorder 2, %s14
      // Predicated region
      $region53: #{forward.6} parent=5 // pred_check
        %p1412 = pneg %p1411
      $region54: #{forward.6} parent=5 // pred_check_branch
        %1414 = sbr.rel (%p1412) target = $region56
      $region55: #{forward.6} parent=5 // pred_region
        %s1415 = ssub.s32 %s14, 2
        // Predicated region
        $region57: #{forward.6} parent=55 // pred_check
          %p1416 = pneg %p158
        $region58: #{forward.6} parent=55 // pred_check_branch
          %1418 = sbr.rel (%p1416) target = $region60
        $region59: #{forward.6} parent=55 // pred_region
          %p1419 = scmp.lt.s32.totalorder %s20, 1
          %s1420 = scalar_select %p1419, %s20, 1
          %s1421 = smul.addr %s1420, 4
          %s1422 = smul.addr %s1421, 8
          %s1423 = scalar_lea.vmem %s5, %s1422
        $region60: #{forward.6} parent=55 // pred_fallthru
          _
        // Predicated region
        $region61: #{forward.6} parent=55 // pred_check
          %p1424 = pneg %p184
        $region62: #{forward.6} parent=55 // pred_check_branch
          %1426 = sbr.rel (%p1424) target = $region64
        $region63: #{forward.6} parent=55 // pred_region
          %p1427 = scmp.lt.s32.totalorder %s20, 1
          %s1428 = scalar_select %p1427, %s20, 1
          %s1429 = smul.addr %s1428, 2
          %s1430 = scalar_lea.vmem %s6, %s1429
        $region64: #{forward.6} parent=55 // pred_fallthru
          _
      $region56: #{forward.6} parent=5 // pred_fallthru
        _
    $region6: #{forward.6} parent=1 // loop_footer
      %s18 = sadd.s32 1, %s14
    $region7: #{forward.6} parent=1 // loop_footer_branch
      %13 = sbr.rel target = $region3
    $region8: #{forward.6} parent=1 // loop_exit
      _
    %1431 = vsyncpa [#allocation3], 1
    %s1432 = scalar_lea.sflag [#allocation3], 1
    %1433 = vsyncpa %s1432, 1

// kernel: forward.7
$region0: #{forward.7}
  #allocation0 [shape = 'u32[]', space=smem, size = 0x4, offset = 0x4, fixed_abs, tag = 'smem constant byte address 0x4 - core index']
  #allocation1 [shape = 'u32[72,128]{1,0:T(1,128)}', space=vmem, size = 0x9000, scoped, tag = 'internal scratch']
  %s0 = inlined_call_operand.hbm [shape: f32[256,2560], index: 0, kind: input, shape index: {}]
  %s1 = inlined_call_operand.vmem [shape: f32[2,9,256], index: 1, kind: input, shape index: {}]
  %s2 = inlined_call_operand.vmem [shape: f32[2,1,256], index: 2, kind: input, shape index: {}]
  %s3 = inlined_call_operand.vmem [shape: f32[10,9,100], index: 3, kind: input, shape index: {}]
  %s4 = inlined_call_operand.vmem [shape: f32[10,9,100], index: 4, kind: input, shape index: {}]
  %s5 = inlined_call_operand.hbm [shape: f32[1,100], index: 5, kind: input, shape index: {}]
  %s6 = inlined_call_operand.vmem [shape: f32[100,80], index: 6, kind: input, shape index: {}]
  %s7 = inlined_call_operand.hbm [shape: f32[1,80], index: 7, kind: input, shape index: {}]
  %s8 = inlined_call_operand.vmem [shape: f32[80,60], index: 8, kind: input, shape index: {}]
  %s9 = inlined_call_operand.hbm [shape: f32[1,60], index: 9, kind: input, shape index: {}]
  %s10 = inlined_call_operand.vmem [shape: f32[60,3], index: 10, kind: input, shape index: {}]
  %s11 = inlined_call_operand.hbm [shape: f32[1,3], index: 11, kind: input, shape index: {}]
  %s12 = inlined_call_operand.hbm [shape: f32[2,1,3], index: 12, kind: output, shape index: {}]
  %s13 = sld [smem:[#allocation0]]
  $region101: #{forward.7} parent=0
    _
  %s15 = ssub.s32 1, %s13
  %s16 = scalar_select 0, %s15, %s13
  $region1: #{forward.7} parent=0
    #allocation2 [shape = 'u8[2621440]{0}', space=vmem, size = 0x280000, scoped, tag = 'input window, operand 0, single buffered']
    #allocation3 [shape = 's32[2]{0}', space=sflag, size = 0x8, scoped, tag = 'scoped memory for forward.7']
    #allocation4 [shape = 's32[2]{0}', space=sflag, size = 0x8, scoped, tag = 'scoped memory for forward.7']
    #allocation5 [shape = 'u8[512]{0}', space=vmem, size = 0x400, scoped, tag = 'input window, operand 5, single buffered']
    #allocation6 [shape = 's32[1]{0}', space=sflag, size = 0x4, scoped, tag = 'scoped memory for forward.7']
    #allocation7 [shape = 'u8[512]{0}', space=vmem, size = 0x400, scoped, tag = 'input window, operand 7, single buffered']
    #allocation8 [shape = 'u8[512]{0}', space=vmem, size = 0x400, scoped, tag = 'input window, operand 9, single buffered']
    #allocation9 [shape = 's32[1]{0}', space=sflag, size = 0x4, scoped, tag = 'scoped memory for forward.7']
    #allocation10 [shape = 'u8[512]{0}', space=vmem, size = 0x400, scoped, tag = 'input window, operand 11, single buffered']
    #allocation11 [shape = 'u8[1024]{0}', space=vmem, size = 0x400, scoped, tag = 'output window, operand 0']
    %17 = vsyncpa [#allocation3], 0
    %18 = vsyncpa [#allocation6], 0
    %19 = vsyncpa [#allocation9], 0
    %20 = vsyncpa [#allocation4], 0
    %s21 = scalar_lea.sflag [#allocation4], 1
    %22 = vsyncpa %s21, 0
    loop: start=0, step=1, limit=4
    $region2: #{forward.7} parent=1 // loop_pre_header
      _
    $region3: #{forward.7} parent=1 // loop_header
      %s24 = sphi 0, %s28
      %p25 = scmp.ge.s32.totalorder %s24, 4
      %s32 = sphi 0, %s32
      %s34 = sphi 0, %s32
      %s35 = sphi 0, %s34
      %s49 = sphi 0, %s35
      %s55 = sphi 0, %s57
      %s58 = sphi 0, %s55
      %s59 = sphi 0, %s58
      %s75 = sphi 0, %s59
      %s81 = sphi 0, %s83
      %s84 = sphi 0, %s81
      %s85 = sphi 0, %s84
      %s101 = sphi 0, %s85
      %s105 = sphi 0, %s105
      %s107 = sphi 0, %s105
      %s108 = sphi 0, %s107
      %s122 = sphi 0, %s108
      %s126 = sphi 0, %s126
      %s128 = sphi 0, %s126
      %s129 = sphi 0, %s128
      %s143 = sphi 0, %s129
      %s147 = sphi 0, %s147
      %s149 = sphi 0, %s147
      %s150 = sphi 0, %s149
      %s164 = sphi 0, %s150
      %s168 = sphi 0, %s168
      %s170 = sphi 0, %s168
      %s171 = sphi 0, %s170
      %s185 = sphi 0, %s171
      %s189 = sphi 0, %s189
      %s191 = sphi 0, %s189
      %s192 = sphi 0, %s191
      %s206 = sphi 0, %s192
      %s210 = sphi 0, %s210
      %s212 = sphi 0, %s210
      %s213 = sphi 0, %s212
      %s227 = sphi 0, %s213
      %s231 = sphi 0, %s231
      %s233 = sphi 0, %s231
      %s234 = sphi 0, %s233
      %s248 = sphi 0, %s234
      %s252 = sphi 0, %s252
      %s254 = sphi 0, %s252
      %s255 = sphi 0, %s254
      %s269 = sphi 0, %s255
      %s273 = sphi 0, %s273
      %s275 = sphi 0, %s273
      %s276 = sphi 0, %s275
      %s290 = sphi 0, %s276
      %s296 = sphi 0, %s298
      %s299 = sphi 0, %s296
      %s300 = sphi 0, %s299
      %s316 = sphi 0, %s300
    $region4: #{forward.7} parent=1 // loop_header_branch
      %27 = sbr.rel (%p25) target = $region8
    $region5: #{forward.7} parent=1 // loop_body
      %s29 = ssub.s32 %s24, 1
      %s30 = ssub.s32 %s24, 2
      %s31 = sadd.s32 %s24, 1
      %s33 = sadd.s32 %s32, 1
      %p36 = scmp.eq.s32.totalorder %s24, 1
      %p37 = scmp.ne.s32.totalorder %s32, %s34
      %p38 = scmp.eq.s32.totalorder %s24, 0
      %p39 = por %p37, %p38
      %p40 = scmp.ne.s32.totalorder %s32, %s34
      %p41 = scmp.eq.s32.totalorder %s29, 1
      %p42 = por %p40, %p41
      %p43 = scmp.ne.s32.totalorder %s34, %s35
      %p44 = scmp.eq.s32.totalorder %s29, 0
      %p45 = por %p43, %p44
      %p46 = scmp.ne.s32.totalorder %s34, %s35
      %p47 = scmp.eq.s32.totalorder %s30, 1
      %p48 = por %p46, %p47
      %p50 = scmp.ne.s32.totalorder %s35, %s49
      %p51 = scmp.eq.s32.totalorder %s30, 0
      %p52 = por %p50, %p51
      %s53 = ssub.s32 %s24, %s31
      %p54 = scmp.eq.s32.totalorder %s53, 0
      %s56 = sadd.s32 %s55, 1
      %s57 = scalar_select %p54, %s55, %s56
      %p60 = pneg %p54
      %p61 = scmp.eq.s32.totalorder %s24, 1
      %p62 = por %p60, %p61
      %p63 = scmp.ne.s32.totalorder %s55, %s58
      %p64 = scmp.eq.s32.totalorder %s24, 0
      %p65 = por %p63, %p64
      %p66 = scmp.ne.s32.totalorder %s55, %s58
      %p67 = scmp.eq.s32.totalorder %s29, 1
      %p68 = por %p66, %p67
      %p69 = scmp.ne.s32.totalorder %s58, %s59
      %p70 = scmp.eq.s32.totalorder %s29, 0
      %p71 = por %p69, %p70
      %p72 = scmp.ne.s32.totalorder %s58, %s59
      %p73 = scmp.eq.s32.totalorder %s30, 1
      %p74 = por %p72, %p73
      %p76 = scmp.ne.s32.totalorder %s59, %s75
      %p77 = scmp.eq.s32.totalorder %s30, 0
      %p78 = por %p76, %p77
      %s79 = ssub.s32 %s24, %s31
      %p80 = scmp.eq.s32.totalorder %s79, 0
      %s82 = sadd.s32 %s81, 1
      %s83 = scalar_select %p80, %s81, %s82
      %p86 = pneg %p80
      %p87 = scmp.eq.s32.totalorder %s24, 1
      %p88 = por %p86, %p87
      %p89 = scmp.ne.s32.totalorder %s81, %s84
      %p90 = scmp.eq.s32.totalorder %s24, 0
      %p91 = por %p89, %p90
      %p92 = scmp.ne.s32.totalorder %s81, %s84
      %p93 = scmp.eq.s32.totalorder %s29, 1
      %p94 = por %p92, %p93
      %p95 = scmp.ne.s32.totalorder %s84, %s85
      %p96 = scmp.eq.s32.totalorder %s29, 0
      %p97 = por %p95, %p96
      %p98 = scmp.ne.s32.totalorder %s84, %s85
      %p99 = scmp.eq.s32.totalorder %s30, 1
      %p100 = por %p98, %p99
      %p102 = scmp.ne.s32.totalorder %s85, %s101
      %p103 = scmp.eq.s32.totalorder %s30, 0
      %p104 = por %p102, %p103
      %s106 = sadd.s32 %s105, 1
      %p109 = scmp.eq.s32.totalorder %s24, 1
      %p110 = scmp.ne.s32.totalorder %s105, %s107
      %p111 = scmp.eq.s32.totalorder %s24, 0
      %p112 = por %p110, %p111
      %p113 = scmp.ne.s32.totalorder %s105, %s107
      %p114 = scmp.eq.s32.totalorder %s29, 1
      %p115 = por %p113, %p114
      %p116 = scmp.ne.s32.totalorder %s107, %s108
      %p117 = scmp.eq.s32.totalorder %s29, 0
      %p118 = por %p116, %p117
      %p119 = scmp.ne.s32.totalorder %s107, %s108
      %p120 = scmp.eq.s32.totalorder %s30, 1
      %p121 = por %p119, %p120
      %p123 = scmp.ne.s32.totalorder %s108, %s122
      %p124 = scmp.eq.s32.totalorder %s30, 0
      %p125 = por %p123, %p124
      %s127 = sadd.s32 %s126, 1
      %p130 = scmp.eq.s32.totalorder %s24, 1
      %p131 = scmp.ne.s32.totalorder %s126, %s128
      %p132 = scmp.eq.s32.totalorder %s24, 0
      %p133 = por %p131, %p132
      %p134 = scmp.ne.s32.totalorder %s126, %s128
      %p135 = scmp.eq.s32.totalorder %s29, 1
      %p136 = por %p134, %p135
      %p137 = scmp.ne.s32.totalorder %s128, %s129
      %p138 = scmp.eq.s32.totalorder %s29, 0
      %p139 = por %p137, %p138
      %p140 = scmp.ne.s32.totalorder %s128, %s129
      %p141 = scmp.eq.s32.totalorder %s30, 1
      %p142 = por %p140, %p141
      %p144 = scmp.ne.s32.totalorder %s129, %s143
      %p145 = scmp.eq.s32.totalorder %s30, 0
      %p146 = por %p144, %p145
      %s148 = sadd.s32 %s147, 1
      %p151 = scmp.eq.s32.totalorder %s24, 1
      %p152 = scmp.ne.s32.totalorder %s147, %s149
      %p153 = scmp.eq.s32.totalorder %s24, 0
      %p154 = por %p152, %p153
      %p155 = scmp.ne.s32.totalorder %s147, %s149
      %p156 = scmp.eq.s32.totalorder %s29, 1
      %p157 = por %p155, %p156
      %p158 = scmp.ne.s32.totalorder %s149, %s150
      %p159 = scmp.eq.s32.totalorder %s29, 0
      %p160 = por %p158, %p159
      %p161 = scmp.ne.s32.totalorder %s149, %s150
      %p162 = scmp.eq.s32.totalorder %s30, 1
      %p163 = por %p161, %p162
      %p165 = scmp.ne.s32.totalorder %s150, %s164
      %p166 = scmp.eq.s32.totalorder %s30, 0
      %p167 = por %p165, %p166
      %s169 = sadd.s32 %s168, 1
      %p172 = scmp.eq.s32.totalorder %s24, 1
      %p173 = scmp.ne.s32.totalorder %s168, %s170
      %p174 = scmp.eq.s32.totalorder %s24, 0
      %p175 = por %p173, %p174
      %p176 = scmp.ne.s32.totalorder %s168, %s170
      %p177 = scmp.eq.s32.totalorder %s29, 1
      %p178 = por %p176, %p177
      %p179 = scmp.ne.s32.totalorder %s170, %s171
      %p180 = scmp.eq.s32.totalorder %s29, 0
      %p181 = por %p179, %p180
      %p182 = scmp.ne.s32.totalorder %s170, %s171
      %p183 = scmp.eq.s32.totalorder %s30, 1
      %p184 = por %p182, %p183
      %p186 = scmp.ne.s32.totalorder %s171, %s185
      %p187 = scmp.eq.s32.totalorder %s30, 0
      %p188 = por %p186, %p187
      %s190 = sadd.s32 %s189, 1
      %p193 = scmp.eq.s32.totalorder %s24, 1
      %p194 = scmp.ne.s32.totalorder %s189, %s191
      %p195 = scmp.eq.s32.totalorder %s24, 0
      %p196 = por %p194, %p195
      %p197 = scmp.ne.s32.totalorder %s189, %s191
      %p198 = scmp.eq.s32.totalorder %s29, 1
      %p199 = por %p197, %p198
      %p200 = scmp.ne.s32.totalorder %s191, %s192
      %p201 = scmp.eq.s32.totalorder %s29, 0
      %p202 = por %p200, %p201
      %p203 = scmp.ne.s32.totalorder %s191, %s192
      %p204 = scmp.eq.s32.totalorder %s30, 1
      %p205 = por %p203, %p204
      %p207 = scmp.ne.s32.totalorder %s192, %s206
      %p208 = scmp.eq.s32.totalorder %s30, 0
      %p209 = por %p207, %p208
      %s211 = sadd.s32 %s210, 1
      %p214 = scmp.eq.s32.totalorder %s24, 1
      %p215 = scmp.ne.s32.totalorder %s210, %s212
      %p216 = scmp.eq.s32.totalorder %s24, 0
      %p217 = por %p215, %p216
      %p218 = scmp.ne.s32.totalorder %s210, %s212
      %p219 = scmp.eq.s32.totalorder %s29, 1
      %p220 = por %p218, %p219
      %p221 = scmp.ne.s32.totalorder %s212, %s213
      %p222 = scmp.eq.s32.totalorder %s29, 0
      %p223 = por %p221, %p222
      %p224 = scmp.ne.s32.totalorder %s212, %s213
      %p225 = scmp.eq.s32.totalorder %s30, 1
      %p226 = por %p224, %p225
      %p228 = scmp.ne.s32.totalorder %s213, %s227
      %p229 = scmp.eq.s32.totalorder %s30, 0
      %p230 = por %p228, %p229
      %s232 = sadd.s32 %s231, 1
      %p235 = scmp.eq.s32.totalorder %s24, 1
      %p236 = scmp.ne.s32.totalorder %s231, %s233
      %p237 = scmp.eq.s32.totalorder %s24, 0
      %p238 = por %p236, %p237
      %p239 = scmp.ne.s32.totalorder %s231, %s233
      %p240 = scmp.eq.s32.totalorder %s29, 1
      %p241 = por %p239, %p240
      %p242 = scmp.ne.s32.totalorder %s233, %s234
      %p243 = scmp.eq.s32.totalorder %s29, 0
      %p244 = por %p242, %p243
      %p245 = scmp.ne.s32.totalorder %s233, %s234
      %p246 = scmp.eq.s32.totalorder %s30, 1
      %p247 = por %p245, %p246
      %p249 = scmp.ne.s32.totalorder %s234, %s248
      %p250 = scmp.eq.s32.totalorder %s30, 0
      %p251 = por %p249, %p250
      %s253 = sadd.s32 %s252, 1
      %p256 = scmp.eq.s32.totalorder %s24, 1
      %p257 = scmp.ne.s32.totalorder %s252, %s254
      %p258 = scmp.eq.s32.totalorder %s24, 0
      %p259 = por %p257, %p258
      %p260 = scmp.ne.s32.totalorder %s252, %s254
      %p261 = scmp.eq.s32.totalorder %s29, 1
      %p262 = por %p260, %p261
      %p263 = scmp.ne.s32.totalorder %s254, %s255
      %p264 = scmp.eq.s32.totalorder %s29, 0
      %p265 = por %p263, %p264
      %p266 = scmp.ne.s32.totalorder %s254, %s255
      %p267 = scmp.eq.s32.totalorder %s30, 1
      %p268 = por %p266, %p267
      %p270 = scmp.ne.s32.totalorder %s255, %s269
      %p271 = scmp.eq.s32.totalorder %s30, 0
      %p272 = por %p270, %p271
      %s274 = sadd.s32 %s273, 1
      %p277 = scmp.eq.s32.totalorder %s24, 1
      %p278 = scmp.ne.s32.totalorder %s273, %s275
      %p279 = scmp.eq.s32.totalorder %s24, 0
      %p280 = por %p278, %p279
      %p281 = scmp.ne.s32.totalorder %s273, %s275
      %p282 = scmp.eq.s32.totalorder %s29, 1
      %p283 = por %p281, %p282
      %p284 = scmp.ne.s32.totalorder %s275, %s276
      %p285 = scmp.eq.s32.totalorder %s29, 0
      %p286 = por %p284, %p285
      %p287 = scmp.ne.s32.totalorder %s275, %s276
      %p288 = scmp.eq.s32.totalorder %s30, 1
      %p289 = por %p287, %p288
      %p291 = scmp.ne.s32.totalorder %s276, %s290
      %p292 = scmp.eq.s32.totalorder %s30, 0
      %p293 = por %p291, %p292
      %s294 = ssub.s32 %s24, %s31
      %p295 = scmp.eq.s32.totalorder %s294, 0
      %s297 = sadd.s32 %s296, 1
      %s298 = scalar_select %p295, %s296, %s297
      %p301 = pneg %p295
      %p302 = scmp.eq.s32.totalorder %s24, 1
      %p303 = por %p301, %p302
      %p304 = scmp.ne.s32.totalorder %s296, %s299
      %p305 = scmp.eq.s32.totalorder %s24, 0
      %p306 = por %p304, %p305
      %p307 = scmp.ne.s32.totalorder %s296, %s299
      %p308 = scmp.eq.s32.totalorder %s29, 1
      %p309 = por %p307, %p308
      %p310 = scmp.ne.s32.totalorder %s299, %s300
      %p311 = scmp.eq.s32.totalorder %s29, 0
      %p312 = por %p310, %p311
      %p313 = scmp.ne.s32.totalorder %s299, %s300
      %p314 = scmp.eq.s32.totalorder %s30, 1
      %p315 = por %p313, %p314
      %p317 = scmp.ne.s32.totalorder %s300, %s316
      %p318 = scmp.eq.s32.totalorder %s30, 0
      %p319 = por %p317, %p318
      %p320 = scmp.le.s32.totalorder 1, %s24
      %p321 = scmp.lt.s32.totalorder %s24, 3
      %p322 = pnand %p320, %p321
      %p323 = pneg %p322
      // Predicated region
      $region9: #{forward.7} parent=5 // pred_check
        _
      $region10: #{forward.7} parent=5 // pred_check_branch
        %325 = sbr.rel (%p322) target = $region12
      $region11: #{forward.7} parent=5 // pred_region
        %s326 = ssub.s32 %s24, 1
        // Predicated region
        $region13: #{forward.7} parent=11 // pred_check
          %p327 = pneg %p45
        $region14: #{forward.7} parent=11 // pred_check_branch
          %329 = sbr.rel (%p327) target = $region16
        $region15: #{forward.7} parent=11 // pred_region
          %331 = vsyncadd [#allocation3], 0
          %s332 = sshll.u32 %s0, 4
          %s333 = int_to_ptr.hbm [resolvable:$true] %s332
          %s334 = sshll.u32 [#allocation2], 4
          %s335 = int_to_ptr.vmem [resolvable:$true] %s334
          %340 = dma.hbm_to_vmem [thread:$0]  %s333, 81920, %s335, [#allocation3], 2560, 2560, 160
        $region16: #{forward.7} parent=11 // pred_fallthru
          _
        // Predicated region
        $region17: #{forward.7} parent=11 // pred_check
          %p341 = pneg %p118
        $region18: #{forward.7} parent=11 // pred_check_branch
          %343 = sbr.rel (%p341) target = $region20
        $region19: #{forward.7} parent=11 // pred_region
          _
        $region20: #{forward.7} parent=11 // pred_fallthru
          _
        // Predicated region
        $region21: #{forward.7} parent=11 // pred_check
          %p344 = pneg %p139
        $region22: #{forward.7} parent=11 // pred_check_branch
          %346 = sbr.rel (%p344) target = $region24
        $region23: #{forward.7} parent=11 // pred_region
          _
        $region24: #{forward.7} parent=11 // pred_fallthru
          _
        // Predicated region
        $region25: #{forward.7} parent=11 // pred_check
          %p347 = pneg %p160
        $region26: #{forward.7} parent=11 // pred_check_branch
          %349 = sbr.rel (%p347) target = $region28
        $region27: #{forward.7} parent=11 // pred_region
          %351 = vsyncadd [#allocation6], 0
          %s353 = sshll.u32 %s5, 4
          %s354 = int_to_ptr.hbm [resolvable:$true] %s353
          %s355 = sshll.u32 [#allocation5], 4
          %s356 = int_to_ptr.vmem [resolvable:$true] %s355
          %358 = dma.hbm_to_vmem [thread:$0]  %s354, 16, %s356, [#allocation6]
        $region28: #{forward.7} parent=11 // pred_fallthru
          _
        // Predicated region
        $region29: #{forward.7} parent=11 // pred_check
          %p359 = pneg %p181
        $region30: #{forward.7} parent=11 // pred_check_branch
          %361 = sbr.rel (%p359) target = $region32
        $region31: #{forward.7} parent=11 // pred_region
          _
        $region32: #{forward.7} parent=11 // pred_fallthru
          _
        // Predicated region
        $region33: #{forward.7} parent=11 // pred_check
          %p362 = pneg %p202
        $region34: #{forward.7} parent=11 // pred_check_branch
          %364 = sbr.rel (%p362) target = $region36
        $region35: #{forward.7} parent=11 // pred_region
          %366 = vsyncadd [#allocation6], 0
          %s368 = sshll.u32 %s7, 4
          %s369 = int_to_ptr.hbm [resolvable:$true] %s368
          %s370 = sshll.u32 [#allocation7], 4
          %s371 = int_to_ptr.vmem [resolvable:$true] %s370
          %373 = dma.hbm_to_vmem [thread:$0]  %s369, 16, %s371, [#allocation6]
        $region36: #{forward.7} parent=11 // pred_fallthru
          _
        // Predicated region
        $region37: #{forward.7} parent=11 // pred_check
          %p374 = pneg %p223
        $region38: #{forward.7} parent=11 // pred_check_branch
          %376 = sbr.rel (%p374) target = $region40
        $region39: #{forward.7} parent=11 // pred_region
          _
        $region40: #{forward.7} parent=11 // pred_fallthru
          _
        // Predicated region
        $region41: #{forward.7} parent=11 // pred_check
          %p377 = pneg %p244
        $region42: #{forward.7} parent=11 // pred_check_branch
          %379 = sbr.rel (%p377) target = $region44
        $region43: #{forward.7} parent=11 // pred_region
          %381 = vsyncadd [#allocation9], 0
          %s383 = sshll.u32 %s9, 4
          %s384 = int_to_ptr.hbm [resolvable:$true] %s383
          %s385 = sshll.u32 [#allocation8], 4
          %s386 = int_to_ptr.vmem [resolvable:$true] %s385
          %388 = dma.hbm_to_vmem [thread:$0]  %s384, 16, %s386, [#allocation9]
        $region44: #{forward.7} parent=11 // pred_fallthru
          _
        // Predicated region
        $region45: #{forward.7} parent=11 // pred_check
          %p389 = pneg %p265
        $region46: #{forward.7} parent=11 // pred_check_branch
          %391 = sbr.rel (%p389) target = $region48
        $region47: #{forward.7} parent=11 // pred_region
          _
        $region48: #{forward.7} parent=11 // pred_fallthru
          _
        // Predicated region
        $region49: #{forward.7} parent=11 // pred_check
          %p392 = pneg %p286
        $region50: #{forward.7} parent=11 // pred_check_branch
          %394 = sbr.rel (%p392) target = $region52
        $region51: #{forward.7} parent=11 // pred_region
          %396 = vsyncadd [#allocation9], 0
          %s398 = sshll.u32 %s11, 4
          %s399 = int_to_ptr.hbm [resolvable:$true] %s398
          %s400 = sshll.u32 [#allocation10], 4
          %s401 = int_to_ptr.vmem [resolvable:$true] %s400
          %403 = dma.hbm_to_vmem [thread:$0]  %s399, 16, %s401, [#allocation9]
        $region52: #{forward.7} parent=11 // pred_fallthru
          _
      $region12: #{forward.7} parent=5 // pred_fallthru
        _
      %p404 = scmp.lt.s32.totalorder %s24, 2
      // Predicated region
      $region53: #{forward.7} parent=5 // pred_check
        %p405 = pneg %p404
      $region54: #{forward.7} parent=5 // pred_check_branch
        %407 = sbr.rel (%p405) target = $region56
      $region55: #{forward.7} parent=5 // pred_region
        // Predicated region
        $region57: #{forward.7} parent=55 // pred_check
          %p408 = pneg %p65
        $region58: #{forward.7} parent=55 // pred_check_branch
          %410 = sbr.rel (%p408) target = $region60
        $region59: #{forward.7} parent=55 // pred_region
          %p411 = scmp.lt.s32.totalorder %s24, 1
          %s412 = scalar_select %p411, %s24, 1
          %s413 = smul.addr %s412, 4
          %s414 = smul.addr %s413, 8
          %s415 = scalar_lea.vmem %s1, %s414
        $region60: #{forward.7} parent=55 // pred_fallthru
          _
        // Predicated region
        $region61: #{forward.7} parent=55 // pred_check
          %p416 = pneg %p91
        $region62: #{forward.7} parent=55 // pred_check_branch
          %418 = sbr.rel (%p416) target = $region64
        $region63: #{forward.7} parent=55 // pred_region
          %p419 = scmp.lt.s32.totalorder %s24, 1
          %s420 = scalar_select %p419, %s24, 1
          %s421 = smul.addr %s420, 2
          %s422 = scalar_lea.vmem %s2, %s421
        $region64: #{forward.7} parent=55 // pred_fallthru
          _
      $region56: #{forward.7} parent=5 // pred_fallthru
        _
      %p423 = scmp.le.s32.totalorder 1, %s24
      %p424 = scmp.lt.s32.totalorder %s24, 3
      %p425 = pnand %p423, %p424
      %p426 = pneg %p425
      // Predicated region
      $region65: #{forward.7} parent=5 // pred_check
        _
      $region66: #{forward.7} parent=5 // pred_check_branch
        %428 = sbr.rel (%p425) target = $region68
      $region67: #{forward.7} parent=5 // pred_region
        %s429 = ssub.s32 %s24, 1
        // Predicated region
        $region69: #{forward.7} parent=67 // pred_check
          %p430 = pneg %p45
        $region70: #{forward.7} parent=67 // pred_check_branch
          %432 = sbr.rel (%p430) target = $region72
        $region71: #{forward.7} parent=67 // pred_region
          %434 = dma.done [#allocation3], 81920
        $region72: #{forward.7} parent=67 // pred_fallthru
          _
        // Predicated region
        $region73: #{forward.7} parent=67 // pred_check
          %p435 = pneg %p160
        $region74: #{forward.7} parent=67 // pred_check_branch
          %437 = sbr.rel (%p435) target = $region76
        $region75: #{forward.7} parent=67 // pred_region
          %439 = dma.done [#allocation6], 16
        $region76: #{forward.7} parent=67 // pred_fallthru
          _
        // Predicated region
        $region77: #{forward.7} parent=67 // pred_check
          %p440 = pneg %p202
        $region78: #{forward.7} parent=67 // pred_check_branch
          %442 = sbr.rel (%p440) target = $region80
        $region79: #{forward.7} parent=67 // pred_region
          %444 = dma.done [#allocation6], 16
        $region80: #{forward.7} parent=67 // pred_fallthru
          _
        // Predicated region
        $region81: #{forward.7} parent=67 // pred_check
          %p445 = pneg %p244
        $region82: #{forward.7} parent=67 // pred_check_branch
          %447 = sbr.rel (%p445) target = $region84
        $region83: #{forward.7} parent=67 // pred_region
          %449 = dma.done [#allocation9], 16
        $region84: #{forward.7} parent=67 // pred_fallthru
          _
        // Predicated region
        $region85: #{forward.7} parent=67 // pred_check
          %p450 = pneg %p286
        $region86: #{forward.7} parent=67 // pred_check_branch
          %452 = sbr.rel (%p450) target = $region88
        $region87: #{forward.7} parent=67 // pred_region
          %454 = dma.done [#allocation9], 16
        $region88: #{forward.7} parent=67 // pred_fallthru
          _
        %p455 = pneg %p45
        %p456 = pneg %p42
        %p457 = scmp.lt.s32.totalorder %s29, 1
        %s458 = scalar_select %p457, %s29, 1
        %s459 = smul.addr %s458, 4
        %s460 = smul.addr %s459, 8
        %s461 = scalar_lea.vmem %s1, %s460
        %p462 = pneg %p71
        %p463 = pneg %p68
        %p464 = scmp.lt.s32.totalorder %s29, 1
        %s465 = scalar_select %p464, %s29, 1
        %s466 = smul.addr %s465, 2
        %s467 = scalar_lea.vmem %s2, %s466
        %p468 = pneg %p97
        %p469 = pneg %p94
        %p470 = pneg %p118
        %p471 = pneg %p115
        %p472 = pneg %p139
        %p473 = pneg %p136
        %p474 = pneg %p160
        %p475 = pneg %p157
        %p476 = pneg %p181
        %p477 = pneg %p178
        %p478 = pneg %p202
        %p479 = pneg %p199
        %p480 = pneg %p223
        %p481 = pneg %p220
        %p482 = pneg %p244
        %p483 = pneg %p241
        %p484 = pneg %p265
        %p485 = pneg %p262
        %p486 = pneg %p286
        %p487 = pneg %p283
        %p488 = pneg %p312
        %p489 = pneg %p309
        %s490 = sand.u32 %s299, 1
        %s491 = scalar_lea.sflag [#allocation4], %s490
        %s492 = sand.u32 %s299, 1
        %s493 = scalar_lea.vmem [#allocation11], %s492
        %p494 = scmp.lt.s32.totalorder %s29, 1
        %s495 = scalar_select %p494, %s29, 1
        %s496 = smul.addr %s495, 4
        %s497 = smul.addr %s496, 8
        %s498 = scalar_lea.vmem %s1, %s497
        %p499 = scmp.lt.s32.totalorder %s29, 1
        %s500 = scalar_select %p499, %s29, 1
        %s501 = smul.addr %s500, 2
        %s502 = scalar_lea.vmem %s2, %s501
        %v503 = vld [vmem:[%s498] sm:$0xff]
        %v504 = vld [vmem:[%s498 + $0x8] sm:$0xff]
        %v505 = vld [vmem:[%s498 + $0x10] sm:$0x1]
        %v506 = vld [vmem:[%s498 + $0x18] sm:$0x1]
        %v507 = vld [vmem:[%s502] sm:$0x3]
        %v509 = vperm.slane %v507, 0
        %v510 = vperm.slane %v507, 1
        %v513 = vmul.f32 %v503, %v509
        %v514 = vmul.f32 %v504, %v510
        %v515 = vmul.f32 %v505, %v509
        %v516 = vmul.f32 %v506, %v510
        %v517 = vld [vmem:[#allocation2] sm:$0xff]
        %v518 = vld [vmem:[#allocation2 + $0x8] sm:$0xff]
        %v519 = vld [vmem:[#allocation2 + $0xa0] sm:$0xff]
        %v520 = vld [vmem:[#allocation2 + $0xa8] sm:$0xff]
        %v521 = vld [vmem:[#allocation2 + $0x140] sm:$0xff]
        %v522 = vld [vmem:[#allocation2 + $0x148] sm:$0xff]
        %v523 = vld [vmem:[#allocation2 + $0x1e0] sm:$0xff]
        %v524 = vld [vmem:[#allocation2 + $0x1e8] sm:$0xff]
        %v525 = vld [vmem:[#allocation2 + $0x280] sm:$0xff]
        %v526 = vld [vmem:[#allocation2 + $0x288] sm:$0xff]
        %v527 = vld [vmem:[#allocation2 + $0x320] sm:$0xff]
        %v528 = vld [vmem:[#allocation2 + $0x328] sm:$0xff]
        %v529 = vld [vmem:[#allocation2 + $0x3c0] sm:$0xff]
        %v530 = vld [vmem:[#allocation2 + $0x3c8] sm:$0xff]
        %v531 = vld [vmem:[#allocation2 + $0x460] sm:$0xff]
        %v532 = vld [vmem:[#allocation2 + $0x468] sm:$0xff]
        %v533 = vld [vmem:[#allocation2 + $0x500] sm:$0xff]
        %v534 = vld [vmem:[#allocation2 + $0x508] sm:$0xff]
        %v535 = vld [vmem:[#allocation2 + $0x5a0] sm:$0xff]
        %v536 = vld [vmem:[#allocation2 + $0x5a8] sm:$0xff]
        %v537 = vld [vmem:[#allocation2 + $0x640] sm:$0xff]
        %v538 = vld [vmem:[#allocation2 + $0x648] sm:$0xff]
        %v539 = vld [vmem:[#allocation2 + $0x6e0] sm:$0xff]
        %v540 = vld [vmem:[#allocation2 + $0x6e8] sm:$0xff]
        %v541 = vld [vmem:[#allocation2 + $0x780] sm:$0xff]
        %v542 = vld [vmem:[#allocation2 + $0x788] sm:$0xff]
        %v543 = vld [vmem:[#allocation2 + $0x820] sm:$0xff]
        %v544 = vld [vmem:[#allocation2 + $0x828] sm:$0xff]
        %v545 = vld [vmem:[#allocation2 + $0x8c0] sm:$0xff]
        %v546 = vld [vmem:[#allocation2 + $0x8c8] sm:$0xff]
        %v547 = vld [vmem:[#allocation2 + $0x960] sm:$0xff]
        %v548 = vld [vmem:[#allocation2 + $0x968] sm:$0xff]
        %v549 = vld [vmem:[#allocation2 + $0xa00] sm:$0xff]
        %v550 = vld [vmem:[#allocation2 + $0xa08] sm:$0xff]
        %v551 = vld [vmem:[#allocation2 + $0xaa0] sm:$0xff]
        %v552 = vld [vmem:[#allocation2 + $0xaa8] sm:$0xff]
        %v553 = vld [vmem:[#allocation2 + $0xb40] sm:$0xff]
        %v554 = vld [vmem:[#allocation2 + $0xb48] sm:$0xff]
        %v555 = vld [vmem:[#allocation2 + $0xbe0] sm:$0xff]
        %v556 = vld [vmem:[#allocation2 + $0xbe8] sm:$0xff]
        %v557 = vld [vmem:[#allocation2 + $0xc80] sm:$0xff]
        %v558 = vld [vmem:[#allocation2 + $0xc88] sm:$0xff]
        %v559 = vld [vmem:[#allocation2 + $0xd20] sm:$0xff]
        %v560 = vld [vmem:[#allocation2 + $0xd28] sm:$0xff]
        %v561 = vld [vmem:[#allocation2 + $0xdc0] sm:$0xff]
        %v562 = vld [vmem:[#allocation2 + $0xdc8] sm:$0xff]
        %v563 = vld [vmem:[#allocation2 + $0xe60] sm:$0xff]
        %v564 = vld [vmem:[#allocation2 + $0xe68] sm:$0xff]
        %v565 = vld [vmem:[#allocation2 + $0xf00] sm:$0xff]
        %v566 = vld [vmem:[#allocation2 + $0xf08] sm:$0xff]
        %v567 = vld [vmem:[#allocation2 + $0xfa0] sm:$0xff]
        %v568 = vld [vmem:[#allocation2 + $0xfa8] sm:$0xff]
        %v569 = vld [vmem:[#allocation2 + $0x1040] sm:$0xff]
        %v570 = vld [vmem:[#allocation2 + $0x1048] sm:$0xff]
        %v571 = vld [vmem:[#allocation2 + $0x10e0] sm:$0xff]
        %v572 = vld [vmem:[#allocation2 + $0x10e8] sm:$0xff]
        %v573 = vld [vmem:[#allocation2 + $0x1180] sm:$0xff]
        %v574 = vld [vmem:[#allocation2 + $0x1188] sm:$0xff]
        %v575 = vld [vmem:[#allocation2 + $0x1220] sm:$0xff]
        %v576 = vld [vmem:[#allocation2 + $0x1228] sm:$0xff]
        %v577 = vld [vmem:[#allocation2 + $0x12c0] sm:$0xff]
        %v578 = vld [vmem:[#allocation2 + $0x12c8] sm:$0xff]
        %v579 = vld [vmem:[#allocation2 + $0x1360] sm:$0xff]
        %v580 = vld [vmem:[#allocation2 + $0x1368] sm:$0xff]
        %581 = vmatpush.msra.mxu0 %v547
        %582 = vmatpush.msra.mxu0 %v545
        %583 = vmatpush.msra.mxu0 %v543
        %584 = vmatpush.msra.mxu0 %v541
        %585 = vmatpush.msra.mxu0 %v539
        %586 = vmatpush.msra.mxu0 %v537
        %587 = vmatpush.msra.mxu0 %v535
        %588 = vmatpush.msra.mxu0 %v533
        %589 = vmatpush.msra.mxu0 %v531
        %590 = vmatpush.msra.mxu0 %v529
        %591 = vmatpush.msra.mxu0 %v527
        %592 = vmatpush.msra.mxu0 %v525
        %593 = vmatpush.msra.mxu0 %v523
        %594 = vmatpush.msra.mxu0 %v521
        %595 = vmatpush.msra.mxu0 %v519
        %596 = vmatpush.msra.mxu0 %v517
        %597 = vmatmul.f32.gmra.mxu0 %v513
        %v598 = vpop.f32.mrf.mxu0
        %v599 = vadd.f32 0.0, %v598
        %600 = vmatmul.f32.gmra.mxu0 %v515
        %v601 = vpop.f32.mrf.mxu0
        %v602 = vadd.f32 0.0, %v601
        %603 = vdwg.mxu0
        %604 = vmatpush.msra.mxu0 %v579
        %605 = vmatpush.msra.mxu0 %v577
        %606 = vmatpush.msra.mxu0 %v575
        %607 = vmatpush.msra.mxu0 %v573
        %608 = vmatpush.msra.mxu0 %v571
        %609 = vmatpush.msra.mxu0 %v569
        %610 = vmatpush.msra.mxu0 %v567
        %611 = vmatpush.msra.mxu0 %v565
        %612 = vmatpush.msra.mxu0 %v563
        %613 = vmatpush.msra.mxu0 %v561
        %614 = vmatpush.msra.mxu0 %v559
        %615 = vmatpush.msra.mxu0 %v557
        %616 = vmatpush.msra.mxu0 %v555
        %617 = vmatpush.msra.mxu0 %v553
        %618 = vmatpush.msra.mxu0 %v551
        %619 = vmatpush.msra.mxu0 %v549
        %620 = vmatmul.f32.gmra.mxu0 %v514
        %v621 = vpop.f32.mrf.mxu0
        %v622 = vadd.f32 %v599, %v621
        %623 = vmatmul.f32.gmra.mxu0 %v516
        %v624 = vpop.f32.mrf.mxu0
        %v625 = vadd.f32 %v602, %v624
        %626 = vdwg.mxu0
        %627 = vmatpush.msra.mxu0 %v548
        %628 = vmatpush.msra.mxu0 %v546
        %629 = vmatpush.msra.mxu0 %v544
        %630 = vmatpush.msra.mxu0 %v542
        %631 = vmatpush.msra.mxu0 %v540
        %632 = vmatpush.msra.mxu0 %v538
        %633 = vmatpush.msra.mxu0 %v536
        %634 = vmatpush.msra.mxu0 %v534
        %635 = vmatpush.msra.mxu0 %v532
        %636 = vmatpush.msra.mxu0 %v530
        %637 = vmatpush.msra.mxu0 %v528
        %638 = vmatpush.msra.mxu0 %v526
        %639 = vmatpush.msra.mxu0 %v524
        %640 = vmatpush.msra.mxu0 %v522
        %641 = vmatpush.msra.mxu0 %v520
        %642 = vmatpush.msra.mxu0 %v518
        %643 = vmatmul.f32.gmra.mxu0 %v513
        %v644 = vpop.f32.mrf.mxu0
        %v645 = vadd.f32 0.0, %v644
        %646 = vmatmul.f32.gmra.mxu0 %v515
        %v647 = vpop.f32.mrf.mxu0
        %v648 = vadd.f32 0.0, %v647
        %649 = vdwg.mxu0
        %650 = vmatpush.msra.mxu0 %v580
        %651 = vmatpush.msra.mxu0 %v578
        %652 = vmatpush.msra.mxu0 %v576
        %653 = vmatpush.msra.mxu0 %v574
        %654 = vmatpush.msra.mxu0 %v572
        %655 = vmatpush.msra.mxu0 %v570
        %656 = vmatpush.msra.mxu0 %v568
        %657 = vmatpush.msra.mxu0 %v566
        %658 = vmatpush.msra.mxu0 %v564
        %659 = vmatpush.msra.mxu0 %v562
        %660 = vmatpush.msra.mxu0 %v560
        %661 = vmatpush.msra.mxu0 %v558
        %662 = vmatpush.msra.mxu0 %v556
        %663 = vmatpush.msra.mxu0 %v554
        %664 = vmatpush.msra.mxu0 %v552
        %665 = vmatpush.msra.mxu0 %v550
        %666 = vmatmul.f32.gmra.mxu0 %v514
        %v667 = vpop.f32.mrf.mxu0
        %v668 = vadd.f32 %v645, %v667
        %669 = vmatmul.f32.gmra.mxu0 %v516
        %v670 = vpop.f32.mrf.mxu0
        %v671 = vadd.f32 %v648, %v670
        %672 = vdwg.mxu0
        %v673 = vand.u32 2147483647, %v622
        %v674 = vand.u32 2147483647, %v668
        %v675 = vand.u32 2147483647, %v625
        %v676 = vand.u32 2147483647, %v671
        %v677 = vadd.f32 %v673, %v674
        %678 = vadd.xlane.f32.xlu0 %v677
        %v679 = vpop.xlane.xlu0 %678
        %vm680 = vcmask 1040384
        %v681 = vsel %vm680, %v675, 0.0
        %v682 = vsel %vm680, %v676, 0.0
        %v683 = vadd.f32 %v681, %v682
        %684 = vadd.xlane.f32.xlu0 %v683
        %v685 = vpop.xlane.xlu0 %684
        %v686 = vmul.f32 %v622, %v622
        %v687 = vmul.f32 %v668, %v668
        %v688 = vmul.f32 %v625, %v625
        %v689 = vmul.f32 %v671, %v671
        %v690 = vadd.f32 %v686, %v687
        %691 = vadd.xlane.f32.xlu0 %v690
        %v692 = vpop.xlane.xlu0 %691
        %v693 = vsel %vm680, %v688, 0.0
        %v694 = vsel %vm680, %v689, 0.0
        %v695 = vadd.f32 %v693, %v694
        %696 = vadd.xlane.f32.xlu0 %v695
        %v697 = vpop.xlane.xlu0 %696
        %v698 = vld [vmem:[%s3] sm:$0xff]
        %v699 = vld [vmem:[%s3 + $0x8] sm:$0x1]
        %v700 = vmul.f32 %v679, %v698
        %v701 = vmul.f32 %v685, %v699
        %v702 = vadd.f32 %v700, 0.0
        %v703 = vadd.f32 %v701, 0.0
        %v704 = vld [vmem:[%s4] sm:$0xff]
        %v705 = vld [vmem:[%s4 + $0x8] sm:$0x1]
        %v706 = vmul.f32 %v692, %v704
        %v707 = vmul.f32 %v697, %v705
        %v708 = vadd.f32 %v702, %v706
        %v709 = vadd.f32 %v703, %v707
        %v710 = vld [vmem:[#allocation2 + $0x10] sm:$0xff]
        %v711 = vld [vmem:[#allocation2 + $0x18] sm:$0xff]
        %v712 = vld [vmem:[#allocation2 + $0xb0] sm:$0xff]
        %v713 = vld [vmem:[#allocation2 + $0xb8] sm:$0xff]
        %v714 = vld [vmem:[#allocation2 + $0x150] sm:$0xff]
        %v715 = vld [vmem:[#allocation2 + $0x158] sm:$0xff]
        %v716 = vld [vmem:[#allocation2 + $0x1f0] sm:$0xff]
        %v717 = vld [vmem:[#allocation2 + $0x1f8] sm:$0xff]
        %v718 = vld [vmem:[#allocation2 + $0x290] sm:$0xff]
        %v719 = vld [vmem:[#allocation2 + $0x298] sm:$0xff]
        %v720 = vld [vmem:[#allocation2 + $0x330] sm:$0xff]
        %v721 = vld [vmem:[#allocation2 + $0x338] sm:$0xff]
        %v722 = vld [vmem:[#allocation2 + $0x3d0] sm:$0xff]
        %v723 = vld [vmem:[#allocation2 + $0x3d8] sm:$0xff]
        %v724 = vld [vmem:[#allocation2 + $0x470] sm:$0xff]
        %v725 = vld [vmem:[#allocation2 + $0x478] sm:$0xff]
        %v726 = vld [vmem:[#allocation2 + $0x510] sm:$0xff]
        %v727 = vld [vmem:[#allocation2 + $0x518] sm:$0xff]
        %v728 = vld [vmem:[#allocation2 + $0x5b0] sm:$0xff]
        %v729 = vld [vmem:[#allocation2 + $0x5b8] sm:$0xff]
        %v730 = vld [vmem:[#allocation2 + $0x650] sm:$0xff]
        %v731 = vld [vmem:[#allocation2 + $0x658] sm:$0xff]
        %v732 = vld [vmem:[#allocation2 + $0x6f0] sm:$0xff]
        %v733 = vld [vmem:[#allocation2 + $0x6f8] sm:$0xff]
        %v734 = vld [vmem:[#allocation2 + $0x790] sm:$0xff]
        %v735 = vld [vmem:[#allocation2 + $0x798] sm:$0xff]
        %v736 = vld [vmem:[#allocation2 + $0x830] sm:$0xff]
        %v737 = vld [vmem:[#allocation2 + $0x838] sm:$0xff]
        %v738 = vld [vmem:[#allocation2 + $0x8d0] sm:$0xff]
        %v739 = vld [vmem:[#allocation2 + $0x8d8] sm:$0xff]
        %v740 = vld [vmem:[#allocation2 + $0x970] sm:$0xff]
        %v741 = vld [vmem:[#allocation2 + $0x978] sm:$0xff]
        %v742 = vld [vmem:[#allocation2 + $0xa10] sm:$0xff]
        %v743 = vld [vmem:[#allocation2 + $0xa18] sm:$0xff]
        %v744 = vld [vmem:[#allocation2 + $0xab0] sm:$0xff]
        %v745 = vld [vmem:[#allocation2 + $0xab8] sm:$0xff]
        %v746 = vld [vmem:[#allocation2 + $0xb50] sm:$0xff]
        %v747 = vld [vmem:[#allocation2 + $0xb58] sm:$0xff]
        %v748 = vld [vmem:[#allocation2 + $0xbf0] sm:$0xff]
        %v749 = vld [vmem:[#allocation2 + $0xbf8] sm:$0xff]
        %v750 = vld [vmem:[#allocation2 + $0xc90] sm:$0xff]
        %v751 = vld [vmem:[#allocation2 + $0xc98] sm:$0xff]
        %v752 = vld [vmem:[#allocation2 + $0xd30] sm:$0xff]
        %v753 = vld [vmem:[#allocation2 + $0xd38] sm:$0xff]
        %v754 = vld [vmem:[#allocation2 + $0xdd0] sm:$0xff]
        %v755 = vld [vmem:[#allocation2 + $0xdd8] sm:$0xff]
        %v756 = vld [vmem:[#allocation2 + $0xe70] sm:$0xff]
        %v757 = vld [vmem:[#allocation2 + $0xe78] sm:$0xff]
        %v758 = vld [vmem:[#allocation2 + $0xf10] sm:$0xff]
        %v759 = vld [vmem:[#allocation2 + $0xf18] sm:$0xff]
        %v760 = vld [vmem:[#allocation2 + $0xfb0] sm:$0xff]
        %v761 = vld [vmem:[#allocation2 + $0xfb8] sm:$0xff]
        %v762 = vld [vmem:[#allocation2 + $0x1050] sm:$0xff]
        %v763 = vld [vmem:[#allocation2 + $0x1058] sm:$0xff]
        %v764 = vld [vmem:[#allocation2 + $0x10f0] sm:$0xff]
        %v765 = vld [vmem:[#allocation2 + $0x10f8] sm:$0xff]
        %v766 = vld [vmem:[#allocation2 + $0x1190] sm:$0xff]
        %v767 = vld [vmem:[#allocation2 + $0x1198] sm:$0xff]
        %v768 = vld [vmem:[#allocation2 + $0x1230] sm:$0xff]
        %v769 = vld [vmem:[#allocation2 + $0x1238] sm:$0xff]
        %v770 = vld [vmem:[#allocation2 + $0x12d0] sm:$0xff]
        %v771 = vld [vmem:[#allocation2 + $0x12d8] sm:$0xff]
        %v772 = vld [vmem:[#allocation2 + $0x1370] sm:$0xff]
        %v773 = vld [vmem:[#allocation2 + $0x1378] sm:$0xff]
        %774 = vmatpush.msra.mxu0 %v740
        %775 = vmatpush.msra.mxu0 %v738
        %776 = vmatpush.msra.mxu0 %v736
        %777 = vmatpush.msra.mxu0 %v734
        %778 = vmatpush.msra.mxu0 %v732
        %779 = vmatpush.msra.mxu0 %v730
        %780 = vmatpush.msra.mxu0 %v728
        %781 = vmatpush.msra.mxu0 %v726
        %782 = vmatpush.msra.mxu0 %v724
        %783 = vmatpush.msra.mxu0 %v722
        %784 = vmatpush.msra.mxu0 %v720
        %785 = vmatpush.msra.mxu0 %v718
        %786 = vmatpush.msra.mxu0 %v716
        %787 = vmatpush.msra.mxu0 %v714
        %788 = vmatpush.msra.mxu0 %v712
        %789 = vmatpush.msra.mxu0 %v710
        %790 = vmatmul.f32.gmra.mxu0 %v513
        %v791 = vpop.f32.mrf.mxu0
        %v792 = vadd.f32 0.0, %v791
        %793 = vmatmul.f32.gmra.mxu0 %v515
        %v794 = vpop.f32.mrf.mxu0
        %v795 = vadd.f32 0.0, %v794
        %796 = vdwg.mxu0
        %797 = vmatpush.msra.mxu0 %v772
        %798 = vmatpush.msra.mxu0 %v770
        %799 = vmatpush.msra.mxu0 %v768
        %800 = vmatpush.msra.mxu0 %v766
        %801 = vmatpush.msra.mxu0 %v764
        %802 = vmatpush.msra.mxu0 %v762
        %803 = vmatpush.msra.mxu0 %v760
        %804 = vmatpush.msra.mxu0 %v758
        %805 = vmatpush.msra.mxu0 %v756
        %806 = vmatpush.msra.mxu0 %v754
        %807 = vmatpush.msra.mxu0 %v752
        %808 = vmatpush.msra.mxu0 %v750
        %809 = vmatpush.msra.mxu0 %v748
        %810 = vmatpush.msra.mxu0 %v746
        %811 = vmatpush.msra.mxu0 %v744
        %812 = vmatpush.msra.mxu0 %v742
        %813 = vmatmul.f32.gmra.mxu0 %v514
        %v814 = vpop.f32.mrf.mxu0
        %v815 = vadd.f32 %v792, %v814
        %816 = vmatmul.f32.gmra.mxu0 %v516
        %v817 = vpop.f32.mrf.mxu0
        %v818 = vadd.f32 %v795, %v817
        %819 = vdwg.mxu0
        %820 = vmatpush.msra.mxu0 %v741
        %821 = vmatpush.msra.mxu0 %v739
        %822 = vmatpush.msra.mxu0 %v737
        %823 = vmatpush.msra.mxu0 %v735
        %824 = vmatpush.msra.mxu0 %v733
        %825 = vmatpush.msra.mxu0 %v731
        %826 = vmatpush.msra.mxu0 %v729
        %827 = vmatpush.msra.mxu0 %v727
        %828 = vmatpush.msra.mxu0 %v725
        %829 = vmatpush.msra.mxu0 %v723
        %830 = vmatpush.msra.mxu0 %v721
        %831 = vmatpush.msra.mxu0 %v719
        %832 = vmatpush.msra.mxu0 %v717
        %833 = vmatpush.msra.mxu0 %v715
        %834 = vmatpush.msra.mxu0 %v713
        %835 = vmatpush.msra.mxu0 %v711
        %836 = vmatmul.f32.gmra.mxu0 %v513
        %v837 = vpop.f32.mrf.mxu0
        %v838 = vadd.f32 0.0, %v837
        %839 = vmatmul.f32.gmra.mxu0 %v515
        %v840 = vpop.f32.mrf.mxu0
        %v841 = vadd.f32 0.0, %v840
        %842 = vdwg.mxu0
        %843 = vmatpush.msra.mxu0 %v773
        %844 = vmatpush.msra.mxu0 %v771
        %845 = vmatpush.msra.mxu0 %v769
        %846 = vmatpush.msra.mxu0 %v767
        %847 = vmatpush.msra.mxu0 %v765
        %848 = vmatpush.msra.mxu0 %v763
        %849 = vmatpush.msra.mxu0 %v761
        %850 = vmatpush.msra.mxu0 %v759
        %851 = vmatpush.msra.mxu0 %v757
        %852 = vmatpush.msra.mxu0 %v755
        %853 = vmatpush.msra.mxu0 %v753
        %854 = vmatpush.msra.mxu0 %v751
        %855 = vmatpush.msra.mxu0 %v749
        %856 = vmatpush.msra.mxu0 %v747
        %857 = vmatpush.msra.mxu0 %v745
        %858 = vmatpush.msra.mxu0 %v743
        %859 = vmatmul.f32.gmra.mxu0 %v514
        %v860 = vpop.f32.mrf.mxu0
        %v861 = vadd.f32 %v838, %v860
        %862 = vmatmul.f32.gmra.mxu0 %v516
        %v863 = vpop.f32.mrf.mxu0
        %v864 = vadd.f32 %v841, %v863
        %865 = vdwg.mxu0
        %v866 = vand.u32 2147483647, %v815
        %v867 = vand.u32 2147483647, %v861
        %v868 = vand.u32 2147483647, %v818
        %v869 = vand.u32 2147483647, %v864
        %v870 = vadd.f32 %v866, %v867
        %871 = vadd.xlane.f32.xlu0 %v870
        %v872 = vpop.xlane.xlu0 %871
        %v873 = vsel %vm680, %v868, 0.0
        %v874 = vsel %vm680, %v869, 0.0
        %v875 = vadd.f32 %v873, %v874
        %876 = vadd.xlane.f32.xlu0 %v875
        %v877 = vpop.xlane.xlu0 %876
        %v878 = vmul.f32 %v815, %v815
        %v879 = vmul.f32 %v861, %v861
        %v880 = vmul.f32 %v818, %v818
        %v881 = vmul.f32 %v864, %v864
        %v882 = vadd.f32 %v878, %v879
        %883 = vadd.xlane.f32.xlu0 %v882
        %v884 = vpop.xlane.xlu0 %883
        %v885 = vsel %vm680, %v880, 0.0
        %v886 = vsel %vm680, %v881, 0.0
        %v887 = vadd.f32 %v885, %v886
        %888 = vadd.xlane.f32.xlu0 %v887
        %v889 = vpop.xlane.xlu0 %888
        %s890 = scalar_lea.vmem %s3, 16
        %v891 = vld [vmem:[%s890] sm:$0xff]
        %v892 = vld [vmem:[%s890 + $0x8] sm:$0x1]
        %v893 = vmul.f32 %v872, %v891
        %v894 = vmul.f32 %v877, %v892
        %v895 = vadd.f32 %v708, %v893
        %v896 = vadd.f32 %v709, %v894
        %s897 = scalar_lea.vmem %s4, 16
        %v898 = vld [vmem:[%s897] sm:$0xff]
        %v899 = vld [vmem:[%s897 + $0x8] sm:$0x1]
        %v900 = vmul.f32 %v884, %v898
        %v901 = vmul.f32 %v889, %v899
        %v902 = vadd.f32 %v895, %v900
        %v903 = vadd.f32 %v896, %v901
        %v904 = vld [vmem:[#allocation2 + $0x20] sm:$0xff]
        %v905 = vld [vmem:[#allocation2 + $0x28] sm:$0xff]
        %v906 = vld [vmem:[#allocation2 + $0xc0] sm:$0xff]
        %v907 = vld [vmem:[#allocation2 + $0xc8] sm:$0xff]
        %v908 = vld [vmem:[#allocation2 + $0x160] sm:$0xff]
        %v909 = vld [vmem:[#allocation2 + $0x168] sm:$0xff]
        %v910 = vld [vmem:[#allocation2 + $0x200] sm:$0xff]
        %v911 = vld [vmem:[#allocation2 + $0x208] sm:$0xff]
        %v912 = vld [vmem:[#allocation2 + $0x2a0] sm:$0xff]
        %v913 = vld [vmem:[#allocation2 + $0x2a8] sm:$0xff]
        %v914 = vld [vmem:[#allocation2 + $0x340] sm:$0xff]
        %v915 = vld [vmem:[#allocation2 + $0x348] sm:$0xff]
        %v916 = vld [vmem:[#allocation2 + $0x3e0] sm:$0xff]
        %v917 = vld [vmem:[#allocation2 + $0x3e8] sm:$0xff]
        %v918 = vld [vmem:[#allocation2 + $0x480] sm:$0xff]
        %v919 = vld [vmem:[#allocation2 + $0x488] sm:$0xff]
        %v920 = vld [vmem:[#allocation2 + $0x520] sm:$0xff]
        %v921 = vld [vmem:[#allocation2 + $0x528] sm:$0xff]
        %v922 = vld [vmem:[#allocation2 + $0x5c0] sm:$0xff]
        %v923 = vld [vmem:[#allocation2 + $0x5c8] sm:$0xff]
        %v924 = vld [vmem:[#allocation2 + $0x660] sm:$0xff]
        %v925 = vld [vmem:[#allocation2 + $0x668] sm:$0xff]
        %v926 = vld [vmem:[#allocation2 + $0x700] sm:$0xff]
        %v927 = vld [vmem:[#allocation2 + $0x708] sm:$0xff]
        %v928 = vld [vmem:[#allocation2 + $0x7a0] sm:$0xff]
        %v929 = vld [vmem:[#allocation2 + $0x7a8] sm:$0xff]
        %v930 = vld [vmem:[#allocation2 + $0x840] sm:$0xff]
        %v931 = vld [vmem:[#allocation2 + $0x848] sm:$0xff]
        %v932 = vld [vmem:[#allocation2 + $0x8e0] sm:$0xff]
        %v933 = vld [vmem:[#allocation2 + $0x8e8] sm:$0xff]
        %v934 = vld [vmem:[#allocation2 + $0x980] sm:$0xff]
        %v935 = vld [vmem:[#allocation2 + $0x988] sm:$0xff]
        %v936 = vld [vmem:[#allocation2 + $0xa20] sm:$0xff]
        %v937 = vld [vmem:[#allocation2 + $0xa28] sm:$0xff]
        %v938 = vld [vmem:[#allocation2 + $0xac0] sm:$0xff]
        %v939 = vld [vmem:[#allocation2 + $0xac8] sm:$0xff]
        %v940 = vld [vmem:[#allocation2 + $0xb60] sm:$0xff]
        %v941 = vld [vmem:[#allocation2 + $0xb68] sm:$0xff]
        %v942 = vld [vmem:[#allocation2 + $0xc00] sm:$0xff]
        %v943 = vld [vmem:[#allocation2 + $0xc08] sm:$0xff]
        %v944 = vld [vmem:[#allocation2 + $0xca0] sm:$0xff]
        %v945 = vld [vmem:[#allocation2 + $0xca8] sm:$0xff]
        %v946 = vld [vmem:[#allocation2 + $0xd40] sm:$0xff]
        %v947 = vld [vmem:[#allocation2 + $0xd48] sm:$0xff]
        %v948 = vld [vmem:[#allocation2 + $0xde0] sm:$0xff]
        %v949 = vld [vmem:[#allocation2 + $0xde8] sm:$0xff]
        %v950 = vld [vmem:[#allocation2 + $0xe80] sm:$0xff]
        %v951 = vld [vmem:[#allocation2 + $0xe88] sm:$0xff]
        %v952 = vld [vmem:[#allocation2 + $0xf20] sm:$0xff]
        %v953 = vld [vmem:[#allocation2 + $0xf28] sm:$0xff]
        %v954 = vld [vmem:[#allocation2 + $0xfc0] sm:$0xff]
        %v955 = vld [vmem:[#allocation2 + $0xfc8] sm:$0xff]
        %v956 = vld [vmem:[#allocation2 + $0x1060] sm:$0xff]
        %v957 = vld [vmem:[#allocation2 + $0x1068] sm:$0xff]
        %v958 = vld [vmem:[#allocation2 + $0x1100] sm:$0xff]
        %v959 = vld [vmem:[#allocation2 + $0x1108] sm:$0xff]
        %v960 = vld [vmem:[#allocation2 + $0x11a0] sm:$0xff]
        %v961 = vld [vmem:[#allocation2 + $0x11a8] sm:$0xff]
        %v962 = vld [vmem:[#allocation2 + $0x1240] sm:$0xff]
        %v963 = vld [vmem:[#allocation2 + $0x1248] sm:$0xff]
        %v964 = vld [vmem:[#allocation2 + $0x12e0] sm:$0xff]
        %v965 = vld [vmem:[#allocation2 + $0x12e8] sm:$0xff]
        %v966 = vld [vmem:[#allocation2 + $0x1380] sm:$0xff]
        %v967 = vld [vmem:[#allocation2 + $0x1388] sm:$0xff]
        %968 = vmatpush.msra.mxu0 %v934
        %969 = vmatpush.msra.mxu0 %v932
        %970 = vmatpush.msra.mxu0 %v930
        %971 = vmatpush.msra.mxu0 %v928
        %972 = vmatpush.msra.mxu0 %v926
        %973 = vmatpush.msra.mxu0 %v924
        %974 = vmatpush.msra.mxu0 %v922
        %975 = vmatpush.msra.mxu0 %v920
        %976 = vmatpush.msra.mxu0 %v918
        %977 = vmatpush.msra.mxu0 %v916
        %978 = vmatpush.msra.mxu0 %v914
        %979 = vmatpush.msra.mxu0 %v912
        %980 = vmatpush.msra.mxu0 %v910
        %981 = vmatpush.msra.mxu0 %v908
        %982 = vmatpush.msra.mxu0 %v906
        %983 = vmatpush.msra.mxu0 %v904
        %984 = vmatmul.f32.gmra.mxu0 %v513
        %v985 = vpop.f32.mrf.mxu0
        %v986 = vadd.f32 0.0, %v985
        %987 = vmatmul.f32.gmra.mxu0 %v515
        %v988 = vpop.f32.mrf.mxu0
        %v989 = vadd.f32 0.0, %v988
        %990 = vdwg.mxu0
        %991 = vmatpush.msra.mxu0 %v966
        %992 = vmatpush.msra.mxu0 %v964
        %993 = vmatpush.msra.mxu0 %v962
        %994 = vmatpush.msra.mxu0 %v960
        %995 = vmatpush.msra.mxu0 %v958
        %996 = vmatpush.msra.mxu0 %v956
        %997 = vmatpush.msra.mxu0 %v954
        %998 = vmatpush.msra.mxu0 %v952
        %999 = vmatpush.msra.mxu0 %v950
        %1000 = vmatpush.msra.mxu0 %v948
        %1001 = vmatpush.msra.mxu0 %v946
        %1002 = vmatpush.msra.mxu0 %v944
        %1003 = vmatpush.msra.mxu0 %v942
        %1004 = vmatpush.msra.mxu0 %v940
        %1005 = vmatpush.msra.mxu0 %v938
        %1006 = vmatpush.msra.mxu0 %v936
        %1007 = vmatmul.f32.gmra.mxu0 %v514
        %v1008 = vpop.f32.mrf.mxu0
        %v1009 = vadd.f32 %v986, %v1008
        %1010 = vmatmul.f32.gmra.mxu0 %v516
        %v1011 = vpop.f32.mrf.mxu0
        %v1012 = vadd.f32 %v989, %v1011
        %1013 = vdwg.mxu0
        %1014 = vmatpush.msra.mxu0 %v935
        %1015 = vmatpush.msra.mxu0 %v933
        %1016 = vmatpush.msra.mxu0 %v931
        %1017 = vmatpush.msra.mxu0 %v929
        %1018 = vmatpush.msra.mxu0 %v927
        %1019 = vmatpush.msra.mxu0 %v925
        %1020 = vmatpush.msra.mxu0 %v923
        %1021 = vmatpush.msra.mxu0 %v921
        %1022 = vmatpush.msra.mxu0 %v919
        %1023 = vmatpush.msra.mxu0 %v917
        %1024 = vmatpush.msra.mxu0 %v915
        %1025 = vmatpush.msra.mxu0 %v913
        %1026 = vmatpush.msra.mxu0 %v911
        %1027 = vmatpush.msra.mxu0 %v909
        %1028 = vmatpush.msra.mxu0 %v907
        %1029 = vmatpush.msra.mxu0 %v905
        %1030 = vmatmul.f32.gmra.mxu0 %v513
        %v1031 = vpop.f32.mrf.mxu0
        %v1032 = vadd.f32 0.0, %v1031
        %1033 = vmatmul.f32.gmra.mxu0 %v515
        %v1034 = vpop.f32.mrf.mxu0
        %v1035 = vadd.f32 0.0, %v1034
        %1036 = vdwg.mxu0
        %1037 = vmatpush.msra.mxu0 %v967
        %1038 = vmatpush.msra.mxu0 %v965
        %1039 = vmatpush.msra.mxu0 %v963
        %1040 = vmatpush.msra.mxu0 %v961
        %1041 = vmatpush.msra.mxu0 %v959
        %1042 = vmatpush.msra.mxu0 %v957
        %1043 = vmatpush.msra.mxu0 %v955
        %1044 = vmatpush.msra.mxu0 %v953
        %1045 = vmatpush.msra.mxu0 %v951
        %1046 = vmatpush.msra.mxu0 %v949
        %1047 = vmatpush.msra.mxu0 %v947
        %1048 = vmatpush.msra.mxu0 %v945
        %1049 = vmatpush.msra.mxu0 %v943
        %1050 = vmatpush.msra.mxu0 %v941
        %1051 = vmatpush.msra.mxu0 %v939
        %1052 = vmatpush.msra.mxu0 %v937
        %1053 = vmatmul.f32.gmra.mxu0 %v514
        %v1054 = vpop.f32.mrf.mxu0
        %v1055 = vadd.f32 %v1032, %v1054
        %1056 = vmatmul.f32.gmra.mxu0 %v516
        %v1057 = vpop.f32.mrf.mxu0
        %v1058 = vadd.f32 %v1035, %v1057
        %1059 = vdwg.mxu0
        %v1060 = vand.u32 2147483647, %v1009
        %v1061 = vand.u32 2147483647, %v1055
        %v1062 = vand.u32 2147483647, %v1012
        %v1063 = vand.u32 2147483647, %v1058
        %v1064 = vadd.f32 %v1060, %v1061
        %1065 = vadd.xlane.f32.xlu0 %v1064
        %v1066 = vpop.xlane.xlu0 %1065
        %v1067 = vsel %vm680, %v1062, 0.0
        %v1068 = vsel %vm680, %v1063, 0.0
        %v1069 = vadd.f32 %v1067, %v1068
        %1070 = vadd.xlane.f32.xlu0 %v1069
        %v1071 = vpop.xlane.xlu0 %1070
        %v1072 = vmul.f32 %v1009, %v1009
        %v1073 = vmul.f32 %v1055, %v1055
        %v1074 = vmul.f32 %v1012, %v1012
        %v1075 = vmul.f32 %v1058, %v1058
        %v1076 = vadd.f32 %v1072, %v1073
        %1077 = vadd.xlane.f32.xlu0 %v1076
        %v1078 = vpop.xlane.xlu0 %1077
        %v1079 = vsel %vm680, %v1074, 0.0
        %v1080 = vsel %vm680, %v1075, 0.0
        %v1081 = vadd.f32 %v1079, %v1080
        %1082 = vadd.xlane.f32.xlu0 %v1081
        %v1083 = vpop.xlane.xlu0 %1082
        %s1084 = scalar_lea.vmem %s3, 32
        %v1085 = vld [vmem:[%s1084] sm:$0xff]
        %v1086 = vld [vmem:[%s1084 + $0x8] sm:$0x1]
        %v1087 = vmul.f32 %v1066, %v1085
        %v1088 = vmul.f32 %v1071, %v1086
        %v1089 = vadd.f32 %v902, %v1087
        %v1090 = vadd.f32 %v903, %v1088
        %s1091 = scalar_lea.vmem %s4, 32
        %v1092 = vld [vmem:[%s1091] sm:$0xff]
        %v1093 = vld [vmem:[%s1091 + $0x8] sm:$0x1]
        %v1094 = vmul.f32 %v1078, %v1092
        %v1095 = vmul.f32 %v1083, %v1093
        %v1096 = vadd.f32 %v1089, %v1094
        %v1097 = vadd.f32 %v1090, %v1095
        %v1098 = vld [vmem:[#allocation2 + $0x30] sm:$0xff]
        %v1099 = vld [vmem:[#allocation2 + $0x38] sm:$0xff]
        %v1100 = vld [vmem:[#allocation2 + $0xd0] sm:$0xff]
        %v1101 = vld [vmem:[#allocation2 + $0xd8] sm:$0xff]
        %v1102 = vld [vmem:[#allocation2 + $0x170] sm:$0xff]
        %v1103 = vld [vmem:[#allocation2 + $0x178] sm:$0xff]
        %v1104 = vld [vmem:[#allocation2 + $0x210] sm:$0xff]
        %v1105 = vld [vmem:[#allocation2 + $0x218] sm:$0xff]
        %v1106 = vld [vmem:[#allocation2 + $0x2b0] sm:$0xff]
        %v1107 = vld [vmem:[#allocation2 + $0x2b8] sm:$0xff]
        %v1108 = vld [vmem:[#allocation2 + $0x350] sm:$0xff]
        %v1109 = vld [vmem:[#allocation2 + $0x358] sm:$0xff]
        %v1110 = vld [vmem:[#allocation2 + $0x3f0] sm:$0xff]
        %v1111 = vld [vmem:[#allocation2 + $0x3f8] sm:$0xff]
        %v1112 = vld [vmem:[#allocation2 + $0x490] sm:$0xff]
        %v1113 = vld [vmem:[#allocation2 + $0x498] sm:$0xff]
        %v1114 = vld [vmem:[#allocation2 + $0x530] sm:$0xff]
        %v1115 = vld [vmem:[#allocation2 + $0x538] sm:$0xff]
        %v1116 = vld [vmem:[#allocation2 + $0x5d0] sm:$0xff]
        %v1117 = vld [vmem:[#allocation2 + $0x5d8] sm:$0xff]
        %v1118 = vld [vmem:[#allocation2 + $0x670] sm:$0xff]
        %v1119 = vld [vmem:[#allocation2 + $0x678] sm:$0xff]
        %v1120 = vld [vmem:[#allocation2 + $0x710] sm:$0xff]
        %v1121 = vld [vmem:[#allocation2 + $0x718] sm:$0xff]
        %v1122 = vld [vmem:[#allocation2 + $0x7b0] sm:$0xff]
        %v1123 = vld [vmem:[#allocation2 + $0x7b8] sm:$0xff]
        %v1124 = vld [vmem:[#allocation2 + $0x850] sm:$0xff]
        %v1125 = vld [vmem:[#allocation2 + $0x858] sm:$0xff]
        %v1126 = vld [vmem:[#allocation2 + $0x8f0] sm:$0xff]
        %v1127 = vld [vmem:[#allocation2 + $0x8f8] sm:$0xff]
        %v1128 = vld [vmem:[#allocation2 + $0x990] sm:$0xff]
        %v1129 = vld [vmem:[#allocation2 + $0x998] sm:$0xff]
        %v1130 = vld [vmem:[#allocation2 + $0xa30] sm:$0xff]
        %v1131 = vld [vmem:[#allocation2 + $0xa38] sm:$0xff]
        %v1132 = vld [vmem:[#allocation2 + $0xad0] sm:$0xff]
        %v1133 = vld [vmem:[#allocation2 + $0xad8] sm:$0xff]
        %v1134 = vld [vmem:[#allocation2 + $0xb70] sm:$0xff]
        %v1135 = vld [vmem:[#allocation2 + $0xb78] sm:$0xff]
        %v1136 = vld [vmem:[#allocation2 + $0xc10] sm:$0xff]
        %v1137 = vld [vmem:[#allocation2 + $0xc18] sm:$0xff]
        %v1138 = vld [vmem:[#allocation2 + $0xcb0] sm:$0xff]
        %v1139 = vld [vmem:[#allocation2 + $0xcb8] sm:$0xff]
        %v1140 = vld [vmem:[#allocation2 + $0xd50] sm:$0xff]
        %v1141 = vld [vmem:[#allocation2 + $0xd58] sm:$0xff]
        %v1142 = vld [vmem:[#allocation2 + $0xdf0] sm:$0xff]
        %v1143 = vld [vmem:[#allocation2 + $0xdf8] sm:$0xff]
        %v1144 = vld [vmem:[#allocation2 + $0xe90] sm:$0xff]
        %v1145 = vld [vmem:[#allocation2 + $0xe98] sm:$0xff]
        %v1146 = vld [vmem:[#allocation2 + $0xf30] sm:$0xff]
        %v1147 = vld [vmem:[#allocation2 + $0xf38] sm:$0xff]
        %v1148 = vld [vmem:[#allocation2 + $0xfd0] sm:$0xff]
        %v1149 = vld [vmem:[#allocation2 + $0xfd8] sm:$0xff]
        %v1150 = vld [vmem:[#allocation2 + $0x1070] sm:$0xff]
        %v1151 = vld [vmem:[#allocation2 + $0x1078] sm:$0xff]
        %v1152 = vld [vmem:[#allocation2 + $0x1110] sm:$0xff]
        %v1153 = vld [vmem:[#allocation2 + $0x1118] sm:$0xff]
        %v1154 = vld [vmem:[#allocation2 + $0x11b0] sm:$0xff]
        %v1155 = vld [vmem:[#allocation2 + $0x11b8] sm:$0xff]
        %v1156 = vld [vmem:[#allocation2 + $0x1250] sm:$0xff]
        %v1157 = vld [vmem:[#allocation2 + $0x1258] sm:$0xff]
        %v1158 = vld [vmem:[#allocation2 + $0x12f0] sm:$0xff]
        %v1159 = vld [vmem:[#allocation2 + $0x12f8] sm:$0xff]
        %v1160 = vld [vmem:[#allocation2 + $0x1390] sm:$0xff]
        %v1161 = vld [vmem:[#allocation2 + $0x1398] sm:$0xff]
        %1162 = vmatpush.msra.mxu0 %v1128
        %1163 = vmatpush.msra.mxu0 %v1126
        %1164 = vmatpush.msra.mxu0 %v1124
        %1165 = vmatpush.msra.mxu0 %v1122
        %1166 = vmatpush.msra.mxu0 %v1120
        %1167 = vmatpush.msra.mxu0 %v1118
        %1168 = vmatpush.msra.mxu0 %v1116
        %1169 = vmatpush.msra.mxu0 %v1114
        %1170 = vmatpush.msra.mxu0 %v1112
        %1171 = vmatpush.msra.mxu0 %v1110
        %1172 = vmatpush.msra.mxu0 %v1108
        %1173 = vmatpush.msra.mxu0 %v1106
        %1174 = vmatpush.msra.mxu0 %v1104
        %1175 = vmatpush.msra.mxu0 %v1102
        %1176 = vmatpush.msra.mxu0 %v1100
        %1177 = vmatpush.msra.mxu0 %v1098
        %1178 = vmatmul.f32.gmra.mxu0 %v513
        %v1179 = vpop.f32.mrf.mxu0
        %v1180 = vadd.f32 0.0, %v1179
        %1181 = vmatmul.f32.gmra.mxu0 %v515
        %v1182 = vpop.f32.mrf.mxu0
        %v1183 = vadd.f32 0.0, %v1182
        %1184 = vdwg.mxu0
        %1185 = vmatpush.msra.mxu0 %v1160
        %1186 = vmatpush.msra.mxu0 %v1158
        %1187 = vmatpush.msra.mxu0 %v1156
        %1188 = vmatpush.msra.mxu0 %v1154
        %1189 = vmatpush.msra.mxu0 %v1152
        %1190 = vmatpush.msra.mxu0 %v1150
        %1191 = vmatpush.msra.mxu0 %v1148
        %1192 = vmatpush.msra.mxu0 %v1146
        %1193 = vmatpush.msra.mxu0 %v1144
        %1194 = vmatpush.msra.mxu0 %v1142
        %1195 = vmatpush.msra.mxu0 %v1140
        %1196 = vmatpush.msra.mxu0 %v1138
        %1197 = vmatpush.msra.mxu0 %v1136
        %1198 = vmatpush.msra.mxu0 %v1134
        %1199 = vmatpush.msra.mxu0 %v1132
        %1200 = vmatpush.msra.mxu0 %v1130
        %1201 = vmatmul.f32.gmra.mxu0 %v514
        %v1202 = vpop.f32.mrf.mxu0
        %v1203 = vadd.f32 %v1180, %v1202
        %1204 = vmatmul.f32.gmra.mxu0 %v516
        %v1205 = vpop.f32.mrf.mxu0
        %v1206 = vadd.f32 %v1183, %v1205
        %1207 = vdwg.mxu0
        %1208 = vmatpush.msra.mxu0 %v1129
        %1209 = vmatpush.msra.mxu0 %v1127
        %1210 = vmatpush.msra.mxu0 %v1125
        %1211 = vmatpush.msra.mxu0 %v1123
        %1212 = vmatpush.msra.mxu0 %v1121
        %1213 = vmatpush.msra.mxu0 %v1119
        %1214 = vmatpush.msra.mxu0 %v1117
        %1215 = vmatpush.msra.mxu0 %v1115
        %1216 = vmatpush.msra.mxu0 %v1113
        %1217 = vmatpush.msra.mxu0 %v1111
        %1218 = vmatpush.msra.mxu0 %v1109
        %1219 = vmatpush.msra.mxu0 %v1107
        %1220 = vmatpush.msra.mxu0 %v1105
        %1221 = vmatpush.msra.mxu0 %v1103
        %1222 = vmatpush.msra.mxu0 %v1101
        %1223 = vmatpush.msra.mxu0 %v1099
        %1224 = vmatmul.f32.gmra.mxu0 %v513
        %v1225 = vpop.f32.mrf.mxu0
        %v1226 = vadd.f32 0.0, %v1225
        %1227 = vmatmul.f32.gmra.mxu0 %v515
        %v1228 = vpop.f32.mrf.mxu0
        %v1229 = vadd.f32 0.0, %v1228
        %1230 = vdwg.mxu0
        %1231 = vmatpush.msra.mxu0 %v1161
        %1232 = vmatpush.msra.mxu0 %v1159
        %1233 = vmatpush.msra.mxu0 %v1157
        %1234 = vmatpush.msra.mxu0 %v1155
        %1235 = vmatpush.msra.mxu0 %v1153
        %1236 = vmatpush.msra.mxu0 %v1151
        %1237 = vmatpush.msra.mxu0 %v1149
        %1238 = vmatpush.msra.mxu0 %v1147
        %1239 = vmatpush.msra.mxu0 %v1145
        %1240 = vmatpush.msra.mxu0 %v1143
        %1241 = vmatpush.msra.mxu0 %v1141
        %1242 = vmatpush.msra.mxu0 %v1139
        %1243 = vmatpush.msra.mxu0 %v1137
        %1244 = vmatpush.msra.mxu0 %v1135
        %1245 = vmatpush.msra.mxu0 %v1133
        %1246 = vmatpush.msra.mxu0 %v1131
        %1247 = vmatmul.f32.gmra.mxu0 %v514
        %v1248 = vpop.f32.mrf.mxu0
        %v1249 = vadd.f32 %v1226, %v1248
        %1250 = vmatmul.f32.gmra.mxu0 %v516
        %v1251 = vpop.f32.mrf.mxu0
        %v1252 = vadd.f32 %v1229, %v1251
        %1253 = vdwg.mxu0
        %v1254 = vand.u32 2147483647, %v1203
        %v1255 = vand.u32 2147483647, %v1249
        %v1256 = vand.u32 2147483647, %v1206
        %v1257 = vand.u32 2147483647, %v1252
        %v1258 = vadd.f32 %v1254, %v1255
        %1259 = vadd.xlane.f32.xlu0 %v1258
        %v1260 = vpop.xlane.xlu0 %1259
        %v1261 = vsel %vm680, %v1256, 0.0
        %v1262 = vsel %vm680, %v1257, 0.0
        %v1263 = vadd.f32 %v1261, %v1262
        %1264 = vadd.xlane.f32.xlu0 %v1263
        %v1265 = vpop.xlane.xlu0 %1264
        %v1266 = vmul.f32 %v1203, %v1203
        %v1267 = vmul.f32 %v1249, %v1249
        %v1268 = vmul.f32 %v1206, %v1206
        %v1269 = vmul.f32 %v1252, %v1252
        %v1270 = vadd.f32 %v1266, %v1267
        %1271 = vadd.xlane.f32.xlu0 %v1270
        %v1272 = vpop.xlane.xlu0 %1271
        %v1273 = vsel %vm680, %v1268, 0.0
        %v1274 = vsel %vm680, %v1269, 0.0
        %v1275 = vadd.f32 %v1273, %v1274
        %1276 = vadd.xlane.f32.xlu0 %v1275
        %v1277 = vpop.xlane.xlu0 %1276
        %s1278 = scalar_lea.vmem %s3, 48
        %v1279 = vld [vmem:[%s1278] sm:$0xff]
        %v1280 = vld [vmem:[%s1278 + $0x8] sm:$0x1]
        %v1281 = vmul.f32 %v1260, %v1279
        %v1282 = vmul.f32 %v1265, %v1280
        %v1283 = vadd.f32 %v1096, %v1281
        %v1284 = vadd.f32 %v1097, %v1282
        %s1285 = scalar_lea.vmem %s4, 48
        %v1286 = vld [vmem:[%s1285] sm:$0xff]
        %v1287 = vld [vmem:[%s1285 + $0x8] sm:$0x1]
        %v1288 = vmul.f32 %v1272, %v1286
        %v1289 = vmul.f32 %v1277, %v1287
        %v1290 = vadd.f32 %v1283, %v1288
        %v1291 = vadd.f32 %v1284, %v1289
        %v1292 = vld [vmem:[#allocation2 + $0x40] sm:$0xff]
        %v1293 = vld [vmem:[#allocation2 + $0x48] sm:$0xff]
        %v1294 = vld [vmem:[#allocation2 + $0xe0] sm:$0xff]
        %v1295 = vld [vmem:[#allocation2 + $0xe8] sm:$0xff]
        %v1296 = vld [vmem:[#allocation2 + $0x180] sm:$0xff]
        %v1297 = vld [vmem:[#allocation2 + $0x188] sm:$0xff]
        %v1298 = vld [vmem:[#allocation2 + $0x220] sm:$0xff]
        %v1299 = vld [vmem:[#allocation2 + $0x228] sm:$0xff]
        %v1300 = vld [vmem:[#allocation2 + $0x2c0] sm:$0xff]
        %v1301 = vld [vmem:[#allocation2 + $0x2c8] sm:$0xff]
        %v1302 = vld [vmem:[#allocation2 + $0x360] sm:$0xff]
        %v1303 = vld [vmem:[#allocation2 + $0x368] sm:$0xff]
        %v1304 = vld [vmem:[#allocation2 + $0x400] sm:$0xff]
        %v1305 = vld [vmem:[#allocation2 + $0x408] sm:$0xff]
        %v1306 = vld [vmem:[#allocation2 + $0x4a0] sm:$0xff]
        %v1307 = vld [vmem:[#allocation2 + $0x4a8] sm:$0xff]
        %v1308 = vld [vmem:[#allocation2 + $0x540] sm:$0xff]
        %v1309 = vld [vmem:[#allocation2 + $0x548] sm:$0xff]
        %v1310 = vld [vmem:[#allocation2 + $0x5e0] sm:$0xff]
        %v1311 = vld [vmem:[#allocation2 + $0x5e8] sm:$0xff]
        %v1312 = vld [vmem:[#allocation2 + $0x680] sm:$0xff]
        %v1313 = vld [vmem:[#allocation2 + $0x688] sm:$0xff]
        %v1314 = vld [vmem:[#allocation2 + $0x720] sm:$0xff]
        %v1315 = vld [vmem:[#allocation2 + $0x728] sm:$0xff]
        %v1316 = vld [vmem:[#allocation2 + $0x7c0] sm:$0xff]
        %v1317 = vld [vmem:[#allocation2 + $0x7c8] sm:$0xff]
        %v1318 = vld [vmem:[#allocation2 + $0x860] sm:$0xff]
        %v1319 = vld [vmem:[#allocation2 + $0x868] sm:$0xff]
        %v1320 = vld [vmem:[#allocation2 + $0x900] sm:$0xff]
        %v1321 = vld [vmem:[#allocation2 + $0x908] sm:$0xff]
        %v1322 = vld [vmem:[#allocation2 + $0x9a0] sm:$0xff]
        %v1323 = vld [vmem:[#allocation2 + $0x9a8] sm:$0xff]
        %v1324 = vld [vmem:[#allocation2 + $0xa40] sm:$0xff]
        %v1325 = vld [vmem:[#allocation2 + $0xa48] sm:$0xff]
        %v1326 = vld [vmem:[#allocation2 + $0xae0] sm:$0xff]
        %v1327 = vld [vmem:[#allocation2 + $0xae8] sm:$0xff]
        %v1328 = vld [vmem:[#allocation2 + $0xb80] sm:$0xff]
        %v1329 = vld [vmem:[#allocation2 + $0xb88] sm:$0xff]
        %v1330 = vld [vmem:[#allocation2 + $0xc20] sm:$0xff]
        %v1331 = vld [vmem:[#allocation2 + $0xc28] sm:$0xff]
        %v1332 = vld [vmem:[#allocation2 + $0xcc0] sm:$0xff]
        %v1333 = vld [vmem:[#allocation2 + $0xcc8] sm:$0xff]
        %v1334 = vld [vmem:[#allocation2 + $0xd60] sm:$0xff]
        %v1335 = vld [vmem:[#allocation2 + $0xd68] sm:$0xff]
        %v1336 = vld [vmem:[#allocation2 + $0xe00] sm:$0xff]
        %v1337 = vld [vmem:[#allocation2 + $0xe08] sm:$0xff]
        %v1338 = vld [vmem:[#allocation2 + $0xea0] sm:$0xff]
        %v1339 = vld [vmem:[#allocation2 + $0xea8] sm:$0xff]
        %v1340 = vld [vmem:[#allocation2 + $0xf40] sm:$0xff]
        %v1341 = vld [vmem:[#allocation2 + $0xf48] sm:$0xff]
        %v1342 = vld [vmem:[#allocation2 + $0xfe0] sm:$0xff]
        %v1343 = vld [vmem:[#allocation2 + $0xfe8] sm:$0xff]
        %v1344 = vld [vmem:[#allocation2 + $0x1080] sm:$0xff]
        %v1345 = vld [vmem:[#allocation2 + $0x1088] sm:$0xff]
        %v1346 = vld [vmem:[#allocation2 + $0x1120] sm:$0xff]
        %v1347 = vld [vmem:[#allocation2 + $0x1128] sm:$0xff]
        %v1348 = vld [vmem:[#allocation2 + $0x11c0] sm:$0xff]
        %v1349 = vld [vmem:[#allocation2 + $0x11c8] sm:$0xff]
        %v1350 = vld [vmem:[#allocation2 + $0x1260] sm:$0xff]
        %v1351 = vld [vmem:[#allocation2 + $0x1268] sm:$0xff]
        %v1352 = vld [vmem:[#allocation2 + $0x1300] sm:$0xff]
        %v1353 = vld [vmem:[#allocation2 + $0x1308] sm:$0xff]
        %v1354 = vld [vmem:[#allocation2 + $0x13a0] sm:$0xff]
        %v1355 = vld [vmem:[#allocation2 + $0x13a8] sm:$0xff]
        %1356 = vmatpush.msra.mxu0 %v1322
        %1357 = vmatpush.msra.mxu0 %v1320
        %1358 = vmatpush.msra.mxu0 %v1318
        %1359 = vmatpush.msra.mxu0 %v1316
        %1360 = vmatpush.msra.mxu0 %v1314
        %1361 = vmatpush.msra.mxu0 %v1312
        %1362 = vmatpush.msra.mxu0 %v1310
        %1363 = vmatpush.msra.mxu0 %v1308
        %1364 = vmatpush.msra.mxu0 %v1306
        %1365 = vmatpush.msra.mxu0 %v1304
        %1366 = vmatpush.msra.mxu0 %v1302
        %1367 = vmatpush.msra.mxu0 %v1300
        %1368 = vmatpush.msra.mxu0 %v1298
        %1369 = vmatpush.msra.mxu0 %v1296
        %1370 = vmatpush.msra.mxu0 %v1294
        %1371 = vmatpush.msra.mxu0 %v1292
        %1372 = vmatmul.f32.gmra.mxu0 %v513
        %v1373 = vpop.f32.mrf.mxu0
        %v1374 = vadd.f32 0.0, %v1373
        %1375 = vmatmul.f32.gmra.mxu0 %v515
        %v1376 = vpop.f32.mrf.mxu0
        %v1377 = vadd.f32 0.0, %v1376
        %1378 = vdwg.mxu0
        %1379 = vmatpush.msra.mxu0 %v1354
        %1380 = vmatpush.msra.mxu0 %v1352
        %1381 = vmatpush.msra.mxu0 %v1350
        %1382 = vmatpush.msra.mxu0 %v1348
        %1383 = vmatpush.msra.mxu0 %v1346
        %1384 = vmatpush.msra.mxu0 %v1344
        %1385 = vmatpush.msra.mxu0 %v1342
        %1386 = vmatpush.msra.mxu0 %v1340
        %1387 = vmatpush.msra.mxu0 %v1338
        %1388 = vmatpush.msra.mxu0 %v1336
        %1389 = vmatpush.msra.mxu0 %v1334
        %1390 = vmatpush.msra.mxu0 %v1332
        %1391 = vmatpush.msra.mxu0 %v1330
        %1392 = vmatpush.msra.mxu0 %v1328
        %1393 = vmatpush.msra.mxu0 %v1326
        %1394 = vmatpush.msra.mxu0 %v1324
        %1395 = vmatmul.f32.gmra.mxu0 %v514
        %v1396 = vpop.f32.mrf.mxu0
        %v1397 = vadd.f32 %v1374, %v1396
        %1398 = vmatmul.f32.gmra.mxu0 %v516
        %v1399 = vpop.f32.mrf.mxu0
        %v1400 = vadd.f32 %v1377, %v1399
        %1401 = vdwg.mxu0
        %1402 = vmatpush.msra.mxu0 %v1323
        %1403 = vmatpush.msra.mxu0 %v1321
        %1404 = vmatpush.msra.mxu0 %v1319
        %1405 = vmatpush.msra.mxu0 %v1317
        %1406 = vmatpush.msra.mxu0 %v1315
        %1407 = vmatpush.msra.mxu0 %v1313
        %1408 = vmatpush.msra.mxu0 %v1311
        %1409 = vmatpush.msra.mxu0 %v1309
        %1410 = vmatpush.msra.mxu0 %v1307
        %1411 = vmatpush.msra.mxu0 %v1305
        %1412 = vmatpush.msra.mxu0 %v1303
        %1413 = vmatpush.msra.mxu0 %v1301
        %1414 = vmatpush.msra.mxu0 %v1299
        %1415 = vmatpush.msra.mxu0 %v1297
        %1416 = vmatpush.msra.mxu0 %v1295
        %1417 = vmatpush.msra.mxu0 %v1293
        %1418 = vmatmul.f32.gmra.mxu0 %v513
        %v1419 = vpop.f32.mrf.mxu0
        %v1420 = vadd.f32 0.0, %v1419
        %1421 = vmatmul.f32.gmra.mxu0 %v515
        %v1422 = vpop.f32.mrf.mxu0
        %v1423 = vadd.f32 0.0, %v1422
        %1424 = vdwg.mxu0
        %1425 = vmatpush.msra.mxu0 %v1355
        %1426 = vmatpush.msra.mxu0 %v1353
        %1427 = vmatpush.msra.mxu0 %v1351
        %1428 = vmatpush.msra.mxu0 %v1349
        %1429 = vmatpush.msra.mxu0 %v1347
        %1430 = vmatpush.msra.mxu0 %v1345
        %1431 = vmatpush.msra.mxu0 %v1343
        %1432 = vmatpush.msra.mxu0 %v1341
        %1433 = vmatpush.msra.mxu0 %v1339
        %1434 = vmatpush.msra.mxu0 %v1337
        %1435 = vmatpush.msra.mxu0 %v1335
        %1436 = vmatpush.msra.mxu0 %v1333
        %1437 = vmatpush.msra.mxu0 %v1331
        %1438 = vmatpush.msra.mxu0 %v1329
        %1439 = vmatpush.msra.mxu0 %v1327
        %1440 = vmatpush.msra.mxu0 %v1325
        %1441 = vmatmul.f32.gmra.mxu0 %v514
        %v1442 = vpop.f32.mrf.mxu0
        %v1443 = vadd.f32 %v1420, %v1442
        %1444 = vmatmul.f32.gmra.mxu0 %v516
        %v1445 = vpop.f32.mrf.mxu0
        %v1446 = vadd.f32 %v1423, %v1445
        %1447 = vdwg.mxu0
        %v1448 = vand.u32 2147483647, %v1397
        %v1449 = vand.u32 2147483647, %v1443
        %v1450 = vand.u32 2147483647, %v1400
        %v1451 = vand.u32 2147483647, %v1446
        %v1452 = vadd.f32 %v1448, %v1449
        %1453 = vadd.xlane.f32.xlu0 %v1452
        %v1454 = vpop.xlane.xlu0 %1453
        %v1455 = vsel %vm680, %v1450, 0.0
        %v1456 = vsel %vm680, %v1451, 0.0
        %v1457 = vadd.f32 %v1455, %v1456
        %1458 = vadd.xlane.f32.xlu0 %v1457
        %v1459 = vpop.xlane.xlu0 %1458
        %v1460 = vmul.f32 %v1397, %v1397
        %v1461 = vmul.f32 %v1443, %v1443
        %v1462 = vmul.f32 %v1400, %v1400
        %v1463 = vmul.f32 %v1446, %v1446
        %v1464 = vadd.f32 %v1460, %v1461
        %1465 = vadd.xlane.f32.xlu0 %v1464
        %v1466 = vpop.xlane.xlu0 %1465
        %v1467 = vsel %vm680, %v1462, 0.0
        %v1468 = vsel %vm680, %v1463, 0.0
        %v1469 = vadd.f32 %v1467, %v1468
        %1470 = vadd.xlane.f32.xlu0 %v1469
        %v1471 = vpop.xlane.xlu0 %1470
        %s1472 = scalar_lea.vmem %s3, 64
        %v1473 = vld [vmem:[%s1472] sm:$0xff]
        %v1474 = vld [vmem:[%s1472 + $0x8] sm:$0x1]
        %v1475 = vmul.f32 %v1454, %v1473
        %v1476 = vmul.f32 %v1459, %v1474
        %v1477 = vadd.f32 %v1290, %v1475
        %v1478 = vadd.f32 %v1291, %v1476
        %s1479 = scalar_lea.vmem %s4, 64
        %v1480 = vld [vmem:[%s1479] sm:$0xff]
        %v1481 = vld [vmem:[%s1479 + $0x8] sm:$0x1]
        %v1482 = vmul.f32 %v1466, %v1480
        %v1483 = vmul.f32 %v1471, %v1481
        %v1484 = vadd.f32 %v1477, %v1482
        %v1485 = vadd.f32 %v1478, %v1483
        %v1486 = vld [vmem:[#allocation2 + $0x50] sm:$0xff]
        %v1487 = vld [vmem:[#allocation2 + $0x58] sm:$0xff]
        %v1488 = vld [vmem:[#allocation2 + $0xf0] sm:$0xff]
        %v1489 = vld [vmem:[#allocation2 + $0xf8] sm:$0xff]
        %v1490 = vld [vmem:[#allocation2 + $0x190] sm:$0xff]
        %v1491 = vld [vmem:[#allocation2 + $0x198] sm:$0xff]
        %v1492 = vld [vmem:[#allocation2 + $0x230] sm:$0xff]
        %v1493 = vld [vmem:[#allocation2 + $0x238] sm:$0xff]
        %v1494 = vld [vmem:[#allocation2 + $0x2d0] sm:$0xff]
        %v1495 = vld [vmem:[#allocation2 + $0x2d8] sm:$0xff]
        %v1496 = vld [vmem:[#allocation2 + $0x370] sm:$0xff]
        %v1497 = vld [vmem:[#allocation2 + $0x378] sm:$0xff]
        %v1498 = vld [vmem:[#allocation2 + $0x410] sm:$0xff]
        %v1499 = vld [vmem:[#allocation2 + $0x418] sm:$0xff]
        %v1500 = vld [vmem:[#allocation2 + $0x4b0] sm:$0xff]
        %v1501 = vld [vmem:[#allocation2 + $0x4b8] sm:$0xff]
        %v1502 = vld [vmem:[#allocation2 + $0x550] sm:$0xff]
        %v1503 = vld [vmem:[#allocation2 + $0x558] sm:$0xff]
        %v1504 = vld [vmem:[#allocation2 + $0x5f0] sm:$0xff]
        %v1505 = vld [vmem:[#allocation2 + $0x5f8] sm:$0xff]
        %v1506 = vld [vmem:[#allocation2 + $0x690] sm:$0xff]
        %v1507 = vld [vmem:[#allocation2 + $0x698] sm:$0xff]
        %v1508 = vld [vmem:[#allocation2 + $0x730] sm:$0xff]
        %v1509 = vld [vmem:[#allocation2 + $0x738] sm:$0xff]
        %v1510 = vld [vmem:[#allocation2 + $0x7d0] sm:$0xff]
        %v1511 = vld [vmem:[#allocation2 + $0x7d8] sm:$0xff]
        %v1512 = vld [vmem:[#allocation2 + $0x870] sm:$0xff]
        %v1513 = vld [vmem:[#allocation2 + $0x878] sm:$0xff]
        %v1514 = vld [vmem:[#allocation2 + $0x910] sm:$0xff]
        %v1515 = vld [vmem:[#allocation2 + $0x918] sm:$0xff]
        %v1516 = vld [vmem:[#allocation2 + $0x9b0] sm:$0xff]
        %v1517 = vld [vmem:[#allocation2 + $0x9b8] sm:$0xff]
        %v1518 = vld [vmem:[#allocation2 + $0xa50] sm:$0xff]
        %v1519 = vld [vmem:[#allocation2 + $0xa58] sm:$0xff]
        %v1520 = vld [vmem:[#allocation2 + $0xaf0] sm:$0xff]
        %v1521 = vld [vmem:[#allocation2 + $0xaf8] sm:$0xff]
        %v1522 = vld [vmem:[#allocation2 + $0xb90] sm:$0xff]
        %v1523 = vld [vmem:[#allocation2 + $0xb98] sm:$0xff]
        %v1524 = vld [vmem:[#allocation2 + $0xc30] sm:$0xff]
        %v1525 = vld [vmem:[#allocation2 + $0xc38] sm:$0xff]
        %v1526 = vld [vmem:[#allocation2 + $0xcd0] sm:$0xff]
        %v1527 = vld [vmem:[#allocation2 + $0xcd8] sm:$0xff]
        %v1528 = vld [vmem:[#allocation2 + $0xd70] sm:$0xff]
        %v1529 = vld [vmem:[#allocation2 + $0xd78] sm:$0xff]
        %v1530 = vld [vmem:[#allocation2 + $0xe10] sm:$0xff]
        %v1531 = vld [vmem:[#allocation2 + $0xe18] sm:$0xff]
        %v1532 = vld [vmem:[#allocation2 + $0xeb0] sm:$0xff]
        %v1533 = vld [vmem:[#allocation2 + $0xeb8] sm:$0xff]
        %v1534 = vld [vmem:[#allocation2 + $0xf50] sm:$0xff]
        %v1535 = vld [vmem:[#allocation2 + $0xf58] sm:$0xff]
        %v1536 = vld [vmem:[#allocation2 + $0xff0] sm:$0xff]
        %v1537 = vld [vmem:[#allocation2 + $0xff8] sm:$0xff]
        %v1538 = vld [vmem:[#allocation2 + $0x1090] sm:$0xff]
        %v1539 = vld [vmem:[#allocation2 + $0x1098] sm:$0xff]
        %v1540 = vld [vmem:[#allocation2 + $0x1130] sm:$0xff]
        %v1541 = vld [vmem:[#allocation2 + $0x1138] sm:$0xff]
        %v1542 = vld [vmem:[#allocation2 + $0x11d0] sm:$0xff]
        %v1543 = vld [vmem:[#allocation2 + $0x11d8] sm:$0xff]
        %v1544 = vld [vmem:[#allocation2 + $0x1270] sm:$0xff]
        %v1545 = vld [vmem:[#allocation2 + $0x1278] sm:$0xff]
        %v1546 = vld [vmem:[#allocation2 + $0x1310] sm:$0xff]
        %v1547 = vld [vmem:[#allocation2 + $0x1318] sm:$0xff]
        %v1548 = vld [vmem:[#allocation2 + $0x13b0] sm:$0xff]
        %v1549 = vld [vmem:[#allocation2 + $0x13b8] sm:$0xff]
        %1550 = vmatpush.msra.mxu0 %v1516
        %1551 = vmatpush.msra.mxu0 %v1514
        %1552 = vmatpush.msra.mxu0 %v1512
        %1553 = vmatpush.msra.mxu0 %v1510
        %1554 = vmatpush.msra.mxu0 %v1508
        %1555 = vmatpush.msra.mxu0 %v1506
        %1556 = vmatpush.msra.mxu0 %v1504
        %1557 = vmatpush.msra.mxu0 %v1502
        %1558 = vmatpush.msra.mxu0 %v1500
        %1559 = vmatpush.msra.mxu0 %v1498
        %1560 = vmatpush.msra.mxu0 %v1496
        %1561 = vmatpush.msra.mxu0 %v1494
        %1562 = vmatpush.msra.mxu0 %v1492
        %1563 = vmatpush.msra.mxu0 %v1490
        %1564 = vmatpush.msra.mxu0 %v1488
        %1565 = vmatpush.msra.mxu0 %v1486
        %1566 = vmatmul.f32.gmra.mxu0 %v513
        %v1567 = vpop.f32.mrf.mxu0
        %v1568 = vadd.f32 0.0, %v1567
        %1569 = vmatmul.f32.gmra.mxu0 %v515
        %v1570 = vpop.f32.mrf.mxu0
        %v1571 = vadd.f32 0.0, %v1570
        %1572 = vdwg.mxu0
        %1573 = vmatpush.msra.mxu0 %v1548
        %1574 = vmatpush.msra.mxu0 %v1546
        %1575 = vmatpush.msra.mxu0 %v1544
        %1576 = vmatpush.msra.mxu0 %v1542
        %1577 = vmatpush.msra.mxu0 %v1540
        %1578 = vmatpush.msra.mxu0 %v1538
        %1579 = vmatpush.msra.mxu0 %v1536
        %1580 = vmatpush.msra.mxu0 %v1534
        %1581 = vmatpush.msra.mxu0 %v1532
        %1582 = vmatpush.msra.mxu0 %v1530
        %1583 = vmatpush.msra.mxu0 %v1528
        %1584 = vmatpush.msra.mxu0 %v1526
        %1585 = vmatpush.msra.mxu0 %v1524
        %1586 = vmatpush.msra.mxu0 %v1522
        %1587 = vmatpush.msra.mxu0 %v1520
        %1588 = vmatpush.msra.mxu0 %v1518
        %1589 = vmatmul.f32.gmra.mxu0 %v514
        %v1590 = vpop.f32.mrf.mxu0
        %v1591 = vadd.f32 %v1568, %v1590
        %1592 = vmatmul.f32.gmra.mxu0 %v516
        %v1593 = vpop.f32.mrf.mxu0
        %v1594 = vadd.f32 %v1571, %v1593
        %1595 = vdwg.mxu0
        %1596 = vmatpush.msra.mxu0 %v1517
        %1597 = vmatpush.msra.mxu0 %v1515
        %1598 = vmatpush.msra.mxu0 %v1513
        %1599 = vmatpush.msra.mxu0 %v1511
        %1600 = vmatpush.msra.mxu0 %v1509
        %1601 = vmatpush.msra.mxu0 %v1507
        %1602 = vmatpush.msra.mxu0 %v1505
        %1603 = vmatpush.msra.mxu0 %v1503
        %1604 = vmatpush.msra.mxu0 %v1501
        %1605 = vmatpush.msra.mxu0 %v1499
        %1606 = vmatpush.msra.mxu0 %v1497
        %1607 = vmatpush.msra.mxu0 %v1495
        %1608 = vmatpush.msra.mxu0 %v1493
        %1609 = vmatpush.msra.mxu0 %v1491
        %1610 = vmatpush.msra.mxu0 %v1489
        %1611 = vmatpush.msra.mxu0 %v1487
        %1612 = vmatmul.f32.gmra.mxu0 %v513
        %v1613 = vpop.f32.mrf.mxu0
        %v1614 = vadd.f32 0.0, %v1613
        %1615 = vmatmul.f32.gmra.mxu0 %v515
        %v1616 = vpop.f32.mrf.mxu0
        %v1617 = vadd.f32 0.0, %v1616
        %1618 = vdwg.mxu0
        %1619 = vmatpush.msra.mxu0 %v1549
        %1620 = vmatpush.msra.mxu0 %v1547
        %1621 = vmatpush.msra.mxu0 %v1545
        %1622 = vmatpush.msra.mxu0 %v1543
        %1623 = vmatpush.msra.mxu0 %v1541
        %1624 = vmatpush.msra.mxu0 %v1539
        %1625 = vmatpush.msra.mxu0 %v1537
        %1626 = vmatpush.msra.mxu0 %v1535
        %1627 = vmatpush.msra.mxu0 %v1533
        %1628 = vmatpush.msra.mxu0 %v1531
        %1629 = vmatpush.msra.mxu0 %v1529
        %1630 = vmatpush.msra.mxu0 %v1527
        %1631 = vmatpush.msra.mxu0 %v1525
        %1632 = vmatpush.msra.mxu0 %v1523
        %1633 = vmatpush.msra.mxu0 %v1521
        %1634 = vmatpush.msra.mxu0 %v1519
        %1635 = vmatmul.f32.gmra.mxu0 %v514
        %v1636 = vpop.f32.mrf.mxu0
        %v1637 = vadd.f32 %v1614, %v1636
        %1638 = vmatmul.f32.gmra.mxu0 %v516
        %v1639 = vpop.f32.mrf.mxu0
        %v1640 = vadd.f32 %v1617, %v1639
        %1641 = vdwg.mxu0
        %v1642 = vand.u32 2147483647, %v1591
        %v1643 = vand.u32 2147483647, %v1637
        %v1644 = vand.u32 2147483647, %v1594
        %v1645 = vand.u32 2147483647, %v1640
        %v1646 = vadd.f32 %v1642, %v1643
        %1647 = vadd.xlane.f32.xlu0 %v1646
        %v1648 = vpop.xlane.xlu0 %1647
        %v1649 = vsel %vm680, %v1644, 0.0
        %v1650 = vsel %vm680, %v1645, 0.0
        %v1651 = vadd.f32 %v1649, %v1650
        %1652 = vadd.xlane.f32.xlu0 %v1651
        %v1653 = vpop.xlane.xlu0 %1652
        %v1654 = vmul.f32 %v1591, %v1591
        %v1655 = vmul.f32 %v1637, %v1637
        %v1656 = vmul.f32 %v1594, %v1594
        %v1657 = vmul.f32 %v1640, %v1640
        %v1658 = vadd.f32 %v1654, %v1655
        %1659 = vadd.xlane.f32.xlu0 %v1658
        %v1660 = vpop.xlane.xlu0 %1659
        %v1661 = vsel %vm680, %v1656, 0.0
        %v1662 = vsel %vm680, %v1657, 0.0
        %v1663 = vadd.f32 %v1661, %v1662
        %1664 = vadd.xlane.f32.xlu0 %v1663
        %v1665 = vpop.xlane.xlu0 %1664
        %s1666 = scalar_lea.vmem %s3, 80
        %v1667 = vld [vmem:[%s1666] sm:$0xff]
        %v1668 = vld [vmem:[%s1666 + $0x8] sm:$0x1]
        %v1669 = vmul.f32 %v1648, %v1667
        %v1670 = vmul.f32 %v1653, %v1668
        %v1671 = vadd.f32 %v1484, %v1669
        %v1672 = vadd.f32 %v1485, %v1670
        %s1673 = scalar_lea.vmem %s4, 80
        %v1674 = vld [vmem:[%s1673] sm:$0xff]
        %v1675 = vld [vmem:[%s1673 + $0x8] sm:$0x1]
        %v1676 = vmul.f32 %v1660, %v1674
        %v1677 = vmul.f32 %v1665, %v1675
        %v1678 = vadd.f32 %v1671, %v1676
        %v1679 = vadd.f32 %v1672, %v1677
        %v1680 = vld [vmem:[#allocation2 + $0x60] sm:$0xff]
        %v1681 = vld [vmem:[#allocation2 + $0x68] sm:$0xff]
        %v1682 = vld [vmem:[#allocation2 + $0x100] sm:$0xff]
        %v1683 = vld [vmem:[#allocation2 + $0x108] sm:$0xff]
        %v1684 = vld [vmem:[#allocation2 + $0x1a0] sm:$0xff]
        %v1685 = vld [vmem:[#allocation2 + $0x1a8] sm:$0xff]
        %v1686 = vld [vmem:[#allocation2 + $0x240] sm:$0xff]
        %v1687 = vld [vmem:[#allocation2 + $0x248] sm:$0xff]
        %v1688 = vld [vmem:[#allocation2 + $0x2e0] sm:$0xff]
        %v1689 = vld [vmem:[#allocation2 + $0x2e8] sm:$0xff]
        %v1690 = vld [vmem:[#allocation2 + $0x380] sm:$0xff]
        %v1691 = vld [vmem:[#allocation2 + $0x388] sm:$0xff]
        %v1692 = vld [vmem:[#allocation2 + $0x420] sm:$0xff]
        %v1693 = vld [vmem:[#allocation2 + $0x428] sm:$0xff]
        %v1694 = vld [vmem:[#allocation2 + $0x4c0] sm:$0xff]
        %v1695 = vld [vmem:[#allocation2 + $0x4c8] sm:$0xff]
        %v1696 = vld [vmem:[#allocation2 + $0x560] sm:$0xff]
        %v1697 = vld [vmem:[#allocation2 + $0x568] sm:$0xff]
        %v1698 = vld [vmem:[#allocation2 + $0x600] sm:$0xff]
        %v1699 = vld [vmem:[#allocation2 + $0x608] sm:$0xff]
        %v1700 = vld [vmem:[#allocation2 + $0x6a0] sm:$0xff]
        %v1701 = vld [vmem:[#allocation2 + $0x6a8] sm:$0xff]
        %v1702 = vld [vmem:[#allocation2 + $0x740] sm:$0xff]
        %v1703 = vld [vmem:[#allocation2 + $0x748] sm:$0xff]
        %v1704 = vld [vmem:[#allocation2 + $0x7e0] sm:$0xff]
        %v1705 = vld [vmem:[#allocation2 + $0x7e8] sm:$0xff]
        %v1706 = vld [vmem:[#allocation2 + $0x880] sm:$0xff]
        %v1707 = vld [vmem:[#allocation2 + $0x888] sm:$0xff]
        %v1708 = vld [vmem:[#allocation2 + $0x920] sm:$0xff]
        %v1709 = vld [vmem:[#allocation2 + $0x928] sm:$0xff]
        %v1710 = vld [vmem:[#allocation2 + $0x9c0] sm:$0xff]
        %v1711 = vld [vmem:[#allocation2 + $0x9c8] sm:$0xff]
        %v1712 = vld [vmem:[#allocation2 + $0xa60] sm:$0xff]
        %v1713 = vld [vmem:[#allocation2 + $0xa68] sm:$0xff]
        %v1714 = vld [vmem:[#allocation2 + $0xb00] sm:$0xff]
        %v1715 = vld [vmem:[#allocation2 + $0xb08] sm:$0xff]
        %v1716 = vld [vmem:[#allocation2 + $0xba0] sm:$0xff]
        %v1717 = vld [vmem:[#allocation2 + $0xba8] sm:$0xff]
        %v1718 = vld [vmem:[#allocation2 + $0xc40] sm:$0xff]
        %v1719 = vld [vmem:[#allocation2 + $0xc48] sm:$0xff]
        %v1720 = vld [vmem:[#allocation2 + $0xce0] sm:$0xff]
        %v1721 = vld [vmem:[#allocation2 + $0xce8] sm:$0xff]
        %v1722 = vld [vmem:[#allocation2 + $0xd80] sm:$0xff]
        %v1723 = vld [vmem:[#allocation2 + $0xd88] sm:$0xff]
        %v1724 = vld [vmem:[#allocation2 + $0xe20] sm:$0xff]
        %v1725 = vld [vmem:[#allocation2 + $0xe28] sm:$0xff]
        %v1726 = vld [vmem:[#allocation2 + $0xec0] sm:$0xff]
        %v1727 = vld [vmem:[#allocation2 + $0xec8] sm:$0xff]
        %v1728 = vld [vmem:[#allocation2 + $0xf60] sm:$0xff]
        %v1729 = vld [vmem:[#allocation2 + $0xf68] sm:$0xff]
        %v1730 = vld [vmem:[#allocation2 + $0x1000] sm:$0xff]
        %v1731 = vld [vmem:[#allocation2 + $0x1008] sm:$0xff]
        %v1732 = vld [vmem:[#allocation2 + $0x10a0] sm:$0xff]
        %v1733 = vld [vmem:[#allocation2 + $0x10a8] sm:$0xff]
        %v1734 = vld [vmem:[#allocation2 + $0x1140] sm:$0xff]
        %v1735 = vld [vmem:[#allocation2 + $0x1148] sm:$0xff]
        %v1736 = vld [vmem:[#allocation2 + $0x11e0] sm:$0xff]
        %v1737 = vld [vmem:[#allocation2 + $0x11e8] sm:$0xff]
        %v1738 = vld [vmem:[#allocation2 + $0x1280] sm:$0xff]
        %v1739 = vld [vmem:[#allocation2 + $0x1288] sm:$0xff]
        %v1740 = vld [vmem:[#allocation2 + $0x1320] sm:$0xff]
        %v1741 = vld [vmem:[#allocation2 + $0x1328] sm:$0xff]
        %v1742 = vld [vmem:[#allocation2 + $0x13c0] sm:$0xff]
        %v1743 = vld [vmem:[#allocation2 + $0x13c8] sm:$0xff]
        %1744 = vmatpush.msra.mxu0 %v1710
        %1745 = vmatpush.msra.mxu0 %v1708
        %1746 = vmatpush.msra.mxu0 %v1706
        %1747 = vmatpush.msra.mxu0 %v1704
        %1748 = vmatpush.msra.mxu0 %v1702
        %1749 = vmatpush.msra.mxu0 %v1700
        %1750 = vmatpush.msra.mxu0 %v1698
        %1751 = vmatpush.msra.mxu0 %v1696
        %1752 = vmatpush.msra.mxu0 %v1694
        %1753 = vmatpush.msra.mxu0 %v1692
        %1754 = vmatpush.msra.mxu0 %v1690
        %1755 = vmatpush.msra.mxu0 %v1688
        %1756 = vmatpush.msra.mxu0 %v1686
        %1757 = vmatpush.msra.mxu0 %v1684
        %1758 = vmatpush.msra.mxu0 %v1682
        %1759 = vmatpush.msra.mxu0 %v1680
        %1760 = vmatmul.f32.gmra.mxu0 %v513
        %v1761 = vpop.f32.mrf.mxu0
        %v1762 = vadd.f32 0.0, %v1761
        %1763 = vmatmul.f32.gmra.mxu0 %v515
        %v1764 = vpop.f32.mrf.mxu0
        %v1765 = vadd.f32 0.0, %v1764
        %1766 = vdwg.mxu0
        %1767 = vmatpush.msra.mxu0 %v1742
        %1768 = vmatpush.msra.mxu0 %v1740
        %1769 = vmatpush.msra.mxu0 %v1738
        %1770 = vmatpush.msra.mxu0 %v1736
        %1771 = vmatpush.msra.mxu0 %v1734
        %1772 = vmatpush.msra.mxu0 %v1732
        %1773 = vmatpush.msra.mxu0 %v1730
        %1774 = vmatpush.msra.mxu0 %v1728
        %1775 = vmatpush.msra.mxu0 %v1726
        %1776 = vmatpush.msra.mxu0 %v1724
        %1777 = vmatpush.msra.mxu0 %v1722
        %1778 = vmatpush.msra.mxu0 %v1720
        %1779 = vmatpush.msra.mxu0 %v1718
        %1780 = vmatpush.msra.mxu0 %v1716
        %1781 = vmatpush.msra.mxu0 %v1714
        %1782 = vmatpush.msra.mxu0 %v1712
        %1783 = vmatmul.f32.gmra.mxu0 %v514
        %v1784 = vpop.f32.mrf.mxu0
        %v1785 = vadd.f32 %v1762, %v1784
        %1786 = vmatmul.f32.gmra.mxu0 %v516
        %v1787 = vpop.f32.mrf.mxu0
        %v1788 = vadd.f32 %v1765, %v1787
        %1789 = vdwg.mxu0
        %1790 = vmatpush.msra.mxu0 %v1711
        %1791 = vmatpush.msra.mxu0 %v1709
        %1792 = vmatpush.msra.mxu0 %v1707
        %1793 = vmatpush.msra.mxu0 %v1705
        %1794 = vmatpush.msra.mxu0 %v1703
        %1795 = vmatpush.msra.mxu0 %v1701
        %1796 = vmatpush.msra.mxu0 %v1699
        %1797 = vmatpush.msra.mxu0 %v1697
        %1798 = vmatpush.msra.mxu0 %v1695
        %1799 = vmatpush.msra.mxu0 %v1693
        %1800 = vmatpush.msra.mxu0 %v1691
        %1801 = vmatpush.msra.mxu0 %v1689
        %1802 = vmatpush.msra.mxu0 %v1687
        %1803 = vmatpush.msra.mxu0 %v1685
        %1804 = vmatpush.msra.mxu0 %v1683
        %1805 = vmatpush.msra.mxu0 %v1681
        %1806 = vmatmul.f32.gmra.mxu0 %v513
        %v1807 = vpop.f32.mrf.mxu0
        %v1808 = vadd.f32 0.0, %v1807
        %1809 = vmatmul.f32.gmra.mxu0 %v515
        %v1810 = vpop.f32.mrf.mxu0
        %v1811 = vadd.f32 0.0, %v1810
        %1812 = vdwg.mxu0
        %1813 = vmatpush.msra.mxu0 %v1743
        %1814 = vmatpush.msra.mxu0 %v1741
        %1815 = vmatpush.msra.mxu0 %v1739
        %1816 = vmatpush.msra.mxu0 %v1737
        %1817 = vmatpush.msra.mxu0 %v1735
        %1818 = vmatpush.msra.mxu0 %v1733
        %1819 = vmatpush.msra.mxu0 %v1731
        %1820 = vmatpush.msra.mxu0 %v1729
        %1821 = vmatpush.msra.mxu0 %v1727
        %1822 = vmatpush.msra.mxu0 %v1725
        %1823 = vmatpush.msra.mxu0 %v1723
        %1824 = vmatpush.msra.mxu0 %v1721
        %1825 = vmatpush.msra.mxu0 %v1719
        %1826 = vmatpush.msra.mxu0 %v1717
        %1827 = vmatpush.msra.mxu0 %v1715
        %1828 = vmatpush.msra.mxu0 %v1713
        %1829 = vmatmul.f32.gmra.mxu0 %v514
        %v1830 = vpop.f32.mrf.mxu0
        %v1831 = vadd.f32 %v1808, %v1830
        %1832 = vmatmul.f32.gmra.mxu0 %v516
        %v1833 = vpop.f32.mrf.mxu0
        %v1834 = vadd.f32 %v1811, %v1833
        %1835 = vdwg.mxu0
        %v1836 = vand.u32 2147483647, %v1785
        %v1837 = vand.u32 2147483647, %v1831
        %v1838 = vand.u32 2147483647, %v1788
        %v1839 = vand.u32 2147483647, %v1834
        %v1840 = vadd.f32 %v1836, %v1837
        %1841 = vadd.xlane.f32.xlu0 %v1840
        %v1842 = vpop.xlane.xlu0 %1841
        %v1843 = vsel %vm680, %v1838, 0.0
        %v1844 = vsel %vm680, %v1839, 0.0
        %v1845 = vadd.f32 %v1843, %v1844
        %1846 = vadd.xlane.f32.xlu0 %v1845
        %v1847 = vpop.xlane.xlu0 %1846
        %v1848 = vmul.f32 %v1785, %v1785
        %v1849 = vmul.f32 %v1831, %v1831
        %v1850 = vmul.f32 %v1788, %v1788
        %v1851 = vmul.f32 %v1834, %v1834
        %v1852 = vadd.f32 %v1848, %v1849
        %1853 = vadd.xlane.f32.xlu0 %v1852
        %v1854 = vpop.xlane.xlu0 %1853
        %v1855 = vsel %vm680, %v1850, 0.0
        %v1856 = vsel %vm680, %v1851, 0.0
        %v1857 = vadd.f32 %v1855, %v1856
        %1858 = vadd.xlane.f32.xlu0 %v1857
        %v1859 = vpop.xlane.xlu0 %1858
        %s1860 = scalar_lea.vmem %s3, 96
        %v1861 = vld [vmem:[%s1860] sm:$0xff]
        %v1862 = vld [vmem:[%s1860 + $0x8] sm:$0x1]
        %v1863 = vmul.f32 %v1842, %v1861
        %v1864 = vmul.f32 %v1847, %v1862
        %v1865 = vadd.f32 %v1678, %v1863
        %v1866 = vadd.f32 %v1679, %v1864
        %s1867 = scalar_lea.vmem %s4, 96
        %v1868 = vld [vmem:[%s1867] sm:$0xff]
        %v1869 = vld [vmem:[%s1867 + $0x8] sm:$0x1]
        %v1870 = vmul.f32 %v1854, %v1868
        %v1871 = vmul.f32 %v1859, %v1869
        %v1872 = vadd.f32 %v1865, %v1870
        %v1873 = vadd.f32 %v1866, %v1871
        %v1874 = vld [vmem:[#allocation2 + $0x70] sm:$0xff]
        %v1875 = vld [vmem:[#allocation2 + $0x78] sm:$0xff]
        %v1876 = vld [vmem:[#allocation2 + $0x110] sm:$0xff]
        %v1877 = vld [vmem:[#allocation2 + $0x118] sm:$0xff]
        %v1878 = vld [vmem:[#allocation2 + $0x1b0] sm:$0xff]
        %v1879 = vld [vmem:[#allocation2 + $0x1b8] sm:$0xff]
        %v1880 = vld [vmem:[#allocation2 + $0x250] sm:$0xff]
        %v1881 = vld [vmem:[#allocation2 + $0x258] sm:$0xff]
        %v1882 = vld [vmem:[#allocation2 + $0x2f0] sm:$0xff]
        %v1883 = vld [vmem:[#allocation2 + $0x2f8] sm:$0xff]
        %v1884 = vld [vmem:[#allocation2 + $0x390] sm:$0xff]
        %v1885 = vld [vmem:[#allocation2 + $0x398] sm:$0xff]
        %v1886 = vld [vmem:[#allocation2 + $0x430] sm:$0xff]
        %v1887 = vld [vmem:[#allocation2 + $0x438] sm:$0xff]
        %v1888 = vld [vmem:[#allocation2 + $0x4d0] sm:$0xff]
        %v1889 = vld [vmem:[#allocation2 + $0x4d8] sm:$0xff]
        %v1890 = vld [vmem:[#allocation2 + $0x570] sm:$0xff]
        %v1891 = vld [vmem:[#allocation2 + $0x578] sm:$0xff]
        %v1892 = vld [vmem:[#allocation2 + $0x610] sm:$0xff]
        %v1893 = vld [vmem:[#allocation2 + $0x618] sm:$0xff]
        %v1894 = vld [vmem:[#allocation2 + $0x6b0] sm:$0xff]
        %v1895 = vld [vmem:[#allocation2 + $0x6b8] sm:$0xff]
        %v1896 = vld [vmem:[#allocation2 + $0x750] sm:$0xff]
        %v1897 = vld [vmem:[#allocation2 + $0x758] sm:$0xff]
        %v1898 = vld [vmem:[#allocation2 + $0x7f0] sm:$0xff]
        %v1899 = vld [vmem:[#allocation2 + $0x7f8] sm:$0xff]
        %v1900 = vld [vmem:[#allocation2 + $0x890] sm:$0xff]
        %v1901 = vld [vmem:[#allocation2 + $0x898] sm:$0xff]
        %v1902 = vld [vmem:[#allocation2 + $0x930] sm:$0xff]
        %v1903 = vld [vmem:[#allocation2 + $0x938] sm:$0xff]
        %v1904 = vld [vmem:[#allocation2 + $0x9d0] sm:$0xff]
        %v1905 = vld [vmem:[#allocation2 + $0x9d8] sm:$0xff]
        %v1906 = vld [vmem:[#allocation2 + $0xa70] sm:$0xff]
        %v1907 = vld [vmem:[#allocation2 + $0xa78] sm:$0xff]
        %v1908 = vld [vmem:[#allocation2 + $0xb10] sm:$0xff]
        %v1909 = vld [vmem:[#allocation2 + $0xb18] sm:$0xff]
        %v1910 = vld [vmem:[#allocation2 + $0xbb0] sm:$0xff]
        %v1911 = vld [vmem:[#allocation2 + $0xbb8] sm:$0xff]
        %v1912 = vld [vmem:[#allocation2 + $0xc50] sm:$0xff]
        %v1913 = vld [vmem:[#allocation2 + $0xc58] sm:$0xff]
        %v1914 = vld [vmem:[#allocation2 + $0xcf0] sm:$0xff]
        %v1915 = vld [vmem:[#allocation2 + $0xcf8] sm:$0xff]
        %v1916 = vld [vmem:[#allocation2 + $0xd90] sm:$0xff]
        %v1917 = vld [vmem:[#allocation2 + $0xd98] sm:$0xff]
        %v1918 = vld [vmem:[#allocation2 + $0xe30] sm:$0xff]
        %v1919 = vld [vmem:[#allocation2 + $0xe38] sm:$0xff]
        %v1920 = vld [vmem:[#allocation2 + $0xed0] sm:$0xff]
        %v1921 = vld [vmem:[#allocation2 + $0xed8] sm:$0xff]
        %v1922 = vld [vmem:[#allocation2 + $0xf70] sm:$0xff]
        %v1923 = vld [vmem:[#allocation2 + $0xf78] sm:$0xff]
        %v1924 = vld [vmem:[#allocation2 + $0x1010] sm:$0xff]
        %v1925 = vld [vmem:[#allocation2 + $0x1018] sm:$0xff]
        %v1926 = vld [vmem:[#allocation2 + $0x10b0] sm:$0xff]
        %v1927 = vld [vmem:[#allocation2 + $0x10b8] sm:$0xff]
        %v1928 = vld [vmem:[#allocation2 + $0x1150] sm:$0xff]
        %v1929 = vld [vmem:[#allocation2 + $0x1158] sm:$0xff]
        %v1930 = vld [vmem:[#allocation2 + $0x11f0] sm:$0xff]
        %v1931 = vld [vmem:[#allocation2 + $0x11f8] sm:$0xff]
        %v1932 = vld [vmem:[#allocation2 + $0x1290] sm:$0xff]
        %v1933 = vld [vmem:[#allocation2 + $0x1298] sm:$0xff]
        %v1934 = vld [vmem:[#allocation2 + $0x1330] sm:$0xff]
        %v1935 = vld [vmem:[#allocation2 + $0x1338] sm:$0xff]
        %v1936 = vld [vmem:[#allocation2 + $0x13d0] sm:$0xff]
        %v1937 = vld [vmem:[#allocation2 + $0x13d8] sm:$0xff]
        %1938 = vmatpush.msra.mxu0 %v1904
        %1939 = vmatpush.msra.mxu0 %v1902
        %1940 = vmatpush.msra.mxu0 %v1900
        %1941 = vmatpush.msra.mxu0 %v1898
        %1942 = vmatpush.msra.mxu0 %v1896
        %1943 = vmatpush.msra.mxu0 %v1894
        %1944 = vmatpush.msra.mxu0 %v1892
        %1945 = vmatpush.msra.mxu0 %v1890
        %1946 = vmatpush.msra.mxu0 %v1888
        %1947 = vmatpush.msra.mxu0 %v1886
        %1948 = vmatpush.msra.mxu0 %v1884
        %1949 = vmatpush.msra.mxu0 %v1882
        %1950 = vmatpush.msra.mxu0 %v1880
        %1951 = vmatpush.msra.mxu0 %v1878
        %1952 = vmatpush.msra.mxu0 %v1876
        %1953 = vmatpush.msra.mxu0 %v1874
        %1954 = vmatmul.f32.gmra.mxu0 %v513
        %v1955 = vpop.f32.mrf.mxu0
        %v1956 = vadd.f32 0.0, %v1955
        %1957 = vmatmul.f32.gmra.mxu0 %v515
        %v1958 = vpop.f32.mrf.mxu0
        %v1959 = vadd.f32 0.0, %v1958
        %1960 = vdwg.mxu0
        %1961 = vmatpush.msra.mxu0 %v1936
        %1962 = vmatpush.msra.mxu0 %v1934
        %1963 = vmatpush.msra.mxu0 %v1932
        %1964 = vmatpush.msra.mxu0 %v1930
        %1965 = vmatpush.msra.mxu0 %v1928
        %1966 = vmatpush.msra.mxu0 %v1926
        %1967 = vmatpush.msra.mxu0 %v1924
        %1968 = vmatpush.msra.mxu0 %v1922
        %1969 = vmatpush.msra.mxu0 %v1920
        %1970 = vmatpush.msra.mxu0 %v1918
        %1971 = vmatpush.msra.mxu0 %v1916
        %1972 = vmatpush.msra.mxu0 %v1914
        %1973 = vmatpush.msra.mxu0 %v1912
        %1974 = vmatpush.msra.mxu0 %v1910
        %1975 = vmatpush.msra.mxu0 %v1908
        %1976 = vmatpush.msra.mxu0 %v1906
        %1977 = vmatmul.f32.gmra.mxu0 %v514
        %v1978 = vpop.f32.mrf.mxu0
        %v1979 = vadd.f32 %v1956, %v1978
        %1980 = vmatmul.f32.gmra.mxu0 %v516
        %v1981 = vpop.f32.mrf.mxu0
        %v1982 = vadd.f32 %v1959, %v1981
        %1983 = vdwg.mxu0
        %1984 = vmatpush.msra.mxu0 %v1905
        %1985 = vmatpush.msra.mxu0 %v1903
        %1986 = vmatpush.msra.mxu0 %v1901
        %1987 = vmatpush.msra.mxu0 %v1899
        %1988 = vmatpush.msra.mxu0 %v1897
        %1989 = vmatpush.msra.mxu0 %v1895
        %1990 = vmatpush.msra.mxu0 %v1893
        %1991 = vmatpush.msra.mxu0 %v1891
        %1992 = vmatpush.msra.mxu0 %v1889
        %1993 = vmatpush.msra.mxu0 %v1887
        %1994 = vmatpush.msra.mxu0 %v1885
        %1995 = vmatpush.msra.mxu0 %v1883
        %1996 = vmatpush.msra.mxu0 %v1881
        %1997 = vmatpush.msra.mxu0 %v1879
        %1998 = vmatpush.msra.mxu0 %v1877
        %1999 = vmatpush.msra.mxu0 %v1875
        %2000 = vmatmul.f32.gmra.mxu0 %v513
        %v2001 = vpop.f32.mrf.mxu0
        %v2002 = vadd.f32 0.0, %v2001
        %2003 = vmatmul.f32.gmra.mxu0 %v515
        %v2004 = vpop.f32.mrf.mxu0
        %v2005 = vadd.f32 0.0, %v2004
        %2006 = vdwg.mxu0
        %2007 = vmatpush.msra.mxu0 %v1937
        %2008 = vmatpush.msra.mxu0 %v1935
        %2009 = vmatpush.msra.mxu0 %v1933
        %2010 = vmatpush.msra.mxu0 %v1931
        %2011 = vmatpush.msra.mxu0 %v1929
        %2012 = vmatpush.msra.mxu0 %v1927
        %2013 = vmatpush.msra.mxu0 %v1925
        %2014 = vmatpush.msra.mxu0 %v1923
        %2015 = vmatpush.msra.mxu0 %v1921
        %2016 = vmatpush.msra.mxu0 %v1919
        %2017 = vmatpush.msra.mxu0 %v1917
        %2018 = vmatpush.msra.mxu0 %v1915
        %2019 = vmatpush.msra.mxu0 %v1913
        %2020 = vmatpush.msra.mxu0 %v1911
        %2021 = vmatpush.msra.mxu0 %v1909
        %2022 = vmatpush.msra.mxu0 %v1907
        %2023 = vmatmul.f32.gmra.mxu0 %v514
        %v2024 = vpop.f32.mrf.mxu0
        %v2025 = vadd.f32 %v2002, %v2024
        %2026 = vmatmul.f32.gmra.mxu0 %v516
        %v2027 = vpop.f32.mrf.mxu0
        %v2028 = vadd.f32 %v2005, %v2027
        %2029 = vdwg.mxu0
        %v2030 = vand.u32 2147483647, %v1979
        %v2031 = vand.u32 2147483647, %v2025
        %v2032 = vand.u32 2147483647, %v1982
        %v2033 = vand.u32 2147483647, %v2028
        %v2034 = vadd.f32 %v2030, %v2031
        %2035 = vadd.xlane.f32.xlu0 %v2034
        %v2036 = vpop.xlane.xlu0 %2035
        %v2037 = vsel %vm680, %v2032, 0.0
        %v2038 = vsel %vm680, %v2033, 0.0
        %v2039 = vadd.f32 %v2037, %v2038
        %2040 = vadd.xlane.f32.xlu0 %v2039
        %v2041 = vpop.xlane.xlu0 %2040
        %v2042 = vmul.f32 %v1979, %v1979
        %v2043 = vmul.f32 %v2025, %v2025
        %v2044 = vmul.f32 %v1982, %v1982
        %v2045 = vmul.f32 %v2028, %v2028
        %v2046 = vadd.f32 %v2042, %v2043
        %2047 = vadd.xlane.f32.xlu0 %v2046
        %v2048 = vpop.xlane.xlu0 %2047
        %v2049 = vsel %vm680, %v2044, 0.0
        %v2050 = vsel %vm680, %v2045, 0.0
        %v2051 = vadd.f32 %v2049, %v2050
        %2052 = vadd.xlane.f32.xlu0 %v2051
        %v2053 = vpop.xlane.xlu0 %2052
        %s2054 = scalar_lea.vmem %s3, 112
        %v2055 = vld [vmem:[%s2054] sm:$0xff]
        %v2056 = vld [vmem:[%s2054 + $0x8] sm:$0x1]
        %v2057 = vmul.f32 %v2036, %v2055
        %v2058 = vmul.f32 %v2041, %v2056
        %v2059 = vadd.f32 %v1872, %v2057
        %v2060 = vadd.f32 %v1873, %v2058
        %s2061 = scalar_lea.vmem %s4, 112
        %v2062 = vld [vmem:[%s2061] sm:$0xff]
        %v2063 = vld [vmem:[%s2061 + $0x8] sm:$0x1]
        %v2064 = vmul.f32 %v2048, %v2062
        %v2065 = vmul.f32 %v2053, %v2063
        %v2066 = vadd.f32 %v2059, %v2064
        %v2067 = vadd.f32 %v2060, %v2065
        %v2068 = vld [vmem:[#allocation2 + $0x80] sm:$0xff]
        %v2069 = vld [vmem:[#allocation2 + $0x88] sm:$0xff]
        %v2070 = vld [vmem:[#allocation2 + $0x120] sm:$0xff]
        %v2071 = vld [vmem:[#allocation2 + $0x128] sm:$0xff]
        %v2072 = vld [vmem:[#allocation2 + $0x1c0] sm:$0xff]
        %v2073 = vld [vmem:[#allocation2 + $0x1c8] sm:$0xff]
        %v2074 = vld [vmem:[#allocation2 + $0x260] sm:$0xff]
        %v2075 = vld [vmem:[#allocation2 + $0x268] sm:$0xff]
        %v2076 = vld [vmem:[#allocation2 + $0x300] sm:$0xff]
        %v2077 = vld [vmem:[#allocation2 + $0x308] sm:$0xff]
        %v2078 = vld [vmem:[#allocation2 + $0x3a0] sm:$0xff]
        %v2079 = vld [vmem:[#allocation2 + $0x3a8] sm:$0xff]
        %v2080 = vld [vmem:[#allocation2 + $0x440] sm:$0xff]
        %v2081 = vld [vmem:[#allocation2 + $0x448] sm:$0xff]
        %v2082 = vld [vmem:[#allocation2 + $0x4e0] sm:$0xff]
        %v2083 = vld [vmem:[#allocation2 + $0x4e8] sm:$0xff]
        %v2084 = vld [vmem:[#allocation2 + $0x580] sm:$0xff]
        %v2085 = vld [vmem:[#allocation2 + $0x588] sm:$0xff]
        %v2086 = vld [vmem:[#allocation2 + $0x620] sm:$0xff]
        %v2087 = vld [vmem:[#allocation2 + $0x628] sm:$0xff]
        %v2088 = vld [vmem:[#allocation2 + $0x6c0] sm:$0xff]
        %v2089 = vld [vmem:[#allocation2 + $0x6c8] sm:$0xff]
        %v2090 = vld [vmem:[#allocation2 + $0x760] sm:$0xff]
        %v2091 = vld [vmem:[#allocation2 + $0x768] sm:$0xff]
        %v2092 = vld [vmem:[#allocation2 + $0x800] sm:$0xff]
        %v2093 = vld [vmem:[#allocation2 + $0x808] sm:$0xff]
        %v2094 = vld [vmem:[#allocation2 + $0x8a0] sm:$0xff]
        %v2095 = vld [vmem:[#allocation2 + $0x8a8] sm:$0xff]
        %v2096 = vld [vmem:[#allocation2 + $0x940] sm:$0xff]
        %v2097 = vld [vmem:[#allocation2 + $0x948] sm:$0xff]
        %v2098 = vld [vmem:[#allocation2 + $0x9e0] sm:$0xff]
        %v2099 = vld [vmem:[#allocation2 + $0x9e8] sm:$0xff]
        %v2100 = vld [vmem:[#allocation2 + $0xa80] sm:$0xff]
        %v2101 = vld [vmem:[#allocation2 + $0xa88] sm:$0xff]
        %v2102 = vld [vmem:[#allocation2 + $0xb20] sm:$0xff]
        %v2103 = vld [vmem:[#allocation2 + $0xb28] sm:$0xff]
        %v2104 = vld [vmem:[#allocation2 + $0xbc0] sm:$0xff]
        %v2105 = vld [vmem:[#allocation2 + $0xbc8] sm:$0xff]
        %v2106 = vld [vmem:[#allocation2 + $0xc60] sm:$0xff]
        %v2107 = vld [vmem:[#allocation2 + $0xc68] sm:$0xff]
        %v2108 = vld [vmem:[#allocation2 + $0xd00] sm:$0xff]
        %v2109 = vld [vmem:[#allocation2 + $0xd08] sm:$0xff]
        %v2110 = vld [vmem:[#allocation2 + $0xda0] sm:$0xff]
        %v2111 = vld [vmem:[#allocation2 + $0xda8] sm:$0xff]
        %v2112 = vld [vmem:[#allocation2 + $0xe40] sm:$0xff]
        %v2113 = vld [vmem:[#allocation2 + $0xe48] sm:$0xff]
        %v2114 = vld [vmem:[#allocation2 + $0xee0] sm:$0xff]
        %v2115 = vld [vmem:[#allocation2 + $0xee8] sm:$0xff]
        %v2116 = vld [vmem:[#allocation2 + $0xf80] sm:$0xff]
        %v2117 = vld [vmem:[#allocation2 + $0xf88] sm:$0xff]
        %v2118 = vld [vmem:[#allocation2 + $0x1020] sm:$0xff]
        %v2119 = vld [vmem:[#allocation2 + $0x1028] sm:$0xff]
        %v2120 = vld [vmem:[#allocation2 + $0x10c0] sm:$0xff]
        %v2121 = vld [vmem:[#allocation2 + $0x10c8] sm:$0xff]
        %v2122 = vld [vmem:[#allocation2 + $0x1160] sm:$0xff]
        %v2123 = vld [vmem:[#allocation2 + $0x1168] sm:$0xff]
        %v2124 = vld [vmem:[#allocation2 + $0x1200] sm:$0xff]
        %v2125 = vld [vmem:[#allocation2 + $0x1208] sm:$0xff]
        %v2126 = vld [vmem:[#allocation2 + $0x12a0] sm:$0xff]
        %v2127 = vld [vmem:[#allocation2 + $0x12a8] sm:$0xff]
        %v2128 = vld [vmem:[#allocation2 + $0x1340] sm:$0xff]
        %v2129 = vld [vmem:[#allocation2 + $0x1348] sm:$0xff]
        %v2130 = vld [vmem:[#allocation2 + $0x13e0] sm:$0xff]
        %v2131 = vld [vmem:[#allocation2 + $0x13e8] sm:$0xff]
        %2132 = vmatpush.msra.mxu0 %v2098
        %2133 = vmatpush.msra.mxu0 %v2096
        %2134 = vmatpush.msra.mxu0 %v2094
        %2135 = vmatpush.msra.mxu0 %v2092
        %2136 = vmatpush.msra.mxu0 %v2090
        %2137 = vmatpush.msra.mxu0 %v2088
        %2138 = vmatpush.msra.mxu0 %v2086
        %2139 = vmatpush.msra.mxu0 %v2084
        %2140 = vmatpush.msra.mxu0 %v2082
        %2141 = vmatpush.msra.mxu0 %v2080
        %2142 = vmatpush.msra.mxu0 %v2078
        %2143 = vmatpush.msra.mxu0 %v2076
        %2144 = vmatpush.msra.mxu0 %v2074
        %2145 = vmatpush.msra.mxu0 %v2072
        %2146 = vmatpush.msra.mxu0 %v2070
        %2147 = vmatpush.msra.mxu0 %v2068
        %2148 = vmatmul.f32.gmra.mxu0 %v513
        %v2149 = vpop.f32.mrf.mxu0
        %v2150 = vadd.f32 0.0, %v2149
        %2151 = vmatmul.f32.gmra.mxu0 %v515
        %v2152 = vpop.f32.mrf.mxu0
        %v2153 = vadd.f32 0.0, %v2152
        %2154 = vdwg.mxu0
        %2155 = vmatpush.msra.mxu0 %v2130
        %2156 = vmatpush.msra.mxu0 %v2128
        %2157 = vmatpush.msra.mxu0 %v2126
        %2158 = vmatpush.msra.mxu0 %v2124
        %2159 = vmatpush.msra.mxu0 %v2122
        %2160 = vmatpush.msra.mxu0 %v2120
        %2161 = vmatpush.msra.mxu0 %v2118
        %2162 = vmatpush.msra.mxu0 %v2116
        %2163 = vmatpush.msra.mxu0 %v2114
        %2164 = vmatpush.msra.mxu0 %v2112
        %2165 = vmatpush.msra.mxu0 %v2110
        %2166 = vmatpush.msra.mxu0 %v2108
        %2167 = vmatpush.msra.mxu0 %v2106
        %2168 = vmatpush.msra.mxu0 %v2104
        %2169 = vmatpush.msra.mxu0 %v2102
        %2170 = vmatpush.msra.mxu0 %v2100
        %2171 = vmatmul.f32.gmra.mxu0 %v514
        %v2172 = vpop.f32.mrf.mxu0
        %v2173 = vadd.f32 %v2150, %v2172
        %2174 = vmatmul.f32.gmra.mxu0 %v516
        %v2175 = vpop.f32.mrf.mxu0
        %v2176 = vadd.f32 %v2153, %v2175
        %2177 = vdwg.mxu0
        %2178 = vmatpush.msra.mxu0 %v2099
        %2179 = vmatpush.msra.mxu0 %v2097
        %2180 = vmatpush.msra.mxu0 %v2095
        %2181 = vmatpush.msra.mxu0 %v2093
        %2182 = vmatpush.msra.mxu0 %v2091
        %2183 = vmatpush.msra.mxu0 %v2089
        %2184 = vmatpush.msra.mxu0 %v2087
        %2185 = vmatpush.msra.mxu0 %v2085
        %2186 = vmatpush.msra.mxu0 %v2083
        %2187 = vmatpush.msra.mxu0 %v2081
        %2188 = vmatpush.msra.mxu0 %v2079
        %2189 = vmatpush.msra.mxu0 %v2077
        %2190 = vmatpush.msra.mxu0 %v2075
        %2191 = vmatpush.msra.mxu0 %v2073
        %2192 = vmatpush.msra.mxu0 %v2071
        %2193 = vmatpush.msra.mxu0 %v2069
        %2194 = vmatmul.f32.gmra.mxu0 %v513
        %v2195 = vpop.f32.mrf.mxu0
        %v2196 = vadd.f32 0.0, %v2195
        %2197 = vmatmul.f32.gmra.mxu0 %v515
        %v2198 = vpop.f32.mrf.mxu0
        %v2199 = vadd.f32 0.0, %v2198
        %2200 = vdwg.mxu0
        %2201 = vmatpush.msra.mxu0 %v2131
        %2202 = vmatpush.msra.mxu0 %v2129
        %2203 = vmatpush.msra.mxu0 %v2127
        %2204 = vmatpush.msra.mxu0 %v2125
        %2205 = vmatpush.msra.mxu0 %v2123
        %2206 = vmatpush.msra.mxu0 %v2121
        %2207 = vmatpush.msra.mxu0 %v2119
        %2208 = vmatpush.msra.mxu0 %v2117
        %2209 = vmatpush.msra.mxu0 %v2115
        %2210 = vmatpush.msra.mxu0 %v2113
        %2211 = vmatpush.msra.mxu0 %v2111
        %2212 = vmatpush.msra.mxu0 %v2109
        %2213 = vmatpush.msra.mxu0 %v2107
        %2214 = vmatpush.msra.mxu0 %v2105
        %2215 = vmatpush.msra.mxu0 %v2103
        %2216 = vmatpush.msra.mxu0 %v2101
        %2217 = vmatmul.f32.gmra.mxu0 %v514
        %v2218 = vpop.f32.mrf.mxu0
        %v2219 = vadd.f32 %v2196, %v2218
        %2220 = vmatmul.f32.gmra.mxu0 %v516
        %v2221 = vpop.f32.mrf.mxu0
        %v2222 = vadd.f32 %v2199, %v2221
        %2223 = vdwg.mxu0
        %v2224 = vand.u32 2147483647, %v2173
        %v2225 = vand.u32 2147483647, %v2219
        %v2226 = vand.u32 2147483647, %v2176
        %v2227 = vand.u32 2147483647, %v2222
        %v2228 = vadd.f32 %v2224, %v2225
        %2229 = vadd.xlane.f32.xlu0 %v2228
        %v2230 = vpop.xlane.xlu0 %2229
        %v2231 = vsel %vm680, %v2226, 0.0
        %v2232 = vsel %vm680, %v2227, 0.0
        %v2233 = vadd.f32 %v2231, %v2232
        %2234 = vadd.xlane.f32.xlu0 %v2233
        %v2235 = vpop.xlane.xlu0 %2234
        %v2236 = vmul.f32 %v2173, %v2173
        %v2237 = vmul.f32 %v2219, %v2219
        %v2238 = vmul.f32 %v2176, %v2176
        %v2239 = vmul.f32 %v2222, %v2222
        %v2240 = vadd.f32 %v2236, %v2237
        %2241 = vadd.xlane.f32.xlu0 %v2240
        %v2242 = vpop.xlane.xlu0 %2241
        %v2243 = vsel %vm680, %v2238, 0.0
        %v2244 = vsel %vm680, %v2239, 0.0
        %v2245 = vadd.f32 %v2243, %v2244
        %2246 = vadd.xlane.f32.xlu0 %v2245
        %v2247 = vpop.xlane.xlu0 %2246
        %s2248 = scalar_lea.vmem %s3, 128
        %v2249 = vld [vmem:[%s2248] sm:$0xff]
        %v2250 = vld [vmem:[%s2248 + $0x8] sm:$0x1]
        %v2251 = vmul.f32 %v2230, %v2249
        %v2252 = vmul.f32 %v2235, %v2250
        %v2253 = vadd.f32 %v2066, %v2251
        %v2254 = vadd.f32 %v2067, %v2252
        %s2255 = scalar_lea.vmem %s4, 128
        %v2256 = vld [vmem:[%s2255] sm:$0xff]
        %v2257 = vld [vmem:[%s2255 + $0x8] sm:$0x1]
        %v2258 = vmul.f32 %v2242, %v2256
        %v2259 = vmul.f32 %v2247, %v2257
        %v2260 = vadd.f32 %v2253, %v2258
        %v2261 = vadd.f32 %v2254, %v2259
        %v2262 = vld [vmem:[#allocation2 + $0x90] sm:$0xff]
        %v2263 = vld [vmem:[#allocation2 + $0x98] sm:$0xff]
        %v2264 = vld [vmem:[#allocation2 + $0x130] sm:$0xff]
        %v2265 = vld [vmem:[#allocation2 + $0x138] sm:$0xff]
        %v2266 = vld [vmem:[#allocation2 + $0x1d0] sm:$0xff]
        %v2267 = vld [vmem:[#allocation2 + $0x1d8] sm:$0xff]
        %v2268 = vld [vmem:[#allocation2 + $0x270] sm:$0xff]
        %v2269 = vld [vmem:[#allocation2 + $0x278] sm:$0xff]
        %v2270 = vld [vmem:[#allocation2 + $0x310] sm:$0xff]
        %v2271 = vld [vmem:[#allocation2 + $0x318] sm:$0xff]
        %v2272 = vld [vmem:[#allocation2 + $0x3b0] sm:$0xff]
        %v2273 = vld [vmem:[#allocation2 + $0x3b8] sm:$0xff]
        %v2274 = vld [vmem:[#allocation2 + $0x450] sm:$0xff]
        %v2275 = vld [vmem:[#allocation2 + $0x458] sm:$0xff]
        %v2276 = vld [vmem:[#allocation2 + $0x4f0] sm:$0xff]
        %v2277 = vld [vmem:[#allocation2 + $0x4f8] sm:$0xff]
        %v2278 = vld [vmem:[#allocation2 + $0x590] sm:$0xff]
        %v2279 = vld [vmem:[#allocation2 + $0x598] sm:$0xff]
        %v2280 = vld [vmem:[#allocation2 + $0x630] sm:$0xff]
        %v2281 = vld [vmem:[#allocation2 + $0x638] sm:$0xff]
        %v2282 = vld [vmem:[#allocation2 + $0x6d0] sm:$0xff]
        %v2283 = vld [vmem:[#allocation2 + $0x6d8] sm:$0xff]
        %v2284 = vld [vmem:[#allocation2 + $0x770] sm:$0xff]
        %v2285 = vld [vmem:[#allocation2 + $0x778] sm:$0xff]
        %v2286 = vld [vmem:[#allocation2 + $0x810] sm:$0xff]
        %v2287 = vld [vmem:[#allocation2 + $0x818] sm:$0xff]
        %v2288 = vld [vmem:[#allocation2 + $0x8b0] sm:$0xff]
        %v2289 = vld [vmem:[#allocation2 + $0x8b8] sm:$0xff]
        %v2290 = vld [vmem:[#allocation2 + $0x950] sm:$0xff]
        %v2291 = vld [vmem:[#allocation2 + $0x958] sm:$0xff]
        %v2292 = vld [vmem:[#allocation2 + $0x9f0] sm:$0xff]
        %v2293 = vld [vmem:[#allocation2 + $0x9f8] sm:$0xff]
        %v2294 = vld [vmem:[#allocation2 + $0xa90] sm:$0xff]
        %v2295 = vld [vmem:[#allocation2 + $0xa98] sm:$0xff]
        %v2296 = vld [vmem:[#allocation2 + $0xb30] sm:$0xff]
        %v2297 = vld [vmem:[#allocation2 + $0xb38] sm:$0xff]
        %v2298 = vld [vmem:[#allocation2 + $0xbd0] sm:$0xff]
        %v2299 = vld [vmem:[#allocation2 + $0xbd8] sm:$0xff]
        %v2300 = vld [vmem:[#allocation2 + $0xc70] sm:$0xff]
        %v2301 = vld [vmem:[#allocation2 + $0xc78] sm:$0xff]
        %v2302 = vld [vmem:[#allocation2 + $0xd10] sm:$0xff]
        %v2303 = vld [vmem:[#allocation2 + $0xd18] sm:$0xff]
        %v2304 = vld [vmem:[#allocation2 + $0xdb0] sm:$0xff]
        %v2305 = vld [vmem:[#allocation2 + $0xdb8] sm:$0xff]
        %v2306 = vld [vmem:[#allocation2 + $0xe50] sm:$0xff]
        %v2307 = vld [vmem:[#allocation2 + $0xe58] sm:$0xff]
        %v2308 = vld [vmem:[#allocation2 + $0xef0] sm:$0xff]
        %v2309 = vld [vmem:[#allocation2 + $0xef8] sm:$0xff]
        %v2310 = vld [vmem:[#allocation2 + $0xf90] sm:$0xff]
        %v2311 = vld [vmem:[#allocation2 + $0xf98] sm:$0xff]
        %v2312 = vld [vmem:[#allocation2 + $0x1030] sm:$0xff]
        %v2313 = vld [vmem:[#allocation2 + $0x1038] sm:$0xff]
        %v2314 = vld [vmem:[#allocation2 + $0x10d0] sm:$0xff]
        %v2315 = vld [vmem:[#allocation2 + $0x10d8] sm:$0xff]
        %v2316 = vld [vmem:[#allocation2 + $0x1170] sm:$0xff]
        %v2317 = vld [vmem:[#allocation2 + $0x1178] sm:$0xff]
        %v2318 = vld [vmem:[#allocation2 + $0x1210] sm:$0xff]
        %v2319 = vld [vmem:[#allocation2 + $0x1218] sm:$0xff]
        %v2320 = vld [vmem:[#allocation2 + $0x12b0] sm:$0xff]
        %v2321 = vld [vmem:[#allocation2 + $0x12b8] sm:$0xff]
        %v2322 = vld [vmem:[#allocation2 + $0x1350] sm:$0xff]
        %v2323 = vld [vmem:[#allocation2 + $0x1358] sm:$0xff]
        %v2324 = vld [vmem:[#allocation2 + $0x13f0] sm:$0xff]
        %v2325 = vld [vmem:[#allocation2 + $0x13f8] sm:$0xff]
        %2326 = vmatpush.msra.mxu0 %v2292
        %2327 = vmatpush.msra.mxu0 %v2290
        %2328 = vmatpush.msra.mxu0 %v2288
        %2329 = vmatpush.msra.mxu0 %v2286
        %2330 = vmatpush.msra.mxu0 %v2284
        %2331 = vmatpush.msra.mxu0 %v2282
        %2332 = vmatpush.msra.mxu0 %v2280
        %2333 = vmatpush.msra.mxu0 %v2278
        %2334 = vmatpush.msra.mxu0 %v2276
        %2335 = vmatpush.msra.mxu0 %v2274
        %2336 = vmatpush.msra.mxu0 %v2272
        %2337 = vmatpush.msra.mxu0 %v2270
        %2338 = vmatpush.msra.mxu0 %v2268
        %2339 = vmatpush.msra.mxu0 %v2266
        %2340 = vmatpush.msra.mxu0 %v2264
        %2341 = vmatpush.msra.mxu0 %v2262
        %2342 = vmatmul.f32.gmra.mxu0 %v513
        %v2343 = vpop.f32.mrf.mxu0
        %v2344 = vadd.f32 0.0, %v2343
        %2345 = vmatmul.f32.gmra.mxu0 %v515
        %v2346 = vpop.f32.mrf.mxu0
        %v2347 = vadd.f32 0.0, %v2346
        %2348 = vdwg.mxu0
        %2349 = vmatpush.msra.mxu0 %v2324
        %2350 = vmatpush.msra.mxu0 %v2322
        %2351 = vmatpush.msra.mxu0 %v2320
        %2352 = vmatpush.msra.mxu0 %v2318
        %2353 = vmatpush.msra.mxu0 %v2316
        %2354 = vmatpush.msra.mxu0 %v2314
        %2355 = vmatpush.msra.mxu0 %v2312
        %2356 = vmatpush.msra.mxu0 %v2310
        %2357 = vmatpush.msra.mxu0 %v2308
        %2358 = vmatpush.msra.mxu0 %v2306
        %2359 = vmatpush.msra.mxu0 %v2304
        %2360 = vmatpush.msra.mxu0 %v2302
        %2361 = vmatpush.msra.mxu0 %v2300
        %2362 = vmatpush.msra.mxu0 %v2298
        %2363 = vmatpush.msra.mxu0 %v2296
        %2364 = vmatpush.msra.mxu0 %v2294
        %2365 = vmatmul.f32.gmra.mxu0 %v514
        %v2366 = vpop.f32.mrf.mxu0
        %v2367 = vadd.f32 %v2344, %v2366
        %2368 = vmatmul.f32.gmra.mxu0 %v516
        %v2369 = vpop.f32.mrf.mxu0
        %v2370 = vadd.f32 %v2347, %v2369
        %2371 = vdwg.mxu0
        %2372 = vmatpush.msra.mxu0 %v2293
        %2373 = vmatpush.msra.mxu0 %v2291
        %2374 = vmatpush.msra.mxu0 %v2289
        %2375 = vmatpush.msra.mxu0 %v2287
        %2376 = vmatpush.msra.mxu0 %v2285
        %2377 = vmatpush.msra.mxu0 %v2283
        %2378 = vmatpush.msra.mxu0 %v2281
        %2379 = vmatpush.msra.mxu0 %v2279
        %2380 = vmatpush.msra.mxu0 %v2277
        %2381 = vmatpush.msra.mxu0 %v2275
        %2382 = vmatpush.msra.mxu0 %v2273
        %2383 = vmatpush.msra.mxu0 %v2271
        %2384 = vmatpush.msra.mxu0 %v2269
        %2385 = vmatpush.msra.mxu0 %v2267
        %2386 = vmatpush.msra.mxu0 %v2265
        %2387 = vmatpush.msra.mxu0 %v2263
        %2388 = vmatmul.f32.gmra.mxu0 %v513
        %v2389 = vpop.f32.mrf.mxu0
        %v2390 = vadd.f32 0.0, %v2389
        %2391 = vmatmul.f32.gmra.mxu0 %v515
        %v2392 = vpop.f32.mrf.mxu0
        %v2393 = vadd.f32 0.0, %v2392
        %2394 = vdwg.mxu0
        %2395 = vmatpush.msra.mxu0 %v2325
        %2396 = vmatpush.msra.mxu0 %v2323
        %2397 = vmatpush.msra.mxu0 %v2321
        %2398 = vmatpush.msra.mxu0 %v2319
        %2399 = vmatpush.msra.mxu0 %v2317
        %2400 = vmatpush.msra.mxu0 %v2315
        %2401 = vmatpush.msra.mxu0 %v2313
        %2402 = vmatpush.msra.mxu0 %v2311
        %2403 = vmatpush.msra.mxu0 %v2309
        %2404 = vmatpush.msra.mxu0 %v2307
        %2405 = vmatpush.msra.mxu0 %v2305
        %2406 = vmatpush.msra.mxu0 %v2303
        %2407 = vmatpush.msra.mxu0 %v2301
        %2408 = vmatpush.msra.mxu0 %v2299
        %2409 = vmatpush.msra.mxu0 %v2297
        %2410 = vmatpush.msra.mxu0 %v2295
        %2411 = vmatmul.f32.gmra.mxu0 %v514
        %v2412 = vpop.f32.mrf.mxu0
        %v2413 = vadd.f32 %v2390, %v2412
        %2414 = vmatmul.f32.gmra.mxu0 %v516
        %v2415 = vpop.f32.mrf.mxu0
        %v2416 = vadd.f32 %v2393, %v2415
        %2417 = vdwg.mxu0
        %v2418 = vand.u32 2147483647, %v2367
        %v2419 = vand.u32 2147483647, %v2413
        %v2420 = vand.u32 2147483647, %v2370
        %v2421 = vand.u32 2147483647, %v2416
        %v2422 = vadd.f32 %v2418, %v2419
        %2423 = vadd.xlane.f32.xlu0 %v2422
        %v2424 = vpop.xlane.xlu0 %2423
        %v2425 = vsel %vm680, %v2420, 0.0
        %v2426 = vsel %vm680, %v2421, 0.0
        %v2427 = vadd.f32 %v2425, %v2426
        %2428 = vadd.xlane.f32.xlu0 %v2427
        %v2429 = vpop.xlane.xlu0 %2428
        %v2430 = vmul.f32 %v2367, %v2367
        %v2431 = vmul.f32 %v2413, %v2413
        %v2432 = vmul.f32 %v2370, %v2370
        %v2433 = vmul.f32 %v2416, %v2416
        %v2434 = vadd.f32 %v2430, %v2431
        %2435 = vadd.xlane.f32.xlu0 %v2434
        %v2436 = vpop.xlane.xlu0 %2435
        %v2437 = vsel %vm680, %v2432, 0.0
        %v2438 = vsel %vm680, %v2433, 0.0
        %v2439 = vadd.f32 %v2437, %v2438
        %2440 = vadd.xlane.f32.xlu0 %v2439
        %v2441 = vpop.xlane.xlu0 %2440
        %s2442 = scalar_lea.vmem %s3, 144
        %v2443 = vld [vmem:[%s2442] sm:$0xff]
        %v2444 = vld [vmem:[%s2442 + $0x8] sm:$0x1]
        %v2445 = vmul.f32 %v2424, %v2443
        %v2446 = vmul.f32 %v2429, %v2444
        %v2447 = vadd.f32 %v2260, %v2445
        %v2448 = vadd.f32 %v2261, %v2446
        %s2449 = scalar_lea.vmem %s4, 144
        %v2450 = vld [vmem:[%s2449] sm:$0xff]
        %v2451 = vld [vmem:[%s2449 + $0x8] sm:$0x1]
        %v2452 = vmul.f32 %v2436, %v2450
        %v2453 = vmul.f32 %v2441, %v2451
        %v2454 = vadd.f32 %v2447, %v2452
        %v2455 = vadd.f32 %v2448, %v2453
        %vm2456 = vcmask 818176
        %v2457 = vsel %vm2456, %v2454, 0.0
        %vm2458 = vcmask 811008
        %v2459 = vsel %vm2458, %v2455, 0.0
        %v2460 = vadd.f32 %v2457, %v2459
        %v2461 = vrot.slane %v2460, 4
        %v2462 = vadd.f32 %v2460, %v2461
        %v2463 = vrot.slane %v2462, 2
        %v2464 = vadd.f32 %v2462, %v2463
        %v2465 = vrot.slane %v2464, 1
        %v2466 = vadd.f32 %v2464, %v2465
        %v2467 = vld [vmem:[#allocation5] sm:$0x1]
        %v2468 = vadd.f32 %v2466, %v2467
        %v2469 = vmax.f32 %v2468, 0.0
        %v2470 = vld [vmem:[%s6] sm:$0xff]
        %v2471 = vld [vmem:[%s6 + $0x8] sm:$0xff]
        %v2472 = vld [vmem:[%s6 + $0x10] sm:$0xff]
        %v2473 = vld [vmem:[%s6 + $0x18] sm:$0xff]
        %v2474 = vld [vmem:[%s6 + $0x20] sm:$0xff]
        %v2475 = vld [vmem:[%s6 + $0x28] sm:$0xff]
        %v2476 = vld [vmem:[%s6 + $0x30] sm:$0xff]
        %v2477 = vld [vmem:[%s6 + $0x38] sm:$0xff]
        %v2478 = vld [vmem:[%s6 + $0x40] sm:$0xff]
        %v2479 = vld [vmem:[%s6 + $0x48] sm:$0xff]
        %v2480 = vld [vmem:[%s6 + $0x50] sm:$0xff]
        %v2481 = vld [vmem:[%s6 + $0x58] sm:$0xff]
        %v2482 = vld [vmem:[%s6 + $0x60] sm:$0xf]
        %v2483 = vld [vmem:[#allocation7] sm:$0x1]
        %v2485 = vsel %vm2456, %v2469, 0
        %vm2487 = vcmask 1043456
        %v2489 = vsel %vm2487, %v2482, 0
        %2491 = vmatpush.msra.mxu0 0.0
        %2492 = vmatpush.msra.mxu0 0.0
        %2493 = vmatpush.msra.mxu0 0.0
        %2494 = vmatpush.msra.mxu0 %v2489
        %2495 = vmatpush.msra.mxu0 %v2481
        %2496 = vmatpush.msra.mxu0 %v2480
        %2497 = vmatpush.msra.mxu0 %v2479
        %2498 = vmatpush.msra.mxu0 %v2478
        %2499 = vmatpush.msra.mxu0 %v2477
        %2500 = vmatpush.msra.mxu0 %v2476
        %2501 = vmatpush.msra.mxu0 %v2475
        %2502 = vmatpush.msra.mxu0 %v2474
        %2503 = vmatpush.msra.mxu0 %v2473
        %2504 = vmatpush.msra.mxu0 %v2472
        %2505 = vmatpush.msra.mxu0 %v2471
        %2506 = vmatpush.msra.mxu0 %v2470
        %2507 = vmatmul.f32.gmra.mxu0 %v2485
        %v2508 = vpop.f32.mrf.mxu0
        %v2509 = vadd.f32 %v2483, %v2508
        %2510 = vdwg.mxu0
        %v2511 = vmax.f32 %v2509, 0.0
        %v2512 = vld [vmem:[%s8] sm:$0xff]
        %v2513 = vld [vmem:[%s8 + $0x8] sm:$0xff]
        %v2514 = vld [vmem:[%s8 + $0x10] sm:$0xff]
        %v2515 = vld [vmem:[%s8 + $0x18] sm:$0xff]
        %v2516 = vld [vmem:[%s8 + $0x20] sm:$0xff]
        %v2517 = vld [vmem:[%s8 + $0x28] sm:$0xff]
        %v2518 = vld [vmem:[%s8 + $0x30] sm:$0xff]
        %v2519 = vld [vmem:[%s8 + $0x38] sm:$0xff]
        %v2520 = vld [vmem:[%s8 + $0x40] sm:$0xff]
        %v2521 = vld [vmem:[%s8 + $0x48] sm:$0xff]
        %v2522 = vld [vmem:[#allocation8] sm:$0x1]
        %vm2523 = vcmask 654336
        %v2525 = vsel %vm2523, %v2511, 0
        %2527 = vmatpush.msra.mxu0 0.0
        %2528 = vmatpush.msra.mxu0 0.0
        %2529 = vmatpush.msra.mxu0 0.0
        %2530 = vmatpush.msra.mxu0 0.0
        %2531 = vmatpush.msra.mxu0 0.0
        %2532 = vmatpush.msra.mxu0 0.0
        %2533 = vmatpush.msra.mxu0 %v2521
        %2534 = vmatpush.msra.mxu0 %v2520
        %2535 = vmatpush.msra.mxu0 %v2519
        %2536 = vmatpush.msra.mxu0 %v2518
        %2537 = vmatpush.msra.mxu0 %v2517
        %2538 = vmatpush.msra.mxu0 %v2516
        %2539 = vmatpush.msra.mxu0 %v2515
        %2540 = vmatpush.msra.mxu0 %v2514
        %2541 = vmatpush.msra.mxu0 %v2513
        %2542 = vmatpush.msra.mxu0 %v2512
        %2543 = vmatmul.f32.gmra.mxu0 %v2525
        %v2544 = vpop.f32.mrf.mxu0
        %v2545 = vadd.f32 %v2522, %v2544
        %2546 = vdwg.mxu0
        %v2547 = vmax.f32 %v2545, 0.0
        %v2548 = vld [vmem:[%s10] sm:$0xff]
        %v2549 = vld [vmem:[%s10 + $0x8] sm:$0xff]
        %v2550 = vld [vmem:[%s10 + $0x10] sm:$0xff]
        %v2551 = vld [vmem:[%s10 + $0x18] sm:$0xff]
        %v2552 = vld [vmem:[%s10 + $0x20] sm:$0xff]
        %v2553 = vld [vmem:[%s10 + $0x28] sm:$0xff]
        %v2554 = vld [vmem:[%s10 + $0x30] sm:$0xff]
        %v2555 = vld [vmem:[%s10 + $0x38] sm:$0xf]
        %v2556 = vld [vmem:[#allocation10] sm:$0x1]
        %vm2557 = vcmask 490496
        %v2559 = vsel %vm2557, %v2547, 0
        %v2562 = vsel %vm2487, %v2555, 0
        %2564 = vmatpush.msra.mxu0 0.0
        %2565 = vmatpush.msra.mxu0 0.0
        %2566 = vmatpush.msra.mxu0 0.0
        %2567 = vmatpush.msra.mxu0 0.0
        %2568 = vmatpush.msra.mxu0 0.0
        %2569 = vmatpush.msra.mxu0 0.0
        %2570 = vmatpush.msra.mxu0 0.0
        %2571 = vmatpush.msra.mxu0 0.0
        %2572 = vmatpush.msra.mxu0 %v2562
        %2573 = vmatpush.msra.mxu0 %v2554
        %2574 = vmatpush.msra.mxu0 %v2553
        %2575 = vmatpush.msra.mxu0 %v2552
        %2576 = vmatpush.msra.mxu0 %v2551
        %2577 = vmatpush.msra.mxu0 %v2550
        %2578 = vmatpush.msra.mxu0 %v2549
        %2579 = vmatpush.msra.mxu0 %v2548
        %2580 = vmatmul.f32.gmra.mxu0 %v2559
        %v2581 = vpop.f32.mrf.mxu0
        %v2582 = vadd.f32 %v2556, %v2581
        %2583 = vdwg.mxu0
        %vm2584 = vcmask 16384
        %2585 = vst.msk [vmem:[%s493] sm:$0x1] %vm2584, %v2582
        %s2586 = sand.u32 %s299, 1
        %s2587 = scalar_lea.sflag [#allocation4], %s2586
        %s2588 = sand.u32 %s299, 1
        %s2589 = scalar_lea.vmem [#allocation11], %s2588
        // Predicated region
        $region89: #{forward.7} parent=67 // pred_check
          %p2590 = pneg %p309
        $region90: #{forward.7} parent=67 // pred_check_branch
          %2592 = sbr.rel (%p2590) target = $region92
        $region91: #{forward.7} parent=67 // pred_region
          %2594 = vsyncadd %s2587, 0
          %s2595 = scalar_lea.hbm %s12, %s29
          %s2597 = sshll.u32 %s2589, 4
          %s2598 = int_to_ptr.vmem [resolvable:$true] %s2597
          %s2599 = sshll.u32 %s2595, 4
          %s2600 = int_to_ptr.hbm [resolvable:$true] %s2599
          %2602 = dma.vmem_to_hbm [thread:$0]  %s2598, 16, %s2600, %s2587
        $region92: #{forward.7} parent=67 // pred_fallthru
          _
      $region68: #{forward.7} parent=5 // pred_fallthru
        _
      %p2603 = scmp.le.s32.totalorder 2, %s24
      // Predicated region
      $region93: #{forward.7} parent=5 // pred_check
        %p2604 = pneg %p2603
      $region94: #{forward.7} parent=5 // pred_check_branch
        %2606 = sbr.rel (%p2604) target = $region96
      $region95: #{forward.7} parent=5 // pred_region
        %s2607 = ssub.s32 %s24, 2
        // Predicated region
        $region97: #{forward.7} parent=95 // pred_check
          %p2608 = pneg %p315
        $region98: #{forward.7} parent=95 // pred_check_branch
          %2610 = sbr.rel (%p2608) target = $region100
        $region99: #{forward.7} parent=95 // pred_region
          %s2611 = sand.u32 %s300, 1
          %s2612 = scalar_lea.sflag [#allocation4], %s2611
          %s2613 = sand.u32 %s300, 1
          %s2614 = scalar_lea.vmem [#allocation11], %s2613
          %2616 = dma.done %s2612, 16
        $region100: #{forward.7} parent=95 // pred_fallthru
          _
      $region96: #{forward.7} parent=5 // pred_fallthru
        _
    $region6: #{forward.7} parent=1 // loop_footer
      %s28 = sadd.s32 1, %s24
    $region7: #{forward.7} parent=1 // loop_footer_branch
      %23 = sbr.rel target = $region3
    $region8: #{forward.7} parent=1 // loop_exit
      _
    %2617 = vsyncpa [#allocation3], 1
    %s2618 = scalar_lea.sflag [#allocation3], 1
    %2619 = vsyncpa %s2618, 1
    %2620 = vsyncpa [#allocation6], 1
    %2621 = vsyncpa [#allocation9], 1
    %2622 = vsyncpa [#allocation4], 1
    %s2623 = scalar_lea.sflag [#allocation4], 1
    %2624 = vsyncpa %s2623, 1

</llo_original>
